<compile_context>
chip_gen: v7x
topology: tpu7x:2x2x1
jax: 0.10.0
libtpu: 0.0.40
codegen_flags: <defaults>
</compile_context>

<pallas_src>
import math

import jax
import jax.numpy as jnp
from jax import lax
from jax.experimental import pallas as pl
from jax.experimental.pallas import tpu as pltpu

# Lane-grid geometry (see comments above each use).
_L1 = 892    # conv1 lanes computed on the 32-stride grid (valid out lane max = 27*32+27 = 891)
_L1P = 859   # pool-1 window-max lanes (anchor lane max = 64*13 + 2*13 = 858)
_A2 = 224    # conv2 input lanes: 14x14 pooled map on a 16-stride grid
_L2 = 154    # conv2 lanes computed (valid out lane max = 16*9 + 9 = 153)
_L3 = 137    # pool-2 window-max lanes (anchor lane max = 32*4 + 2*4 = 136)


# ----------------------------------------------------------------------------
# Fused Pallas kernel: one grid step == one image
# ----------------------------------------------------------------------------
def _toy_fused_kernel(x_ref, w1_ref, b1_ref, s1_ref, w2_ref, b2_ref, w1e_ref,
                      fc1b_ref, fc2w_ref, fc2b_ref, fc3w_ref, fc3b_ref, o_ref):
    f32, bf16 = jnp.float32, jnp.bfloat16
    x = x_ref[0]                                   # (3, 1024) f32, lane = 32*i + j

    # ---- conv1 (3->6, 5x5, VALID): 25 lane-shifted matmuls, f32 accumulation ----
    y1 = jnp.zeros((6, _L1), f32)
    for di in range(5):
        for dj in range(5):
            s = 32 * di + dj
            y1 += jnp.dot(w1_ref[5 * di + dj],                   # (6, 3) bf16
                          x[:, s:s + _L1].astype(bf16),          # (3, _L1) bf16
                          preferred_element_type=f32)
    y1 = jnp.maximum(y1 + b1_ref[...], 0.0)                      # bias (6,1) + ReLU

    # ---- 2x2/2 max-pool #1: window max via 4 lane shifts, then stride-2
    #      downsample (28x28 -> 14x14, re-gridded to stride 16) via a 0/1 matmul ----
    m1 = jnp.maximum(jnp.maximum(y1[:, 0:_L1P], y1[:, 1:_L1P + 1]),
                     jnp.maximum(y1[:, 32:_L1P + 32], y1[:, 33:_L1P + 33]))
    a2 = jnp.dot(m1.astype(bf16), s1_ref[...], preferred_element_type=f32)  # (6, 224)

    # ---- conv2 (6->16, 5x5, VALID) on the 16-stride lane grid ----
    y2 = jnp.zeros((16, _L2), f32)
    for di in range(5):
        for dj in range(5):
            s = 16 * di + dj
            y2 += jnp.dot(w2_ref[5 * di + dj],                   # (16, 6) bf16
                          a2[:, s:s + _L2].astype(bf16),         # (6, _L2) bf16
                          preferred_element_type=f32)
    y2 = jnp.maximum(y2 + b2_ref[...], 0.0)

    # ---- 2x2/2 max-pool #2: window max only; the stride-2 downsample and the
    #      torch (C,H,W)-order flatten are folded into the fc1 weight (w1e) ----
    m2 = jnp.maximum(jnp.maximum(y2[:, 0:_L3], y2[:, 1:_L3 + 1]),
                     jnp.maximum(y2[:, 16:_L3 + 16], y2[:, 17:_L3 + 17]))

    # ---- fc1 (400->120): sum over the 16 channels of (1,_L3)@(_L3,120) ----
    h = jnp.zeros((1, 120), f32)
    for c in range(16):
        h += jnp.dot(m2[c:c + 1, :].astype(bf16), w1e_ref[c],
                     preferred_element_type=f32)
    h = jnp.maximum(h + fc1b_ref[...], 0.0)

    # ---- fc2 (120->84) + ReLU ----
    h = jnp.dot(h.astype(bf16), fc2w_ref[...], preferred_element_type=f32) + fc2b_ref[...]
    h = jnp.maximum(h, 0.0)

    # ---- fc3 (84->10, padded to 128 lanes so the HBM store is lane-dense) ----
    o = jnp.dot(h.astype(bf16), fc3w_ref[...], preferred_element_type=f32) + fc3b_ref[...]
    o_ref[0] = o                                                 # (1, 128)


# ----------------------------------------------------------------------------
# Parameter re-layout (pure XLA, tiny, traced once under jit)
# ----------------------------------------------------------------------------
def prepare_params(params):
    bf16, f32 = jnp.bfloat16, jnp.float32

    # Conv taps: one (Cout, Cin) matrix per (di, dj); weights are HWIO.
    w1t = jnp.transpose(params["w1"], (0, 1, 3, 2)).reshape(25, 6, 3).astype(bf16)
    w2t = jnp.transpose(params["w2"], (0, 1, 3, 2)).reshape(25, 16, 6).astype(bf16)
    b1 = params["b1"].reshape(6, 1).astype(f32)
    b2 = params["b2"].reshape(16, 1).astype(f32)

    # Pool-1 stride-2 downsample as a selection matmul:
    #   source lane 64*pi + 2*pj (32-stride conv1 grid) -> dest lane 16*pi + pj.
    pi, pj = jnp.meshgrid(jnp.arange(14), jnp.arange(14), indexing="ij")
    src = (64 * pi + 2 * pj).reshape(-1)
    dst = (16 * pi + pj).reshape(-1)
    s1 = jnp.zeros((_L1P, _A2), f32).at[src, dst].set(1.0).astype(bf16)

    # fc1 weight with pool-2 downsample + torch NCHW flatten folded in:
    #   w1e[c, 32*pi + 2*pj, :] = fc1_w[c*25 + 5*pi + pj, :]; other rows are zero,
    #   so garbage lanes of the window-max never contribute.
    qi, qj = jnp.meshgrid(jnp.arange(5), jnp.arange(5), indexing="ij")
    anchors = (32 * qi + 2 * qj).reshape(-1)
    w1e = (jnp.zeros((16, _L3, 120), f32)
           .at[:, anchors, :]
           .set(params["fc1_w"].reshape(16, 25, 120))
           .astype(bf16))

    fc3w = jnp.pad(params["fc3_w"], ((0, 0), (0, 128 - 10))).astype(bf16)
    fc3b = jnp.pad(params["fc3_b"], (0, 128 - 10)).reshape(1, 128).astype(f32)

    return dict(
        w1t=w1t, b1=b1, s1=s1, w2t=w2t, b2=b2, w1e=w1e,
        fc1b=params["fc1_b"].reshape(1, 120).astype(f32),
        fc2w=params["fc2_w"].astype(bf16),
        fc2b=params["fc2_b"].reshape(1, 84).astype(f32),
        fc3w=fc3w, fc3b=fc3b,
    )


# ----------------------------------------------------------------------------
# Forward pass (single fused pallas_call, grid over batch)
# ----------------------------------------------------------------------------
def toy_forward(x_nchw, params):
    assert x_nchw.shape[1:] == (3, 32, 32), x_nchw.shape
    B = x_nchw.shape[0]
    p = prepare_params(params)
    x = x_nchw.reshape(B, 3, 32 * 32)   # NCHW kept as-is; spatial flattened into lanes.

    out = pl.pallas_call(
        _toy_fused_kernel,
        out_shape=jax.ShapeDtypeStruct((B, 1, 128), jnp.float32),
        grid=(B,),
        in_specs=[
            pl.BlockSpec((1, 3, 1024), lambda b: (b, 0, 0)),     # per-image input
            pl.BlockSpec((25, 6, 3), lambda b: (0, 0, 0)),       # conv1 taps (resident)
            pl.BlockSpec((6, 1), lambda b: (0, 0)),              # conv1 bias
            pl.BlockSpec((_L1P, _A2), lambda b: (0, 0)),         # pool-1 selection
            pl.BlockSpec((25, 16, 6), lambda b: (0, 0, 0)),      # conv2 taps
            pl.BlockSpec((16, 1), lambda b: (0, 0)),             # conv2 bias
            pl.BlockSpec((16, _L3, 120), lambda b: (0, 0, 0)),   # fc1 (pool2+flatten folded)
            pl.BlockSpec((1, 120), lambda b: (0, 0)),            # fc1 bias
            pl.BlockSpec((120, 84), lambda b: (0, 0)),           # fc2 weight
            pl.BlockSpec((1, 84), lambda b: (0, 0)),             # fc2 bias
            pl.BlockSpec((84, 128), lambda b: (0, 0)),           # fc3 weight (padded)
            pl.BlockSpec((1, 128), lambda b: (0, 0)),            # fc3 bias (padded)
        ],
        out_specs=pl.BlockSpec((1, 1, 128), lambda b: (b, 0, 0)),
        compiler_params=pltpu.CompilerParams(
            dimension_semantics=("parallel",),
        ),
    )(x, p["w1t"], p["b1"], p["s1"], p["w2t"], p["b2"], p["w1e"],
      p["fc1b"], p["fc2w"], p["fc2b"], p["fc3w"], p["fc3b"])

    return out.reshape(B, 128)[:, :10]


# ----------------------------------------------------------------------------
# Pure-JAX (non-Pallas) reference for verification
# ----------------------------------------------------------------------------
def toy_reference(x_nchw, params):
    B = x_nchw.shape[0]
    x = jnp.transpose(x_nchw, (0, 2, 3, 1))
    dn = ("NHWC", "HWIO", "NHWC")

    y = lax.conv_general_dilated(x, params["w1"], (1, 1), "VALID", dimension_numbers=dn)
    y = jnp.maximum(y + params["b1"], 0.0)
    y = lax.reduce_window(y, -jnp.inf, lax.max, (1, 2, 2, 1), (1, 2, 2, 1), "VALID")

    y = lax.conv_general_dilated(y, params["w2"], (1, 1), "VALID", dimension_numbers=dn)
    y = jnp.maximum(y + params["b2"], 0.0)
    y = lax.reduce_window(y, -jnp.inf, lax.max, (1, 2, 2, 1), (1, 2, 2, 1), "VALID")

    flat = jnp.transpose(y, (0, 3, 1, 2)).reshape(B, -1)   # torch.flatten (NCHW order)
    h = jnp.maximum(flat @ params["fc1_w"] + params["fc1_b"], 0.0)
    h = jnp.maximum(h @ params["fc2_w"] + params["fc2_b"], 0.0)
    return h @ params["fc3_w"] + params["fc3_b"]


# ----------------------------------------------------------------------------
# Deterministic parameter init (PyTorch-style U(-1/sqrt(fan_in), 1/sqrt(fan_in)))
# ----------------------------------------------------------------------------
def init_params(key):
    keys = jax.random.split(key, 10)

    def u(k, shape, fan_in):
        bound = 1.0 / math.sqrt(fan_in)
        return jax.random.uniform(k, shape, jnp.float32, -bound, bound)

    return {
        "w1": u(keys[0], (5, 5, 3, 6), 3 * 5 * 5),     # HWIO
        "b1": u(keys[1], (6,), 3 * 5 * 5),
        "w2": u(keys[2], (5, 5, 6, 16), 6 * 5 * 5),    # HWIO
        "b2": u(keys[3], (16,), 6 * 5 * 5),
        "fc1_w": u(keys[4], (400, 120), 400),
        "fc1_b": u(keys[5], (120,), 400),
        "fc2_w": u(keys[6], (120, 84), 120),
        "fc2_b": u(keys[7], (84,), 120),
        "fc3_w": u(keys[8], (84, 10), 84),
        "fc3_b": u(keys[9], (10,), 84),
    }


if __name__ == "__main__":
    key = jax.random.PRNGKey(0)
    pkey, xkey = jax.random.split(key)
    params = init_params(pkey)

    # Toy (LeNet) needs 32x32 spatial input so the flatten is 16*5*5 = 400.
    x = jax.random.normal(xkey, (2, 3, 32, 32), dtype=jnp.float32)

    fwd = jax.jit(toy_forward)
    out = jax.block_until_ready(fwd(x, params))
    assert out.shape == (2, 10), out.shape

    ref = jax.block_until_ready(toy_reference(x, params))
    max_err = float(jnp.max(jnp.abs(out - ref)))
    assert max_err < 2e-2, f"mismatch vs reference: {max_err}"

    print("KERNEL_OK")
</pallas_src>

<mosaic_0001>
module attributes {stable_mosaic.version = 11 : i64} {
  func.func @_toy_fused_kernel(%arg0: i32, %arg1: memref<1x3x1024xf32, #tpu.memory_space<vmem>>, %arg2: memref<25x6x3xbf16, #tpu.memory_space<vmem>>, %arg3: memref<6x1xf32, #tpu.memory_space<vmem>>, %arg4: memref<859x224xbf16, #tpu.memory_space<vmem>>, %arg5: memref<25x16x6xbf16, #tpu.memory_space<vmem>>, %arg6: memref<16x1xf32, #tpu.memory_space<vmem>>, %arg7: memref<16x137x120xbf16, #tpu.memory_space<vmem>>, %arg8: memref<1x120xf32, #tpu.memory_space<vmem>>, %arg9: memref<120x84xbf16, #tpu.memory_space<vmem>>, %arg10: memref<1x84xf32, #tpu.memory_space<vmem>>, %arg11: memref<84x128xbf16, #tpu.memory_space<vmem>>, %arg12: memref<1x128xf32, #tpu.memory_space<vmem>>, %arg13: memref<1x1x128xf32, #tpu.memory_space<vmem>>) attributes {dimension_semantics = [#tpu.dimension_semantics<parallel>], iteration_bounds = array<i64: 2>, scalar_prefetch = 0 : i64, scratch_operands = 0 : i64, tpu.core_type = #tpu.core_type<tc>, window_params = [{transform_indices = @transform_0, window_bounds = array<i64: 1, 3, 1024>}, {pipeline_mode = #tpu.pipeline_mode<synchronous>, transform_indices = @transform_1, window_bounds = array<i64: 25, 6, 3>}, {pipeline_mode = #tpu.pipeline_mode<synchronous>, transform_indices = @transform_2, window_bounds = array<i64: 6, 1>}, {pipeline_mode = #tpu.pipeline_mode<synchronous>, transform_indices = @transform_3, window_bounds = array<i64: 859, 224>}, {pipeline_mode = #tpu.pipeline_mode<synchronous>, transform_indices = @transform_4, window_bounds = array<i64: 25, 16, 6>}, {pipeline_mode = #tpu.pipeline_mode<synchronous>, transform_indices = @transform_5, window_bounds = array<i64: 16, 1>}, {pipeline_mode = #tpu.pipeline_mode<synchronous>, transform_indices = @transform_6, window_bounds = array<i64: 16, 137, 120>}, {pipeline_mode = #tpu.pipeline_mode<synchronous>, transform_indices = @transform_7, window_bounds = array<i64: 1, 120>}, {pipeline_mode = #tpu.pipeline_mode<synchronous>, transform_indices = @transform_8, window_bounds = array<i64: 120, 84>}, {pipeline_mode = #tpu.pipeline_mode<synchronous>, transform_indices = @transform_9, window_bounds = array<i64: 1, 84>}, {pipeline_mode = #tpu.pipeline_mode<synchronous>, transform_indices = @transform_10, window_bounds = array<i64: 84, 128>}, {pipeline_mode = #tpu.pipeline_mode<synchronous>, transform_indices = @transform_11, window_bounds = array<i64: 1, 128>}, {transform_indices = @transform_12, window_bounds = array<i64: 1, 1, 128>}]} {
    %c0 = arith.constant 0 : index
    %c0_0 = arith.constant 0 : index
    %c0_1 = arith.constant 0 : index
    %0 = vector.load %arg1[%c0, %c0_0, %c0_1] : memref<1x3x1024xf32, #tpu.memory_space<vmem>>, vector<1x3x1024xf32>
    %1 = vector.shape_cast %0 : vector<1x3x1024xf32> to vector<3x1024xf32>
    %cst = arith.constant 0.000000e+00 : f32
    %2 = vector.broadcast %cst : f32 to vector<6x892xf32>
    %c0_2 = arith.constant 0 : index
    %c0_3 = arith.constant 0 : index
    %c0_4 = arith.constant 0 : index
    %3 = vector.load %arg2[%c0_2, %c0_3, %c0_4] : memref<25x6x3xbf16, #tpu.memory_space<vmem>>, vector<1x6x3xbf16>
    %4 = vector.shape_cast %3 : vector<1x6x3xbf16> to vector<6x3xbf16>
    %5 = vector.extract_strided_slice %1 {offsets = [0, 0], sizes = [3, 892], strides = [1, 1]} : vector<3x1024xf32> to vector<3x892xf32>
    %6 = arith.truncf %5 : vector<3x892xf32> to vector<3x892xbf16>
    %cst_5 = arith.constant dense<0.000000e+00> : vector<6x892xf32>
    %7 = tpu.matmul %4, %6, %cst_5 {dimension_numbers = #tpu.dot_dimension_numbers<[1], [0], [0], [1], [0, 0, 1, 1], [], []>} : vector<6x3xbf16>, vector<3x892xbf16>, vector<6x892xf32> -> vector<6x892xf32>
    %8 = arith.addf %2, %7 : vector<6x892xf32>
    %c1 = arith.constant 1 : index
    %c0_6 = arith.constant 0 : index
    %c0_7 = arith.constant 0 : index
    %9 = vector.load %arg2[%c1, %c0_6, %c0_7] : memref<25x6x3xbf16, #tpu.memory_space<vmem>>, vector<1x6x3xbf16>
    %10 = vector.shape_cast %9 : vector<1x6x3xbf16> to vector<6x3xbf16>
    %11 = vector.extract_strided_slice %1 {offsets = [0, 1], sizes = [3, 892], strides = [1, 1]} : vector<3x1024xf32> to vector<3x892xf32>
    %12 = arith.truncf %11 : vector<3x892xf32> to vector<3x892xbf16>
    %cst_8 = arith.constant dense<0.000000e+00> : vector<6x892xf32>
    %13 = tpu.matmul %10, %12, %cst_8 {dimension_numbers = #tpu.dot_dimension_numbers<[1], [0], [0], [1], [0, 0, 1, 1], [], []>} : vector<6x3xbf16>, vector<3x892xbf16>, vector<6x892xf32> -> vector<6x892xf32>
    %14 = arith.addf %8, %13 : vector<6x892xf32>
    %c2 = arith.constant 2 : index
    %c0_9 = arith.constant 0 : index
    %c0_10 = arith.constant 0 : index
    %15 = vector.load %arg2[%c2, %c0_9, %c0_10] : memref<25x6x3xbf16, #tpu.memory_space<vmem>>, vector<1x6x3xbf16>
    %16 = vector.shape_cast %15 : vector<1x6x3xbf16> to vector<6x3xbf16>
    %17 = vector.extract_strided_slice %1 {offsets = [0, 2], sizes = [3, 892], strides = [1, 1]} : vector<3x1024xf32> to vector<3x892xf32>
    %18 = arith.truncf %17 : vector<3x892xf32> to vector<3x892xbf16>
    %cst_11 = arith.constant dense<0.000000e+00> : vector<6x892xf32>
    %19 = tpu.matmul %16, %18, %cst_11 {dimension_numbers = #tpu.dot_dimension_numbers<[1], [0], [0], [1], [0, 0, 1, 1], [], []>} : vector<6x3xbf16>, vector<3x892xbf16>, vector<6x892xf32> -> vector<6x892xf32>
    %20 = arith.addf %14, %19 : vector<6x892xf32>
    %c3 = arith.constant 3 : index
    %c0_12 = arith.constant 0 : index
    %c0_13 = arith.constant 0 : index
    %21 = vector.load %arg2[%c3, %c0_12, %c0_13] : memref<25x6x3xbf16, #tpu.memory_space<vmem>>, vector<1x6x3xbf16>
    %22 = vector.shape_cast %21 : vector<1x6x3xbf16> to vector<6x3xbf16>
    %23 = vector.extract_strided_slice %1 {offsets = [0, 3], sizes = [3, 892], strides = [1, 1]} : vector<3x1024xf32> to vector<3x892xf32>
    %24 = arith.truncf %23 : vector<3x892xf32> to vector<3x892xbf16>
    %cst_14 = arith.constant dense<0.000000e+00> : vector<6x892xf32>
    %25 = tpu.matmul %22, %24, %cst_14 {dimension_numbers = #tpu.dot_dimension_numbers<[1], [0], [0], [1], [0, 0, 1, 1], [], []>} : vector<6x3xbf16>, vector<3x892xbf16>, vector<6x892xf32> -> vector<6x892xf32>
    %26 = arith.addf %20, %25 : vector<6x892xf32>
    %c4 = arith.constant 4 : index
    %c0_15 = arith.constant 0 : index
    %c0_16 = arith.constant 0 : index
    %27 = vector.load %arg2[%c4, %c0_15, %c0_16] : memref<25x6x3xbf16, #tpu.memory_space<vmem>>, vector<1x6x3xbf16>
    %28 = vector.shape_cast %27 : vector<1x6x3xbf16> to vector<6x3xbf16>
    %29 = vector.extract_strided_slice %1 {offsets = [0, 4], sizes = [3, 892], strides = [1, 1]} : vector<3x1024xf32> to vector<3x892xf32>
    %30 = arith.truncf %29 : vector<3x892xf32> to vector<3x892xbf16>
    %cst_17 = arith.constant dense<0.000000e+00> : vector<6x892xf32>
    %31 = tpu.matmul %28, %30, %cst_17 {dimension_numbers = #tpu.dot_dimension_numbers<[1], [0], [0], [1], [0, 0, 1, 1], [], []>} : vector<6x3xbf16>, vector<3x892xbf16>, vector<6x892xf32> -> vector<6x892xf32>
    %32 = arith.addf %26, %31 : vector<6x892xf32>
    %c5 = arith.constant 5 : index
    %c0_18 = arith.constant 0 : index
    %c0_19 = arith.constant 0 : index
    %33 = vector.load %arg2[%c5, %c0_18, %c0_19] : memref<25x6x3xbf16, #tpu.memory_space<vmem>>, vector<1x6x3xbf16>
    %34 = vector.shape_cast %33 : vector<1x6x3xbf16> to vector<6x3xbf16>
    %35 = vector.extract_strided_slice %1 {offsets = [0, 32], sizes = [3, 892], strides = [1, 1]} : vector<3x1024xf32> to vector<3x892xf32>
    %36 = arith.truncf %35 : vector<3x892xf32> to vector<3x892xbf16>
    %cst_20 = arith.constant dense<0.000000e+00> : vector<6x892xf32>
    %37 = tpu.matmul %34, %36, %cst_20 {dimension_numbers = #tpu.dot_dimension_numbers<[1], [0], [0], [1], [0, 0, 1, 1], [], []>} : vector<6x3xbf16>, vector<3x892xbf16>, vector<6x892xf32> -> vector<6x892xf32>
    %38 = arith.addf %32, %37 : vector<6x892xf32>
    %c6 = arith.constant 6 : index
    %c0_21 = arith.constant 0 : index
    %c0_22 = arith.constant 0 : index
    %39 = vector.load %arg2[%c6, %c0_21, %c0_22] : memref<25x6x3xbf16, #tpu.memory_space<vmem>>, vector<1x6x3xbf16>
    %40 = vector.shape_cast %39 : vector<1x6x3xbf16> to vector<6x3xbf16>
    %41 = vector.extract_strided_slice %1 {offsets = [0, 33], sizes = [3, 892], strides = [1, 1]} : vector<3x1024xf32> to vector<3x892xf32>
    %42 = arith.truncf %41 : vector<3x892xf32> to vector<3x892xbf16>
    %cst_23 = arith.constant dense<0.000000e+00> : vector<6x892xf32>
    %43 = tpu.matmul %40, %42, %cst_23 {dimension_numbers = #tpu.dot_dimension_numbers<[1], [0], [0], [1], [0, 0, 1, 1], [], []>} : vector<6x3xbf16>, vector<3x892xbf16>, vector<6x892xf32> -> vector<6x892xf32>
    %44 = arith.addf %38, %43 : vector<6x892xf32>
    %c7 = arith.constant 7 : index
    %c0_24 = arith.constant 0 : index
    %c0_25 = arith.constant 0 : index
    %45 = vector.load %arg2[%c7, %c0_24, %c0_25] : memref<25x6x3xbf16, #tpu.memory_space<vmem>>, vector<1x6x3xbf16>
    %46 = vector.shape_cast %45 : vector<1x6x3xbf16> to vector<6x3xbf16>
    %47 = vector.extract_strided_slice %1 {offsets = [0, 34], sizes = [3, 892], strides = [1, 1]} : vector<3x1024xf32> to vector<3x892xf32>
    %48 = arith.truncf %47 : vector<3x892xf32> to vector<3x892xbf16>
    %cst_26 = arith.constant dense<0.000000e+00> : vector<6x892xf32>
    %49 = tpu.matmul %46, %48, %cst_26 {dimension_numbers = #tpu.dot_dimension_numbers<[1], [0], [0], [1], [0, 0, 1, 1], [], []>} : vector<6x3xbf16>, vector<3x892xbf16>, vector<6x892xf32> -> vector<6x892xf32>
    %50 = arith.addf %44, %49 : vector<6x892xf32>
    %c8 = arith.constant 8 : index
    %c0_27 = arith.constant 0 : index
    %c0_28 = arith.constant 0 : index
    %51 = vector.load %arg2[%c8, %c0_27, %c0_28] : memref<25x6x3xbf16, #tpu.memory_space<vmem>>, vector<1x6x3xbf16>
    %52 = vector.shape_cast %51 : vector<1x6x3xbf16> to vector<6x3xbf16>
    %53 = vector.extract_strided_slice %1 {offsets = [0, 35], sizes = [3, 892], strides = [1, 1]} : vector<3x1024xf32> to vector<3x892xf32>
    %54 = arith.truncf %53 : vector<3x892xf32> to vector<3x892xbf16>
    %cst_29 = arith.constant dense<0.000000e+00> : vector<6x892xf32>
    %55 = tpu.matmul %52, %54, %cst_29 {dimension_numbers = #tpu.dot_dimension_numbers<[1], [0], [0], [1], [0, 0, 1, 1], [], []>} : vector<6x3xbf16>, vector<3x892xbf16>, vector<6x892xf32> -> vector<6x892xf32>
    %56 = arith.addf %50, %55 : vector<6x892xf32>
    %c9 = arith.constant 9 : index
    %c0_30 = arith.constant 0 : index
    %c0_31 = arith.constant 0 : index
    %57 = vector.load %arg2[%c9, %c0_30, %c0_31] : memref<25x6x3xbf16, #tpu.memory_space<vmem>>, vector<1x6x3xbf16>
    %58 = vector.shape_cast %57 : vector<1x6x3xbf16> to vector<6x3xbf16>
    %59 = vector.extract_strided_slice %1 {offsets = [0, 36], sizes = [3, 892], strides = [1, 1]} : vector<3x1024xf32> to vector<3x892xf32>
    %60 = arith.truncf %59 : vector<3x892xf32> to vector<3x892xbf16>
    %cst_32 = arith.constant dense<0.000000e+00> : vector<6x892xf32>
    %61 = tpu.matmul %58, %60, %cst_32 {dimension_numbers = #tpu.dot_dimension_numbers<[1], [0], [0], [1], [0, 0, 1, 1], [], []>} : vector<6x3xbf16>, vector<3x892xbf16>, vector<6x892xf32> -> vector<6x892xf32>
    %62 = arith.addf %56, %61 : vector<6x892xf32>
    %c10 = arith.constant 10 : index
    %c0_33 = arith.constant 0 : index
    %c0_34 = arith.constant 0 : index
    %63 = vector.load %arg2[%c10, %c0_33, %c0_34] : memref<25x6x3xbf16, #tpu.memory_space<vmem>>, vector<1x6x3xbf16>
    %64 = vector.shape_cast %63 : vector<1x6x3xbf16> to vector<6x3xbf16>
    %65 = vector.extract_strided_slice %1 {offsets = [0, 64], sizes = [3, 892], strides = [1, 1]} : vector<3x1024xf32> to vector<3x892xf32>
    %66 = arith.truncf %65 : vector<3x892xf32> to vector<3x892xbf16>
    %cst_35 = arith.constant dense<0.000000e+00> : vector<6x892xf32>
    %67 = tpu.matmul %64, %66, %cst_35 {dimension_numbers = #tpu.dot_dimension_numbers<[1], [0], [0], [1], [0, 0, 1, 1], [], []>} : vector<6x3xbf16>, vector<3x892xbf16>, vector<6x892xf32> -> vector<6x892xf32>
    %68 = arith.addf %62, %67 : vector<6x892xf32>
    %c11 = arith.constant 11 : index
    %c0_36 = arith.constant 0 : index
    %c0_37 = arith.constant 0 : index
    %69 = vector.load %arg2[%c11, %c0_36, %c0_37] : memref<25x6x3xbf16, #tpu.memory_space<vmem>>, vector<1x6x3xbf16>
    %70 = vector.shape_cast %69 : vector<1x6x3xbf16> to vector<6x3xbf16>
    %71 = vector.extract_strided_slice %1 {offsets = [0, 65], sizes = [3, 892], strides = [1, 1]} : vector<3x1024xf32> to vector<3x892xf32>
    %72 = arith.truncf %71 : vector<3x892xf32> to vector<3x892xbf16>
    %cst_38 = arith.constant dense<0.000000e+00> : vector<6x892xf32>
    %73 = tpu.matmul %70, %72, %cst_38 {dimension_numbers = #tpu.dot_dimension_numbers<[1], [0], [0], [1], [0, 0, 1, 1], [], []>} : vector<6x3xbf16>, vector<3x892xbf16>, vector<6x892xf32> -> vector<6x892xf32>
    %74 = arith.addf %68, %73 : vector<6x892xf32>
    %c12 = arith.constant 12 : index
    %c0_39 = arith.constant 0 : index
    %c0_40 = arith.constant 0 : index
    %75 = vector.load %arg2[%c12, %c0_39, %c0_40] : memref<25x6x3xbf16, #tpu.memory_space<vmem>>, vector<1x6x3xbf16>
    %76 = vector.shape_cast %75 : vector<1x6x3xbf16> to vector<6x3xbf16>
    %77 = vector.extract_strided_slice %1 {offsets = [0, 66], sizes = [3, 892], strides = [1, 1]} : vector<3x1024xf32> to vector<3x892xf32>
    %78 = arith.truncf %77 : vector<3x892xf32> to vector<3x892xbf16>
    %cst_41 = arith.constant dense<0.000000e+00> : vector<6x892xf32>
    %79 = tpu.matmul %76, %78, %cst_41 {dimension_numbers = #tpu.dot_dimension_numbers<[1], [0], [0], [1], [0, 0, 1, 1], [], []>} : vector<6x3xbf16>, vector<3x892xbf16>, vector<6x892xf32> -> vector<6x892xf32>
    %80 = arith.addf %74, %79 : vector<6x892xf32>
    %c13 = arith.constant 13 : index
    %c0_42 = arith.constant 0 : index
    %c0_43 = arith.constant 0 : index
    %81 = vector.load %arg2[%c13, %c0_42, %c0_43] : memref<25x6x3xbf16, #tpu.memory_space<vmem>>, vector<1x6x3xbf16>
    %82 = vector.shape_cast %81 : vector<1x6x3xbf16> to vector<6x3xbf16>
    %83 = vector.extract_strided_slice %1 {offsets = [0, 67], sizes = [3, 892], strides = [1, 1]} : vector<3x1024xf32> to vector<3x892xf32>
    %84 = arith.truncf %83 : vector<3x892xf32> to vector<3x892xbf16>
    %cst_44 = arith.constant dense<0.000000e+00> : vector<6x892xf32>
    %85 = tpu.matmul %82, %84, %cst_44 {dimension_numbers = #tpu.dot_dimension_numbers<[1], [0], [0], [1], [0, 0, 1, 1], [], []>} : vector<6x3xbf16>, vector<3x892xbf16>, vector<6x892xf32> -> vector<6x892xf32>
    %86 = arith.addf %80, %85 : vector<6x892xf32>
    %c14 = arith.constant 14 : index
    %c0_45 = arith.constant 0 : index
    %c0_46 = arith.constant 0 : index
    %87 = vector.load %arg2[%c14, %c0_45, %c0_46] : memref<25x6x3xbf16, #tpu.memory_space<vmem>>, vector<1x6x3xbf16>
    %88 = vector.shape_cast %87 : vector<1x6x3xbf16> to vector<6x3xbf16>
    %89 = vector.extract_strided_slice %1 {offsets = [0, 68], sizes = [3, 892], strides = [1, 1]} : vector<3x1024xf32> to vector<3x892xf32>
    %90 = arith.truncf %89 : vector<3x892xf32> to vector<3x892xbf16>
    %cst_47 = arith.constant dense<0.000000e+00> : vector<6x892xf32>
    %91 = tpu.matmul %88, %90, %cst_47 {dimension_numbers = #tpu.dot_dimension_numbers<[1], [0], [0], [1], [0, 0, 1, 1], [], []>} : vector<6x3xbf16>, vector<3x892xbf16>, vector<6x892xf32> -> vector<6x892xf32>
    %92 = arith.addf %86, %91 : vector<6x892xf32>
    %c15 = arith.constant 15 : index
    %c0_48 = arith.constant 0 : index
    %c0_49 = arith.constant 0 : index
    %93 = vector.load %arg2[%c15, %c0_48, %c0_49] : memref<25x6x3xbf16, #tpu.memory_space<vmem>>, vector<1x6x3xbf16>
    %94 = vector.shape_cast %93 : vector<1x6x3xbf16> to vector<6x3xbf16>
    %95 = vector.extract_strided_slice %1 {offsets = [0, 96], sizes = [3, 892], strides = [1, 1]} : vector<3x1024xf32> to vector<3x892xf32>
    %96 = arith.truncf %95 : vector<3x892xf32> to vector<3x892xbf16>
    %cst_50 = arith.constant dense<0.000000e+00> : vector<6x892xf32>
    %97 = tpu.matmul %94, %96, %cst_50 {dimension_numbers = #tpu.dot_dimension_numbers<[1], [0], [0], [1], [0, 0, 1, 1], [], []>} : vector<6x3xbf16>, vector<3x892xbf16>, vector<6x892xf32> -> vector<6x892xf32>
    %98 = arith.addf %92, %97 : vector<6x892xf32>
    %c16 = arith.constant 16 : index
    %c0_51 = arith.constant 0 : index
    %c0_52 = arith.constant 0 : index
    %99 = vector.load %arg2[%c16, %c0_51, %c0_52] : memref<25x6x3xbf16, #tpu.memory_space<vmem>>, vector<1x6x3xbf16>
    %100 = vector.shape_cast %99 : vector<1x6x3xbf16> to vector<6x3xbf16>
    %101 = vector.extract_strided_slice %1 {offsets = [0, 97], sizes = [3, 892], strides = [1, 1]} : vector<3x1024xf32> to vector<3x892xf32>
    %102 = arith.truncf %101 : vector<3x892xf32> to vector<3x892xbf16>
    %cst_53 = arith.constant dense<0.000000e+00> : vector<6x892xf32>
    %103 = tpu.matmul %100, %102, %cst_53 {dimension_numbers = #tpu.dot_dimension_numbers<[1], [0], [0], [1], [0, 0, 1, 1], [], []>} : vector<6x3xbf16>, vector<3x892xbf16>, vector<6x892xf32> -> vector<6x892xf32>
    %104 = arith.addf %98, %103 : vector<6x892xf32>
    %c17 = arith.constant 17 : index
    %c0_54 = arith.constant 0 : index
    %c0_55 = arith.constant 0 : index
    %105 = vector.load %arg2[%c17, %c0_54, %c0_55] : memref<25x6x3xbf16, #tpu.memory_space<vmem>>, vector<1x6x3xbf16>
    %106 = vector.shape_cast %105 : vector<1x6x3xbf16> to vector<6x3xbf16>
    %107 = vector.extract_strided_slice %1 {offsets = [0, 98], sizes = [3, 892], strides = [1, 1]} : vector<3x1024xf32> to vector<3x892xf32>
    %108 = arith.truncf %107 : vector<3x892xf32> to vector<3x892xbf16>
    %cst_56 = arith.constant dense<0.000000e+00> : vector<6x892xf32>
    %109 = tpu.matmul %106, %108, %cst_56 {dimension_numbers = #tpu.dot_dimension_numbers<[1], [0], [0], [1], [0, 0, 1, 1], [], []>} : vector<6x3xbf16>, vector<3x892xbf16>, vector<6x892xf32> -> vector<6x892xf32>
    %110 = arith.addf %104, %109 : vector<6x892xf32>
    %c18 = arith.constant 18 : index
    %c0_57 = arith.constant 0 : index
    %c0_58 = arith.constant 0 : index
    %111 = vector.load %arg2[%c18, %c0_57, %c0_58] : memref<25x6x3xbf16, #tpu.memory_space<vmem>>, vector<1x6x3xbf16>
    %112 = vector.shape_cast %111 : vector<1x6x3xbf16> to vector<6x3xbf16>
    %113 = vector.extract_strided_slice %1 {offsets = [0, 99], sizes = [3, 892], strides = [1, 1]} : vector<3x1024xf32> to vector<3x892xf32>
    %114 = arith.truncf %113 : vector<3x892xf32> to vector<3x892xbf16>
    %cst_59 = arith.constant dense<0.000000e+00> : vector<6x892xf32>
    %115 = tpu.matmul %112, %114, %cst_59 {dimension_numbers = #tpu.dot_dimension_numbers<[1], [0], [0], [1], [0, 0, 1, 1], [], []>} : vector<6x3xbf16>, vector<3x892xbf16>, vector<6x892xf32> -> vector<6x892xf32>
    %116 = arith.addf %110, %115 : vector<6x892xf32>
    %c19 = arith.constant 19 : index
    %c0_60 = arith.constant 0 : index
    %c0_61 = arith.constant 0 : index
    %117 = vector.load %arg2[%c19, %c0_60, %c0_61] : memref<25x6x3xbf16, #tpu.memory_space<vmem>>, vector<1x6x3xbf16>
    %118 = vector.shape_cast %117 : vector<1x6x3xbf16> to vector<6x3xbf16>
    %119 = vector.extract_strided_slice %1 {offsets = [0, 100], sizes = [3, 892], strides = [1, 1]} : vector<3x1024xf32> to vector<3x892xf32>
    %120 = arith.truncf %119 : vector<3x892xf32> to vector<3x892xbf16>
    %cst_62 = arith.constant dense<0.000000e+00> : vector<6x892xf32>
    %121 = tpu.matmul %118, %120, %cst_62 {dimension_numbers = #tpu.dot_dimension_numbers<[1], [0], [0], [1], [0, 0, 1, 1], [], []>} : vector<6x3xbf16>, vector<3x892xbf16>, vector<6x892xf32> -> vector<6x892xf32>
    %122 = arith.addf %116, %121 : vector<6x892xf32>
    %c20 = arith.constant 20 : index
    %c0_63 = arith.constant 0 : index
    %c0_64 = arith.constant 0 : index
    %123 = vector.load %arg2[%c20, %c0_63, %c0_64] : memref<25x6x3xbf16, #tpu.memory_space<vmem>>, vector<1x6x3xbf16>
    %124 = vector.shape_cast %123 : vector<1x6x3xbf16> to vector<6x3xbf16>
    %125 = vector.extract_strided_slice %1 {offsets = [0, 128], sizes = [3, 892], strides = [1, 1]} : vector<3x1024xf32> to vector<3x892xf32>
    %126 = arith.truncf %125 : vector<3x892xf32> to vector<3x892xbf16>
    %cst_65 = arith.constant dense<0.000000e+00> : vector<6x892xf32>
    %127 = tpu.matmul %124, %126, %cst_65 {dimension_numbers = #tpu.dot_dimension_numbers<[1], [0], [0], [1], [0, 0, 1, 1], [], []>} : vector<6x3xbf16>, vector<3x892xbf16>, vector<6x892xf32> -> vector<6x892xf32>
    %128 = arith.addf %122, %127 : vector<6x892xf32>
    %c21 = arith.constant 21 : index
    %c0_66 = arith.constant 0 : index
    %c0_67 = arith.constant 0 : index
    %129 = vector.load %arg2[%c21, %c0_66, %c0_67] : memref<25x6x3xbf16, #tpu.memory_space<vmem>>, vector<1x6x3xbf16>
    %130 = vector.shape_cast %129 : vector<1x6x3xbf16> to vector<6x3xbf16>
    %131 = vector.extract_strided_slice %1 {offsets = [0, 129], sizes = [3, 892], strides = [1, 1]} : vector<3x1024xf32> to vector<3x892xf32>
    %132 = arith.truncf %131 : vector<3x892xf32> to vector<3x892xbf16>
    %cst_68 = arith.constant dense<0.000000e+00> : vector<6x892xf32>
    %133 = tpu.matmul %130, %132, %cst_68 {dimension_numbers = #tpu.dot_dimension_numbers<[1], [0], [0], [1], [0, 0, 1, 1], [], []>} : vector<6x3xbf16>, vector<3x892xbf16>, vector<6x892xf32> -> vector<6x892xf32>
    %134 = arith.addf %128, %133 : vector<6x892xf32>
    %c22 = arith.constant 22 : index
    %c0_69 = arith.constant 0 : index
    %c0_70 = arith.constant 0 : index
    %135 = vector.load %arg2[%c22, %c0_69, %c0_70] : memref<25x6x3xbf16, #tpu.memory_space<vmem>>, vector<1x6x3xbf16>
    %136 = vector.shape_cast %135 : vector<1x6x3xbf16> to vector<6x3xbf16>
    %137 = vector.extract_strided_slice %1 {offsets = [0, 130], sizes = [3, 892], strides = [1, 1]} : vector<3x1024xf32> to vector<3x892xf32>
    %138 = arith.truncf %137 : vector<3x892xf32> to vector<3x892xbf16>
    %cst_71 = arith.constant dense<0.000000e+00> : vector<6x892xf32>
    %139 = tpu.matmul %136, %138, %cst_71 {dimension_numbers = #tpu.dot_dimension_numbers<[1], [0], [0], [1], [0, 0, 1, 1], [], []>} : vector<6x3xbf16>, vector<3x892xbf16>, vector<6x892xf32> -> vector<6x892xf32>
    %140 = arith.addf %134, %139 : vector<6x892xf32>
    %c23 = arith.constant 23 : index
    %c0_72 = arith.constant 0 : index
    %c0_73 = arith.constant 0 : index
    %141 = vector.load %arg2[%c23, %c0_72, %c0_73] : memref<25x6x3xbf16, #tpu.memory_space<vmem>>, vector<1x6x3xbf16>
    %142 = vector.shape_cast %141 : vector<1x6x3xbf16> to vector<6x3xbf16>
    %143 = vector.extract_strided_slice %1 {offsets = [0, 131], sizes = [3, 892], strides = [1, 1]} : vector<3x1024xf32> to vector<3x892xf32>
    %144 = arith.truncf %143 : vector<3x892xf32> to vector<3x892xbf16>
    %cst_74 = arith.constant dense<0.000000e+00> : vector<6x892xf32>
    %145 = tpu.matmul %142, %144, %cst_74 {dimension_numbers = #tpu.dot_dimension_numbers<[1], [0], [0], [1], [0, 0, 1, 1], [], []>} : vector<6x3xbf16>, vector<3x892xbf16>, vector<6x892xf32> -> vector<6x892xf32>
    %146 = arith.addf %140, %145 : vector<6x892xf32>
    %c24 = arith.constant 24 : index
    %c0_75 = arith.constant 0 : index
    %c0_76 = arith.constant 0 : index
    %147 = vector.load %arg2[%c24, %c0_75, %c0_76] : memref<25x6x3xbf16, #tpu.memory_space<vmem>>, vector<1x6x3xbf16>
    %148 = vector.shape_cast %147 : vector<1x6x3xbf16> to vector<6x3xbf16>
    %149 = vector.extract_strided_slice %1 {offsets = [0, 132], sizes = [3, 892], strides = [1, 1]} : vector<3x1024xf32> to vector<3x892xf32>
    %150 = arith.truncf %149 : vector<3x892xf32> to vector<3x892xbf16>
    %cst_77 = arith.constant dense<0.000000e+00> : vector<6x892xf32>
    %151 = tpu.matmul %148, %150, %cst_77 {dimension_numbers = #tpu.dot_dimension_numbers<[1], [0], [0], [1], [0, 0, 1, 1], [], []>} : vector<6x3xbf16>, vector<3x892xbf16>, vector<6x892xf32> -> vector<6x892xf32>
    %152 = arith.addf %146, %151 : vector<6x892xf32>
    %c0_78 = arith.constant 0 : index
    %c0_79 = arith.constant 0 : index
    %153 = vector.load %arg3[%c0_78, %c0_79] : memref<6x1xf32, #tpu.memory_space<vmem>>, vector<6x1xf32>
    %154 = vector.broadcast %153 : vector<6x1xf32> to vector<6x892xf32>
    %155 = arith.addf %152, %154 : vector<6x892xf32>
    %cst_80 = arith.constant 0.000000e+00 : f32
    %156 = vector.broadcast %cst_80 : f32 to vector<6x892xf32>
    %157 = arith.maximumf %155, %156 : vector<6x892xf32>
    %158 = vector.extract_strided_slice %157 {offsets = [0, 0], sizes = [6, 859], strides = [1, 1]} : vector<6x892xf32> to vector<6x859xf32>
    %159 = vector.extract_strided_slice %157 {offsets = [0, 1], sizes = [6, 859], strides = [1, 1]} : vector<6x892xf32> to vector<6x859xf32>
    %160 = arith.maximumf %158, %159 : vector<6x859xf32>
    %161 = vector.extract_strided_slice %157 {offsets = [0, 32], sizes = [6, 859], strides = [1, 1]} : vector<6x892xf32> to vector<6x859xf32>
    %162 = vector.extract_strided_slice %157 {offsets = [0, 33], sizes = [6, 859], strides = [1, 1]} : vector<6x892xf32> to vector<6x859xf32>
    %163 = arith.maximumf %161, %162 : vector<6x859xf32>
    %164 = arith.maximumf %160, %163 : vector<6x859xf32>
    %165 = arith.truncf %164 : vector<6x859xf32> to vector<6x859xbf16>
    %c0_81 = arith.constant 0 : index
    %c0_82 = arith.constant 0 : index
    %166 = vector.load %arg4[%c0_81, %c0_82] : memref<859x224xbf16, #tpu.memory_space<vmem>>, vector<859x224xbf16>
    %cst_83 = arith.constant dense<0.000000e+00> : vector<6x224xf32>
    %167 = tpu.matmul %165, %166, %cst_83 {dimension_numbers = #tpu.dot_dimension_numbers<[1], [0], [0], [1], [0, 0, 1, 1], [], []>} : vector<6x859xbf16>, vector<859x224xbf16>, vector<6x224xf32> -> vector<6x224xf32>
    %cst_84 = arith.constant 0.000000e+00 : f32
    %168 = vector.broadcast %cst_84 : f32 to vector<16x154xf32>
    %c0_85 = arith.constant 0 : index
    %c0_86 = arith.constant 0 : index
    %c0_87 = arith.constant 0 : index
    %169 = vector.load %arg5[%c0_85, %c0_86, %c0_87] : memref<25x16x6xbf16, #tpu.memory_space<vmem>>, vector<1x16x6xbf16>
    %170 = vector.shape_cast %169 : vector<1x16x6xbf16> to vector<16x6xbf16>
    %171 = vector.extract_strided_slice %167 {offsets = [0, 0], sizes = [6, 154], strides = [1, 1]} : vector<6x224xf32> to vector<6x154xf32>
    %172 = arith.truncf %171 : vector<6x154xf32> to vector<6x154xbf16>
    %cst_88 = arith.constant dense<0.000000e+00> : vector<16x154xf32>
    %173 = tpu.matmul %170, %172, %cst_88 {dimension_numbers = #tpu.dot_dimension_numbers<[1], [0], [0], [1], [0, 0, 1, 1], [], []>} : vector<16x6xbf16>, vector<6x154xbf16>, vector<16x154xf32> -> vector<16x154xf32>
    %174 = arith.addf %168, %173 : vector<16x154xf32>
    %c1_89 = arith.constant 1 : index
    %c0_90 = arith.constant 0 : index
    %c0_91 = arith.constant 0 : index
    %175 = vector.load %arg5[%c1_89, %c0_90, %c0_91] : memref<25x16x6xbf16, #tpu.memory_space<vmem>>, vector<1x16x6xbf16>
    %176 = vector.shape_cast %175 : vector<1x16x6xbf16> to vector<16x6xbf16>
    %177 = vector.extract_strided_slice %167 {offsets = [0, 1], sizes = [6, 154], strides = [1, 1]} : vector<6x224xf32> to vector<6x154xf32>
    %178 = arith.truncf %177 : vector<6x154xf32> to vector<6x154xbf16>
    %cst_92 = arith.constant dense<0.000000e+00> : vector<16x154xf32>
    %179 = tpu.matmul %176, %178, %cst_92 {dimension_numbers = #tpu.dot_dimension_numbers<[1], [0], [0], [1], [0, 0, 1, 1], [], []>} : vector<16x6xbf16>, vector<6x154xbf16>, vector<16x154xf32> -> vector<16x154xf32>
    %180 = arith.addf %174, %179 : vector<16x154xf32>
    %c2_93 = arith.constant 2 : index
    %c0_94 = arith.constant 0 : index
    %c0_95 = arith.constant 0 : index
    %181 = vector.load %arg5[%c2_93, %c0_94, %c0_95] : memref<25x16x6xbf16, #tpu.memory_space<vmem>>, vector<1x16x6xbf16>
    %182 = vector.shape_cast %181 : vector<1x16x6xbf16> to vector<16x6xbf16>
    %183 = vector.extract_strided_slice %167 {offsets = [0, 2], sizes = [6, 154], strides = [1, 1]} : vector<6x224xf32> to vector<6x154xf32>
    %184 = arith.truncf %183 : vector<6x154xf32> to vector<6x154xbf16>
    %cst_96 = arith.constant dense<0.000000e+00> : vector<16x154xf32>
    %185 = tpu.matmul %182, %184, %cst_96 {dimension_numbers = #tpu.dot_dimension_numbers<[1], [0], [0], [1], [0, 0, 1, 1], [], []>} : vector<16x6xbf16>, vector<6x154xbf16>, vector<16x154xf32> -> vector<16x154xf32>
    %186 = arith.addf %180, %185 : vector<16x154xf32>
    %c3_97 = arith.constant 3 : index
    %c0_98 = arith.constant 0 : index
    %c0_99 = arith.constant 0 : index
    %187 = vector.load %arg5[%c3_97, %c0_98, %c0_99] : memref<25x16x6xbf16, #tpu.memory_space<vmem>>, vector<1x16x6xbf16>
    %188 = vector.shape_cast %187 : vector<1x16x6xbf16> to vector<16x6xbf16>
    %189 = vector.extract_strided_slice %167 {offsets = [0, 3], sizes = [6, 154], strides = [1, 1]} : vector<6x224xf32> to vector<6x154xf32>
    %190 = arith.truncf %189 : vector<6x154xf32> to vector<6x154xbf16>
    %cst_100 = arith.constant dense<0.000000e+00> : vector<16x154xf32>
    %191 = tpu.matmul %188, %190, %cst_100 {dimension_numbers = #tpu.dot_dimension_numbers<[1], [0], [0], [1], [0, 0, 1, 1], [], []>} : vector<16x6xbf16>, vector<6x154xbf16>, vector<16x154xf32> -> vector<16x154xf32>
    %192 = arith.addf %186, %191 : vector<16x154xf32>
    %c4_101 = arith.constant 4 : index
    %c0_102 = arith.constant 0 : index
    %c0_103 = arith.constant 0 : index
    %193 = vector.load %arg5[%c4_101, %c0_102, %c0_103] : memref<25x16x6xbf16, #tpu.memory_space<vmem>>, vector<1x16x6xbf16>
    %194 = vector.shape_cast %193 : vector<1x16x6xbf16> to vector<16x6xbf16>
    %195 = vector.extract_strided_slice %167 {offsets = [0, 4], sizes = [6, 154], strides = [1, 1]} : vector<6x224xf32> to vector<6x154xf32>
    %196 = arith.truncf %195 : vector<6x154xf32> to vector<6x154xbf16>
    %cst_104 = arith.constant dense<0.000000e+00> : vector<16x154xf32>
    %197 = tpu.matmul %194, %196, %cst_104 {dimension_numbers = #tpu.dot_dimension_numbers<[1], [0], [0], [1], [0, 0, 1, 1], [], []>} : vector<16x6xbf16>, vector<6x154xbf16>, vector<16x154xf32> -> vector<16x154xf32>
    %198 = arith.addf %192, %197 : vector<16x154xf32>
    %c5_105 = arith.constant 5 : index
    %c0_106 = arith.constant 0 : index
    %c0_107 = arith.constant 0 : index
    %199 = vector.load %arg5[%c5_105, %c0_106, %c0_107] : memref<25x16x6xbf16, #tpu.memory_space<vmem>>, vector<1x16x6xbf16>
    %200 = vector.shape_cast %199 : vector<1x16x6xbf16> to vector<16x6xbf16>
    %201 = vector.extract_strided_slice %167 {offsets = [0, 16], sizes = [6, 154], strides = [1, 1]} : vector<6x224xf32> to vector<6x154xf32>
    %202 = arith.truncf %201 : vector<6x154xf32> to vector<6x154xbf16>
    %cst_108 = arith.constant dense<0.000000e+00> : vector<16x154xf32>
    %203 = tpu.matmul %200, %202, %cst_108 {dimension_numbers = #tpu.dot_dimension_numbers<[1], [0], [0], [1], [0, 0, 1, 1], [], []>} : vector<16x6xbf16>, vector<6x154xbf16>, vector<16x154xf32> -> vector<16x154xf32>
    %204 = arith.addf %198, %203 : vector<16x154xf32>
    %c6_109 = arith.constant 6 : index
    %c0_110 = arith.constant 0 : index
    %c0_111 = arith.constant 0 : index
    %205 = vector.load %arg5[%c6_109, %c0_110, %c0_111] : memref<25x16x6xbf16, #tpu.memory_space<vmem>>, vector<1x16x6xbf16>
    %206 = vector.shape_cast %205 : vector<1x16x6xbf16> to vector<16x6xbf16>
    %207 = vector.extract_strided_slice %167 {offsets = [0, 17], sizes = [6, 154], strides = [1, 1]} : vector<6x224xf32> to vector<6x154xf32>
    %208 = arith.truncf %207 : vector<6x154xf32> to vector<6x154xbf16>
    %cst_112 = arith.constant dense<0.000000e+00> : vector<16x154xf32>
    %209 = tpu.matmul %206, %208, %cst_112 {dimension_numbers = #tpu.dot_dimension_numbers<[1], [0], [0], [1], [0, 0, 1, 1], [], []>} : vector<16x6xbf16>, vector<6x154xbf16>, vector<16x154xf32> -> vector<16x154xf32>
    %210 = arith.addf %204, %209 : vector<16x154xf32>
    %c7_113 = arith.constant 7 : index
    %c0_114 = arith.constant 0 : index
    %c0_115 = arith.constant 0 : index
    %211 = vector.load %arg5[%c7_113, %c0_114, %c0_115] : memref<25x16x6xbf16, #tpu.memory_space<vmem>>, vector<1x16x6xbf16>
    %212 = vector.shape_cast %211 : vector<1x16x6xbf16> to vector<16x6xbf16>
    %213 = vector.extract_strided_slice %167 {offsets = [0, 18], sizes = [6, 154], strides = [1, 1]} : vector<6x224xf32> to vector<6x154xf32>
    %214 = arith.truncf %213 : vector<6x154xf32> to vector<6x154xbf16>
    %cst_116 = arith.constant dense<0.000000e+00> : vector<16x154xf32>
    %215 = tpu.matmul %212, %214, %cst_116 {dimension_numbers = #tpu.dot_dimension_numbers<[1], [0], [0], [1], [0, 0, 1, 1], [], []>} : vector<16x6xbf16>, vector<6x154xbf16>, vector<16x154xf32> -> vector<16x154xf32>
    %216 = arith.addf %210, %215 : vector<16x154xf32>
    %c8_117 = arith.constant 8 : index
    %c0_118 = arith.constant 0 : index
    %c0_119 = arith.constant 0 : index
    %217 = vector.load %arg5[%c8_117, %c0_118, %c0_119] : memref<25x16x6xbf16, #tpu.memory_space<vmem>>, vector<1x16x6xbf16>
    %218 = vector.shape_cast %217 : vector<1x16x6xbf16> to vector<16x6xbf16>
    %219 = vector.extract_strided_slice %167 {offsets = [0, 19], sizes = [6, 154], strides = [1, 1]} : vector<6x224xf32> to vector<6x154xf32>
    %220 = arith.truncf %219 : vector<6x154xf32> to vector<6x154xbf16>
    %cst_120 = arith.constant dense<0.000000e+00> : vector<16x154xf32>
    %221 = tpu.matmul %218, %220, %cst_120 {dimension_numbers = #tpu.dot_dimension_numbers<[1], [0], [0], [1], [0, 0, 1, 1], [], []>} : vector<16x6xbf16>, vector<6x154xbf16>, vector<16x154xf32> -> vector<16x154xf32>
    %222 = arith.addf %216, %221 : vector<16x154xf32>
    %c9_121 = arith.constant 9 : index
    %c0_122 = arith.constant 0 : index
    %c0_123 = arith.constant 0 : index
    %223 = vector.load %arg5[%c9_121, %c0_122, %c0_123] : memref<25x16x6xbf16, #tpu.memory_space<vmem>>, vector<1x16x6xbf16>
    %224 = vector.shape_cast %223 : vector<1x16x6xbf16> to vector<16x6xbf16>
    %225 = vector.extract_strided_slice %167 {offsets = [0, 20], sizes = [6, 154], strides = [1, 1]} : vector<6x224xf32> to vector<6x154xf32>
    %226 = arith.truncf %225 : vector<6x154xf32> to vector<6x154xbf16>
    %cst_124 = arith.constant dense<0.000000e+00> : vector<16x154xf32>
    %227 = tpu.matmul %224, %226, %cst_124 {dimension_numbers = #tpu.dot_dimension_numbers<[1], [0], [0], [1], [0, 0, 1, 1], [], []>} : vector<16x6xbf16>, vector<6x154xbf16>, vector<16x154xf32> -> vector<16x154xf32>
    %228 = arith.addf %222, %227 : vector<16x154xf32>
    %c10_125 = arith.constant 10 : index
    %c0_126 = arith.constant 0 : index
    %c0_127 = arith.constant 0 : index
    %229 = vector.load %arg5[%c10_125, %c0_126, %c0_127] : memref<25x16x6xbf16, #tpu.memory_space<vmem>>, vector<1x16x6xbf16>
    %230 = vector.shape_cast %229 : vector<1x16x6xbf16> to vector<16x6xbf16>
    %231 = vector.extract_strided_slice %167 {offsets = [0, 32], sizes = [6, 154], strides = [1, 1]} : vector<6x224xf32> to vector<6x154xf32>
    %232 = arith.truncf %231 : vector<6x154xf32> to vector<6x154xbf16>
    %cst_128 = arith.constant dense<0.000000e+00> : vector<16x154xf32>
    %233 = tpu.matmul %230, %232, %cst_128 {dimension_numbers = #tpu.dot_dimension_numbers<[1], [0], [0], [1], [0, 0, 1, 1], [], []>} : vector<16x6xbf16>, vector<6x154xbf16>, vector<16x154xf32> -> vector<16x154xf32>
    %234 = arith.addf %228, %233 : vector<16x154xf32>
    %c11_129 = arith.constant 11 : index
    %c0_130 = arith.constant 0 : index
    %c0_131 = arith.constant 0 : index
    %235 = vector.load %arg5[%c11_129, %c0_130, %c0_131] : memref<25x16x6xbf16, #tpu.memory_space<vmem>>, vector<1x16x6xbf16>
    %236 = vector.shape_cast %235 : vector<1x16x6xbf16> to vector<16x6xbf16>
    %237 = vector.extract_strided_slice %167 {offsets = [0, 33], sizes = [6, 154], strides = [1, 1]} : vector<6x224xf32> to vector<6x154xf32>
    %238 = arith.truncf %237 : vector<6x154xf32> to vector<6x154xbf16>
    %cst_132 = arith.constant dense<0.000000e+00> : vector<16x154xf32>
    %239 = tpu.matmul %236, %238, %cst_132 {dimension_numbers = #tpu.dot_dimension_numbers<[1], [0], [0], [1], [0, 0, 1, 1], [], []>} : vector<16x6xbf16>, vector<6x154xbf16>, vector<16x154xf32> -> vector<16x154xf32>
    %240 = arith.addf %234, %239 : vector<16x154xf32>
    %c12_133 = arith.constant 12 : index
    %c0_134 = arith.constant 0 : index
    %c0_135 = arith.constant 0 : index
    %241 = vector.load %arg5[%c12_133, %c0_134, %c0_135] : memref<25x16x6xbf16, #tpu.memory_space<vmem>>, vector<1x16x6xbf16>
    %242 = vector.shape_cast %241 : vector<1x16x6xbf16> to vector<16x6xbf16>
    %243 = vector.extract_strided_slice %167 {offsets = [0, 34], sizes = [6, 154], strides = [1, 1]} : vector<6x224xf32> to vector<6x154xf32>
    %244 = arith.truncf %243 : vector<6x154xf32> to vector<6x154xbf16>
    %cst_136 = arith.constant dense<0.000000e+00> : vector<16x154xf32>
    %245 = tpu.matmul %242, %244, %cst_136 {dimension_numbers = #tpu.dot_dimension_numbers<[1], [0], [0], [1], [0, 0, 1, 1], [], []>} : vector<16x6xbf16>, vector<6x154xbf16>, vector<16x154xf32> -> vector<16x154xf32>
    %246 = arith.addf %240, %245 : vector<16x154xf32>
    %c13_137 = arith.constant 13 : index
    %c0_138 = arith.constant 0 : index
    %c0_139 = arith.constant 0 : index
    %247 = vector.load %arg5[%c13_137, %c0_138, %c0_139] : memref<25x16x6xbf16, #tpu.memory_space<vmem>>, vector<1x16x6xbf16>
    %248 = vector.shape_cast %247 : vector<1x16x6xbf16> to vector<16x6xbf16>
    %249 = vector.extract_strided_slice %167 {offsets = [0, 35], sizes = [6, 154], strides = [1, 1]} : vector<6x224xf32> to vector<6x154xf32>
    %250 = arith.truncf %249 : vector<6x154xf32> to vector<6x154xbf16>
    %cst_140 = arith.constant dense<0.000000e+00> : vector<16x154xf32>
    %251 = tpu.matmul %248, %250, %cst_140 {dimension_numbers = #tpu.dot_dimension_numbers<[1], [0], [0], [1], [0, 0, 1, 1], [], []>} : vector<16x6xbf16>, vector<6x154xbf16>, vector<16x154xf32> -> vector<16x154xf32>
    %252 = arith.addf %246, %251 : vector<16x154xf32>
    %c14_141 = arith.constant 14 : index
    %c0_142 = arith.constant 0 : index
    %c0_143 = arith.constant 0 : index
    %253 = vector.load %arg5[%c14_141, %c0_142, %c0_143] : memref<25x16x6xbf16, #tpu.memory_space<vmem>>, vector<1x16x6xbf16>
    %254 = vector.shape_cast %253 : vector<1x16x6xbf16> to vector<16x6xbf16>
    %255 = vector.extract_strided_slice %167 {offsets = [0, 36], sizes = [6, 154], strides = [1, 1]} : vector<6x224xf32> to vector<6x154xf32>
    %256 = arith.truncf %255 : vector<6x154xf32> to vector<6x154xbf16>
    %cst_144 = arith.constant dense<0.000000e+00> : vector<16x154xf32>
    %257 = tpu.matmul %254, %256, %cst_144 {dimension_numbers = #tpu.dot_dimension_numbers<[1], [0], [0], [1], [0, 0, 1, 1], [], []>} : vector<16x6xbf16>, vector<6x154xbf16>, vector<16x154xf32> -> vector<16x154xf32>
    %258 = arith.addf %252, %257 : vector<16x154xf32>
    %c15_145 = arith.constant 15 : index
    %c0_146 = arith.constant 0 : index
    %c0_147 = arith.constant 0 : index
    %259 = vector.load %arg5[%c15_145, %c0_146, %c0_147] : memref<25x16x6xbf16, #tpu.memory_space<vmem>>, vector<1x16x6xbf16>
    %260 = vector.shape_cast %259 : vector<1x16x6xbf16> to vector<16x6xbf16>
    %261 = vector.extract_strided_slice %167 {offsets = [0, 48], sizes = [6, 154], strides = [1, 1]} : vector<6x224xf32> to vector<6x154xf32>
    %262 = arith.truncf %261 : vector<6x154xf32> to vector<6x154xbf16>
    %cst_148 = arith.constant dense<0.000000e+00> : vector<16x154xf32>
    %263 = tpu.matmul %260, %262, %cst_148 {dimension_numbers = #tpu.dot_dimension_numbers<[1], [0], [0], [1], [0, 0, 1, 1], [], []>} : vector<16x6xbf16>, vector<6x154xbf16>, vector<16x154xf32> -> vector<16x154xf32>
    %264 = arith.addf %258, %263 : vector<16x154xf32>
    %c16_149 = arith.constant 16 : index
    %c0_150 = arith.constant 0 : index
    %c0_151 = arith.constant 0 : index
    %265 = vector.load %arg5[%c16_149, %c0_150, %c0_151] : memref<25x16x6xbf16, #tpu.memory_space<vmem>>, vector<1x16x6xbf16>
    %266 = vector.shape_cast %265 : vector<1x16x6xbf16> to vector<16x6xbf16>
    %267 = vector.extract_strided_slice %167 {offsets = [0, 49], sizes = [6, 154], strides = [1, 1]} : vector<6x224xf32> to vector<6x154xf32>
    %268 = arith.truncf %267 : vector<6x154xf32> to vector<6x154xbf16>
    %cst_152 = arith.constant dense<0.000000e+00> : vector<16x154xf32>
    %269 = tpu.matmul %266, %268, %cst_152 {dimension_numbers = #tpu.dot_dimension_numbers<[1], [0], [0], [1], [0, 0, 1, 1], [], []>} : vector<16x6xbf16>, vector<6x154xbf16>, vector<16x154xf32> -> vector<16x154xf32>
    %270 = arith.addf %264, %269 : vector<16x154xf32>
    %c17_153 = arith.constant 17 : index
    %c0_154 = arith.constant 0 : index
    %c0_155 = arith.constant 0 : index
    %271 = vector.load %arg5[%c17_153, %c0_154, %c0_155] : memref<25x16x6xbf16, #tpu.memory_space<vmem>>, vector<1x16x6xbf16>
    %272 = vector.shape_cast %271 : vector<1x16x6xbf16> to vector<16x6xbf16>
    %273 = vector.extract_strided_slice %167 {offsets = [0, 50], sizes = [6, 154], strides = [1, 1]} : vector<6x224xf32> to vector<6x154xf32>
    %274 = arith.truncf %273 : vector<6x154xf32> to vector<6x154xbf16>
    %cst_156 = arith.constant dense<0.000000e+00> : vector<16x154xf32>
    %275 = tpu.matmul %272, %274, %cst_156 {dimension_numbers = #tpu.dot_dimension_numbers<[1], [0], [0], [1], [0, 0, 1, 1], [], []>} : vector<16x6xbf16>, vector<6x154xbf16>, vector<16x154xf32> -> vector<16x154xf32>
    %276 = arith.addf %270, %275 : vector<16x154xf32>
    %c18_157 = arith.constant 18 : index
    %c0_158 = arith.constant 0 : index
    %c0_159 = arith.constant 0 : index
    %277 = vector.load %arg5[%c18_157, %c0_158, %c0_159] : memref<25x16x6xbf16, #tpu.memory_space<vmem>>, vector<1x16x6xbf16>
    %278 = vector.shape_cast %277 : vector<1x16x6xbf16> to vector<16x6xbf16>
    %279 = vector.extract_strided_slice %167 {offsets = [0, 51], sizes = [6, 154], strides = [1, 1]} : vector<6x224xf32> to vector<6x154xf32>
    %280 = arith.truncf %279 : vector<6x154xf32> to vector<6x154xbf16>
    %cst_160 = arith.constant dense<0.000000e+00> : vector<16x154xf32>
    %281 = tpu.matmul %278, %280, %cst_160 {dimension_numbers = #tpu.dot_dimension_numbers<[1], [0], [0], [1], [0, 0, 1, 1], [], []>} : vector<16x6xbf16>, vector<6x154xbf16>, vector<16x154xf32> -> vector<16x154xf32>
    %282 = arith.addf %276, %281 : vector<16x154xf32>
    %c19_161 = arith.constant 19 : index
    %c0_162 = arith.constant 0 : index
    %c0_163 = arith.constant 0 : index
    %283 = vector.load %arg5[%c19_161, %c0_162, %c0_163] : memref<25x16x6xbf16, #tpu.memory_space<vmem>>, vector<1x16x6xbf16>
    %284 = vector.shape_cast %283 : vector<1x16x6xbf16> to vector<16x6xbf16>
    %285 = vector.extract_strided_slice %167 {offsets = [0, 52], sizes = [6, 154], strides = [1, 1]} : vector<6x224xf32> to vector<6x154xf32>
    %286 = arith.truncf %285 : vector<6x154xf32> to vector<6x154xbf16>
    %cst_164 = arith.constant dense<0.000000e+00> : vector<16x154xf32>
    %287 = tpu.matmul %284, %286, %cst_164 {dimension_numbers = #tpu.dot_dimension_numbers<[1], [0], [0], [1], [0, 0, 1, 1], [], []>} : vector<16x6xbf16>, vector<6x154xbf16>, vector<16x154xf32> -> vector<16x154xf32>
    %288 = arith.addf %282, %287 : vector<16x154xf32>
    %c20_165 = arith.constant 20 : index
    %c0_166 = arith.constant 0 : index
    %c0_167 = arith.constant 0 : index
    %289 = vector.load %arg5[%c20_165, %c0_166, %c0_167] : memref<25x16x6xbf16, #tpu.memory_space<vmem>>, vector<1x16x6xbf16>
    %290 = vector.shape_cast %289 : vector<1x16x6xbf16> to vector<16x6xbf16>
    %291 = vector.extract_strided_slice %167 {offsets = [0, 64], sizes = [6, 154], strides = [1, 1]} : vector<6x224xf32> to vector<6x154xf32>
    %292 = arith.truncf %291 : vector<6x154xf32> to vector<6x154xbf16>
    %cst_168 = arith.constant dense<0.000000e+00> : vector<16x154xf32>
    %293 = tpu.matmul %290, %292, %cst_168 {dimension_numbers = #tpu.dot_dimension_numbers<[1], [0], [0], [1], [0, 0, 1, 1], [], []>} : vector<16x6xbf16>, vector<6x154xbf16>, vector<16x154xf32> -> vector<16x154xf32>
    %294 = arith.addf %288, %293 : vector<16x154xf32>
    %c21_169 = arith.constant 21 : index
    %c0_170 = arith.constant 0 : index
    %c0_171 = arith.constant 0 : index
    %295 = vector.load %arg5[%c21_169, %c0_170, %c0_171] : memref<25x16x6xbf16, #tpu.memory_space<vmem>>, vector<1x16x6xbf16>
    %296 = vector.shape_cast %295 : vector<1x16x6xbf16> to vector<16x6xbf16>
    %297 = vector.extract_strided_slice %167 {offsets = [0, 65], sizes = [6, 154], strides = [1, 1]} : vector<6x224xf32> to vector<6x154xf32>
    %298 = arith.truncf %297 : vector<6x154xf32> to vector<6x154xbf16>
    %cst_172 = arith.constant dense<0.000000e+00> : vector<16x154xf32>
    %299 = tpu.matmul %296, %298, %cst_172 {dimension_numbers = #tpu.dot_dimension_numbers<[1], [0], [0], [1], [0, 0, 1, 1], [], []>} : vector<16x6xbf16>, vector<6x154xbf16>, vector<16x154xf32> -> vector<16x154xf32>
    %300 = arith.addf %294, %299 : vector<16x154xf32>
    %c22_173 = arith.constant 22 : index
    %c0_174 = arith.constant 0 : index
    %c0_175 = arith.constant 0 : index
    %301 = vector.load %arg5[%c22_173, %c0_174, %c0_175] : memref<25x16x6xbf16, #tpu.memory_space<vmem>>, vector<1x16x6xbf16>
    %302 = vector.shape_cast %301 : vector<1x16x6xbf16> to vector<16x6xbf16>
    %303 = vector.extract_strided_slice %167 {offsets = [0, 66], sizes = [6, 154], strides = [1, 1]} : vector<6x224xf32> to vector<6x154xf32>
    %304 = arith.truncf %303 : vector<6x154xf32> to vector<6x154xbf16>
    %cst_176 = arith.constant dense<0.000000e+00> : vector<16x154xf32>
    %305 = tpu.matmul %302, %304, %cst_176 {dimension_numbers = #tpu.dot_dimension_numbers<[1], [0], [0], [1], [0, 0, 1, 1], [], []>} : vector<16x6xbf16>, vector<6x154xbf16>, vector<16x154xf32> -> vector<16x154xf32>
    %306 = arith.addf %300, %305 : vector<16x154xf32>
    %c23_177 = arith.constant 23 : index
    %c0_178 = arith.constant 0 : index
    %c0_179 = arith.constant 0 : index
    %307 = vector.load %arg5[%c23_177, %c0_178, %c0_179] : memref<25x16x6xbf16, #tpu.memory_space<vmem>>, vector<1x16x6xbf16>
    %308 = vector.shape_cast %307 : vector<1x16x6xbf16> to vector<16x6xbf16>
    %309 = vector.extract_strided_slice %167 {offsets = [0, 67], sizes = [6, 154], strides = [1, 1]} : vector<6x224xf32> to vector<6x154xf32>
    %310 = arith.truncf %309 : vector<6x154xf32> to vector<6x154xbf16>
    %cst_180 = arith.constant dense<0.000000e+00> : vector<16x154xf32>
    %311 = tpu.matmul %308, %310, %cst_180 {dimension_numbers = #tpu.dot_dimension_numbers<[1], [0], [0], [1], [0, 0, 1, 1], [], []>} : vector<16x6xbf16>, vector<6x154xbf16>, vector<16x154xf32> -> vector<16x154xf32>
    %312 = arith.addf %306, %311 : vector<16x154xf32>
    %c24_181 = arith.constant 24 : index
    %c0_182 = arith.constant 0 : index
    %c0_183 = arith.constant 0 : index
    %313 = vector.load %arg5[%c24_181, %c0_182, %c0_183] : memref<25x16x6xbf16, #tpu.memory_space<vmem>>, vector<1x16x6xbf16>
    %314 = vector.shape_cast %313 : vector<1x16x6xbf16> to vector<16x6xbf16>
    %315 = vector.extract_strided_slice %167 {offsets = [0, 68], sizes = [6, 154], strides = [1, 1]} : vector<6x224xf32> to vector<6x154xf32>
    %316 = arith.truncf %315 : vector<6x154xf32> to vector<6x154xbf16>
    %cst_184 = arith.constant dense<0.000000e+00> : vector<16x154xf32>
    %317 = tpu.matmul %314, %316, %cst_184 {dimension_numbers = #tpu.dot_dimension_numbers<[1], [0], [0], [1], [0, 0, 1, 1], [], []>} : vector<16x6xbf16>, vector<6x154xbf16>, vector<16x154xf32> -> vector<16x154xf32>
    %318 = arith.addf %312, %317 : vector<16x154xf32>
    %c0_185 = arith.constant 0 : index
    %c0_186 = arith.constant 0 : index
    %319 = vector.load %arg6[%c0_185, %c0_186] : memref<16x1xf32, #tpu.memory_space<vmem>>, vector<16x1xf32>
    %320 = vector.broadcast %319 : vector<16x1xf32> to vector<16x154xf32>
    %321 = arith.addf %318, %320 : vector<16x154xf32>
    %cst_187 = arith.constant 0.000000e+00 : f32
    %322 = vector.broadcast %cst_187 : f32 to vector<16x154xf32>
    %323 = arith.maximumf %321, %322 : vector<16x154xf32>
    %324 = vector.extract_strided_slice %323 {offsets = [0, 0], sizes = [16, 137], strides = [1, 1]} : vector<16x154xf32> to vector<16x137xf32>
    %325 = vector.extract_strided_slice %323 {offsets = [0, 1], sizes = [16, 137], strides = [1, 1]} : vector<16x154xf32> to vector<16x137xf32>
    %326 = arith.maximumf %324, %325 : vector<16x137xf32>
    %327 = vector.extract_strided_slice %323 {offsets = [0, 16], sizes = [16, 137], strides = [1, 1]} : vector<16x154xf32> to vector<16x137xf32>
    %328 = vector.extract_strided_slice %323 {offsets = [0, 17], sizes = [16, 137], strides = [1, 1]} : vector<16x154xf32> to vector<16x137xf32>
    %329 = arith.maximumf %327, %328 : vector<16x137xf32>
    %330 = arith.maximumf %326, %329 : vector<16x137xf32>
    %cst_188 = arith.constant 0.000000e+00 : f32
    %331 = vector.broadcast %cst_188 : f32 to vector<1x120xf32>
    %332 = vector.extract_strided_slice %330 {offsets = [0, 0], sizes = [1, 137], strides = [1, 1]} : vector<16x137xf32> to vector<1x137xf32>
    %333 = arith.truncf %332 : vector<1x137xf32> to vector<1x137xbf16>
    %c0_189 = arith.constant 0 : index
    %c0_190 = arith.constant 0 : index
    %c0_191 = arith.constant 0 : index
    %334 = vector.load %arg7[%c0_189, %c0_190, %c0_191] : memref<16x137x120xbf16, #tpu.memory_space<vmem>>, vector<1x137x120xbf16>
    %335 = vector.shape_cast %334 : vector<1x137x120xbf16> to vector<137x120xbf16>
    %cst_192 = arith.constant dense<0.000000e+00> : vector<1x120xf32>
    %336 = tpu.matmul %333, %335, %cst_192 {dimension_numbers = #tpu.dot_dimension_numbers<[1], [0], [0], [1], [0, 0, 1, 1], [], []>} : vector<1x137xbf16>, vector<137x120xbf16>, vector<1x120xf32> -> vector<1x120xf32>
    %337 = arith.addf %331, %336 : vector<1x120xf32>
    %338 = vector.extract_strided_slice %330 {offsets = [1, 0], sizes = [1, 137], strides = [1, 1]} : vector<16x137xf32> to vector<1x137xf32>
    %339 = arith.truncf %338 : vector<1x137xf32> to vector<1x137xbf16>
    %c1_193 = arith.constant 1 : index
    %c0_194 = arith.constant 0 : index
    %c0_195 = arith.constant 0 : index
    %340 = vector.load %arg7[%c1_193, %c0_194, %c0_195] : memref<16x137x120xbf16, #tpu.memory_space<vmem>>, vector<1x137x120xbf16>
    %341 = vector.shape_cast %340 : vector<1x137x120xbf16> to vector<137x120xbf16>
    %cst_196 = arith.constant dense<0.000000e+00> : vector<1x120xf32>
    %342 = tpu.matmul %339, %341, %cst_196 {dimension_numbers = #tpu.dot_dimension_numbers<[1], [0], [0], [1], [0, 0, 1, 1], [], []>} : vector<1x137xbf16>, vector<137x120xbf16>, vector<1x120xf32> -> vector<1x120xf32>
    %343 = arith.addf %337, %342 : vector<1x120xf32>
    %344 = vector.extract_strided_slice %330 {offsets = [2, 0], sizes = [1, 137], strides = [1, 1]} : vector<16x137xf32> to vector<1x137xf32>
    %345 = arith.truncf %344 : vector<1x137xf32> to vector<1x137xbf16>
    %c2_197 = arith.constant 2 : index
    %c0_198 = arith.constant 0 : index
    %c0_199 = arith.constant 0 : index
    %346 = vector.load %arg7[%c2_197, %c0_198, %c0_199] : memref<16x137x120xbf16, #tpu.memory_space<vmem>>, vector<1x137x120xbf16>
    %347 = vector.shape_cast %346 : vector<1x137x120xbf16> to vector<137x120xbf16>
    %cst_200 = arith.constant dense<0.000000e+00> : vector<1x120xf32>
    %348 = tpu.matmul %345, %347, %cst_200 {dimension_numbers = #tpu.dot_dimension_numbers<[1], [0], [0], [1], [0, 0, 1, 1], [], []>} : vector<1x137xbf16>, vector<137x120xbf16>, vector<1x120xf32> -> vector<1x120xf32>
    %349 = arith.addf %343, %348 : vector<1x120xf32>
    %350 = vector.extract_strided_slice %330 {offsets = [3, 0], sizes = [1, 137], strides = [1, 1]} : vector<16x137xf32> to vector<1x137xf32>
    %351 = arith.truncf %350 : vector<1x137xf32> to vector<1x137xbf16>
    %c3_201 = arith.constant 3 : index
    %c0_202 = arith.constant 0 : index
    %c0_203 = arith.constant 0 : index
    %352 = vector.load %arg7[%c3_201, %c0_202, %c0_203] : memref<16x137x120xbf16, #tpu.memory_space<vmem>>, vector<1x137x120xbf16>
    %353 = vector.shape_cast %352 : vector<1x137x120xbf16> to vector<137x120xbf16>
    %cst_204 = arith.constant dense<0.000000e+00> : vector<1x120xf32>
    %354 = tpu.matmul %351, %353, %cst_204 {dimension_numbers = #tpu.dot_dimension_numbers<[1], [0], [0], [1], [0, 0, 1, 1], [], []>} : vector<1x137xbf16>, vector<137x120xbf16>, vector<1x120xf32> -> vector<1x120xf32>
    %355 = arith.addf %349, %354 : vector<1x120xf32>
    %356 = vector.extract_strided_slice %330 {offsets = [4, 0], sizes = [1, 137], strides = [1, 1]} : vector<16x137xf32> to vector<1x137xf32>
    %357 = arith.truncf %356 : vector<1x137xf32> to vector<1x137xbf16>
    %c4_205 = arith.constant 4 : index
    %c0_206 = arith.constant 0 : index
    %c0_207 = arith.constant 0 : index
    %358 = vector.load %arg7[%c4_205, %c0_206, %c0_207] : memref<16x137x120xbf16, #tpu.memory_space<vmem>>, vector<1x137x120xbf16>
    %359 = vector.shape_cast %358 : vector<1x137x120xbf16> to vector<137x120xbf16>
    %cst_208 = arith.constant dense<0.000000e+00> : vector<1x120xf32>
    %360 = tpu.matmul %357, %359, %cst_208 {dimension_numbers = #tpu.dot_dimension_numbers<[1], [0], [0], [1], [0, 0, 1, 1], [], []>} : vector<1x137xbf16>, vector<137x120xbf16>, vector<1x120xf32> -> vector<1x120xf32>
    %361 = arith.addf %355, %360 : vector<1x120xf32>
    %362 = vector.extract_strided_slice %330 {offsets = [5, 0], sizes = [1, 137], strides = [1, 1]} : vector<16x137xf32> to vector<1x137xf32>
    %363 = arith.truncf %362 : vector<1x137xf32> to vector<1x137xbf16>
    %c5_209 = arith.constant 5 : index
    %c0_210 = arith.constant 0 : index
    %c0_211 = arith.constant 0 : index
    %364 = vector.load %arg7[%c5_209, %c0_210, %c0_211] : memref<16x137x120xbf16, #tpu.memory_space<vmem>>, vector<1x137x120xbf16>
    %365 = vector.shape_cast %364 : vector<1x137x120xbf16> to vector<137x120xbf16>
    %cst_212 = arith.constant dense<0.000000e+00> : vector<1x120xf32>
    %366 = tpu.matmul %363, %365, %cst_212 {dimension_numbers = #tpu.dot_dimension_numbers<[1], [0], [0], [1], [0, 0, 1, 1], [], []>} : vector<1x137xbf16>, vector<137x120xbf16>, vector<1x120xf32> -> vector<1x120xf32>
    %367 = arith.addf %361, %366 : vector<1x120xf32>
    %368 = vector.extract_strided_slice %330 {offsets = [6, 0], sizes = [1, 137], strides = [1, 1]} : vector<16x137xf32> to vector<1x137xf32>
    %369 = arith.truncf %368 : vector<1x137xf32> to vector<1x137xbf16>
    %c6_213 = arith.constant 6 : index
    %c0_214 = arith.constant 0 : index
    %c0_215 = arith.constant 0 : index
    %370 = vector.load %arg7[%c6_213, %c0_214, %c0_215] : memref<16x137x120xbf16, #tpu.memory_space<vmem>>, vector<1x137x120xbf16>
    %371 = vector.shape_cast %370 : vector<1x137x120xbf16> to vector<137x120xbf16>
    %cst_216 = arith.constant dense<0.000000e+00> : vector<1x120xf32>
    %372 = tpu.matmul %369, %371, %cst_216 {dimension_numbers = #tpu.dot_dimension_numbers<[1], [0], [0], [1], [0, 0, 1, 1], [], []>} : vector<1x137xbf16>, vector<137x120xbf16>, vector<1x120xf32> -> vector<1x120xf32>
    %373 = arith.addf %367, %372 : vector<1x120xf32>
    %374 = vector.extract_strided_slice %330 {offsets = [7, 0], sizes = [1, 137], strides = [1, 1]} : vector<16x137xf32> to vector<1x137xf32>
    %375 = arith.truncf %374 : vector<1x137xf32> to vector<1x137xbf16>
    %c7_217 = arith.constant 7 : index
    %c0_218 = arith.constant 0 : index
    %c0_219 = arith.constant 0 : index
    %376 = vector.load %arg7[%c7_217, %c0_218, %c0_219] : memref<16x137x120xbf16, #tpu.memory_space<vmem>>, vector<1x137x120xbf16>
    %377 = vector.shape_cast %376 : vector<1x137x120xbf16> to vector<137x120xbf16>
    %cst_220 = arith.constant dense<0.000000e+00> : vector<1x120xf32>
    %378 = tpu.matmul %375, %377, %cst_220 {dimension_numbers = #tpu.dot_dimension_numbers<[1], [0], [0], [1], [0, 0, 1, 1], [], []>} : vector<1x137xbf16>, vector<137x120xbf16>, vector<1x120xf32> -> vector<1x120xf32>
    %379 = arith.addf %373, %378 : vector<1x120xf32>
    %380 = vector.extract_strided_slice %330 {offsets = [8, 0], sizes = [1, 137], strides = [1, 1]} : vector<16x137xf32> to vector<1x137xf32>
    %381 = arith.truncf %380 : vector<1x137xf32> to vector<1x137xbf16>
    %c8_221 = arith.constant 8 : index
    %c0_222 = arith.constant 0 : index
    %c0_223 = arith.constant 0 : index
    %382 = vector.load %arg7[%c8_221, %c0_222, %c0_223] : memref<16x137x120xbf16, #tpu.memory_space<vmem>>, vector<1x137x120xbf16>
    %383 = vector.shape_cast %382 : vector<1x137x120xbf16> to vector<137x120xbf16>
    %cst_224 = arith.constant dense<0.000000e+00> : vector<1x120xf32>
    %384 = tpu.matmul %381, %383, %cst_224 {dimension_numbers = #tpu.dot_dimension_numbers<[1], [0], [0], [1], [0, 0, 1, 1], [], []>} : vector<1x137xbf16>, vector<137x120xbf16>, vector<1x120xf32> -> vector<1x120xf32>
    %385 = arith.addf %379, %384 : vector<1x120xf32>
    %386 = vector.extract_strided_slice %330 {offsets = [9, 0], sizes = [1, 137], strides = [1, 1]} : vector<16x137xf32> to vector<1x137xf32>
    %387 = arith.truncf %386 : vector<1x137xf32> to vector<1x137xbf16>
    %c9_225 = arith.constant 9 : index
    %c0_226 = arith.constant 0 : index
    %c0_227 = arith.constant 0 : index
    %388 = vector.load %arg7[%c9_225, %c0_226, %c0_227] : memref<16x137x120xbf16, #tpu.memory_space<vmem>>, vector<1x137x120xbf16>
    %389 = vector.shape_cast %388 : vector<1x137x120xbf16> to vector<137x120xbf16>
    %cst_228 = arith.constant dense<0.000000e+00> : vector<1x120xf32>
    %390 = tpu.matmul %387, %389, %cst_228 {dimension_numbers = #tpu.dot_dimension_numbers<[1], [0], [0], [1], [0, 0, 1, 1], [], []>} : vector<1x137xbf16>, vector<137x120xbf16>, vector<1x120xf32> -> vector<1x120xf32>
    %391 = arith.addf %385, %390 : vector<1x120xf32>
    %392 = vector.extract_strided_slice %330 {offsets = [10, 0], sizes = [1, 137], strides = [1, 1]} : vector<16x137xf32> to vector<1x137xf32>
    %393 = arith.truncf %392 : vector<1x137xf32> to vector<1x137xbf16>
    %c10_229 = arith.constant 10 : index
    %c0_230 = arith.constant 0 : index
    %c0_231 = arith.constant 0 : index
    %394 = vector.load %arg7[%c10_229, %c0_230, %c0_231] : memref<16x137x120xbf16, #tpu.memory_space<vmem>>, vector<1x137x120xbf16>
    %395 = vector.shape_cast %394 : vector<1x137x120xbf16> to vector<137x120xbf16>
    %cst_232 = arith.constant dense<0.000000e+00> : vector<1x120xf32>
    %396 = tpu.matmul %393, %395, %cst_232 {dimension_numbers = #tpu.dot_dimension_numbers<[1], [0], [0], [1], [0, 0, 1, 1], [], []>} : vector<1x137xbf16>, vector<137x120xbf16>, vector<1x120xf32> -> vector<1x120xf32>
    %397 = arith.addf %391, %396 : vector<1x120xf32>
    %398 = vector.extract_strided_slice %330 {offsets = [11, 0], sizes = [1, 137], strides = [1, 1]} : vector<16x137xf32> to vector<1x137xf32>
    %399 = arith.truncf %398 : vector<1x137xf32> to vector<1x137xbf16>
    %c11_233 = arith.constant 11 : index
    %c0_234 = arith.constant 0 : index
    %c0_235 = arith.constant 0 : index
    %400 = vector.load %arg7[%c11_233, %c0_234, %c0_235] : memref<16x137x120xbf16, #tpu.memory_space<vmem>>, vector<1x137x120xbf16>
    %401 = vector.shape_cast %400 : vector<1x137x120xbf16> to vector<137x120xbf16>
    %cst_236 = arith.constant dense<0.000000e+00> : vector<1x120xf32>
    %402 = tpu.matmul %399, %401, %cst_236 {dimension_numbers = #tpu.dot_dimension_numbers<[1], [0], [0], [1], [0, 0, 1, 1], [], []>} : vector<1x137xbf16>, vector<137x120xbf16>, vector<1x120xf32> -> vector<1x120xf32>
    %403 = arith.addf %397, %402 : vector<1x120xf32>
    %404 = vector.extract_strided_slice %330 {offsets = [12, 0], sizes = [1, 137], strides = [1, 1]} : vector<16x137xf32> to vector<1x137xf32>
    %405 = arith.truncf %404 : vector<1x137xf32> to vector<1x137xbf16>
    %c12_237 = arith.constant 12 : index
    %c0_238 = arith.constant 0 : index
    %c0_239 = arith.constant 0 : index
    %406 = vector.load %arg7[%c12_237, %c0_238, %c0_239] : memref<16x137x120xbf16, #tpu.memory_space<vmem>>, vector<1x137x120xbf16>
    %407 = vector.shape_cast %406 : vector<1x137x120xbf16> to vector<137x120xbf16>
    %cst_240 = arith.constant dense<0.000000e+00> : vector<1x120xf32>
    %408 = tpu.matmul %405, %407, %cst_240 {dimension_numbers = #tpu.dot_dimension_numbers<[1], [0], [0], [1], [0, 0, 1, 1], [], []>} : vector<1x137xbf16>, vector<137x120xbf16>, vector<1x120xf32> -> vector<1x120xf32>
    %409 = arith.addf %403, %408 : vector<1x120xf32>
    %410 = vector.extract_strided_slice %330 {offsets = [13, 0], sizes = [1, 137], strides = [1, 1]} : vector<16x137xf32> to vector<1x137xf32>
    %411 = arith.truncf %410 : vector<1x137xf32> to vector<1x137xbf16>
    %c13_241 = arith.constant 13 : index
    %c0_242 = arith.constant 0 : index
    %c0_243 = arith.constant 0 : index
    %412 = vector.load %arg7[%c13_241, %c0_242, %c0_243] : memref<16x137x120xbf16, #tpu.memory_space<vmem>>, vector<1x137x120xbf16>
    %413 = vector.shape_cast %412 : vector<1x137x120xbf16> to vector<137x120xbf16>
    %cst_244 = arith.constant dense<0.000000e+00> : vector<1x120xf32>
    %414 = tpu.matmul %411, %413, %cst_244 {dimension_numbers = #tpu.dot_dimension_numbers<[1], [0], [0], [1], [0, 0, 1, 1], [], []>} : vector<1x137xbf16>, vector<137x120xbf16>, vector<1x120xf32> -> vector<1x120xf32>
    %415 = arith.addf %409, %414 : vector<1x120xf32>
    %416 = vector.extract_strided_slice %330 {offsets = [14, 0], sizes = [1, 137], strides = [1, 1]} : vector<16x137xf32> to vector<1x137xf32>
    %417 = arith.truncf %416 : vector<1x137xf32> to vector<1x137xbf16>
    %c14_245 = arith.constant 14 : index
    %c0_246 = arith.constant 0 : index
    %c0_247 = arith.constant 0 : index
    %418 = vector.load %arg7[%c14_245, %c0_246, %c0_247] : memref<16x137x120xbf16, #tpu.memory_space<vmem>>, vector<1x137x120xbf16>
    %419 = vector.shape_cast %418 : vector<1x137x120xbf16> to vector<137x120xbf16>
    %cst_248 = arith.constant dense<0.000000e+00> : vector<1x120xf32>
    %420 = tpu.matmul %417, %419, %cst_248 {dimension_numbers = #tpu.dot_dimension_numbers<[1], [0], [0], [1], [0, 0, 1, 1], [], []>} : vector<1x137xbf16>, vector<137x120xbf16>, vector<1x120xf32> -> vector<1x120xf32>
    %421 = arith.addf %415, %420 : vector<1x120xf32>
    %422 = vector.extract_strided_slice %330 {offsets = [15, 0], sizes = [1, 137], strides = [1, 1]} : vector<16x137xf32> to vector<1x137xf32>
    %423 = arith.truncf %422 : vector<1x137xf32> to vector<1x137xbf16>
    %c15_249 = arith.constant 15 : index
    %c0_250 = arith.constant 0 : index
    %c0_251 = arith.constant 0 : index
    %424 = vector.load %arg7[%c15_249, %c0_250, %c0_251] : memref<16x137x120xbf16, #tpu.memory_space<vmem>>, vector<1x137x120xbf16>
    %425 = vector.shape_cast %424 : vector<1x137x120xbf16> to vector<137x120xbf16>
    %cst_252 = arith.constant dense<0.000000e+00> : vector<1x120xf32>
    %426 = tpu.matmul %423, %425, %cst_252 {dimension_numbers = #tpu.dot_dimension_numbers<[1], [0], [0], [1], [0, 0, 1, 1], [], []>} : vector<1x137xbf16>, vector<137x120xbf16>, vector<1x120xf32> -> vector<1x120xf32>
    %427 = arith.addf %421, %426 : vector<1x120xf32>
    %c0_253 = arith.constant 0 : index
    %c0_254 = arith.constant 0 : index
    %428 = vector.load %arg8[%c0_253, %c0_254] : memref<1x120xf32, #tpu.memory_space<vmem>>, vector<1x120xf32>
    %429 = arith.addf %427, %428 : vector<1x120xf32>
    %cst_255 = arith.constant 0.000000e+00 : f32
    %430 = vector.broadcast %cst_255 : f32 to vector<1x120xf32>
    %431 = arith.maximumf %429, %430 : vector<1x120xf32>
    %432 = arith.truncf %431 : vector<1x120xf32> to vector<1x120xbf16>
    %c0_256 = arith.constant 0 : index
    %c0_257 = arith.constant 0 : index
    %433 = vector.load %arg9[%c0_256, %c0_257] : memref<120x84xbf16, #tpu.memory_space<vmem>>, vector<120x84xbf16>
    %cst_258 = arith.constant dense<0.000000e+00> : vector<1x84xf32>
    %434 = tpu.matmul %432, %433, %cst_258 {dimension_numbers = #tpu.dot_dimension_numbers<[1], [0], [0], [1], [0, 0, 1, 1], [], []>} : vector<1x120xbf16>, vector<120x84xbf16>, vector<1x84xf32> -> vector<1x84xf32>
    %c0_259 = arith.constant 0 : index
    %c0_260 = arith.constant 0 : index
    %435 = vector.load %arg10[%c0_259, %c0_260] : memref<1x84xf32, #tpu.memory_space<vmem>>, vector<1x84xf32>
    %436 = arith.addf %434, %435 : vector<1x84xf32>
    %cst_261 = arith.constant 0.000000e+00 : f32
    %437 = vector.broadcast %cst_261 : f32 to vector<1x84xf32>
    %438 = arith.maximumf %436, %437 : vector<1x84xf32>
    %439 = arith.truncf %438 : vector<1x84xf32> to vector<1x84xbf16>
    %c0_262 = arith.constant 0 : index
    %c0_263 = arith.constant 0 : index
    %440 = vector.load %arg11[%c0_262, %c0_263] : memref<84x128xbf16, #tpu.memory_space<vmem>>, vector<84x128xbf16>
    %cst_264 = arith.constant dense<0.000000e+00> : vector<1x128xf32>
    %441 = tpu.matmul %439, %440, %cst_264 {dimension_numbers = #tpu.dot_dimension_numbers<[1], [0], [0], [1], [0, 0, 1, 1], [], []>} : vector<1x84xbf16>, vector<84x128xbf16>, vector<1x128xf32> -> vector<1x128xf32>
    %c0_265 = arith.constant 0 : index
    %c0_266 = arith.constant 0 : index
    %442 = vector.load %arg12[%c0_265, %c0_266] : memref<1x128xf32, #tpu.memory_space<vmem>>, vector<1x128xf32>
    %443 = arith.addf %441, %442 : vector<1x128xf32>
    %c0_267 = arith.constant 0 : index
    %c0_268 = arith.constant 0 : index
    %c0_269 = arith.constant 0 : index
    %444 = vector.load %arg13[%c0_267, %c0_268, %c0_269] : memref<1x1x128xf32, #tpu.memory_space<vmem>>, vector<1x1x128xf32>
    %445 = vector.shape_cast %444 : vector<1x1x128xf32> to vector<1x128xf32>
    %446 = vector.shape_cast %443 : vector<1x128xf32> to vector<1x1x128xf32>
    tpu.vector_store %arg13[%c0_267, %c0_268, %c0_269], %446 {strides = array<i32>} : memref<1x1x128xf32, #tpu.memory_space<vmem>>, vector<1x1x128xf32>,
    return
  }
  func.func @transform_0(%arg0: i32) -> (i32, i32, i32) {
    %c0_i32 = arith.constant 0 : i32
    %c0_i32_0 = arith.constant 0 : i32
    %c0_i32_1 = arith.constant 0 : i32
    return %arg0, %c0_i32, %c0_i32_0 : i32, i32, i32
  }
  func.func @transform_1(%arg0: i32) -> (i32, i32, i32) {
    %c0_i32 = arith.constant 0 : i32
    %c0_i32_0 = arith.constant 0 : i32
    %c0_i32_1 = arith.constant 0 : i32
    %c0_i32_2 = arith.constant 0 : i32
    return %c0_i32, %c0_i32_0, %c0_i32_1 : i32, i32, i32
  }
  func.func @transform_2(%arg0: i32) -> (i32, i32) {
    %c0_i32 = arith.constant 0 : i32
    %c0_i32_0 = arith.constant 0 : i32
    %c0_i32_1 = arith.constant 0 : i32
    return %c0_i32, %c0_i32_0 : i32, i32
  }
  func.func @transform_3(%arg0: i32) -> (i32, i32) {
    %c0_i32 = arith.constant 0 : i32
    %c0_i32_0 = arith.constant 0 : i32
    %c0_i32_1 = arith.constant 0 : i32
    return %c0_i32, %c0_i32_0 : i32, i32
  }
  func.func @transform_4(%arg0: i32) -> (i32, i32, i32) {
    %c0_i32 = arith.constant 0 : i32
    %c0_i32_0 = arith.constant 0 : i32
    %c0_i32_1 = arith.constant 0 : i32
    %c0_i32_2 = arith.constant 0 : i32
    return %c0_i32, %c0_i32_0, %c0_i32_1 : i32, i32, i32
  }
  func.func @transform_5(%arg0: i32) -> (i32, i32) {
    %c0_i32 = arith.constant 0 : i32
    %c0_i32_0 = arith.constant 0 : i32
    %c0_i32_1 = arith.constant 0 : i32
    return %c0_i32, %c0_i32_0 : i32, i32
  }
  func.func @transform_6(%arg0: i32) -> (i32, i32, i32) {
    %c0_i32 = arith.constant 0 : i32
    %c0_i32_0 = arith.constant 0 : i32
    %c0_i32_1 = arith.constant 0 : i32
    %c0_i32_2 = arith.constant 0 : i32
    return %c0_i32, %c0_i32_0, %c0_i32_1 : i32, i32, i32
  }
  func.func @transform_7(%arg0: i32) -> (i32, i32) {
    %c0_i32 = arith.constant 0 : i32
    %c0_i32_0 = arith.constant 0 : i32
    %c0_i32_1 = arith.constant 0 : i32
    return %c0_i32, %c0_i32_0 : i32, i32
  }
  func.func @transform_8(%arg0: i32) -> (i32, i32) {
    %c0_i32 = arith.constant 0 : i32
    %c0_i32_0 = arith.constant 0 : i32
    %c0_i32_1 = arith.constant 0 : i32
    return %c0_i32, %c0_i32_0 : i32, i32
  }
  func.func @transform_9(%arg0: i32) -> (i32, i32) {
    %c0_i32 = arith.constant 0 : i32
    %c0_i32_0 = arith.constant 0 : i32
    %c0_i32_1 = arith.constant 0 : i32
    return %c0_i32, %c0_i32_0 : i32, i32
  }
  func.func @transform_10(%arg0: i32) -> (i32, i32) {
    %c0_i32 = arith.constant 0 : i32
    %c0_i32_0 = arith.constant 0 : i32
    %c0_i32_1 = arith.constant 0 : i32
    return %c0_i32, %c0_i32_0 : i32, i32
  }
  func.func @transform_11(%arg0: i32) -> (i32, i32) {
    %c0_i32 = arith.constant 0 : i32
    %c0_i32_0 = arith.constant 0 : i32
    %c0_i32_1 = arith.constant 0 : i32
    return %c0_i32, %c0_i32_0 : i32, i32
  }
  func.func @transform_12(%arg0: i32) -> (i32, i32, i32) {
    %c0_i32 = arith.constant 0 : i32
    %c0_i32_0 = arith.constant 0 : i32
    %c0_i32_1 = arith.constant 0 : i32
    return %arg0, %c0_i32, %c0_i32_0 : i32, i32, i32
  }
}

</mosaic_0001>

<llo_original>
// kernel: toy_forward.1
$region0: #{toy_forward.1}
  #allocation0 [shape = 'u32[]', space=smem, size = 0x4, offset = 0x4, fixed_abs, tag = 'smem constant byte address 0x4 - core index']
  #allocation1 [shape = 'u32[144,128]{1,0:T(1,128)}', space=vmem, size = 0x12000, scoped, tag = 'internal scratch']
  %s0 = inlined_call_operand.vmem [shape: f32[2,3,1024], index: 0, kind: input, shape index: {}]
  %s1 = inlined_call_operand.vmem [shape: bf16[25,6,3], index: 1, kind: input, shape index: {}]
  %s2 = inlined_call_operand.vmem [shape: f32[6,1], index: 2, kind: input, shape index: {}]
  %s3 = inlined_call_operand.vmem [shape: bf16[859,224], index: 3, kind: input, shape index: {}]
  %s4 = inlined_call_operand.vmem [shape: bf16[25,16,6], index: 4, kind: input, shape index: {}]
  %s5 = inlined_call_operand.vmem [shape: f32[16,1], index: 5, kind: input, shape index: {}]
  %s6 = inlined_call_operand.vmem [shape: bf16[16,137,120], index: 6, kind: input, shape index: {}]
  %s7 = inlined_call_operand.vmem [shape: f32[1,120], index: 7, kind: input, shape index: {}]
  %s8 = inlined_call_operand.vmem [shape: bf16[120,84], index: 8, kind: input, shape index: {}]
  %s9 = inlined_call_operand.vmem [shape: f32[1,84], index: 9, kind: input, shape index: {}]
  %s10 = inlined_call_operand.vmem [shape: bf16[84,128], index: 10, kind: input, shape index: {}]
  %s11 = inlined_call_operand.vmem [shape: f32[1,128], index: 11, kind: input, shape index: {}]
  %s12 = inlined_call_operand.hbm [shape: f32[2,1,128], index: 12, kind: output, shape index: {}]
  %s13 = sld [smem:[#allocation0]]
  $region81: #{toy_forward.1} parent=0
    _
  %s15 = ssub.s32 1, %s13
  %s16 = scalar_select 0, %s15, %s13
  $region1: #{toy_forward.1} parent=0
    #allocation2 [shape = 'u8[1024]{0}', space=vmem, size = 0x400, scoped, tag = 'output window, operand 0']
    #allocation3 [shape = 's32[2]{0}', space=sflag, size = 0x8, scoped, tag = 'scoped memory for toy_forward.1']
    %17 = vsyncpa [#allocation3], 0
    %s18 = scalar_lea.sflag [#allocation3], 1
    %19 = vsyncpa %s18, 0
    loop: start=0, step=1, limit=4
    $region2: #{toy_forward.1} parent=1 // loop_pre_header
      _
    $region3: #{toy_forward.1} parent=1 // loop_header
      %s21 = sphi 0, %s25
      %p22 = scmp.ge.s32.totalorder %s21, 4
      %s31 = sphi 0, %s33
      %s34 = sphi 0, %s31
      %s35 = sphi 0, %s34
      %s51 = sphi 0, %s35
      %s55 = sphi 0, %s55
      %s57 = sphi 0, %s55
      %s58 = sphi 0, %s57
      %s72 = sphi 0, %s58
      %s76 = sphi 0, %s76
      %s78 = sphi 0, %s76
      %s79 = sphi 0, %s78
      %s93 = sphi 0, %s79
      %s97 = sphi 0, %s97
      %s99 = sphi 0, %s97
      %s100 = sphi 0, %s99
      %s114 = sphi 0, %s100
      %s118 = sphi 0, %s118
      %s120 = sphi 0, %s118
      %s121 = sphi 0, %s120
      %s135 = sphi 0, %s121
      %s139 = sphi 0, %s139
      %s141 = sphi 0, %s139
      %s142 = sphi 0, %s141
      %s156 = sphi 0, %s142
      %s160 = sphi 0, %s160
      %s162 = sphi 0, %s160
      %s163 = sphi 0, %s162
      %s177 = sphi 0, %s163
      %s181 = sphi 0, %s181
      %s183 = sphi 0, %s181
      %s184 = sphi 0, %s183
      %s198 = sphi 0, %s184
      %s202 = sphi 0, %s202
      %s204 = sphi 0, %s202
      %s205 = sphi 0, %s204
      %s219 = sphi 0, %s205
      %s223 = sphi 0, %s223
      %s225 = sphi 0, %s223
      %s226 = sphi 0, %s225
      %s240 = sphi 0, %s226
      %s244 = sphi 0, %s244
      %s246 = sphi 0, %s244
      %s247 = sphi 0, %s246
      %s261 = sphi 0, %s247
      %s265 = sphi 0, %s265
      %s267 = sphi 0, %s265
      %s268 = sphi 0, %s267
      %s282 = sphi 0, %s268
      %s288 = sphi 0, %s290
      %s291 = sphi 0, %s288
      %s292 = sphi 0, %s291
      %s308 = sphi 0, %s292
    $region4: #{toy_forward.1} parent=1 // loop_header_branch
      %24 = sbr.rel (%p22) target = $region8
    $region5: #{toy_forward.1} parent=1 // loop_body
      %s26 = ssub.s32 %s21, 1
      %s27 = ssub.s32 %s21, 2
      %s28 = sadd.s32 %s21, 1
      %s29 = ssub.s32 %s21, %s28
      %p30 = scmp.eq.s32.totalorder %s29, 0
      %s32 = sadd.s32 %s31, 1
      %s33 = scalar_select %p30, %s31, %s32
      %p36 = pneg %p30
      %p37 = scmp.eq.s32.totalorder %s21, 1
      %p38 = por %p36, %p37
      %p39 = scmp.ne.s32.totalorder %s31, %s34
      %p40 = scmp.eq.s32.totalorder %s21, 0
      %p41 = por %p39, %p40
      %p42 = scmp.ne.s32.totalorder %s31, %s34
      %p43 = scmp.eq.s32.totalorder %s26, 1
      %p44 = por %p42, %p43
      %p45 = scmp.ne.s32.totalorder %s34, %s35
      %p46 = scmp.eq.s32.totalorder %s26, 0
      %p47 = por %p45, %p46
      %p48 = scmp.ne.s32.totalorder %s34, %s35
      %p49 = scmp.eq.s32.totalorder %s27, 1
      %p50 = por %p48, %p49
      %p52 = scmp.ne.s32.totalorder %s35, %s51
      %p53 = scmp.eq.s32.totalorder %s27, 0
      %p54 = por %p52, %p53
      %s56 = sadd.s32 %s55, 1
      %p59 = scmp.eq.s32.totalorder %s21, 1
      %p60 = scmp.ne.s32.totalorder %s55, %s57
      %p61 = scmp.eq.s32.totalorder %s21, 0
      %p62 = por %p60, %p61
      %p63 = scmp.ne.s32.totalorder %s55, %s57
      %p64 = scmp.eq.s32.totalorder %s26, 1
      %p65 = por %p63, %p64
      %p66 = scmp.ne.s32.totalorder %s57, %s58
      %p67 = scmp.eq.s32.totalorder %s26, 0
      %p68 = por %p66, %p67
      %p69 = scmp.ne.s32.totalorder %s57, %s58
      %p70 = scmp.eq.s32.totalorder %s27, 1
      %p71 = por %p69, %p70
      %p73 = scmp.ne.s32.totalorder %s58, %s72
      %p74 = scmp.eq.s32.totalorder %s27, 0
      %p75 = por %p73, %p74
      %s77 = sadd.s32 %s76, 1
      %p80 = scmp.eq.s32.totalorder %s21, 1
      %p81 = scmp.ne.s32.totalorder %s76, %s78
      %p82 = scmp.eq.s32.totalorder %s21, 0
      %p83 = por %p81, %p82
      %p84 = scmp.ne.s32.totalorder %s76, %s78
      %p85 = scmp.eq.s32.totalorder %s26, 1
      %p86 = por %p84, %p85
      %p87 = scmp.ne.s32.totalorder %s78, %s79
      %p88 = scmp.eq.s32.totalorder %s26, 0
      %p89 = por %p87, %p88
      %p90 = scmp.ne.s32.totalorder %s78, %s79
      %p91 = scmp.eq.s32.totalorder %s27, 1
      %p92 = por %p90, %p91
      %p94 = scmp.ne.s32.totalorder %s79, %s93
      %p95 = scmp.eq.s32.totalorder %s27, 0
      %p96 = por %p94, %p95
      %s98 = sadd.s32 %s97, 1
      %p101 = scmp.eq.s32.totalorder %s21, 1
      %p102 = scmp.ne.s32.totalorder %s97, %s99
      %p103 = scmp.eq.s32.totalorder %s21, 0
      %p104 = por %p102, %p103
      %p105 = scmp.ne.s32.totalorder %s97, %s99
      %p106 = scmp.eq.s32.totalorder %s26, 1
      %p107 = por %p105, %p106
      %p108 = scmp.ne.s32.totalorder %s99, %s100
      %p109 = scmp.eq.s32.totalorder %s26, 0
      %p110 = por %p108, %p109
      %p111 = scmp.ne.s32.totalorder %s99, %s100
      %p112 = scmp.eq.s32.totalorder %s27, 1
      %p113 = por %p111, %p112
      %p115 = scmp.ne.s32.totalorder %s100, %s114
      %p116 = scmp.eq.s32.totalorder %s27, 0
      %p117 = por %p115, %p116
      %s119 = sadd.s32 %s118, 1
      %p122 = scmp.eq.s32.totalorder %s21, 1
      %p123 = scmp.ne.s32.totalorder %s118, %s120
      %p124 = scmp.eq.s32.totalorder %s21, 0
      %p125 = por %p123, %p124
      %p126 = scmp.ne.s32.totalorder %s118, %s120
      %p127 = scmp.eq.s32.totalorder %s26, 1
      %p128 = por %p126, %p127
      %p129 = scmp.ne.s32.totalorder %s120, %s121
      %p130 = scmp.eq.s32.totalorder %s26, 0
      %p131 = por %p129, %p130
      %p132 = scmp.ne.s32.totalorder %s120, %s121
      %p133 = scmp.eq.s32.totalorder %s27, 1
      %p134 = por %p132, %p133
      %p136 = scmp.ne.s32.totalorder %s121, %s135
      %p137 = scmp.eq.s32.totalorder %s27, 0
      %p138 = por %p136, %p137
      %s140 = sadd.s32 %s139, 1
      %p143 = scmp.eq.s32.totalorder %s21, 1
      %p144 = scmp.ne.s32.totalorder %s139, %s141
      %p145 = scmp.eq.s32.totalorder %s21, 0
      %p146 = por %p144, %p145
      %p147 = scmp.ne.s32.totalorder %s139, %s141
      %p148 = scmp.eq.s32.totalorder %s26, 1
      %p149 = por %p147, %p148
      %p150 = scmp.ne.s32.totalorder %s141, %s142
      %p151 = scmp.eq.s32.totalorder %s26, 0
      %p152 = por %p150, %p151
      %p153 = scmp.ne.s32.totalorder %s141, %s142
      %p154 = scmp.eq.s32.totalorder %s27, 1
      %p155 = por %p153, %p154
      %p157 = scmp.ne.s32.totalorder %s142, %s156
      %p158 = scmp.eq.s32.totalorder %s27, 0
      %p159 = por %p157, %p158
      %s161 = sadd.s32 %s160, 1
      %p164 = scmp.eq.s32.totalorder %s21, 1
      %p165 = scmp.ne.s32.totalorder %s160, %s162
      %p166 = scmp.eq.s32.totalorder %s21, 0
      %p167 = por %p165, %p166
      %p168 = scmp.ne.s32.totalorder %s160, %s162
      %p169 = scmp.eq.s32.totalorder %s26, 1
      %p170 = por %p168, %p169
      %p171 = scmp.ne.s32.totalorder %s162, %s163
      %p172 = scmp.eq.s32.totalorder %s26, 0
      %p173 = por %p171, %p172
      %p174 = scmp.ne.s32.totalorder %s162, %s163
      %p175 = scmp.eq.s32.totalorder %s27, 1
      %p176 = por %p174, %p175
      %p178 = scmp.ne.s32.totalorder %s163, %s177
      %p179 = scmp.eq.s32.totalorder %s27, 0
      %p180 = por %p178, %p179
      %s182 = sadd.s32 %s181, 1
      %p185 = scmp.eq.s32.totalorder %s21, 1
      %p186 = scmp.ne.s32.totalorder %s181, %s183
      %p187 = scmp.eq.s32.totalorder %s21, 0
      %p188 = por %p186, %p187
      %p189 = scmp.ne.s32.totalorder %s181, %s183
      %p190 = scmp.eq.s32.totalorder %s26, 1
      %p191 = por %p189, %p190
      %p192 = scmp.ne.s32.totalorder %s183, %s184
      %p193 = scmp.eq.s32.totalorder %s26, 0
      %p194 = por %p192, %p193
      %p195 = scmp.ne.s32.totalorder %s183, %s184
      %p196 = scmp.eq.s32.totalorder %s27, 1
      %p197 = por %p195, %p196
      %p199 = scmp.ne.s32.totalorder %s184, %s198
      %p200 = scmp.eq.s32.totalorder %s27, 0
      %p201 = por %p199, %p200
      %s203 = sadd.s32 %s202, 1
      %p206 = scmp.eq.s32.totalorder %s21, 1
      %p207 = scmp.ne.s32.totalorder %s202, %s204
      %p208 = scmp.eq.s32.totalorder %s21, 0
      %p209 = por %p207, %p208
      %p210 = scmp.ne.s32.totalorder %s202, %s204
      %p211 = scmp.eq.s32.totalorder %s26, 1
      %p212 = por %p210, %p211
      %p213 = scmp.ne.s32.totalorder %s204, %s205
      %p214 = scmp.eq.s32.totalorder %s26, 0
      %p215 = por %p213, %p214
      %p216 = scmp.ne.s32.totalorder %s204, %s205
      %p217 = scmp.eq.s32.totalorder %s27, 1
      %p218 = por %p216, %p217
      %p220 = scmp.ne.s32.totalorder %s205, %s219
      %p221 = scmp.eq.s32.totalorder %s27, 0
      %p222 = por %p220, %p221
      %s224 = sadd.s32 %s223, 1
      %p227 = scmp.eq.s32.totalorder %s21, 1
      %p228 = scmp.ne.s32.totalorder %s223, %s225
      %p229 = scmp.eq.s32.totalorder %s21, 0
      %p230 = por %p228, %p229
      %p231 = scmp.ne.s32.totalorder %s223, %s225
      %p232 = scmp.eq.s32.totalorder %s26, 1
      %p233 = por %p231, %p232
      %p234 = scmp.ne.s32.totalorder %s225, %s226
      %p235 = scmp.eq.s32.totalorder %s26, 0
      %p236 = por %p234, %p235
      %p237 = scmp.ne.s32.totalorder %s225, %s226
      %p238 = scmp.eq.s32.totalorder %s27, 1
      %p239 = por %p237, %p238
      %p241 = scmp.ne.s32.totalorder %s226, %s240
      %p242 = scmp.eq.s32.totalorder %s27, 0
      %p243 = por %p241, %p242
      %s245 = sadd.s32 %s244, 1
      %p248 = scmp.eq.s32.totalorder %s21, 1
      %p249 = scmp.ne.s32.totalorder %s244, %s246
      %p250 = scmp.eq.s32.totalorder %s21, 0
      %p251 = por %p249, %p250
      %p252 = scmp.ne.s32.totalorder %s244, %s246
      %p253 = scmp.eq.s32.totalorder %s26, 1
      %p254 = por %p252, %p253
      %p255 = scmp.ne.s32.totalorder %s246, %s247
      %p256 = scmp.eq.s32.totalorder %s26, 0
      %p257 = por %p255, %p256
      %p258 = scmp.ne.s32.totalorder %s246, %s247
      %p259 = scmp.eq.s32.totalorder %s27, 1
      %p260 = por %p258, %p259
      %p262 = scmp.ne.s32.totalorder %s247, %s261
      %p263 = scmp.eq.s32.totalorder %s27, 0
      %p264 = por %p262, %p263
      %s266 = sadd.s32 %s265, 1
      %p269 = scmp.eq.s32.totalorder %s21, 1
      %p270 = scmp.ne.s32.totalorder %s265, %s267
      %p271 = scmp.eq.s32.totalorder %s21, 0
      %p272 = por %p270, %p271
      %p273 = scmp.ne.s32.totalorder %s265, %s267
      %p274 = scmp.eq.s32.totalorder %s26, 1
      %p275 = por %p273, %p274
      %p276 = scmp.ne.s32.totalorder %s267, %s268
      %p277 = scmp.eq.s32.totalorder %s26, 0
      %p278 = por %p276, %p277
      %p279 = scmp.ne.s32.totalorder %s267, %s268
      %p280 = scmp.eq.s32.totalorder %s27, 1
      %p281 = por %p279, %p280
      %p283 = scmp.ne.s32.totalorder %s268, %s282
      %p284 = scmp.eq.s32.totalorder %s27, 0
      %p285 = por %p283, %p284
      %s286 = ssub.s32 %s21, %s28
      %p287 = scmp.eq.s32.totalorder %s286, 0
      %s289 = sadd.s32 %s288, 1
      %s290 = scalar_select %p287, %s288, %s289
      %p293 = pneg %p287
      %p294 = scmp.eq.s32.totalorder %s21, 1
      %p295 = por %p293, %p294
      %p296 = scmp.ne.s32.totalorder %s288, %s291
      %p297 = scmp.eq.s32.totalorder %s21, 0
      %p298 = por %p296, %p297
      %p299 = scmp.ne.s32.totalorder %s288, %s291
      %p300 = scmp.eq.s32.totalorder %s26, 1
      %p301 = por %p299, %p300
      %p302 = scmp.ne.s32.totalorder %s291, %s292
      %p303 = scmp.eq.s32.totalorder %s26, 0
      %p304 = por %p302, %p303
      %p305 = scmp.ne.s32.totalorder %s291, %s292
      %p306 = scmp.eq.s32.totalorder %s27, 1
      %p307 = por %p305, %p306
      %p309 = scmp.ne.s32.totalorder %s292, %s308
      %p310 = scmp.eq.s32.totalorder %s27, 0
      %p311 = por %p309, %p310
      %p312 = scmp.le.s32.totalorder 1, %s21
      %p313 = scmp.lt.s32.totalorder %s21, 3
      %p314 = pnand %p312, %p313
      %p315 = pneg %p314
      // Predicated region
      $region9: #{toy_forward.1} parent=5 // pred_check
        _
      $region10: #{toy_forward.1} parent=5 // pred_check_branch
        %317 = sbr.rel (%p314) target = $region12
      $region11: #{toy_forward.1} parent=5 // pred_region
        %s318 = ssub.s32 %s21, 1
        // Predicated region
        $region13: #{toy_forward.1} parent=11 // pred_check
          %p319 = pneg %p68
        $region14: #{toy_forward.1} parent=11 // pred_check_branch
          %321 = sbr.rel (%p319) target = $region16
        $region15: #{toy_forward.1} parent=11 // pred_region
          _
        $region16: #{toy_forward.1} parent=11 // pred_fallthru
          _
        // Predicated region
        $region17: #{toy_forward.1} parent=11 // pred_check
          %p322 = pneg %p89
        $region18: #{toy_forward.1} parent=11 // pred_check_branch
          %324 = sbr.rel (%p322) target = $region20
        $region19: #{toy_forward.1} parent=11 // pred_region
          _
        $region20: #{toy_forward.1} parent=11 // pred_fallthru
          _
        // Predicated region
        $region21: #{toy_forward.1} parent=11 // pred_check
          %p325 = pneg %p110
        $region22: #{toy_forward.1} parent=11 // pred_check_branch
          %327 = sbr.rel (%p325) target = $region24
        $region23: #{toy_forward.1} parent=11 // pred_region
          _
        $region24: #{toy_forward.1} parent=11 // pred_fallthru
          _
        // Predicated region
        $region25: #{toy_forward.1} parent=11 // pred_check
          %p328 = pneg %p131
        $region26: #{toy_forward.1} parent=11 // pred_check_branch
          %330 = sbr.rel (%p328) target = $region28
        $region27: #{toy_forward.1} parent=11 // pred_region
          _
        $region28: #{toy_forward.1} parent=11 // pred_fallthru
          _
        // Predicated region
        $region29: #{toy_forward.1} parent=11 // pred_check
          %p331 = pneg %p152
        $region30: #{toy_forward.1} parent=11 // pred_check_branch
          %333 = sbr.rel (%p331) target = $region32
        $region31: #{toy_forward.1} parent=11 // pred_region
          _
        $region32: #{toy_forward.1} parent=11 // pred_fallthru
          _
        // Predicated region
        $region33: #{toy_forward.1} parent=11 // pred_check
          %p334 = pneg %p173
        $region34: #{toy_forward.1} parent=11 // pred_check_branch
          %336 = sbr.rel (%p334) target = $region36
        $region35: #{toy_forward.1} parent=11 // pred_region
          _
        $region36: #{toy_forward.1} parent=11 // pred_fallthru
          _
        // Predicated region
        $region37: #{toy_forward.1} parent=11 // pred_check
          %p337 = pneg %p194
        $region38: #{toy_forward.1} parent=11 // pred_check_branch
          %339 = sbr.rel (%p337) target = $region40
        $region39: #{toy_forward.1} parent=11 // pred_region
          _
        $region40: #{toy_forward.1} parent=11 // pred_fallthru
          _
        // Predicated region
        $region41: #{toy_forward.1} parent=11 // pred_check
          %p340 = pneg %p215
        $region42: #{toy_forward.1} parent=11 // pred_check_branch
          %342 = sbr.rel (%p340) target = $region44
        $region43: #{toy_forward.1} parent=11 // pred_region
          _
        $region44: #{toy_forward.1} parent=11 // pred_fallthru
          _
        // Predicated region
        $region45: #{toy_forward.1} parent=11 // pred_check
          %p343 = pneg %p236
        $region46: #{toy_forward.1} parent=11 // pred_check_branch
          %345 = sbr.rel (%p343) target = $region48
        $region47: #{toy_forward.1} parent=11 // pred_region
          _
        $region48: #{toy_forward.1} parent=11 // pred_fallthru
          _
        // Predicated region
        $region49: #{toy_forward.1} parent=11 // pred_check
          %p346 = pneg %p257
        $region50: #{toy_forward.1} parent=11 // pred_check_branch
          %348 = sbr.rel (%p346) target = $region52
        $region51: #{toy_forward.1} parent=11 // pred_region
          _
        $region52: #{toy_forward.1} parent=11 // pred_fallthru
          _
        // Predicated region
        $region53: #{toy_forward.1} parent=11 // pred_check
          %p349 = pneg %p278
        $region54: #{toy_forward.1} parent=11 // pred_check_branch
          %351 = sbr.rel (%p349) target = $region56
        $region55: #{toy_forward.1} parent=11 // pred_region
          _
        $region56: #{toy_forward.1} parent=11 // pred_fallthru
          _
      $region12: #{toy_forward.1} parent=5 // pred_fallthru
        _
      %p352 = scmp.lt.s32.totalorder %s21, 2
      // Predicated region
      $region57: #{toy_forward.1} parent=5 // pred_check
        %p353 = pneg %p352
      $region58: #{toy_forward.1} parent=5 // pred_check_branch
        %355 = sbr.rel (%p353) target = $region60
      $region59: #{toy_forward.1} parent=5 // pred_region
        // Predicated region
        $region61: #{toy_forward.1} parent=59 // pred_check
          %p356 = pneg %p41
        $region62: #{toy_forward.1} parent=59 // pred_check_branch
          %358 = sbr.rel (%p356) target = $region64
        $region63: #{toy_forward.1} parent=59 // pred_region
          %p359 = scmp.lt.s32.totalorder %s21, 1
          %s360 = scalar_select %p359, %s21, 1
          %s361 = smul.addr %s360, 8
          %s362 = smul.addr %s361, 4
          %s363 = scalar_lea.vmem %s0, %s362
        $region64: #{toy_forward.1} parent=59 // pred_fallthru
          _
      $region60: #{toy_forward.1} parent=5 // pred_fallthru
        _
      %p364 = scmp.le.s32.totalorder 1, %s21
      %p365 = scmp.lt.s32.totalorder %s21, 3
      %p366 = pnand %p364, %p365
      %p367 = pneg %p366
      // Predicated region
      $region65: #{toy_forward.1} parent=5 // pred_check
        _
      $region66: #{toy_forward.1} parent=5 // pred_check_branch
        %369 = sbr.rel (%p366) target = $region68
      $region67: #{toy_forward.1} parent=5 // pred_region
        %s370 = ssub.s32 %s21, 1
        %p371 = scmp.lt.s32.totalorder %s26, 1
        %s372 = scalar_select %p371, %s26, 1
        %s373 = smul.addr %s372, 8
        %s374 = smul.addr %s373, 4
        %s375 = scalar_lea.vmem %s0, %s374
        %p376 = pneg %p47
        %p377 = pneg %p44
        %p378 = pneg %p68
        %p379 = pneg %p65
        %p380 = pneg %p89
        %p381 = pneg %p86
        %p382 = pneg %p110
        %p383 = pneg %p107
        %p384 = pneg %p131
        %p385 = pneg %p128
        %p386 = pneg %p152
        %p387 = pneg %p149
        %p388 = pneg %p173
        %p389 = pneg %p170
        %p390 = pneg %p194
        %p391 = pneg %p191
        %p392 = pneg %p215
        %p393 = pneg %p212
        %p394 = pneg %p236
        %p395 = pneg %p233
        %p396 = pneg %p257
        %p397 = pneg %p254
        %p398 = pneg %p278
        %p399 = pneg %p275
        %p400 = pneg %p304
        %p401 = pneg %p301
        %s402 = sand.u32 %s291, 1
        %s403 = scalar_lea.sflag [#allocation3], %s402
        %s404 = sand.u32 %s291, 1
        %s405 = scalar_lea.vmem [#allocation2], %s404
        %p406 = scmp.lt.s32.totalorder %s26, 1
        %s407 = scalar_select %p406, %s26, 1
        %s408 = smul.addr %s407, 8
        %s409 = smul.addr %s408, 4
        %s410 = scalar_lea.vmem %s0, %s409
        %v412 = vld [vmem:[%s410] sm:$0x77]
        %v413 = vld [vmem:[%s410 + $0x8] sm:$0x77]
        %v414 = vld [vmem:[%s410 + $0x10] sm:$0x77]
        %v415 = vld [vmem:[%s410 + $0x18] sm:$0x77]
        %v416 = vld [vmem:[%s1] sm:$0x7]
        %v421 = vcombine.high %v412, %v412
        %v422 = vcombine.high %v413, %v413
        %v423 = vcombine.high %v414, %v414
        %v427 = vpack.c.bf16 %v412, %v412
        %v428 = vpack.c.bf16 %v421, %v421
        %v429 = vpack.c.bf16 %v413, %v413
        %v430 = vpack.c.bf16 %v422, %v422
        %v431 = vpack.c.bf16 %v414, %v414
        %v432 = vpack.c.bf16 %v423, %v423
        %v433 = vpack.c.bf16 %v415, %v415
        %s434 = scalar_lea.vmem %s1, 4
        %v435 = vld [vmem:[%s434] sm:$0x7]
        %443 = vrot.lane.b32.xlu0 %v427, 127
        %v444 = vpop.permute.xlu0 %443
        %445 = vrot.lane.b32.xlu0 %v428, 127
        %v446 = vpop.permute.xlu0 %445
        %447 = vrot.lane.b32.xlu0 %v429, 127
        %v448 = vpop.permute.xlu0 %447
        %449 = vrot.lane.b32.xlu0 %v430, 127
        %v450 = vpop.permute.xlu0 %449
        %451 = vrot.lane.b32.xlu0 %v431, 127
        %v452 = vpop.permute.xlu0 %451
        %453 = vrot.lane.b32.xlu0 %v432, 127
        %v454 = vpop.permute.xlu0 %453
        %455 = vrot.lane.b32.xlu0 %v433, 127
        %v456 = vpop.permute.xlu0 %455
        %vm457 = vcmask 1039360
        %v458 = vsel %vm457, %v444, %v446
        %v459 = vsel %vm457, %v446, %v448
        %v460 = vsel %vm457, %v448, %v450
        %v461 = vsel %vm457, %v450, %v452
        %v462 = vsel %vm457, %v452, %v454
        %v463 = vsel %vm457, %v454, %v456
        %vm464 = vcmask 23552
        %v466 = vsel %vm464, %v435, 0
        %vm468 = vcmask 1040384
        %vm469 = vcmask 1041408
        %v470 = vsel %vm468, 4294967295, 65535
        %v471 = vsel %vm469, %v470, 0
        %v473 = vand.u32 %v458, %v471
        %v476 = vand.u32 %v459, %v471
        %v479 = vand.u32 %v460, %v471
        %v482 = vand.u32 %v461, %v471
        %v485 = vand.u32 %v462, %v471
        %v488 = vand.u32 %v463, %v471
        %v491 = vand.u32 %v456, %v471
        %493 = vmatprep.subr.bf16.mxu0 %v476
        %494 = vmatpush1.bf16.msra.mxu0 %v473
        %495 = vmatprep.subr.bf16.mxu0 0
        %496 = vmatpush1.bf16.msra.mxu0 0
        %497 = vmatprep.subr.bf16.mxu0 0
        %498 = vmatpush1.bf16.msra.mxu0 0
        %499 = vmatprep.subr.bf16.mxu0 0
        %500 = vmatpush1.bf16.msra.mxu0 0
        %501 = vmatprep.subr.bf16.mxu0 0
        %502 = vmatpush1.bf16.msra.mxu0 0
        %503 = vmatprep.subr.bf16.mxu0 0
        %504 = vmatpush1.bf16.msra.mxu0 0
        %505 = vmatprep.subr.bf16.mxu0 0
        %506 = vmatpush1.bf16.msra.mxu0 0
        %507 = vmatprep.subr.bf16.mxu0 0
        %508 = vmatpush1.bf16.msra.mxu0 0
        %509 = vmatprep.subr.bf16.mxu0 0
        %510 = vmatpush1.bf16.msra.mxu0 0
        %511 = vmatprep.subr.bf16.mxu0 0
        %512 = vmatpush1.bf16.msra.mxu0 0
        %513 = vmatprep.subr.bf16.mxu0 0
        %514 = vmatpush1.bf16.msra.mxu0 0
        %515 = vmatprep.subr.bf16.mxu0 0
        %516 = vmatpush1.bf16.msra.mxu0 0
        %517 = vmatprep.subr.bf16.mxu0 0
        %518 = vmatpush1.bf16.msra.mxu0 0
        %519 = vmatprep.subr.bf16.mxu0 0
        %520 = vmatpush1.bf16.msra.mxu0 0
        %521 = vmatprep.subr.bf16.mxu0 0
        %522 = vmatpush1.bf16.msra.mxu0 0
        %523 = vmatprep.subr.bf16.mxu0 0
        %524 = vmatpush1.bf16.msra.mxu0 0
        %525 = vmatprep.mubr.bf16.mxu0 0
        %526 = vmatmul.mubr.bf16.gmra.mrb[0].mxu0 %v466
        %v527 = vpop.f32.mrb[0].mxu0
        %v528 = vadd.f32 0.0, %v527
        %v529 = vpop.f32.mrb[0].mxu0
        %v530 = vadd.f32 0.0, %v529
        %v531 = vpop.f32.mrb[0].mxu0
        %v532 = vpop.f32.mrb[0].mxu0
        %533 = vdwg.mxu0
        %534 = vmatprep.subr.bf16.mxu0 %v482
        %535 = vmatpush1.bf16.msra.mxu0 %v479
        %536 = vmatprep.subr.bf16.mxu0 0
        %537 = vmatpush1.bf16.msra.mxu0 0
        %538 = vmatprep.subr.bf16.mxu0 0
        %539 = vmatpush1.bf16.msra.mxu0 0
        %540 = vmatprep.subr.bf16.mxu0 0
        %541 = vmatpush1.bf16.msra.mxu0 0
        %542 = vmatprep.subr.bf16.mxu0 0
        %543 = vmatpush1.bf16.msra.mxu0 0
        %544 = vmatprep.subr.bf16.mxu0 0
        %545 = vmatpush1.bf16.msra.mxu0 0
        %546 = vmatprep.subr.bf16.mxu0 0
        %547 = vmatpush1.bf16.msra.mxu0 0
        %548 = vmatprep.subr.bf16.mxu0 0
        %549 = vmatpush1.bf16.msra.mxu0 0
        %550 = vmatprep.subr.bf16.mxu0 0
        %551 = vmatpush1.bf16.msra.mxu0 0
        %552 = vmatprep.subr.bf16.mxu0 0
        %553 = vmatpush1.bf16.msra.mxu0 0
        %554 = vmatprep.subr.bf16.mxu0 0
        %555 = vmatpush1.bf16.msra.mxu0 0
        %556 = vmatprep.subr.bf16.mxu0 0
        %557 = vmatpush1.bf16.msra.mxu0 0
        %558 = vmatprep.subr.bf16.mxu0 0
        %559 = vmatpush1.bf16.msra.mxu0 0
        %560 = vmatprep.subr.bf16.mxu0 0
        %561 = vmatpush1.bf16.msra.mxu0 0
        %562 = vmatprep.subr.bf16.mxu0 0
        %563 = vmatpush1.bf16.msra.mxu0 0
        %564 = vmatprep.subr.bf16.mxu0 0
        %565 = vmatpush1.bf16.msra.mxu0 0
        %566 = vmatprep.mubr.bf16.mxu0 0
        %567 = vmatmul.mubr.bf16.gmra.mrb[0].mxu0 %v466
        %v568 = vpop.f32.mrb[0].mxu0
        %v569 = vadd.f32 0.0, %v568
        %v570 = vpop.f32.mrb[0].mxu0
        %v571 = vadd.f32 0.0, %v570
        %v572 = vpop.f32.mrb[0].mxu0
        %v573 = vpop.f32.mrb[0].mxu0
        %574 = vdwg.mxu0
        %575 = vmatprep.subr.bf16.mxu0 %v488
        %576 = vmatpush1.bf16.msra.mxu0 %v485
        %577 = vmatprep.subr.bf16.mxu0 0
        %578 = vmatpush1.bf16.msra.mxu0 0
        %579 = vmatprep.subr.bf16.mxu0 0
        %580 = vmatpush1.bf16.msra.mxu0 0
        %581 = vmatprep.subr.bf16.mxu0 0
        %582 = vmatpush1.bf16.msra.mxu0 0
        %583 = vmatprep.subr.bf16.mxu0 0
        %584 = vmatpush1.bf16.msra.mxu0 0
        %585 = vmatprep.subr.bf16.mxu0 0
        %586 = vmatpush1.bf16.msra.mxu0 0
        %587 = vmatprep.subr.bf16.mxu0 0
        %588 = vmatpush1.bf16.msra.mxu0 0
        %589 = vmatprep.subr.bf16.mxu0 0
        %590 = vmatpush1.bf16.msra.mxu0 0
        %591 = vmatprep.subr.bf16.mxu0 0
        %592 = vmatpush1.bf16.msra.mxu0 0
        %593 = vmatprep.subr.bf16.mxu0 0
        %594 = vmatpush1.bf16.msra.mxu0 0
        %595 = vmatprep.subr.bf16.mxu0 0
        %596 = vmatpush1.bf16.msra.mxu0 0
        %597 = vmatprep.subr.bf16.mxu0 0
        %598 = vmatpush1.bf16.msra.mxu0 0
        %599 = vmatprep.subr.bf16.mxu0 0
        %600 = vmatpush1.bf16.msra.mxu0 0
        %601 = vmatprep.subr.bf16.mxu0 0
        %602 = vmatpush1.bf16.msra.mxu0 0
        %603 = vmatprep.subr.bf16.mxu0 0
        %604 = vmatpush1.bf16.msra.mxu0 0
        %605 = vmatprep.subr.bf16.mxu0 0
        %606 = vmatpush1.bf16.msra.mxu0 0
        %607 = vmatprep.mubr.bf16.mxu0 0
        %608 = vmatmul.mubr.bf16.gmra.mrb[0].mxu0 %v466
        %v609 = vpop.f32.mrb[0].mxu0
        %v610 = vadd.f32 0.0, %v609
        %v611 = vpop.f32.mrb[0].mxu0
        %v612 = vadd.f32 0.0, %v611
        %v613 = vpop.f32.mrb[0].mxu0
        %v614 = vpop.f32.mrb[0].mxu0
        %615 = vdwg.mxu0
        %616 = vmatprep.subr.bf16.mxu0 0
        %617 = vmatpush1.bf16.msra.mxu0 %v491
        %618 = vmatprep.subr.bf16.mxu0 0
        %619 = vmatpush1.bf16.msra.mxu0 0
        %620 = vmatprep.subr.bf16.mxu0 0
        %621 = vmatpush1.bf16.msra.mxu0 0
        %622 = vmatprep.subr.bf16.mxu0 0
        %623 = vmatpush1.bf16.msra.mxu0 0
        %624 = vmatprep.subr.bf16.mxu0 0
        %625 = vmatpush1.bf16.msra.mxu0 0
        %626 = vmatprep.subr.bf16.mxu0 0
        %627 = vmatpush1.bf16.msra.mxu0 0
        %628 = vmatprep.subr.bf16.mxu0 0
        %629 = vmatpush1.bf16.msra.mxu0 0
        %630 = vmatprep.subr.bf16.mxu0 0
        %631 = vmatpush1.bf16.msra.mxu0 0
        %632 = vmatprep.subr.bf16.mxu0 0
        %633 = vmatpush1.bf16.msra.mxu0 0
        %634 = vmatprep.subr.bf16.mxu0 0
        %635 = vmatpush1.bf16.msra.mxu0 0
        %636 = vmatprep.subr.bf16.mxu0 0
        %637 = vmatpush1.bf16.msra.mxu0 0
        %638 = vmatprep.subr.bf16.mxu0 0
        %639 = vmatpush1.bf16.msra.mxu0 0
        %640 = vmatprep.subr.bf16.mxu0 0
        %641 = vmatpush1.bf16.msra.mxu0 0
        %642 = vmatprep.subr.bf16.mxu0 0
        %643 = vmatpush1.bf16.msra.mxu0 0
        %644 = vmatprep.subr.bf16.mxu0 0
        %645 = vmatpush1.bf16.msra.mxu0 0
        %646 = vmatprep.subr.bf16.mxu0 0
        %647 = vmatpush1.bf16.msra.mxu0 0
        %648 = vmatprep.mubr.bf16.mxu0 0
        %649 = vmatmul.mubr.bf16.gmra.mrb[0].mxu0 %v466
        %v650 = vpop.f32.mrb[0].mxu0
        %v651 = vadd.f32 0.0, %v650
        %v652 = vpop.f32.mrb[0].mxu0
        %v653 = vpop.f32.mrb[0].mxu0
        %v654 = vpop.f32.mrb[0].mxu0
        %655 = vdwg.mxu0
        %v657 = vsel %vm464, %v416, 0
        %v660 = vand.u32 %v427, %v471
        %v663 = vand.u32 %v428, %v471
        %v666 = vand.u32 %v429, %v471
        %v669 = vand.u32 %v430, %v471
        %v672 = vand.u32 %v431, %v471
        %v675 = vand.u32 %v432, %v471
        %v678 = vand.u32 %v433, %v471
        %680 = vmatprep.subr.bf16.mxu0 %v663
        %681 = vmatpush1.bf16.msra.mxu0 %v660
        %682 = vmatprep.subr.bf16.mxu0 0
        %683 = vmatpush1.bf16.msra.mxu0 0
        %684 = vmatprep.subr.bf16.mxu0 0
        %685 = vmatpush1.bf16.msra.mxu0 0
        %686 = vmatprep.subr.bf16.mxu0 0
        %687 = vmatpush1.bf16.msra.mxu0 0
        %688 = vmatprep.subr.bf16.mxu0 0
        %689 = vmatpush1.bf16.msra.mxu0 0
        %690 = vmatprep.subr.bf16.mxu0 0
        %691 = vmatpush1.bf16.msra.mxu0 0
        %692 = vmatprep.subr.bf16.mxu0 0
        %693 = vmatpush1.bf16.msra.mxu0 0
        %694 = vmatprep.subr.bf16.mxu0 0
        %695 = vmatpush1.bf16.msra.mxu0 0
        %696 = vmatprep.subr.bf16.mxu0 0
        %697 = vmatpush1.bf16.msra.mxu0 0
        %698 = vmatprep.subr.bf16.mxu0 0
        %699 = vmatpush1.bf16.msra.mxu0 0
        %700 = vmatprep.subr.bf16.mxu0 0
        %701 = vmatpush1.bf16.msra.mxu0 0
        %702 = vmatprep.subr.bf16.mxu0 0
        %703 = vmatpush1.bf16.msra.mxu0 0
        %704 = vmatprep.subr.bf16.mxu0 0
        %705 = vmatpush1.bf16.msra.mxu0 0
        %706 = vmatprep.subr.bf16.mxu0 0
        %707 = vmatpush1.bf16.msra.mxu0 0
        %708 = vmatprep.subr.bf16.mxu0 0
        %709 = vmatpush1.bf16.msra.mxu0 0
        %710 = vmatprep.subr.bf16.mxu0 0
        %711 = vmatpush1.bf16.msra.mxu0 0
        %712 = vmatprep.mubr.bf16.mxu0 0
        %713 = vmatmul.mubr.bf16.gmra.mrb[0].mxu0 %v657
        %v714 = vpop.f32.mrb[0].mxu0
        %v715 = vadd.f32 %v528, %v714
        %v716 = vpop.f32.mrb[0].mxu0
        %v717 = vadd.f32 %v530, %v716
        %v718 = vpop.f32.mrb[0].mxu0
        %v719 = vpop.f32.mrb[0].mxu0
        %720 = vdwg.mxu0
        %721 = vmatprep.subr.bf16.mxu0 %v669
        %722 = vmatpush1.bf16.msra.mxu0 %v666
        %723 = vmatprep.subr.bf16.mxu0 0
        %724 = vmatpush1.bf16.msra.mxu0 0
        %725 = vmatprep.subr.bf16.mxu0 0
        %726 = vmatpush1.bf16.msra.mxu0 0
        %727 = vmatprep.subr.bf16.mxu0 0
        %728 = vmatpush1.bf16.msra.mxu0 0
        %729 = vmatprep.subr.bf16.mxu0 0
        %730 = vmatpush1.bf16.msra.mxu0 0
        %731 = vmatprep.subr.bf16.mxu0 0
        %732 = vmatpush1.bf16.msra.mxu0 0
        %733 = vmatprep.subr.bf16.mxu0 0
        %734 = vmatpush1.bf16.msra.mxu0 0
        %735 = vmatprep.subr.bf16.mxu0 0
        %736 = vmatpush1.bf16.msra.mxu0 0
        %737 = vmatprep.subr.bf16.mxu0 0
        %738 = vmatpush1.bf16.msra.mxu0 0
        %739 = vmatprep.subr.bf16.mxu0 0
        %740 = vmatpush1.bf16.msra.mxu0 0
        %741 = vmatprep.subr.bf16.mxu0 0
        %742 = vmatpush1.bf16.msra.mxu0 0
        %743 = vmatprep.subr.bf16.mxu0 0
        %744 = vmatpush1.bf16.msra.mxu0 0
        %745 = vmatprep.subr.bf16.mxu0 0
        %746 = vmatpush1.bf16.msra.mxu0 0
        %747 = vmatprep.subr.bf16.mxu0 0
        %748 = vmatpush1.bf16.msra.mxu0 0
        %749 = vmatprep.subr.bf16.mxu0 0
        %750 = vmatpush1.bf16.msra.mxu0 0
        %751 = vmatprep.subr.bf16.mxu0 0
        %752 = vmatpush1.bf16.msra.mxu0 0
        %753 = vmatprep.mubr.bf16.mxu0 0
        %754 = vmatmul.mubr.bf16.gmra.mrb[0].mxu0 %v657
        %v755 = vpop.f32.mrb[0].mxu0
        %v756 = vadd.f32 %v569, %v755
        %v757 = vpop.f32.mrb[0].mxu0
        %v758 = vadd.f32 %v571, %v757
        %v759 = vpop.f32.mrb[0].mxu0
        %v760 = vpop.f32.mrb[0].mxu0
        %761 = vdwg.mxu0
        %762 = vmatprep.subr.bf16.mxu0 %v675
        %763 = vmatpush1.bf16.msra.mxu0 %v672
        %764 = vmatprep.subr.bf16.mxu0 0
        %765 = vmatpush1.bf16.msra.mxu0 0
        %766 = vmatprep.subr.bf16.mxu0 0
        %767 = vmatpush1.bf16.msra.mxu0 0
        %768 = vmatprep.subr.bf16.mxu0 0
        %769 = vmatpush1.bf16.msra.mxu0 0
        %770 = vmatprep.subr.bf16.mxu0 0
        %771 = vmatpush1.bf16.msra.mxu0 0
        %772 = vmatprep.subr.bf16.mxu0 0
        %773 = vmatpush1.bf16.msra.mxu0 0
        %774 = vmatprep.subr.bf16.mxu0 0
        %775 = vmatpush1.bf16.msra.mxu0 0
        %776 = vmatprep.subr.bf16.mxu0 0
        %777 = vmatpush1.bf16.msra.mxu0 0
        %778 = vmatprep.subr.bf16.mxu0 0
        %779 = vmatpush1.bf16.msra.mxu0 0
        %780 = vmatprep.subr.bf16.mxu0 0
        %781 = vmatpush1.bf16.msra.mxu0 0
        %782 = vmatprep.subr.bf16.mxu0 0
        %783 = vmatpush1.bf16.msra.mxu0 0
        %784 = vmatprep.subr.bf16.mxu0 0
        %785 = vmatpush1.bf16.msra.mxu0 0
        %786 = vmatprep.subr.bf16.mxu0 0
        %787 = vmatpush1.bf16.msra.mxu0 0
        %788 = vmatprep.subr.bf16.mxu0 0
        %789 = vmatpush1.bf16.msra.mxu0 0
        %790 = vmatprep.subr.bf16.mxu0 0
        %791 = vmatpush1.bf16.msra.mxu0 0
        %792 = vmatprep.subr.bf16.mxu0 0
        %793 = vmatpush1.bf16.msra.mxu0 0
        %794 = vmatprep.mubr.bf16.mxu0 0
        %795 = vmatmul.mubr.bf16.gmra.mrb[0].mxu0 %v657
        %v796 = vpop.f32.mrb[0].mxu0
        %v797 = vadd.f32 %v610, %v796
        %v798 = vpop.f32.mrb[0].mxu0
        %v799 = vadd.f32 %v612, %v798
        %v800 = vpop.f32.mrb[0].mxu0
        %v801 = vpop.f32.mrb[0].mxu0
        %802 = vdwg.mxu0
        %803 = vmatprep.subr.bf16.mxu0 0
        %804 = vmatpush1.bf16.msra.mxu0 %v678
        %805 = vmatprep.subr.bf16.mxu0 0
        %806 = vmatpush1.bf16.msra.mxu0 0
        %807 = vmatprep.subr.bf16.mxu0 0
        %808 = vmatpush1.bf16.msra.mxu0 0
        %809 = vmatprep.subr.bf16.mxu0 0
        %810 = vmatpush1.bf16.msra.mxu0 0
        %811 = vmatprep.subr.bf16.mxu0 0
        %812 = vmatpush1.bf16.msra.mxu0 0
        %813 = vmatprep.subr.bf16.mxu0 0
        %814 = vmatpush1.bf16.msra.mxu0 0
        %815 = vmatprep.subr.bf16.mxu0 0
        %816 = vmatpush1.bf16.msra.mxu0 0
        %817 = vmatprep.subr.bf16.mxu0 0
        %818 = vmatpush1.bf16.msra.mxu0 0
        %819 = vmatprep.subr.bf16.mxu0 0
        %820 = vmatpush1.bf16.msra.mxu0 0
        %821 = vmatprep.subr.bf16.mxu0 0
        %822 = vmatpush1.bf16.msra.mxu0 0
        %823 = vmatprep.subr.bf16.mxu0 0
        %824 = vmatpush1.bf16.msra.mxu0 0
        %825 = vmatprep.subr.bf16.mxu0 0
        %826 = vmatpush1.bf16.msra.mxu0 0
        %827 = vmatprep.subr.bf16.mxu0 0
        %828 = vmatpush1.bf16.msra.mxu0 0
        %829 = vmatprep.subr.bf16.mxu0 0
        %830 = vmatpush1.bf16.msra.mxu0 0
        %831 = vmatprep.subr.bf16.mxu0 0
        %832 = vmatpush1.bf16.msra.mxu0 0
        %833 = vmatprep.subr.bf16.mxu0 0
        %834 = vmatpush1.bf16.msra.mxu0 0
        %835 = vmatprep.mubr.bf16.mxu0 0
        %836 = vmatmul.mubr.bf16.gmra.mrb[0].mxu0 %v657
        %v837 = vpop.f32.mrb[0].mxu0
        %v838 = vadd.f32 %v651, %v837
        %v839 = vpop.f32.mrb[0].mxu0
        %v840 = vpop.f32.mrb[0].mxu0
        %v841 = vpop.f32.mrb[0].mxu0
        %842 = vdwg.mxu0
        %s843 = scalar_lea.vmem %s1, 8
        %v844 = vld [vmem:[%s843] sm:$0x7]
        %845 = vrot.lane.b32.xlu0 %v427, 126
        %v846 = vpop.permute.xlu0 %845
        %847 = vrot.lane.b32.xlu0 %v428, 126
        %v848 = vpop.permute.xlu0 %847
        %849 = vrot.lane.b32.xlu0 %v429, 126
        %v850 = vpop.permute.xlu0 %849
        %851 = vrot.lane.b32.xlu0 %v430, 126
        %v852 = vpop.permute.xlu0 %851
        %853 = vrot.lane.b32.xlu0 %v431, 126
        %v854 = vpop.permute.xlu0 %853
        %855 = vrot.lane.b32.xlu0 %v432, 126
        %v856 = vpop.permute.xlu0 %855
        %857 = vrot.lane.b32.xlu0 %v433, 126
        %v858 = vpop.permute.xlu0 %857
        %vm859 = vcmask 1031168
        %v860 = vsel %vm859, %v846, %v848
        %v861 = vsel %vm859, %v848, %v850
        %v862 = vsel %vm859, %v850, %v852
        %v863 = vsel %vm859, %v852, %v854
        %v864 = vsel %vm859, %v854, %v856
        %v865 = vsel %vm859, %v856, %v858
        %v867 = vsel %vm464, %v844, 0
        %v870 = vand.u32 %v860, %v471
        %v873 = vand.u32 %v861, %v471
        %v876 = vand.u32 %v862, %v471
        %v879 = vand.u32 %v863, %v471
        %v882 = vand.u32 %v864, %v471
        %v885 = vand.u32 %v865, %v471
        %v888 = vand.u32 %v858, %v471
        %890 = vmatprep.subr.bf16.mxu0 %v873
        %891 = vmatpush1.bf16.msra.mxu0 %v870
        %892 = vmatprep.subr.bf16.mxu0 0
        %893 = vmatpush1.bf16.msra.mxu0 0
        %894 = vmatprep.subr.bf16.mxu0 0
        %895 = vmatpush1.bf16.msra.mxu0 0
        %896 = vmatprep.subr.bf16.mxu0 0
        %897 = vmatpush1.bf16.msra.mxu0 0
        %898 = vmatprep.subr.bf16.mxu0 0
        %899 = vmatpush1.bf16.msra.mxu0 0
        %900 = vmatprep.subr.bf16.mxu0 0
        %901 = vmatpush1.bf16.msra.mxu0 0
        %902 = vmatprep.subr.bf16.mxu0 0
        %903 = vmatpush1.bf16.msra.mxu0 0
        %904 = vmatprep.subr.bf16.mxu0 0
        %905 = vmatpush1.bf16.msra.mxu0 0
        %906 = vmatprep.subr.bf16.mxu0 0
        %907 = vmatpush1.bf16.msra.mxu0 0
        %908 = vmatprep.subr.bf16.mxu0 0
        %909 = vmatpush1.bf16.msra.mxu0 0
        %910 = vmatprep.subr.bf16.mxu0 0
        %911 = vmatpush1.bf16.msra.mxu0 0
        %912 = vmatprep.subr.bf16.mxu0 0
        %913 = vmatpush1.bf16.msra.mxu0 0
        %914 = vmatprep.subr.bf16.mxu0 0
        %915 = vmatpush1.bf16.msra.mxu0 0
        %916 = vmatprep.subr.bf16.mxu0 0
        %917 = vmatpush1.bf16.msra.mxu0 0
        %918 = vmatprep.subr.bf16.mxu0 0
        %919 = vmatpush1.bf16.msra.mxu0 0
        %920 = vmatprep.subr.bf16.mxu0 0
        %921 = vmatpush1.bf16.msra.mxu0 0
        %922 = vmatprep.mubr.bf16.mxu0 0
        %923 = vmatmul.mubr.bf16.gmra.mrb[0].mxu0 %v867
        %v924 = vpop.f32.mrb[0].mxu0
        %v925 = vadd.f32 0.0, %v924
        %v926 = vpop.f32.mrb[0].mxu0
        %v927 = vadd.f32 0.0, %v926
        %v928 = vpop.f32.mrb[0].mxu0
        %v929 = vpop.f32.mrb[0].mxu0
        %930 = vdwg.mxu0
        %931 = vmatprep.subr.bf16.mxu0 %v879
        %932 = vmatpush1.bf16.msra.mxu0 %v876
        %933 = vmatprep.subr.bf16.mxu0 0
        %934 = vmatpush1.bf16.msra.mxu0 0
        %935 = vmatprep.subr.bf16.mxu0 0
        %936 = vmatpush1.bf16.msra.mxu0 0
        %937 = vmatprep.subr.bf16.mxu0 0
        %938 = vmatpush1.bf16.msra.mxu0 0
        %939 = vmatprep.subr.bf16.mxu0 0
        %940 = vmatpush1.bf16.msra.mxu0 0
        %941 = vmatprep.subr.bf16.mxu0 0
        %942 = vmatpush1.bf16.msra.mxu0 0
        %943 = vmatprep.subr.bf16.mxu0 0
        %944 = vmatpush1.bf16.msra.mxu0 0
        %945 = vmatprep.subr.bf16.mxu0 0
        %946 = vmatpush1.bf16.msra.mxu0 0
        %947 = vmatprep.subr.bf16.mxu0 0
        %948 = vmatpush1.bf16.msra.mxu0 0
        %949 = vmatprep.subr.bf16.mxu0 0
        %950 = vmatpush1.bf16.msra.mxu0 0
        %951 = vmatprep.subr.bf16.mxu0 0
        %952 = vmatpush1.bf16.msra.mxu0 0
        %953 = vmatprep.subr.bf16.mxu0 0
        %954 = vmatpush1.bf16.msra.mxu0 0
        %955 = vmatprep.subr.bf16.mxu0 0
        %956 = vmatpush1.bf16.msra.mxu0 0
        %957 = vmatprep.subr.bf16.mxu0 0
        %958 = vmatpush1.bf16.msra.mxu0 0
        %959 = vmatprep.subr.bf16.mxu0 0
        %960 = vmatpush1.bf16.msra.mxu0 0
        %961 = vmatprep.subr.bf16.mxu0 0
        %962 = vmatpush1.bf16.msra.mxu0 0
        %963 = vmatprep.mubr.bf16.mxu0 0
        %964 = vmatmul.mubr.bf16.gmra.mrb[0].mxu0 %v867
        %v965 = vpop.f32.mrb[0].mxu0
        %v966 = vadd.f32 0.0, %v965
        %v967 = vpop.f32.mrb[0].mxu0
        %v968 = vadd.f32 0.0, %v967
        %v969 = vpop.f32.mrb[0].mxu0
        %v970 = vpop.f32.mrb[0].mxu0
        %971 = vdwg.mxu0
        %972 = vmatprep.subr.bf16.mxu0 %v885
        %973 = vmatpush1.bf16.msra.mxu0 %v882
        %974 = vmatprep.subr.bf16.mxu0 0
        %975 = vmatpush1.bf16.msra.mxu0 0
        %976 = vmatprep.subr.bf16.mxu0 0
        %977 = vmatpush1.bf16.msra.mxu0 0
        %978 = vmatprep.subr.bf16.mxu0 0
        %979 = vmatpush1.bf16.msra.mxu0 0
        %980 = vmatprep.subr.bf16.mxu0 0
        %981 = vmatpush1.bf16.msra.mxu0 0
        %982 = vmatprep.subr.bf16.mxu0 0
        %983 = vmatpush1.bf16.msra.mxu0 0
        %984 = vmatprep.subr.bf16.mxu0 0
        %985 = vmatpush1.bf16.msra.mxu0 0
        %986 = vmatprep.subr.bf16.mxu0 0
        %987 = vmatpush1.bf16.msra.mxu0 0
        %988 = vmatprep.subr.bf16.mxu0 0
        %989 = vmatpush1.bf16.msra.mxu0 0
        %990 = vmatprep.subr.bf16.mxu0 0
        %991 = vmatpush1.bf16.msra.mxu0 0
        %992 = vmatprep.subr.bf16.mxu0 0
        %993 = vmatpush1.bf16.msra.mxu0 0
        %994 = vmatprep.subr.bf16.mxu0 0
        %995 = vmatpush1.bf16.msra.mxu0 0
        %996 = vmatprep.subr.bf16.mxu0 0
        %997 = vmatpush1.bf16.msra.mxu0 0
        %998 = vmatprep.subr.bf16.mxu0 0
        %999 = vmatpush1.bf16.msra.mxu0 0
        %1000 = vmatprep.subr.bf16.mxu0 0
        %1001 = vmatpush1.bf16.msra.mxu0 0
        %1002 = vmatprep.subr.bf16.mxu0 0
        %1003 = vmatpush1.bf16.msra.mxu0 0
        %1004 = vmatprep.mubr.bf16.mxu0 0
        %1005 = vmatmul.mubr.bf16.gmra.mrb[0].mxu0 %v867
        %v1006 = vpop.f32.mrb[0].mxu0
        %v1007 = vadd.f32 0.0, %v1006
        %v1008 = vpop.f32.mrb[0].mxu0
        %v1009 = vadd.f32 0.0, %v1008
        %v1010 = vpop.f32.mrb[0].mxu0
        %v1011 = vpop.f32.mrb[0].mxu0
        %1012 = vdwg.mxu0
        %1013 = vmatprep.subr.bf16.mxu0 0
        %1014 = vmatpush1.bf16.msra.mxu0 %v888
        %1015 = vmatprep.subr.bf16.mxu0 0
        %1016 = vmatpush1.bf16.msra.mxu0 0
        %1017 = vmatprep.subr.bf16.mxu0 0
        %1018 = vmatpush1.bf16.msra.mxu0 0
        %1019 = vmatprep.subr.bf16.mxu0 0
        %1020 = vmatpush1.bf16.msra.mxu0 0
        %1021 = vmatprep.subr.bf16.mxu0 0
        %1022 = vmatpush1.bf16.msra.mxu0 0
        %1023 = vmatprep.subr.bf16.mxu0 0
        %1024 = vmatpush1.bf16.msra.mxu0 0
        %1025 = vmatprep.subr.bf16.mxu0 0
        %1026 = vmatpush1.bf16.msra.mxu0 0
        %1027 = vmatprep.subr.bf16.mxu0 0
        %1028 = vmatpush1.bf16.msra.mxu0 0
        %1029 = vmatprep.subr.bf16.mxu0 0
        %1030 = vmatpush1.bf16.msra.mxu0 0
        %1031 = vmatprep.subr.bf16.mxu0 0
        %1032 = vmatpush1.bf16.msra.mxu0 0
        %1033 = vmatprep.subr.bf16.mxu0 0
        %1034 = vmatpush1.bf16.msra.mxu0 0
        %1035 = vmatprep.subr.bf16.mxu0 0
        %1036 = vmatpush1.bf16.msra.mxu0 0
        %1037 = vmatprep.subr.bf16.mxu0 0
        %1038 = vmatpush1.bf16.msra.mxu0 0
        %1039 = vmatprep.subr.bf16.mxu0 0
        %1040 = vmatpush1.bf16.msra.mxu0 0
        %1041 = vmatprep.subr.bf16.mxu0 0
        %1042 = vmatpush1.bf16.msra.mxu0 0
        %1043 = vmatprep.subr.bf16.mxu0 0
        %1044 = vmatpush1.bf16.msra.mxu0 0
        %1045 = vmatprep.mubr.bf16.mxu0 0
        %1046 = vmatmul.mubr.bf16.gmra.mrb[0].mxu0 %v867
        %v1047 = vpop.f32.mrb[0].mxu0
        %v1048 = vadd.f32 0.0, %v1047
        %v1049 = vpop.f32.mrb[0].mxu0
        %v1050 = vpop.f32.mrb[0].mxu0
        %v1051 = vpop.f32.mrb[0].mxu0
        %1052 = vdwg.mxu0
        %v1053 = vadd.f32 %v715, %v925
        %v1054 = vadd.f32 %v717, %v927
        %v1055 = vadd.f32 %v756, %v966
        %v1056 = vadd.f32 %v758, %v968
        %v1057 = vadd.f32 %v797, %v1007
        %v1058 = vadd.f32 %v799, %v1009
        %v1059 = vadd.f32 %v838, %v1048
        %s1060 = scalar_lea.vmem %s1, 12
        %v1061 = vld [vmem:[%s1060] sm:$0x7]
        %1062 = vrot.lane.b32.xlu0 %v427, 125
        %v1063 = vpop.permute.xlu0 %1062
        %1064 = vrot.lane.b32.xlu0 %v428, 125
        %v1065 = vpop.permute.xlu0 %1064
        %1066 = vrot.lane.b32.xlu0 %v429, 125
        %v1067 = vpop.permute.xlu0 %1066
        %1068 = vrot.lane.b32.xlu0 %v430, 125
        %v1069 = vpop.permute.xlu0 %1068
        %1070 = vrot.lane.b32.xlu0 %v431, 125
        %v1071 = vpop.permute.xlu0 %1070
        %1072 = vrot.lane.b32.xlu0 %v432, 125
        %v1073 = vpop.permute.xlu0 %1072
        %1074 = vrot.lane.b32.xlu0 %v433, 125
        %v1075 = vpop.permute.xlu0 %1074
        %vm1076 = vcmask 1022976
        %v1077 = vsel %vm1076, %v1063, %v1065
        %v1078 = vsel %vm1076, %v1065, %v1067
        %v1079 = vsel %vm1076, %v1067, %v1069
        %v1080 = vsel %vm1076, %v1069, %v1071
        %v1081 = vsel %vm1076, %v1071, %v1073
        %v1082 = vsel %vm1076, %v1073, %v1075
        %v1084 = vsel %vm464, %v1061, 0
        %v1087 = vand.u32 %v1077, %v471
        %v1090 = vand.u32 %v1078, %v471
        %v1093 = vand.u32 %v1079, %v471
        %v1096 = vand.u32 %v1080, %v471
        %v1099 = vand.u32 %v1081, %v471
        %v1102 = vand.u32 %v1082, %v471
        %v1105 = vand.u32 %v1075, %v471
        %1107 = vmatprep.subr.bf16.mxu0 %v1090
        %1108 = vmatpush1.bf16.msra.mxu0 %v1087
        %1109 = vmatprep.subr.bf16.mxu0 0
        %1110 = vmatpush1.bf16.msra.mxu0 0
        %1111 = vmatprep.subr.bf16.mxu0 0
        %1112 = vmatpush1.bf16.msra.mxu0 0
        %1113 = vmatprep.subr.bf16.mxu0 0
        %1114 = vmatpush1.bf16.msra.mxu0 0
        %1115 = vmatprep.subr.bf16.mxu0 0
        %1116 = vmatpush1.bf16.msra.mxu0 0
        %1117 = vmatprep.subr.bf16.mxu0 0
        %1118 = vmatpush1.bf16.msra.mxu0 0
        %1119 = vmatprep.subr.bf16.mxu0 0
        %1120 = vmatpush1.bf16.msra.mxu0 0
        %1121 = vmatprep.subr.bf16.mxu0 0
        %1122 = vmatpush1.bf16.msra.mxu0 0
        %1123 = vmatprep.subr.bf16.mxu0 0
        %1124 = vmatpush1.bf16.msra.mxu0 0
        %1125 = vmatprep.subr.bf16.mxu0 0
        %1126 = vmatpush1.bf16.msra.mxu0 0
        %1127 = vmatprep.subr.bf16.mxu0 0
        %1128 = vmatpush1.bf16.msra.mxu0 0
        %1129 = vmatprep.subr.bf16.mxu0 0
        %1130 = vmatpush1.bf16.msra.mxu0 0
        %1131 = vmatprep.subr.bf16.mxu0 0
        %1132 = vmatpush1.bf16.msra.mxu0 0
        %1133 = vmatprep.subr.bf16.mxu0 0
        %1134 = vmatpush1.bf16.msra.mxu0 0
        %1135 = vmatprep.subr.bf16.mxu0 0
        %1136 = vmatpush1.bf16.msra.mxu0 0
        %1137 = vmatprep.subr.bf16.mxu0 0
        %1138 = vmatpush1.bf16.msra.mxu0 0
        %1139 = vmatprep.mubr.bf16.mxu0 0
        %1140 = vmatmul.mubr.bf16.gmra.mrb[0].mxu0 %v1084
        %v1141 = vpop.f32.mrb[0].mxu0
        %v1142 = vadd.f32 0.0, %v1141
        %v1143 = vpop.f32.mrb[0].mxu0
        %v1144 = vadd.f32 0.0, %v1143
        %v1145 = vpop.f32.mrb[0].mxu0
        %v1146 = vpop.f32.mrb[0].mxu0
        %1147 = vdwg.mxu0
        %1148 = vmatprep.subr.bf16.mxu0 %v1096
        %1149 = vmatpush1.bf16.msra.mxu0 %v1093
        %1150 = vmatprep.subr.bf16.mxu0 0
        %1151 = vmatpush1.bf16.msra.mxu0 0
        %1152 = vmatprep.subr.bf16.mxu0 0
        %1153 = vmatpush1.bf16.msra.mxu0 0
        %1154 = vmatprep.subr.bf16.mxu0 0
        %1155 = vmatpush1.bf16.msra.mxu0 0
        %1156 = vmatprep.subr.bf16.mxu0 0
        %1157 = vmatpush1.bf16.msra.mxu0 0
        %1158 = vmatprep.subr.bf16.mxu0 0
        %1159 = vmatpush1.bf16.msra.mxu0 0
        %1160 = vmatprep.subr.bf16.mxu0 0
        %1161 = vmatpush1.bf16.msra.mxu0 0
        %1162 = vmatprep.subr.bf16.mxu0 0
        %1163 = vmatpush1.bf16.msra.mxu0 0
        %1164 = vmatprep.subr.bf16.mxu0 0
        %1165 = vmatpush1.bf16.msra.mxu0 0
        %1166 = vmatprep.subr.bf16.mxu0 0
        %1167 = vmatpush1.bf16.msra.mxu0 0
        %1168 = vmatprep.subr.bf16.mxu0 0
        %1169 = vmatpush1.bf16.msra.mxu0 0
        %1170 = vmatprep.subr.bf16.mxu0 0
        %1171 = vmatpush1.bf16.msra.mxu0 0
        %1172 = vmatprep.subr.bf16.mxu0 0
        %1173 = vmatpush1.bf16.msra.mxu0 0
        %1174 = vmatprep.subr.bf16.mxu0 0
        %1175 = vmatpush1.bf16.msra.mxu0 0
        %1176 = vmatprep.subr.bf16.mxu0 0
        %1177 = vmatpush1.bf16.msra.mxu0 0
        %1178 = vmatprep.subr.bf16.mxu0 0
        %1179 = vmatpush1.bf16.msra.mxu0 0
        %1180 = vmatprep.mubr.bf16.mxu0 0
        %1181 = vmatmul.mubr.bf16.gmra.mrb[0].mxu0 %v1084
        %v1182 = vpop.f32.mrb[0].mxu0
        %v1183 = vadd.f32 0.0, %v1182
        %v1184 = vpop.f32.mrb[0].mxu0
        %v1185 = vadd.f32 0.0, %v1184
        %v1186 = vpop.f32.mrb[0].mxu0
        %v1187 = vpop.f32.mrb[0].mxu0
        %1188 = vdwg.mxu0
        %1189 = vmatprep.subr.bf16.mxu0 %v1102
        %1190 = vmatpush1.bf16.msra.mxu0 %v1099
        %1191 = vmatprep.subr.bf16.mxu0 0
        %1192 = vmatpush1.bf16.msra.mxu0 0
        %1193 = vmatprep.subr.bf16.mxu0 0
        %1194 = vmatpush1.bf16.msra.mxu0 0
        %1195 = vmatprep.subr.bf16.mxu0 0
        %1196 = vmatpush1.bf16.msra.mxu0 0
        %1197 = vmatprep.subr.bf16.mxu0 0
        %1198 = vmatpush1.bf16.msra.mxu0 0
        %1199 = vmatprep.subr.bf16.mxu0 0
        %1200 = vmatpush1.bf16.msra.mxu0 0
        %1201 = vmatprep.subr.bf16.mxu0 0
        %1202 = vmatpush1.bf16.msra.mxu0 0
        %1203 = vmatprep.subr.bf16.mxu0 0
        %1204 = vmatpush1.bf16.msra.mxu0 0
        %1205 = vmatprep.subr.bf16.mxu0 0
        %1206 = vmatpush1.bf16.msra.mxu0 0
        %1207 = vmatprep.subr.bf16.mxu0 0
        %1208 = vmatpush1.bf16.msra.mxu0 0
        %1209 = vmatprep.subr.bf16.mxu0 0
        %1210 = vmatpush1.bf16.msra.mxu0 0
        %1211 = vmatprep.subr.bf16.mxu0 0
        %1212 = vmatpush1.bf16.msra.mxu0 0
        %1213 = vmatprep.subr.bf16.mxu0 0
        %1214 = vmatpush1.bf16.msra.mxu0 0
        %1215 = vmatprep.subr.bf16.mxu0 0
        %1216 = vmatpush1.bf16.msra.mxu0 0
        %1217 = vmatprep.subr.bf16.mxu0 0
        %1218 = vmatpush1.bf16.msra.mxu0 0
        %1219 = vmatprep.subr.bf16.mxu0 0
        %1220 = vmatpush1.bf16.msra.mxu0 0
        %1221 = vmatprep.mubr.bf16.mxu0 0
        %1222 = vmatmul.mubr.bf16.gmra.mrb[0].mxu0 %v1084
        %v1223 = vpop.f32.mrb[0].mxu0
        %v1224 = vadd.f32 0.0, %v1223
        %v1225 = vpop.f32.mrb[0].mxu0
        %v1226 = vadd.f32 0.0, %v1225
        %v1227 = vpop.f32.mrb[0].mxu0
        %v1228 = vpop.f32.mrb[0].mxu0
        %1229 = vdwg.mxu0
        %1230 = vmatprep.subr.bf16.mxu0 0
        %1231 = vmatpush1.bf16.msra.mxu0 %v1105
        %1232 = vmatprep.subr.bf16.mxu0 0
        %1233 = vmatpush1.bf16.msra.mxu0 0
        %1234 = vmatprep.subr.bf16.mxu0 0
        %1235 = vmatpush1.bf16.msra.mxu0 0
        %1236 = vmatprep.subr.bf16.mxu0 0
        %1237 = vmatpush1.bf16.msra.mxu0 0
        %1238 = vmatprep.subr.bf16.mxu0 0
        %1239 = vmatpush1.bf16.msra.mxu0 0
        %1240 = vmatprep.subr.bf16.mxu0 0
        %1241 = vmatpush1.bf16.msra.mxu0 0
        %1242 = vmatprep.subr.bf16.mxu0 0
        %1243 = vmatpush1.bf16.msra.mxu0 0
        %1244 = vmatprep.subr.bf16.mxu0 0
        %1245 = vmatpush1.bf16.msra.mxu0 0
        %1246 = vmatprep.subr.bf16.mxu0 0
        %1247 = vmatpush1.bf16.msra.mxu0 0
        %1248 = vmatprep.subr.bf16.mxu0 0
        %1249 = vmatpush1.bf16.msra.mxu0 0
        %1250 = vmatprep.subr.bf16.mxu0 0
        %1251 = vmatpush1.bf16.msra.mxu0 0
        %1252 = vmatprep.subr.bf16.mxu0 0
        %1253 = vmatpush1.bf16.msra.mxu0 0
        %1254 = vmatprep.subr.bf16.mxu0 0
        %1255 = vmatpush1.bf16.msra.mxu0 0
        %1256 = vmatprep.subr.bf16.mxu0 0
        %1257 = vmatpush1.bf16.msra.mxu0 0
        %1258 = vmatprep.subr.bf16.mxu0 0
        %1259 = vmatpush1.bf16.msra.mxu0 0
        %1260 = vmatprep.subr.bf16.mxu0 0
        %1261 = vmatpush1.bf16.msra.mxu0 0
        %1262 = vmatprep.mubr.bf16.mxu0 0
        %1263 = vmatmul.mubr.bf16.gmra.mrb[0].mxu0 %v1084
        %v1264 = vpop.f32.mrb[0].mxu0
        %v1265 = vadd.f32 0.0, %v1264
        %v1266 = vpop.f32.mrb[0].mxu0
        %v1267 = vpop.f32.mrb[0].mxu0
        %v1268 = vpop.f32.mrb[0].mxu0
        %1269 = vdwg.mxu0
        %v1270 = vadd.f32 %v1053, %v1142
        %v1271 = vadd.f32 %v1054, %v1144
        %v1272 = vadd.f32 %v1055, %v1183
        %v1273 = vadd.f32 %v1056, %v1185
        %v1274 = vadd.f32 %v1057, %v1224
        %v1275 = vadd.f32 %v1058, %v1226
        %v1276 = vadd.f32 %v1059, %v1265
        %s1277 = scalar_lea.vmem %s1, 16
        %v1278 = vld [vmem:[%s1277] sm:$0x7]
        %1279 = vrot.lane.b32.xlu0 %v427, 124
        %v1280 = vpop.permute.xlu0 %1279
        %1281 = vrot.lane.b32.xlu0 %v428, 124
        %v1282 = vpop.permute.xlu0 %1281
        %1283 = vrot.lane.b32.xlu0 %v429, 124
        %v1284 = vpop.permute.xlu0 %1283
        %1285 = vrot.lane.b32.xlu0 %v430, 124
        %v1286 = vpop.permute.xlu0 %1285
        %1287 = vrot.lane.b32.xlu0 %v431, 124
        %v1288 = vpop.permute.xlu0 %1287
        %1289 = vrot.lane.b32.xlu0 %v432, 124
        %v1290 = vpop.permute.xlu0 %1289
        %1291 = vrot.lane.b32.xlu0 %v433, 124
        %v1292 = vpop.permute.xlu0 %1291
        %vm1293 = vcmask 1014784
        %v1294 = vsel %vm1293, %v1280, %v1282
        %v1295 = vsel %vm1293, %v1282, %v1284
        %v1296 = vsel %vm1293, %v1284, %v1286
        %v1297 = vsel %vm1293, %v1286, %v1288
        %v1298 = vsel %vm1293, %v1288, %v1290
        %v1299 = vsel %vm1293, %v1290, %v1292
        %v1301 = vsel %vm464, %v1278, 0
        %v1304 = vand.u32 %v1294, %v471
        %v1307 = vand.u32 %v1295, %v471
        %v1310 = vand.u32 %v1296, %v471
        %v1313 = vand.u32 %v1297, %v471
        %v1316 = vand.u32 %v1298, %v471
        %v1319 = vand.u32 %v1299, %v471
        %v1322 = vand.u32 %v1292, %v471
        %1324 = vmatprep.subr.bf16.mxu0 %v1307
        %1325 = vmatpush1.bf16.msra.mxu0 %v1304
        %1326 = vmatprep.subr.bf16.mxu0 0
        %1327 = vmatpush1.bf16.msra.mxu0 0
        %1328 = vmatprep.subr.bf16.mxu0 0
        %1329 = vmatpush1.bf16.msra.mxu0 0
        %1330 = vmatprep.subr.bf16.mxu0 0
        %1331 = vmatpush1.bf16.msra.mxu0 0
        %1332 = vmatprep.subr.bf16.mxu0 0
        %1333 = vmatpush1.bf16.msra.mxu0 0
        %1334 = vmatprep.subr.bf16.mxu0 0
        %1335 = vmatpush1.bf16.msra.mxu0 0
        %1336 = vmatprep.subr.bf16.mxu0 0
        %1337 = vmatpush1.bf16.msra.mxu0 0
        %1338 = vmatprep.subr.bf16.mxu0 0
        %1339 = vmatpush1.bf16.msra.mxu0 0
        %1340 = vmatprep.subr.bf16.mxu0 0
        %1341 = vmatpush1.bf16.msra.mxu0 0
        %1342 = vmatprep.subr.bf16.mxu0 0
        %1343 = vmatpush1.bf16.msra.mxu0 0
        %1344 = vmatprep.subr.bf16.mxu0 0
        %1345 = vmatpush1.bf16.msra.mxu0 0
        %1346 = vmatprep.subr.bf16.mxu0 0
        %1347 = vmatpush1.bf16.msra.mxu0 0
        %1348 = vmatprep.subr.bf16.mxu0 0
        %1349 = vmatpush1.bf16.msra.mxu0 0
        %1350 = vmatprep.subr.bf16.mxu0 0
        %1351 = vmatpush1.bf16.msra.mxu0 0
        %1352 = vmatprep.subr.bf16.mxu0 0
        %1353 = vmatpush1.bf16.msra.mxu0 0
        %1354 = vmatprep.subr.bf16.mxu0 0
        %1355 = vmatpush1.bf16.msra.mxu0 0
        %1356 = vmatprep.mubr.bf16.mxu0 0
        %1357 = vmatmul.mubr.bf16.gmra.mrb[0].mxu0 %v1301
        %v1358 = vpop.f32.mrb[0].mxu0
        %v1359 = vadd.f32 0.0, %v1358
        %v1360 = vpop.f32.mrb[0].mxu0
        %v1361 = vadd.f32 0.0, %v1360
        %v1362 = vpop.f32.mrb[0].mxu0
        %v1363 = vpop.f32.mrb[0].mxu0
        %1364 = vdwg.mxu0
        %1365 = vmatprep.subr.bf16.mxu0 %v1313
        %1366 = vmatpush1.bf16.msra.mxu0 %v1310
        %1367 = vmatprep.subr.bf16.mxu0 0
        %1368 = vmatpush1.bf16.msra.mxu0 0
        %1369 = vmatprep.subr.bf16.mxu0 0
        %1370 = vmatpush1.bf16.msra.mxu0 0
        %1371 = vmatprep.subr.bf16.mxu0 0
        %1372 = vmatpush1.bf16.msra.mxu0 0
        %1373 = vmatprep.subr.bf16.mxu0 0
        %1374 = vmatpush1.bf16.msra.mxu0 0
        %1375 = vmatprep.subr.bf16.mxu0 0
        %1376 = vmatpush1.bf16.msra.mxu0 0
        %1377 = vmatprep.subr.bf16.mxu0 0
        %1378 = vmatpush1.bf16.msra.mxu0 0
        %1379 = vmatprep.subr.bf16.mxu0 0
        %1380 = vmatpush1.bf16.msra.mxu0 0
        %1381 = vmatprep.subr.bf16.mxu0 0
        %1382 = vmatpush1.bf16.msra.mxu0 0
        %1383 = vmatprep.subr.bf16.mxu0 0
        %1384 = vmatpush1.bf16.msra.mxu0 0
        %1385 = vmatprep.subr.bf16.mxu0 0
        %1386 = vmatpush1.bf16.msra.mxu0 0
        %1387 = vmatprep.subr.bf16.mxu0 0
        %1388 = vmatpush1.bf16.msra.mxu0 0
        %1389 = vmatprep.subr.bf16.mxu0 0
        %1390 = vmatpush1.bf16.msra.mxu0 0
        %1391 = vmatprep.subr.bf16.mxu0 0
        %1392 = vmatpush1.bf16.msra.mxu0 0
        %1393 = vmatprep.subr.bf16.mxu0 0
        %1394 = vmatpush1.bf16.msra.mxu0 0
        %1395 = vmatprep.subr.bf16.mxu0 0
        %1396 = vmatpush1.bf16.msra.mxu0 0
        %1397 = vmatprep.mubr.bf16.mxu0 0
        %1398 = vmatmul.mubr.bf16.gmra.mrb[0].mxu0 %v1301
        %v1399 = vpop.f32.mrb[0].mxu0
        %v1400 = vadd.f32 0.0, %v1399
        %v1401 = vpop.f32.mrb[0].mxu0
        %v1402 = vadd.f32 0.0, %v1401
        %v1403 = vpop.f32.mrb[0].mxu0
        %v1404 = vpop.f32.mrb[0].mxu0
        %1405 = vdwg.mxu0
        %1406 = vmatprep.subr.bf16.mxu0 %v1319
        %1407 = vmatpush1.bf16.msra.mxu0 %v1316
        %1408 = vmatprep.subr.bf16.mxu0 0
        %1409 = vmatpush1.bf16.msra.mxu0 0
        %1410 = vmatprep.subr.bf16.mxu0 0
        %1411 = vmatpush1.bf16.msra.mxu0 0
        %1412 = vmatprep.subr.bf16.mxu0 0
        %1413 = vmatpush1.bf16.msra.mxu0 0
        %1414 = vmatprep.subr.bf16.mxu0 0
        %1415 = vmatpush1.bf16.msra.mxu0 0
        %1416 = vmatprep.subr.bf16.mxu0 0
        %1417 = vmatpush1.bf16.msra.mxu0 0
        %1418 = vmatprep.subr.bf16.mxu0 0
        %1419 = vmatpush1.bf16.msra.mxu0 0
        %1420 = vmatprep.subr.bf16.mxu0 0
        %1421 = vmatpush1.bf16.msra.mxu0 0
        %1422 = vmatprep.subr.bf16.mxu0 0
        %1423 = vmatpush1.bf16.msra.mxu0 0
        %1424 = vmatprep.subr.bf16.mxu0 0
        %1425 = vmatpush1.bf16.msra.mxu0 0
        %1426 = vmatprep.subr.bf16.mxu0 0
        %1427 = vmatpush1.bf16.msra.mxu0 0
        %1428 = vmatprep.subr.bf16.mxu0 0
        %1429 = vmatpush1.bf16.msra.mxu0 0
        %1430 = vmatprep.subr.bf16.mxu0 0
        %1431 = vmatpush1.bf16.msra.mxu0 0
        %1432 = vmatprep.subr.bf16.mxu0 0
        %1433 = vmatpush1.bf16.msra.mxu0 0
        %1434 = vmatprep.subr.bf16.mxu0 0
        %1435 = vmatpush1.bf16.msra.mxu0 0
        %1436 = vmatprep.subr.bf16.mxu0 0
        %1437 = vmatpush1.bf16.msra.mxu0 0
        %1438 = vmatprep.mubr.bf16.mxu0 0
        %1439 = vmatmul.mubr.bf16.gmra.mrb[0].mxu0 %v1301
        %v1440 = vpop.f32.mrb[0].mxu0
        %v1441 = vadd.f32 0.0, %v1440
        %v1442 = vpop.f32.mrb[0].mxu0
        %v1443 = vadd.f32 0.0, %v1442
        %v1444 = vpop.f32.mrb[0].mxu0
        %v1445 = vpop.f32.mrb[0].mxu0
        %1446 = vdwg.mxu0
        %1447 = vmatprep.subr.bf16.mxu0 0
        %1448 = vmatpush1.bf16.msra.mxu0 %v1322
        %1449 = vmatprep.subr.bf16.mxu0 0
        %1450 = vmatpush1.bf16.msra.mxu0 0
        %1451 = vmatprep.subr.bf16.mxu0 0
        %1452 = vmatpush1.bf16.msra.mxu0 0
        %1453 = vmatprep.subr.bf16.mxu0 0
        %1454 = vmatpush1.bf16.msra.mxu0 0
        %1455 = vmatprep.subr.bf16.mxu0 0
        %1456 = vmatpush1.bf16.msra.mxu0 0
        %1457 = vmatprep.subr.bf16.mxu0 0
        %1458 = vmatpush1.bf16.msra.mxu0 0
        %1459 = vmatprep.subr.bf16.mxu0 0
        %1460 = vmatpush1.bf16.msra.mxu0 0
        %1461 = vmatprep.subr.bf16.mxu0 0
        %1462 = vmatpush1.bf16.msra.mxu0 0
        %1463 = vmatprep.subr.bf16.mxu0 0
        %1464 = vmatpush1.bf16.msra.mxu0 0
        %1465 = vmatprep.subr.bf16.mxu0 0
        %1466 = vmatpush1.bf16.msra.mxu0 0
        %1467 = vmatprep.subr.bf16.mxu0 0
        %1468 = vmatpush1.bf16.msra.mxu0 0
        %1469 = vmatprep.subr.bf16.mxu0 0
        %1470 = vmatpush1.bf16.msra.mxu0 0
        %1471 = vmatprep.subr.bf16.mxu0 0
        %1472 = vmatpush1.bf16.msra.mxu0 0
        %1473 = vmatprep.subr.bf16.mxu0 0
        %1474 = vmatpush1.bf16.msra.mxu0 0
        %1475 = vmatprep.subr.bf16.mxu0 0
        %1476 = vmatpush1.bf16.msra.mxu0 0
        %1477 = vmatprep.subr.bf16.mxu0 0
        %1478 = vmatpush1.bf16.msra.mxu0 0
        %1479 = vmatprep.mubr.bf16.mxu0 0
        %1480 = vmatmul.mubr.bf16.gmra.mrb[0].mxu0 %v1301
        %v1481 = vpop.f32.mrb[0].mxu0
        %v1482 = vadd.f32 0.0, %v1481
        %v1483 = vpop.f32.mrb[0].mxu0
        %v1484 = vpop.f32.mrb[0].mxu0
        %v1485 = vpop.f32.mrb[0].mxu0
        %1486 = vdwg.mxu0
        %v1487 = vadd.f32 %v1270, %v1359
        %v1488 = vadd.f32 %v1271, %v1361
        %v1489 = vadd.f32 %v1272, %v1400
        %v1490 = vadd.f32 %v1273, %v1402
        %v1491 = vadd.f32 %v1274, %v1441
        %v1492 = vadd.f32 %v1275, %v1443
        %v1493 = vadd.f32 %v1276, %v1482
        %s1494 = scalar_lea.vmem %s1, 20
        %v1495 = vld [vmem:[%s1494] sm:$0x7]
        %v1496 = vcombine.high %v415, %v415
        %v1498 = vpack.c.bf16 %v1496, %v1496
        %1500 = vrot.lane.b32.xlu0 %v427, 96
        %v1501 = vpop.permute.xlu0 %1500
        %1502 = vrot.lane.b32.xlu0 %v428, 96
        %v1503 = vpop.permute.xlu0 %1502
        %1504 = vrot.lane.b32.xlu0 %v429, 96
        %v1505 = vpop.permute.xlu0 %1504
        %1506 = vrot.lane.b32.xlu0 %v430, 96
        %v1507 = vpop.permute.xlu0 %1506
        %1508 = vrot.lane.b32.xlu0 %v431, 96
        %v1509 = vpop.permute.xlu0 %1508
        %1510 = vrot.lane.b32.xlu0 %v432, 96
        %v1511 = vpop.permute.xlu0 %1510
        %1512 = vrot.lane.b32.xlu0 %v433, 96
        %v1513 = vpop.permute.xlu0 %1512
        %1514 = vrot.lane.b32.xlu0 %v1498, 96
        %v1515 = vpop.permute.xlu0 %1514
        %vm1516 = vcmask 785408
        %v1517 = vsel %vm1516, %v1501, %v1503
        %v1518 = vsel %vm1516, %v1503, %v1505
        %v1519 = vsel %vm1516, %v1505, %v1507
        %v1520 = vsel %vm1516, %v1507, %v1509
        %v1521 = vsel %vm1516, %v1509, %v1511
        %v1522 = vsel %vm1516, %v1511, %v1513
        %v1523 = vsel %vm1516, %v1513, %v1515
        %v1525 = vsel %vm464, %v1495, 0
        %v1528 = vand.u32 %v1517, %v471
        %v1531 = vand.u32 %v1518, %v471
        %v1534 = vand.u32 %v1519, %v471
        %v1537 = vand.u32 %v1520, %v471
        %v1540 = vand.u32 %v1521, %v471
        %v1543 = vand.u32 %v1522, %v471
        %v1546 = vand.u32 %v1523, %v471
        %1548 = vmatprep.subr.bf16.mxu0 %v1531
        %1549 = vmatpush1.bf16.msra.mxu0 %v1528
        %1550 = vmatprep.subr.bf16.mxu0 0
        %1551 = vmatpush1.bf16.msra.mxu0 0
        %1552 = vmatprep.subr.bf16.mxu0 0
        %1553 = vmatpush1.bf16.msra.mxu0 0
        %1554 = vmatprep.subr.bf16.mxu0 0
        %1555 = vmatpush1.bf16.msra.mxu0 0
        %1556 = vmatprep.subr.bf16.mxu0 0
        %1557 = vmatpush1.bf16.msra.mxu0 0
        %1558 = vmatprep.subr.bf16.mxu0 0
        %1559 = vmatpush1.bf16.msra.mxu0 0
        %1560 = vmatprep.subr.bf16.mxu0 0
        %1561 = vmatpush1.bf16.msra.mxu0 0
        %1562 = vmatprep.subr.bf16.mxu0 0
        %1563 = vmatpush1.bf16.msra.mxu0 0
        %1564 = vmatprep.subr.bf16.mxu0 0
        %1565 = vmatpush1.bf16.msra.mxu0 0
        %1566 = vmatprep.subr.bf16.mxu0 0
        %1567 = vmatpush1.bf16.msra.mxu0 0
        %1568 = vmatprep.subr.bf16.mxu0 0
        %1569 = vmatpush1.bf16.msra.mxu0 0
        %1570 = vmatprep.subr.bf16.mxu0 0
        %1571 = vmatpush1.bf16.msra.mxu0 0
        %1572 = vmatprep.subr.bf16.mxu0 0
        %1573 = vmatpush1.bf16.msra.mxu0 0
        %1574 = vmatprep.subr.bf16.mxu0 0
        %1575 = vmatpush1.bf16.msra.mxu0 0
        %1576 = vmatprep.subr.bf16.mxu0 0
        %1577 = vmatpush1.bf16.msra.mxu0 0
        %1578 = vmatprep.subr.bf16.mxu0 0
        %1579 = vmatpush1.bf16.msra.mxu0 0
        %1580 = vmatprep.mubr.bf16.mxu0 0
        %1581 = vmatmul.mubr.bf16.gmra.mrb[0].mxu0 %v1525
        %v1582 = vpop.f32.mrb[0].mxu0
        %v1583 = vadd.f32 0.0, %v1582
        %v1584 = vpop.f32.mrb[0].mxu0
        %v1585 = vadd.f32 0.0, %v1584
        %v1586 = vpop.f32.mrb[0].mxu0
        %v1587 = vpop.f32.mrb[0].mxu0
        %1588 = vdwg.mxu0
        %1589 = vmatprep.subr.bf16.mxu0 %v1537
        %1590 = vmatpush1.bf16.msra.mxu0 %v1534
        %1591 = vmatprep.subr.bf16.mxu0 0
        %1592 = vmatpush1.bf16.msra.mxu0 0
        %1593 = vmatprep.subr.bf16.mxu0 0
        %1594 = vmatpush1.bf16.msra.mxu0 0
        %1595 = vmatprep.subr.bf16.mxu0 0
        %1596 = vmatpush1.bf16.msra.mxu0 0
        %1597 = vmatprep.subr.bf16.mxu0 0
        %1598 = vmatpush1.bf16.msra.mxu0 0
        %1599 = vmatprep.subr.bf16.mxu0 0
        %1600 = vmatpush1.bf16.msra.mxu0 0
        %1601 = vmatprep.subr.bf16.mxu0 0
        %1602 = vmatpush1.bf16.msra.mxu0 0
        %1603 = vmatprep.subr.bf16.mxu0 0
        %1604 = vmatpush1.bf16.msra.mxu0 0
        %1605 = vmatprep.subr.bf16.mxu0 0
        %1606 = vmatpush1.bf16.msra.mxu0 0
        %1607 = vmatprep.subr.bf16.mxu0 0
        %1608 = vmatpush1.bf16.msra.mxu0 0
        %1609 = vmatprep.subr.bf16.mxu0 0
        %1610 = vmatpush1.bf16.msra.mxu0 0
        %1611 = vmatprep.subr.bf16.mxu0 0
        %1612 = vmatpush1.bf16.msra.mxu0 0
        %1613 = vmatprep.subr.bf16.mxu0 0
        %1614 = vmatpush1.bf16.msra.mxu0 0
        %1615 = vmatprep.subr.bf16.mxu0 0
        %1616 = vmatpush1.bf16.msra.mxu0 0
        %1617 = vmatprep.subr.bf16.mxu0 0
        %1618 = vmatpush1.bf16.msra.mxu0 0
        %1619 = vmatprep.subr.bf16.mxu0 0
        %1620 = vmatpush1.bf16.msra.mxu0 0
        %1621 = vmatprep.mubr.bf16.mxu0 0
        %1622 = vmatmul.mubr.bf16.gmra.mrb[0].mxu0 %v1525
        %v1623 = vpop.f32.mrb[0].mxu0
        %v1624 = vadd.f32 0.0, %v1623
        %v1625 = vpop.f32.mrb[0].mxu0
        %v1626 = vadd.f32 0.0, %v1625
        %v1627 = vpop.f32.mrb[0].mxu0
        %v1628 = vpop.f32.mrb[0].mxu0
        %1629 = vdwg.mxu0
        %1630 = vmatprep.subr.bf16.mxu0 %v1543
        %1631 = vmatpush1.bf16.msra.mxu0 %v1540
        %1632 = vmatprep.subr.bf16.mxu0 0
        %1633 = vmatpush1.bf16.msra.mxu0 0
        %1634 = vmatprep.subr.bf16.mxu0 0
        %1635 = vmatpush1.bf16.msra.mxu0 0
        %1636 = vmatprep.subr.bf16.mxu0 0
        %1637 = vmatpush1.bf16.msra.mxu0 0
        %1638 = vmatprep.subr.bf16.mxu0 0
        %1639 = vmatpush1.bf16.msra.mxu0 0
        %1640 = vmatprep.subr.bf16.mxu0 0
        %1641 = vmatpush1.bf16.msra.mxu0 0
        %1642 = vmatprep.subr.bf16.mxu0 0
        %1643 = vmatpush1.bf16.msra.mxu0 0
        %1644 = vmatprep.subr.bf16.mxu0 0
        %1645 = vmatpush1.bf16.msra.mxu0 0
        %1646 = vmatprep.subr.bf16.mxu0 0
        %1647 = vmatpush1.bf16.msra.mxu0 0
        %1648 = vmatprep.subr.bf16.mxu0 0
        %1649 = vmatpush1.bf16.msra.mxu0 0
        %1650 = vmatprep.subr.bf16.mxu0 0
        %1651 = vmatpush1.bf16.msra.mxu0 0
        %1652 = vmatprep.subr.bf16.mxu0 0
        %1653 = vmatpush1.bf16.msra.mxu0 0
        %1654 = vmatprep.subr.bf16.mxu0 0
        %1655 = vmatpush1.bf16.msra.mxu0 0
        %1656 = vmatprep.subr.bf16.mxu0 0
        %1657 = vmatpush1.bf16.msra.mxu0 0
        %1658 = vmatprep.subr.bf16.mxu0 0
        %1659 = vmatpush1.bf16.msra.mxu0 0
        %1660 = vmatprep.subr.bf16.mxu0 0
        %1661 = vmatpush1.bf16.msra.mxu0 0
        %1662 = vmatprep.mubr.bf16.mxu0 0
        %1663 = vmatmul.mubr.bf16.gmra.mrb[0].mxu0 %v1525
        %v1664 = vpop.f32.mrb[0].mxu0
        %v1665 = vadd.f32 0.0, %v1664
        %v1666 = vpop.f32.mrb[0].mxu0
        %v1667 = vadd.f32 0.0, %v1666
        %v1668 = vpop.f32.mrb[0].mxu0
        %v1669 = vpop.f32.mrb[0].mxu0
        %1670 = vdwg.mxu0
        %1671 = vmatprep.subr.bf16.mxu0 0
        %1672 = vmatpush1.bf16.msra.mxu0 %v1546
        %1673 = vmatprep.subr.bf16.mxu0 0
        %1674 = vmatpush1.bf16.msra.mxu0 0
        %1675 = vmatprep.subr.bf16.mxu0 0
        %1676 = vmatpush1.bf16.msra.mxu0 0
        %1677 = vmatprep.subr.bf16.mxu0 0
        %1678 = vmatpush1.bf16.msra.mxu0 0
        %1679 = vmatprep.subr.bf16.mxu0 0
        %1680 = vmatpush1.bf16.msra.mxu0 0
        %1681 = vmatprep.subr.bf16.mxu0 0
        %1682 = vmatpush1.bf16.msra.mxu0 0
        %1683 = vmatprep.subr.bf16.mxu0 0
        %1684 = vmatpush1.bf16.msra.mxu0 0
        %1685 = vmatprep.subr.bf16.mxu0 0
        %1686 = vmatpush1.bf16.msra.mxu0 0
        %1687 = vmatprep.subr.bf16.mxu0 0
        %1688 = vmatpush1.bf16.msra.mxu0 0
        %1689 = vmatprep.subr.bf16.mxu0 0
        %1690 = vmatpush1.bf16.msra.mxu0 0
        %1691 = vmatprep.subr.bf16.mxu0 0
        %1692 = vmatpush1.bf16.msra.mxu0 0
        %1693 = vmatprep.subr.bf16.mxu0 0
        %1694 = vmatpush1.bf16.msra.mxu0 0
        %1695 = vmatprep.subr.bf16.mxu0 0
        %1696 = vmatpush1.bf16.msra.mxu0 0
        %1697 = vmatprep.subr.bf16.mxu0 0
        %1698 = vmatpush1.bf16.msra.mxu0 0
        %1699 = vmatprep.subr.bf16.mxu0 0
        %1700 = vmatpush1.bf16.msra.mxu0 0
        %1701 = vmatprep.subr.bf16.mxu0 0
        %1702 = vmatpush1.bf16.msra.mxu0 0
        %1703 = vmatprep.mubr.bf16.mxu0 0
        %1704 = vmatmul.mubr.bf16.gmra.mrb[0].mxu0 %v1525
        %v1705 = vpop.f32.mrb[0].mxu0
        %v1706 = vadd.f32 0.0, %v1705
        %v1707 = vpop.f32.mrb[0].mxu0
        %v1708 = vpop.f32.mrb[0].mxu0
        %v1709 = vpop.f32.mrb[0].mxu0
        %1710 = vdwg.mxu0
        %v1711 = vadd.f32 %v1487, %v1583
        %v1712 = vadd.f32 %v1488, %v1585
        %v1713 = vadd.f32 %v1489, %v1624
        %v1714 = vadd.f32 %v1490, %v1626
        %v1715 = vadd.f32 %v1491, %v1665
        %v1716 = vadd.f32 %v1492, %v1667
        %v1717 = vadd.f32 %v1493, %v1706
        %s1718 = scalar_lea.vmem %s1, 24
        %v1719 = vld [vmem:[%s1718] sm:$0x7]
        %1720 = vrot.lane.b32.xlu0 %v427, 95
        %v1721 = vpop.permute.xlu0 %1720
        %1722 = vrot.lane.b32.xlu0 %v428, 95
        %v1723 = vpop.permute.xlu0 %1722
        %1724 = vrot.lane.b32.xlu0 %v429, 95
        %v1725 = vpop.permute.xlu0 %1724
        %1726 = vrot.lane.b32.xlu0 %v430, 95
        %v1727 = vpop.permute.xlu0 %1726
        %1728 = vrot.lane.b32.xlu0 %v431, 95
        %v1729 = vpop.permute.xlu0 %1728
        %1730 = vrot.lane.b32.xlu0 %v432, 95
        %v1731 = vpop.permute.xlu0 %1730
        %1732 = vrot.lane.b32.xlu0 %v433, 95
        %v1733 = vpop.permute.xlu0 %1732
        %1734 = vrot.lane.b32.xlu0 %v1498, 95
        %v1735 = vpop.permute.xlu0 %1734
        %vm1736 = vcmask 777216
        %v1737 = vsel %vm1736, %v1721, %v1723
        %v1738 = vsel %vm1736, %v1723, %v1725
        %v1739 = vsel %vm1736, %v1725, %v1727
        %v1740 = vsel %vm1736, %v1727, %v1729
        %v1741 = vsel %vm1736, %v1729, %v1731
        %v1742 = vsel %vm1736, %v1731, %v1733
        %v1743 = vsel %vm1736, %v1733, %v1735
        %v1745 = vsel %vm464, %v1719, 0
        %v1748 = vand.u32 %v1737, %v471
        %v1751 = vand.u32 %v1738, %v471
        %v1754 = vand.u32 %v1739, %v471
        %v1757 = vand.u32 %v1740, %v471
        %v1760 = vand.u32 %v1741, %v471
        %v1763 = vand.u32 %v1742, %v471
        %v1766 = vand.u32 %v1743, %v471
        %1768 = vmatprep.subr.bf16.mxu0 %v1751
        %1769 = vmatpush1.bf16.msra.mxu0 %v1748
        %1770 = vmatprep.subr.bf16.mxu0 0
        %1771 = vmatpush1.bf16.msra.mxu0 0
        %1772 = vmatprep.subr.bf16.mxu0 0
        %1773 = vmatpush1.bf16.msra.mxu0 0
        %1774 = vmatprep.subr.bf16.mxu0 0
        %1775 = vmatpush1.bf16.msra.mxu0 0
        %1776 = vmatprep.subr.bf16.mxu0 0
        %1777 = vmatpush1.bf16.msra.mxu0 0
        %1778 = vmatprep.subr.bf16.mxu0 0
        %1779 = vmatpush1.bf16.msra.mxu0 0
        %1780 = vmatprep.subr.bf16.mxu0 0
        %1781 = vmatpush1.bf16.msra.mxu0 0
        %1782 = vmatprep.subr.bf16.mxu0 0
        %1783 = vmatpush1.bf16.msra.mxu0 0
        %1784 = vmatprep.subr.bf16.mxu0 0
        %1785 = vmatpush1.bf16.msra.mxu0 0
        %1786 = vmatprep.subr.bf16.mxu0 0
        %1787 = vmatpush1.bf16.msra.mxu0 0
        %1788 = vmatprep.subr.bf16.mxu0 0
        %1789 = vmatpush1.bf16.msra.mxu0 0
        %1790 = vmatprep.subr.bf16.mxu0 0
        %1791 = vmatpush1.bf16.msra.mxu0 0
        %1792 = vmatprep.subr.bf16.mxu0 0
        %1793 = vmatpush1.bf16.msra.mxu0 0
        %1794 = vmatprep.subr.bf16.mxu0 0
        %1795 = vmatpush1.bf16.msra.mxu0 0
        %1796 = vmatprep.subr.bf16.mxu0 0
        %1797 = vmatpush1.bf16.msra.mxu0 0
        %1798 = vmatprep.subr.bf16.mxu0 0
        %1799 = vmatpush1.bf16.msra.mxu0 0
        %1800 = vmatprep.mubr.bf16.mxu0 0
        %1801 = vmatmul.mubr.bf16.gmra.mrb[0].mxu0 %v1745
        %v1802 = vpop.f32.mrb[0].mxu0
        %v1803 = vadd.f32 0.0, %v1802
        %v1804 = vpop.f32.mrb[0].mxu0
        %v1805 = vadd.f32 0.0, %v1804
        %v1806 = vpop.f32.mrb[0].mxu0
        %v1807 = vpop.f32.mrb[0].mxu0
        %1808 = vdwg.mxu0
        %1809 = vmatprep.subr.bf16.mxu0 %v1757
        %1810 = vmatpush1.bf16.msra.mxu0 %v1754
        %1811 = vmatprep.subr.bf16.mxu0 0
        %1812 = vmatpush1.bf16.msra.mxu0 0
        %1813 = vmatprep.subr.bf16.mxu0 0
        %1814 = vmatpush1.bf16.msra.mxu0 0
        %1815 = vmatprep.subr.bf16.mxu0 0
        %1816 = vmatpush1.bf16.msra.mxu0 0
        %1817 = vmatprep.subr.bf16.mxu0 0
        %1818 = vmatpush1.bf16.msra.mxu0 0
        %1819 = vmatprep.subr.bf16.mxu0 0
        %1820 = vmatpush1.bf16.msra.mxu0 0
        %1821 = vmatprep.subr.bf16.mxu0 0
        %1822 = vmatpush1.bf16.msra.mxu0 0
        %1823 = vmatprep.subr.bf16.mxu0 0
        %1824 = vmatpush1.bf16.msra.mxu0 0
        %1825 = vmatprep.subr.bf16.mxu0 0
        %1826 = vmatpush1.bf16.msra.mxu0 0
        %1827 = vmatprep.subr.bf16.mxu0 0
        %1828 = vmatpush1.bf16.msra.mxu0 0
        %1829 = vmatprep.subr.bf16.mxu0 0
        %1830 = vmatpush1.bf16.msra.mxu0 0
        %1831 = vmatprep.subr.bf16.mxu0 0
        %1832 = vmatpush1.bf16.msra.mxu0 0
        %1833 = vmatprep.subr.bf16.mxu0 0
        %1834 = vmatpush1.bf16.msra.mxu0 0
        %1835 = vmatprep.subr.bf16.mxu0 0
        %1836 = vmatpush1.bf16.msra.mxu0 0
        %1837 = vmatprep.subr.bf16.mxu0 0
        %1838 = vmatpush1.bf16.msra.mxu0 0
        %1839 = vmatprep.subr.bf16.mxu0 0
        %1840 = vmatpush1.bf16.msra.mxu0 0
        %1841 = vmatprep.mubr.bf16.mxu0 0
        %1842 = vmatmul.mubr.bf16.gmra.mrb[0].mxu0 %v1745
        %v1843 = vpop.f32.mrb[0].mxu0
        %v1844 = vadd.f32 0.0, %v1843
        %v1845 = vpop.f32.mrb[0].mxu0
        %v1846 = vadd.f32 0.0, %v1845
        %v1847 = vpop.f32.mrb[0].mxu0
        %v1848 = vpop.f32.mrb[0].mxu0
        %1849 = vdwg.mxu0
        %1850 = vmatprep.subr.bf16.mxu0 %v1763
        %1851 = vmatpush1.bf16.msra.mxu0 %v1760
        %1852 = vmatprep.subr.bf16.mxu0 0
        %1853 = vmatpush1.bf16.msra.mxu0 0
        %1854 = vmatprep.subr.bf16.mxu0 0
        %1855 = vmatpush1.bf16.msra.mxu0 0
        %1856 = vmatprep.subr.bf16.mxu0 0
        %1857 = vmatpush1.bf16.msra.mxu0 0
        %1858 = vmatprep.subr.bf16.mxu0 0
        %1859 = vmatpush1.bf16.msra.mxu0 0
        %1860 = vmatprep.subr.bf16.mxu0 0
        %1861 = vmatpush1.bf16.msra.mxu0 0
        %1862 = vmatprep.subr.bf16.mxu0 0
        %1863 = vmatpush1.bf16.msra.mxu0 0
        %1864 = vmatprep.subr.bf16.mxu0 0
        %1865 = vmatpush1.bf16.msra.mxu0 0
        %1866 = vmatprep.subr.bf16.mxu0 0
        %1867 = vmatpush1.bf16.msra.mxu0 0
        %1868 = vmatprep.subr.bf16.mxu0 0
        %1869 = vmatpush1.bf16.msra.mxu0 0
        %1870 = vmatprep.subr.bf16.mxu0 0
        %1871 = vmatpush1.bf16.msra.mxu0 0
        %1872 = vmatprep.subr.bf16.mxu0 0
        %1873 = vmatpush1.bf16.msra.mxu0 0
        %1874 = vmatprep.subr.bf16.mxu0 0
        %1875 = vmatpush1.bf16.msra.mxu0 0
        %1876 = vmatprep.subr.bf16.mxu0 0
        %1877 = vmatpush1.bf16.msra.mxu0 0
        %1878 = vmatprep.subr.bf16.mxu0 0
        %1879 = vmatpush1.bf16.msra.mxu0 0
        %1880 = vmatprep.subr.bf16.mxu0 0
        %1881 = vmatpush1.bf16.msra.mxu0 0
        %1882 = vmatprep.mubr.bf16.mxu0 0
        %1883 = vmatmul.mubr.bf16.gmra.mrb[0].mxu0 %v1745
        %v1884 = vpop.f32.mrb[0].mxu0
        %v1885 = vadd.f32 0.0, %v1884
        %v1886 = vpop.f32.mrb[0].mxu0
        %v1887 = vadd.f32 0.0, %v1886
        %v1888 = vpop.f32.mrb[0].mxu0
        %v1889 = vpop.f32.mrb[0].mxu0
        %1890 = vdwg.mxu0
        %1891 = vmatprep.subr.bf16.mxu0 0
        %1892 = vmatpush1.bf16.msra.mxu0 %v1766
        %1893 = vmatprep.subr.bf16.mxu0 0
        %1894 = vmatpush1.bf16.msra.mxu0 0
        %1895 = vmatprep.subr.bf16.mxu0 0
        %1896 = vmatpush1.bf16.msra.mxu0 0
        %1897 = vmatprep.subr.bf16.mxu0 0
        %1898 = vmatpush1.bf16.msra.mxu0 0
        %1899 = vmatprep.subr.bf16.mxu0 0
        %1900 = vmatpush1.bf16.msra.mxu0 0
        %1901 = vmatprep.subr.bf16.mxu0 0
        %1902 = vmatpush1.bf16.msra.mxu0 0
        %1903 = vmatprep.subr.bf16.mxu0 0
        %1904 = vmatpush1.bf16.msra.mxu0 0
        %1905 = vmatprep.subr.bf16.mxu0 0
        %1906 = vmatpush1.bf16.msra.mxu0 0
        %1907 = vmatprep.subr.bf16.mxu0 0
        %1908 = vmatpush1.bf16.msra.mxu0 0
        %1909 = vmatprep.subr.bf16.mxu0 0
        %1910 = vmatpush1.bf16.msra.mxu0 0
        %1911 = vmatprep.subr.bf16.mxu0 0
        %1912 = vmatpush1.bf16.msra.mxu0 0
        %1913 = vmatprep.subr.bf16.mxu0 0
        %1914 = vmatpush1.bf16.msra.mxu0 0
        %1915 = vmatprep.subr.bf16.mxu0 0
        %1916 = vmatpush1.bf16.msra.mxu0 0
        %1917 = vmatprep.subr.bf16.mxu0 0
        %1918 = vmatpush1.bf16.msra.mxu0 0
        %1919 = vmatprep.subr.bf16.mxu0 0
        %1920 = vmatpush1.bf16.msra.mxu0 0
        %1921 = vmatprep.subr.bf16.mxu0 0
        %1922 = vmatpush1.bf16.msra.mxu0 0
        %1923 = vmatprep.mubr.bf16.mxu0 0
        %1924 = vmatmul.mubr.bf16.gmra.mrb[0].mxu0 %v1745
        %v1925 = vpop.f32.mrb[0].mxu0
        %v1926 = vadd.f32 0.0, %v1925
        %v1927 = vpop.f32.mrb[0].mxu0
        %v1928 = vpop.f32.mrb[0].mxu0
        %v1929 = vpop.f32.mrb[0].mxu0
        %1930 = vdwg.mxu0
        %v1931 = vadd.f32 %v1711, %v1803
        %v1932 = vadd.f32 %v1712, %v1805
        %v1933 = vadd.f32 %v1713, %v1844
        %v1934 = vadd.f32 %v1714, %v1846
        %v1935 = vadd.f32 %v1715, %v1885
        %v1936 = vadd.f32 %v1716, %v1887
        %v1937 = vadd.f32 %v1717, %v1926
        %s1938 = scalar_lea.vmem %s1, 28
        %v1939 = vld [vmem:[%s1938] sm:$0x7]
        %1940 = vrot.lane.b32.xlu0 %v427, 94
        %v1941 = vpop.permute.xlu0 %1940
        %1942 = vrot.lane.b32.xlu0 %v428, 94
        %v1943 = vpop.permute.xlu0 %1942
        %1944 = vrot.lane.b32.xlu0 %v429, 94
        %v1945 = vpop.permute.xlu0 %1944
        %1946 = vrot.lane.b32.xlu0 %v430, 94
        %v1947 = vpop.permute.xlu0 %1946
        %1948 = vrot.lane.b32.xlu0 %v431, 94
        %v1949 = vpop.permute.xlu0 %1948
        %1950 = vrot.lane.b32.xlu0 %v432, 94
        %v1951 = vpop.permute.xlu0 %1950
        %1952 = vrot.lane.b32.xlu0 %v433, 94
        %v1953 = vpop.permute.xlu0 %1952
        %1954 = vrot.lane.b32.xlu0 %v1498, 94
        %v1955 = vpop.permute.xlu0 %1954
        %vm1956 = vcmask 769024
        %v1957 = vsel %vm1956, %v1941, %v1943
        %v1958 = vsel %vm1956, %v1943, %v1945
        %v1959 = vsel %vm1956, %v1945, %v1947
        %v1960 = vsel %vm1956, %v1947, %v1949
        %v1961 = vsel %vm1956, %v1949, %v1951
        %v1962 = vsel %vm1956, %v1951, %v1953
        %v1963 = vsel %vm1956, %v1953, %v1955
        %v1965 = vsel %vm464, %v1939, 0
        %v1968 = vand.u32 %v1957, %v471
        %v1971 = vand.u32 %v1958, %v471
        %v1974 = vand.u32 %v1959, %v471
        %v1977 = vand.u32 %v1960, %v471
        %v1980 = vand.u32 %v1961, %v471
        %v1983 = vand.u32 %v1962, %v471
        %v1986 = vand.u32 %v1963, %v471
        %1988 = vmatprep.subr.bf16.mxu0 %v1971
        %1989 = vmatpush1.bf16.msra.mxu0 %v1968
        %1990 = vmatprep.subr.bf16.mxu0 0
        %1991 = vmatpush1.bf16.msra.mxu0 0
        %1992 = vmatprep.subr.bf16.mxu0 0
        %1993 = vmatpush1.bf16.msra.mxu0 0
        %1994 = vmatprep.subr.bf16.mxu0 0
        %1995 = vmatpush1.bf16.msra.mxu0 0
        %1996 = vmatprep.subr.bf16.mxu0 0
        %1997 = vmatpush1.bf16.msra.mxu0 0
        %1998 = vmatprep.subr.bf16.mxu0 0
        %1999 = vmatpush1.bf16.msra.mxu0 0
        %2000 = vmatprep.subr.bf16.mxu0 0
        %2001 = vmatpush1.bf16.msra.mxu0 0
        %2002 = vmatprep.subr.bf16.mxu0 0
        %2003 = vmatpush1.bf16.msra.mxu0 0
        %2004 = vmatprep.subr.bf16.mxu0 0
        %2005 = vmatpush1.bf16.msra.mxu0 0
        %2006 = vmatprep.subr.bf16.mxu0 0
        %2007 = vmatpush1.bf16.msra.mxu0 0
        %2008 = vmatprep.subr.bf16.mxu0 0
        %2009 = vmatpush1.bf16.msra.mxu0 0
        %2010 = vmatprep.subr.bf16.mxu0 0
        %2011 = vmatpush1.bf16.msra.mxu0 0
        %2012 = vmatprep.subr.bf16.mxu0 0
        %2013 = vmatpush1.bf16.msra.mxu0 0
        %2014 = vmatprep.subr.bf16.mxu0 0
        %2015 = vmatpush1.bf16.msra.mxu0 0
        %2016 = vmatprep.subr.bf16.mxu0 0
        %2017 = vmatpush1.bf16.msra.mxu0 0
        %2018 = vmatprep.subr.bf16.mxu0 0
        %2019 = vmatpush1.bf16.msra.mxu0 0
        %2020 = vmatprep.mubr.bf16.mxu0 0
        %2021 = vmatmul.mubr.bf16.gmra.mrb[0].mxu0 %v1965
        %v2022 = vpop.f32.mrb[0].mxu0
        %v2023 = vadd.f32 0.0, %v2022
        %v2024 = vpop.f32.mrb[0].mxu0
        %v2025 = vadd.f32 0.0, %v2024
        %v2026 = vpop.f32.mrb[0].mxu0
        %v2027 = vpop.f32.mrb[0].mxu0
        %2028 = vdwg.mxu0
        %2029 = vmatprep.subr.bf16.mxu0 %v1977
        %2030 = vmatpush1.bf16.msra.mxu0 %v1974
        %2031 = vmatprep.subr.bf16.mxu0 0
        %2032 = vmatpush1.bf16.msra.mxu0 0
        %2033 = vmatprep.subr.bf16.mxu0 0
        %2034 = vmatpush1.bf16.msra.mxu0 0
        %2035 = vmatprep.subr.bf16.mxu0 0
        %2036 = vmatpush1.bf16.msra.mxu0 0
        %2037 = vmatprep.subr.bf16.mxu0 0
        %2038 = vmatpush1.bf16.msra.mxu0 0
        %2039 = vmatprep.subr.bf16.mxu0 0
        %2040 = vmatpush1.bf16.msra.mxu0 0
        %2041 = vmatprep.subr.bf16.mxu0 0
        %2042 = vmatpush1.bf16.msra.mxu0 0
        %2043 = vmatprep.subr.bf16.mxu0 0
        %2044 = vmatpush1.bf16.msra.mxu0 0
        %2045 = vmatprep.subr.bf16.mxu0 0
        %2046 = vmatpush1.bf16.msra.mxu0 0
        %2047 = vmatprep.subr.bf16.mxu0 0
        %2048 = vmatpush1.bf16.msra.mxu0 0
        %2049 = vmatprep.subr.bf16.mxu0 0
        %2050 = vmatpush1.bf16.msra.mxu0 0
        %2051 = vmatprep.subr.bf16.mxu0 0
        %2052 = vmatpush1.bf16.msra.mxu0 0
        %2053 = vmatprep.subr.bf16.mxu0 0
        %2054 = vmatpush1.bf16.msra.mxu0 0
        %2055 = vmatprep.subr.bf16.mxu0 0
        %2056 = vmatpush1.bf16.msra.mxu0 0
        %2057 = vmatprep.subr.bf16.mxu0 0
        %2058 = vmatpush1.bf16.msra.mxu0 0
        %2059 = vmatprep.subr.bf16.mxu0 0
        %2060 = vmatpush1.bf16.msra.mxu0 0
        %2061 = vmatprep.mubr.bf16.mxu0 0
        %2062 = vmatmul.mubr.bf16.gmra.mrb[0].mxu0 %v1965
        %v2063 = vpop.f32.mrb[0].mxu0
        %v2064 = vadd.f32 0.0, %v2063
        %v2065 = vpop.f32.mrb[0].mxu0
        %v2066 = vadd.f32 0.0, %v2065
        %v2067 = vpop.f32.mrb[0].mxu0
        %v2068 = vpop.f32.mrb[0].mxu0
        %2069 = vdwg.mxu0
        %2070 = vmatprep.subr.bf16.mxu0 %v1983
        %2071 = vmatpush1.bf16.msra.mxu0 %v1980
        %2072 = vmatprep.subr.bf16.mxu0 0
        %2073 = vmatpush1.bf16.msra.mxu0 0
        %2074 = vmatprep.subr.bf16.mxu0 0
        %2075 = vmatpush1.bf16.msra.mxu0 0
        %2076 = vmatprep.subr.bf16.mxu0 0
        %2077 = vmatpush1.bf16.msra.mxu0 0
        %2078 = vmatprep.subr.bf16.mxu0 0
        %2079 = vmatpush1.bf16.msra.mxu0 0
        %2080 = vmatprep.subr.bf16.mxu0 0
        %2081 = vmatpush1.bf16.msra.mxu0 0
        %2082 = vmatprep.subr.bf16.mxu0 0
        %2083 = vmatpush1.bf16.msra.mxu0 0
        %2084 = vmatprep.subr.bf16.mxu0 0
        %2085 = vmatpush1.bf16.msra.mxu0 0
        %2086 = vmatprep.subr.bf16.mxu0 0
        %2087 = vmatpush1.bf16.msra.mxu0 0
        %2088 = vmatprep.subr.bf16.mxu0 0
        %2089 = vmatpush1.bf16.msra.mxu0 0
        %2090 = vmatprep.subr.bf16.mxu0 0
        %2091 = vmatpush1.bf16.msra.mxu0 0
        %2092 = vmatprep.subr.bf16.mxu0 0
        %2093 = vmatpush1.bf16.msra.mxu0 0
        %2094 = vmatprep.subr.bf16.mxu0 0
        %2095 = vmatpush1.bf16.msra.mxu0 0
        %2096 = vmatprep.subr.bf16.mxu0 0
        %2097 = vmatpush1.bf16.msra.mxu0 0
        %2098 = vmatprep.subr.bf16.mxu0 0
        %2099 = vmatpush1.bf16.msra.mxu0 0
        %2100 = vmatprep.subr.bf16.mxu0 0
        %2101 = vmatpush1.bf16.msra.mxu0 0
        %2102 = vmatprep.mubr.bf16.mxu0 0
        %2103 = vmatmul.mubr.bf16.gmra.mrb[0].mxu0 %v1965
        %v2104 = vpop.f32.mrb[0].mxu0
        %v2105 = vadd.f32 0.0, %v2104
        %v2106 = vpop.f32.mrb[0].mxu0
        %v2107 = vadd.f32 0.0, %v2106
        %v2108 = vpop.f32.mrb[0].mxu0
        %v2109 = vpop.f32.mrb[0].mxu0
        %2110 = vdwg.mxu0
        %2111 = vmatprep.subr.bf16.mxu0 0
        %2112 = vmatpush1.bf16.msra.mxu0 %v1986
        %2113 = vmatprep.subr.bf16.mxu0 0
        %2114 = vmatpush1.bf16.msra.mxu0 0
        %2115 = vmatprep.subr.bf16.mxu0 0
        %2116 = vmatpush1.bf16.msra.mxu0 0
        %2117 = vmatprep.subr.bf16.mxu0 0
        %2118 = vmatpush1.bf16.msra.mxu0 0
        %2119 = vmatprep.subr.bf16.mxu0 0
        %2120 = vmatpush1.bf16.msra.mxu0 0
        %2121 = vmatprep.subr.bf16.mxu0 0
        %2122 = vmatpush1.bf16.msra.mxu0 0
        %2123 = vmatprep.subr.bf16.mxu0 0
        %2124 = vmatpush1.bf16.msra.mxu0 0
        %2125 = vmatprep.subr.bf16.mxu0 0
        %2126 = vmatpush1.bf16.msra.mxu0 0
        %2127 = vmatprep.subr.bf16.mxu0 0
        %2128 = vmatpush1.bf16.msra.mxu0 0
        %2129 = vmatprep.subr.bf16.mxu0 0
        %2130 = vmatpush1.bf16.msra.mxu0 0
        %2131 = vmatprep.subr.bf16.mxu0 0
        %2132 = vmatpush1.bf16.msra.mxu0 0
        %2133 = vmatprep.subr.bf16.mxu0 0
        %2134 = vmatpush1.bf16.msra.mxu0 0
        %2135 = vmatprep.subr.bf16.mxu0 0
        %2136 = vmatpush1.bf16.msra.mxu0 0
        %2137 = vmatprep.subr.bf16.mxu0 0
        %2138 = vmatpush1.bf16.msra.mxu0 0
        %2139 = vmatprep.subr.bf16.mxu0 0
        %2140 = vmatpush1.bf16.msra.mxu0 0
        %2141 = vmatprep.subr.bf16.mxu0 0
        %2142 = vmatpush1.bf16.msra.mxu0 0
        %2143 = vmatprep.mubr.bf16.mxu0 0
        %2144 = vmatmul.mubr.bf16.gmra.mrb[0].mxu0 %v1965
        %v2145 = vpop.f32.mrb[0].mxu0
        %v2146 = vadd.f32 0.0, %v2145
        %v2147 = vpop.f32.mrb[0].mxu0
        %v2148 = vpop.f32.mrb[0].mxu0
        %v2149 = vpop.f32.mrb[0].mxu0
        %2150 = vdwg.mxu0
        %v2151 = vadd.f32 %v1931, %v2023
        %v2152 = vadd.f32 %v1932, %v2025
        %v2153 = vadd.f32 %v1933, %v2064
        %v2154 = vadd.f32 %v1934, %v2066
        %v2155 = vadd.f32 %v1935, %v2105
        %v2156 = vadd.f32 %v1936, %v2107
        %v2157 = vadd.f32 %v1937, %v2146
        %s2158 = scalar_lea.vmem %s1, 32
        %v2159 = vld [vmem:[%s2158] sm:$0x7]
        %2160 = vrot.lane.b32.xlu0 %v427, 93
        %v2161 = vpop.permute.xlu0 %2160
        %2162 = vrot.lane.b32.xlu0 %v428, 93
        %v2163 = vpop.permute.xlu0 %2162
        %2164 = vrot.lane.b32.xlu0 %v429, 93
        %v2165 = vpop.permute.xlu0 %2164
        %2166 = vrot.lane.b32.xlu0 %v430, 93
        %v2167 = vpop.permute.xlu0 %2166
        %2168 = vrot.lane.b32.xlu0 %v431, 93
        %v2169 = vpop.permute.xlu0 %2168
        %2170 = vrot.lane.b32.xlu0 %v432, 93
        %v2171 = vpop.permute.xlu0 %2170
        %2172 = vrot.lane.b32.xlu0 %v433, 93
        %v2173 = vpop.permute.xlu0 %2172
        %2174 = vrot.lane.b32.xlu0 %v1498, 93
        %v2175 = vpop.permute.xlu0 %2174
        %vm2176 = vcmask 760832
        %v2177 = vsel %vm2176, %v2161, %v2163
        %v2178 = vsel %vm2176, %v2163, %v2165
        %v2179 = vsel %vm2176, %v2165, %v2167
        %v2180 = vsel %vm2176, %v2167, %v2169
        %v2181 = vsel %vm2176, %v2169, %v2171
        %v2182 = vsel %vm2176, %v2171, %v2173
        %v2183 = vsel %vm2176, %v2173, %v2175
        %v2185 = vsel %vm464, %v2159, 0
        %v2188 = vand.u32 %v2177, %v471
        %v2191 = vand.u32 %v2178, %v471
        %v2194 = vand.u32 %v2179, %v471
        %v2197 = vand.u32 %v2180, %v471
        %v2200 = vand.u32 %v2181, %v471
        %v2203 = vand.u32 %v2182, %v471
        %v2206 = vand.u32 %v2183, %v471
        %2208 = vmatprep.subr.bf16.mxu0 %v2191
        %2209 = vmatpush1.bf16.msra.mxu0 %v2188
        %2210 = vmatprep.subr.bf16.mxu0 0
        %2211 = vmatpush1.bf16.msra.mxu0 0
        %2212 = vmatprep.subr.bf16.mxu0 0
        %2213 = vmatpush1.bf16.msra.mxu0 0
        %2214 = vmatprep.subr.bf16.mxu0 0
        %2215 = vmatpush1.bf16.msra.mxu0 0
        %2216 = vmatprep.subr.bf16.mxu0 0
        %2217 = vmatpush1.bf16.msra.mxu0 0
        %2218 = vmatprep.subr.bf16.mxu0 0
        %2219 = vmatpush1.bf16.msra.mxu0 0
        %2220 = vmatprep.subr.bf16.mxu0 0
        %2221 = vmatpush1.bf16.msra.mxu0 0
        %2222 = vmatprep.subr.bf16.mxu0 0
        %2223 = vmatpush1.bf16.msra.mxu0 0
        %2224 = vmatprep.subr.bf16.mxu0 0
        %2225 = vmatpush1.bf16.msra.mxu0 0
        %2226 = vmatprep.subr.bf16.mxu0 0
        %2227 = vmatpush1.bf16.msra.mxu0 0
        %2228 = vmatprep.subr.bf16.mxu0 0
        %2229 = vmatpush1.bf16.msra.mxu0 0
        %2230 = vmatprep.subr.bf16.mxu0 0
        %2231 = vmatpush1.bf16.msra.mxu0 0
        %2232 = vmatprep.subr.bf16.mxu0 0
        %2233 = vmatpush1.bf16.msra.mxu0 0
        %2234 = vmatprep.subr.bf16.mxu0 0
        %2235 = vmatpush1.bf16.msra.mxu0 0
        %2236 = vmatprep.subr.bf16.mxu0 0
        %2237 = vmatpush1.bf16.msra.mxu0 0
        %2238 = vmatprep.subr.bf16.mxu0 0
        %2239 = vmatpush1.bf16.msra.mxu0 0
        %2240 = vmatprep.mubr.bf16.mxu0 0
        %2241 = vmatmul.mubr.bf16.gmra.mrb[0].mxu0 %v2185
        %v2242 = vpop.f32.mrb[0].mxu0
        %v2243 = vadd.f32 0.0, %v2242
        %v2244 = vpop.f32.mrb[0].mxu0
        %v2245 = vadd.f32 0.0, %v2244
        %v2246 = vpop.f32.mrb[0].mxu0
        %v2247 = vpop.f32.mrb[0].mxu0
        %2248 = vdwg.mxu0
        %2249 = vmatprep.subr.bf16.mxu0 %v2197
        %2250 = vmatpush1.bf16.msra.mxu0 %v2194
        %2251 = vmatprep.subr.bf16.mxu0 0
        %2252 = vmatpush1.bf16.msra.mxu0 0
        %2253 = vmatprep.subr.bf16.mxu0 0
        %2254 = vmatpush1.bf16.msra.mxu0 0
        %2255 = vmatprep.subr.bf16.mxu0 0
        %2256 = vmatpush1.bf16.msra.mxu0 0
        %2257 = vmatprep.subr.bf16.mxu0 0
        %2258 = vmatpush1.bf16.msra.mxu0 0
        %2259 = vmatprep.subr.bf16.mxu0 0
        %2260 = vmatpush1.bf16.msra.mxu0 0
        %2261 = vmatprep.subr.bf16.mxu0 0
        %2262 = vmatpush1.bf16.msra.mxu0 0
        %2263 = vmatprep.subr.bf16.mxu0 0
        %2264 = vmatpush1.bf16.msra.mxu0 0
        %2265 = vmatprep.subr.bf16.mxu0 0
        %2266 = vmatpush1.bf16.msra.mxu0 0
        %2267 = vmatprep.subr.bf16.mxu0 0
        %2268 = vmatpush1.bf16.msra.mxu0 0
        %2269 = vmatprep.subr.bf16.mxu0 0
        %2270 = vmatpush1.bf16.msra.mxu0 0
        %2271 = vmatprep.subr.bf16.mxu0 0
        %2272 = vmatpush1.bf16.msra.mxu0 0
        %2273 = vmatprep.subr.bf16.mxu0 0
        %2274 = vmatpush1.bf16.msra.mxu0 0
        %2275 = vmatprep.subr.bf16.mxu0 0
        %2276 = vmatpush1.bf16.msra.mxu0 0
        %2277 = vmatprep.subr.bf16.mxu0 0
        %2278 = vmatpush1.bf16.msra.mxu0 0
        %2279 = vmatprep.subr.bf16.mxu0 0
        %2280 = vmatpush1.bf16.msra.mxu0 0
        %2281 = vmatprep.mubr.bf16.mxu0 0
        %2282 = vmatmul.mubr.bf16.gmra.mrb[0].mxu0 %v2185
        %v2283 = vpop.f32.mrb[0].mxu0
        %v2284 = vadd.f32 0.0, %v2283
        %v2285 = vpop.f32.mrb[0].mxu0
        %v2286 = vadd.f32 0.0, %v2285
        %v2287 = vpop.f32.mrb[0].mxu0
        %v2288 = vpop.f32.mrb[0].mxu0
        %2289 = vdwg.mxu0
        %2290 = vmatprep.subr.bf16.mxu0 %v2203
        %2291 = vmatpush1.bf16.msra.mxu0 %v2200
        %2292 = vmatprep.subr.bf16.mxu0 0
        %2293 = vmatpush1.bf16.msra.mxu0 0
        %2294 = vmatprep.subr.bf16.mxu0 0
        %2295 = vmatpush1.bf16.msra.mxu0 0
        %2296 = vmatprep.subr.bf16.mxu0 0
        %2297 = vmatpush1.bf16.msra.mxu0 0
        %2298 = vmatprep.subr.bf16.mxu0 0
        %2299 = vmatpush1.bf16.msra.mxu0 0
        %2300 = vmatprep.subr.bf16.mxu0 0
        %2301 = vmatpush1.bf16.msra.mxu0 0
        %2302 = vmatprep.subr.bf16.mxu0 0
        %2303 = vmatpush1.bf16.msra.mxu0 0
        %2304 = vmatprep.subr.bf16.mxu0 0
        %2305 = vmatpush1.bf16.msra.mxu0 0
        %2306 = vmatprep.subr.bf16.mxu0 0
        %2307 = vmatpush1.bf16.msra.mxu0 0
        %2308 = vmatprep.subr.bf16.mxu0 0
        %2309 = vmatpush1.bf16.msra.mxu0 0
        %2310 = vmatprep.subr.bf16.mxu0 0
        %2311 = vmatpush1.bf16.msra.mxu0 0
        %2312 = vmatprep.subr.bf16.mxu0 0
        %2313 = vmatpush1.bf16.msra.mxu0 0
        %2314 = vmatprep.subr.bf16.mxu0 0
        %2315 = vmatpush1.bf16.msra.mxu0 0
        %2316 = vmatprep.subr.bf16.mxu0 0
        %2317 = vmatpush1.bf16.msra.mxu0 0
        %2318 = vmatprep.subr.bf16.mxu0 0
        %2319 = vmatpush1.bf16.msra.mxu0 0
        %2320 = vmatprep.subr.bf16.mxu0 0
        %2321 = vmatpush1.bf16.msra.mxu0 0
        %2322 = vmatprep.mubr.bf16.mxu0 0
        %2323 = vmatmul.mubr.bf16.gmra.mrb[0].mxu0 %v2185
        %v2324 = vpop.f32.mrb[0].mxu0
        %v2325 = vadd.f32 0.0, %v2324
        %v2326 = vpop.f32.mrb[0].mxu0
        %v2327 = vadd.f32 0.0, %v2326
        %v2328 = vpop.f32.mrb[0].mxu0
        %v2329 = vpop.f32.mrb[0].mxu0
        %2330 = vdwg.mxu0
        %2331 = vmatprep.subr.bf16.mxu0 0
        %2332 = vmatpush1.bf16.msra.mxu0 %v2206
        %2333 = vmatprep.subr.bf16.mxu0 0
        %2334 = vmatpush1.bf16.msra.mxu0 0
        %2335 = vmatprep.subr.bf16.mxu0 0
        %2336 = vmatpush1.bf16.msra.mxu0 0
        %2337 = vmatprep.subr.bf16.mxu0 0
        %2338 = vmatpush1.bf16.msra.mxu0 0
        %2339 = vmatprep.subr.bf16.mxu0 0
        %2340 = vmatpush1.bf16.msra.mxu0 0
        %2341 = vmatprep.subr.bf16.mxu0 0
        %2342 = vmatpush1.bf16.msra.mxu0 0
        %2343 = vmatprep.subr.bf16.mxu0 0
        %2344 = vmatpush1.bf16.msra.mxu0 0
        %2345 = vmatprep.subr.bf16.mxu0 0
        %2346 = vmatpush1.bf16.msra.mxu0 0
        %2347 = vmatprep.subr.bf16.mxu0 0
        %2348 = vmatpush1.bf16.msra.mxu0 0
        %2349 = vmatprep.subr.bf16.mxu0 0
        %2350 = vmatpush1.bf16.msra.mxu0 0
        %2351 = vmatprep.subr.bf16.mxu0 0
        %2352 = vmatpush1.bf16.msra.mxu0 0
        %2353 = vmatprep.subr.bf16.mxu0 0
        %2354 = vmatpush1.bf16.msra.mxu0 0
        %2355 = vmatprep.subr.bf16.mxu0 0
        %2356 = vmatpush1.bf16.msra.mxu0 0
        %2357 = vmatprep.subr.bf16.mxu0 0
        %2358 = vmatpush1.bf16.msra.mxu0 0
        %2359 = vmatprep.subr.bf16.mxu0 0
        %2360 = vmatpush1.bf16.msra.mxu0 0
        %2361 = vmatprep.subr.bf16.mxu0 0
        %2362 = vmatpush1.bf16.msra.mxu0 0
        %2363 = vmatprep.mubr.bf16.mxu0 0
        %2364 = vmatmul.mubr.bf16.gmra.mrb[0].mxu0 %v2185
        %v2365 = vpop.f32.mrb[0].mxu0
        %v2366 = vadd.f32 0.0, %v2365
        %v2367 = vpop.f32.mrb[0].mxu0
        %v2368 = vpop.f32.mrb[0].mxu0
        %v2369 = vpop.f32.mrb[0].mxu0
        %2370 = vdwg.mxu0
        %v2371 = vadd.f32 %v2151, %v2243
        %v2372 = vadd.f32 %v2152, %v2245
        %v2373 = vadd.f32 %v2153, %v2284
        %v2374 = vadd.f32 %v2154, %v2286
        %v2375 = vadd.f32 %v2155, %v2325
        %v2376 = vadd.f32 %v2156, %v2327
        %v2377 = vadd.f32 %v2157, %v2366
        %s2378 = scalar_lea.vmem %s1, 36
        %v2379 = vld [vmem:[%s2378] sm:$0x7]
        %2380 = vrot.lane.b32.xlu0 %v427, 92
        %v2381 = vpop.permute.xlu0 %2380
        %2382 = vrot.lane.b32.xlu0 %v428, 92
        %v2383 = vpop.permute.xlu0 %2382
        %2384 = vrot.lane.b32.xlu0 %v429, 92
        %v2385 = vpop.permute.xlu0 %2384
        %2386 = vrot.lane.b32.xlu0 %v430, 92
        %v2387 = vpop.permute.xlu0 %2386
        %2388 = vrot.lane.b32.xlu0 %v431, 92
        %v2389 = vpop.permute.xlu0 %2388
        %2390 = vrot.lane.b32.xlu0 %v432, 92
        %v2391 = vpop.permute.xlu0 %2390
        %2392 = vrot.lane.b32.xlu0 %v433, 92
        %v2393 = vpop.permute.xlu0 %2392
        %2394 = vrot.lane.b32.xlu0 %v1498, 92
        %v2395 = vpop.permute.xlu0 %2394
        %vm2396 = vcmask 752640
        %v2397 = vsel %vm2396, %v2381, %v2383
        %v2398 = vsel %vm2396, %v2383, %v2385
        %v2399 = vsel %vm2396, %v2385, %v2387
        %v2400 = vsel %vm2396, %v2387, %v2389
        %v2401 = vsel %vm2396, %v2389, %v2391
        %v2402 = vsel %vm2396, %v2391, %v2393
        %v2403 = vsel %vm2396, %v2393, %v2395
        %v2405 = vsel %vm464, %v2379, 0
        %v2408 = vand.u32 %v2397, %v471
        %v2411 = vand.u32 %v2398, %v471
        %v2414 = vand.u32 %v2399, %v471
        %v2417 = vand.u32 %v2400, %v471
        %v2420 = vand.u32 %v2401, %v471
        %v2423 = vand.u32 %v2402, %v471
        %v2426 = vand.u32 %v2403, %v471
        %2428 = vmatprep.subr.bf16.mxu0 %v2411
        %2429 = vmatpush1.bf16.msra.mxu0 %v2408
        %2430 = vmatprep.subr.bf16.mxu0 0
        %2431 = vmatpush1.bf16.msra.mxu0 0
        %2432 = vmatprep.subr.bf16.mxu0 0
        %2433 = vmatpush1.bf16.msra.mxu0 0
        %2434 = vmatprep.subr.bf16.mxu0 0
        %2435 = vmatpush1.bf16.msra.mxu0 0
        %2436 = vmatprep.subr.bf16.mxu0 0
        %2437 = vmatpush1.bf16.msra.mxu0 0
        %2438 = vmatprep.subr.bf16.mxu0 0
        %2439 = vmatpush1.bf16.msra.mxu0 0
        %2440 = vmatprep.subr.bf16.mxu0 0
        %2441 = vmatpush1.bf16.msra.mxu0 0
        %2442 = vmatprep.subr.bf16.mxu0 0
        %2443 = vmatpush1.bf16.msra.mxu0 0
        %2444 = vmatprep.subr.bf16.mxu0 0
        %2445 = vmatpush1.bf16.msra.mxu0 0
        %2446 = vmatprep.subr.bf16.mxu0 0
        %2447 = vmatpush1.bf16.msra.mxu0 0
        %2448 = vmatprep.subr.bf16.mxu0 0
        %2449 = vmatpush1.bf16.msra.mxu0 0
        %2450 = vmatprep.subr.bf16.mxu0 0
        %2451 = vmatpush1.bf16.msra.mxu0 0
        %2452 = vmatprep.subr.bf16.mxu0 0
        %2453 = vmatpush1.bf16.msra.mxu0 0
        %2454 = vmatprep.subr.bf16.mxu0 0
        %2455 = vmatpush1.bf16.msra.mxu0 0
        %2456 = vmatprep.subr.bf16.mxu0 0
        %2457 = vmatpush1.bf16.msra.mxu0 0
        %2458 = vmatprep.subr.bf16.mxu0 0
        %2459 = vmatpush1.bf16.msra.mxu0 0
        %2460 = vmatprep.mubr.bf16.mxu0 0
        %2461 = vmatmul.mubr.bf16.gmra.mrb[0].mxu0 %v2405
        %v2462 = vpop.f32.mrb[0].mxu0
        %v2463 = vadd.f32 0.0, %v2462
        %v2464 = vpop.f32.mrb[0].mxu0
        %v2465 = vadd.f32 0.0, %v2464
        %v2466 = vpop.f32.mrb[0].mxu0
        %v2467 = vpop.f32.mrb[0].mxu0
        %2468 = vdwg.mxu0
        %2469 = vmatprep.subr.bf16.mxu0 %v2417
        %2470 = vmatpush1.bf16.msra.mxu0 %v2414
        %2471 = vmatprep.subr.bf16.mxu0 0
        %2472 = vmatpush1.bf16.msra.mxu0 0
        %2473 = vmatprep.subr.bf16.mxu0 0
        %2474 = vmatpush1.bf16.msra.mxu0 0
        %2475 = vmatprep.subr.bf16.mxu0 0
        %2476 = vmatpush1.bf16.msra.mxu0 0
        %2477 = vmatprep.subr.bf16.mxu0 0
        %2478 = vmatpush1.bf16.msra.mxu0 0
        %2479 = vmatprep.subr.bf16.mxu0 0
        %2480 = vmatpush1.bf16.msra.mxu0 0
        %2481 = vmatprep.subr.bf16.mxu0 0
        %2482 = vmatpush1.bf16.msra.mxu0 0
        %2483 = vmatprep.subr.bf16.mxu0 0
        %2484 = vmatpush1.bf16.msra.mxu0 0
        %2485 = vmatprep.subr.bf16.mxu0 0
        %2486 = vmatpush1.bf16.msra.mxu0 0
        %2487 = vmatprep.subr.bf16.mxu0 0
        %2488 = vmatpush1.bf16.msra.mxu0 0
        %2489 = vmatprep.subr.bf16.mxu0 0
        %2490 = vmatpush1.bf16.msra.mxu0 0
        %2491 = vmatprep.subr.bf16.mxu0 0
        %2492 = vmatpush1.bf16.msra.mxu0 0
        %2493 = vmatprep.subr.bf16.mxu0 0
        %2494 = vmatpush1.bf16.msra.mxu0 0
        %2495 = vmatprep.subr.bf16.mxu0 0
        %2496 = vmatpush1.bf16.msra.mxu0 0
        %2497 = vmatprep.subr.bf16.mxu0 0
        %2498 = vmatpush1.bf16.msra.mxu0 0
        %2499 = vmatprep.subr.bf16.mxu0 0
        %2500 = vmatpush1.bf16.msra.mxu0 0
        %2501 = vmatprep.mubr.bf16.mxu0 0
        %2502 = vmatmul.mubr.bf16.gmra.mrb[0].mxu0 %v2405
        %v2503 = vpop.f32.mrb[0].mxu0
        %v2504 = vadd.f32 0.0, %v2503
        %v2505 = vpop.f32.mrb[0].mxu0
        %v2506 = vadd.f32 0.0, %v2505
        %v2507 = vpop.f32.mrb[0].mxu0
        %v2508 = vpop.f32.mrb[0].mxu0
        %2509 = vdwg.mxu0
        %2510 = vmatprep.subr.bf16.mxu0 %v2423
        %2511 = vmatpush1.bf16.msra.mxu0 %v2420
        %2512 = vmatprep.subr.bf16.mxu0 0
        %2513 = vmatpush1.bf16.msra.mxu0 0
        %2514 = vmatprep.subr.bf16.mxu0 0
        %2515 = vmatpush1.bf16.msra.mxu0 0
        %2516 = vmatprep.subr.bf16.mxu0 0
        %2517 = vmatpush1.bf16.msra.mxu0 0
        %2518 = vmatprep.subr.bf16.mxu0 0
        %2519 = vmatpush1.bf16.msra.mxu0 0
        %2520 = vmatprep.subr.bf16.mxu0 0
        %2521 = vmatpush1.bf16.msra.mxu0 0
        %2522 = vmatprep.subr.bf16.mxu0 0
        %2523 = vmatpush1.bf16.msra.mxu0 0
        %2524 = vmatprep.subr.bf16.mxu0 0
        %2525 = vmatpush1.bf16.msra.mxu0 0
        %2526 = vmatprep.subr.bf16.mxu0 0
        %2527 = vmatpush1.bf16.msra.mxu0 0
        %2528 = vmatprep.subr.bf16.mxu0 0
        %2529 = vmatpush1.bf16.msra.mxu0 0
        %2530 = vmatprep.subr.bf16.mxu0 0
        %2531 = vmatpush1.bf16.msra.mxu0 0
        %2532 = vmatprep.subr.bf16.mxu0 0
        %2533 = vmatpush1.bf16.msra.mxu0 0
        %2534 = vmatprep.subr.bf16.mxu0 0
        %2535 = vmatpush1.bf16.msra.mxu0 0
        %2536 = vmatprep.subr.bf16.mxu0 0
        %2537 = vmatpush1.bf16.msra.mxu0 0
        %2538 = vmatprep.subr.bf16.mxu0 0
        %2539 = vmatpush1.bf16.msra.mxu0 0
        %2540 = vmatprep.subr.bf16.mxu0 0
        %2541 = vmatpush1.bf16.msra.mxu0 0
        %2542 = vmatprep.mubr.bf16.mxu0 0
        %2543 = vmatmul.mubr.bf16.gmra.mrb[0].mxu0 %v2405
        %v2544 = vpop.f32.mrb[0].mxu0
        %v2545 = vadd.f32 0.0, %v2544
        %v2546 = vpop.f32.mrb[0].mxu0
        %v2547 = vadd.f32 0.0, %v2546
        %v2548 = vpop.f32.mrb[0].mxu0
        %v2549 = vpop.f32.mrb[0].mxu0
        %2550 = vdwg.mxu0
        %2551 = vmatprep.subr.bf16.mxu0 0
        %2552 = vmatpush1.bf16.msra.mxu0 %v2426
        %2553 = vmatprep.subr.bf16.mxu0 0
        %2554 = vmatpush1.bf16.msra.mxu0 0
        %2555 = vmatprep.subr.bf16.mxu0 0
        %2556 = vmatpush1.bf16.msra.mxu0 0
        %2557 = vmatprep.subr.bf16.mxu0 0
        %2558 = vmatpush1.bf16.msra.mxu0 0
        %2559 = vmatprep.subr.bf16.mxu0 0
        %2560 = vmatpush1.bf16.msra.mxu0 0
        %2561 = vmatprep.subr.bf16.mxu0 0
        %2562 = vmatpush1.bf16.msra.mxu0 0
        %2563 = vmatprep.subr.bf16.mxu0 0
        %2564 = vmatpush1.bf16.msra.mxu0 0
        %2565 = vmatprep.subr.bf16.mxu0 0
        %2566 = vmatpush1.bf16.msra.mxu0 0
        %2567 = vmatprep.subr.bf16.mxu0 0
        %2568 = vmatpush1.bf16.msra.mxu0 0
        %2569 = vmatprep.subr.bf16.mxu0 0
        %2570 = vmatpush1.bf16.msra.mxu0 0
        %2571 = vmatprep.subr.bf16.mxu0 0
        %2572 = vmatpush1.bf16.msra.mxu0 0
        %2573 = vmatprep.subr.bf16.mxu0 0
        %2574 = vmatpush1.bf16.msra.mxu0 0
        %2575 = vmatprep.subr.bf16.mxu0 0
        %2576 = vmatpush1.bf16.msra.mxu0 0
        %2577 = vmatprep.subr.bf16.mxu0 0
        %2578 = vmatpush1.bf16.msra.mxu0 0
        %2579 = vmatprep.subr.bf16.mxu0 0
        %2580 = vmatpush1.bf16.msra.mxu0 0
        %2581 = vmatprep.subr.bf16.mxu0 0
        %2582 = vmatpush1.bf16.msra.mxu0 0
        %2583 = vmatprep.mubr.bf16.mxu0 0
        %2584 = vmatmul.mubr.bf16.gmra.mrb[0].mxu0 %v2405
        %v2585 = vpop.f32.mrb[0].mxu0
        %v2586 = vadd.f32 0.0, %v2585
        %v2587 = vpop.f32.mrb[0].mxu0
        %v2588 = vpop.f32.mrb[0].mxu0
        %v2589 = vpop.f32.mrb[0].mxu0
        %2590 = vdwg.mxu0
        %v2591 = vadd.f32 %v2371, %v2463
        %v2592 = vadd.f32 %v2372, %v2465
        %v2593 = vadd.f32 %v2373, %v2504
        %v2594 = vadd.f32 %v2374, %v2506
        %v2595 = vadd.f32 %v2375, %v2545
        %v2596 = vadd.f32 %v2376, %v2547
        %v2597 = vadd.f32 %v2377, %v2586
        %s2598 = scalar_lea.vmem %s1, 40
        %v2599 = vld [vmem:[%s2598] sm:$0x7]
        %2600 = vrot.lane.b32.xlu0 %v427, 64
        %v2601 = vpop.permute.xlu0 %2600
        %2602 = vrot.lane.b32.xlu0 %v428, 64
        %v2603 = vpop.permute.xlu0 %2602
        %2604 = vrot.lane.b32.xlu0 %v429, 64
        %v2605 = vpop.permute.xlu0 %2604
        %2606 = vrot.lane.b32.xlu0 %v430, 64
        %v2607 = vpop.permute.xlu0 %2606
        %2608 = vrot.lane.b32.xlu0 %v431, 64
        %v2609 = vpop.permute.xlu0 %2608
        %2610 = vrot.lane.b32.xlu0 %v432, 64
        %v2611 = vpop.permute.xlu0 %2610
        %2612 = vrot.lane.b32.xlu0 %v433, 64
        %v2613 = vpop.permute.xlu0 %2612
        %2614 = vrot.lane.b32.xlu0 %v1498, 64
        %v2615 = vpop.permute.xlu0 %2614
        %vm2616 = vcmask 523264
        %v2617 = vsel %vm2616, %v2601, %v2603
        %v2618 = vsel %vm2616, %v2603, %v2605
        %v2619 = vsel %vm2616, %v2605, %v2607
        %v2620 = vsel %vm2616, %v2607, %v2609
        %v2621 = vsel %vm2616, %v2609, %v2611
        %v2622 = vsel %vm2616, %v2611, %v2613
        %v2623 = vsel %vm2616, %v2613, %v2615
        %v2625 = vsel %vm464, %v2599, 0
        %v2628 = vand.u32 %v2617, %v471
        %v2631 = vand.u32 %v2618, %v471
        %v2634 = vand.u32 %v2619, %v471
        %v2637 = vand.u32 %v2620, %v471
        %v2640 = vand.u32 %v2621, %v471
        %v2643 = vand.u32 %v2622, %v471
        %v2646 = vand.u32 %v2623, %v471
        %2648 = vmatprep.subr.bf16.mxu0 %v2631
        %2649 = vmatpush1.bf16.msra.mxu0 %v2628
        %2650 = vmatprep.subr.bf16.mxu0 0
        %2651 = vmatpush1.bf16.msra.mxu0 0
        %2652 = vmatprep.subr.bf16.mxu0 0
        %2653 = vmatpush1.bf16.msra.mxu0 0
        %2654 = vmatprep.subr.bf16.mxu0 0
        %2655 = vmatpush1.bf16.msra.mxu0 0
        %2656 = vmatprep.subr.bf16.mxu0 0
        %2657 = vmatpush1.bf16.msra.mxu0 0
        %2658 = vmatprep.subr.bf16.mxu0 0
        %2659 = vmatpush1.bf16.msra.mxu0 0
        %2660 = vmatprep.subr.bf16.mxu0 0
        %2661 = vmatpush1.bf16.msra.mxu0 0
        %2662 = vmatprep.subr.bf16.mxu0 0
        %2663 = vmatpush1.bf16.msra.mxu0 0
        %2664 = vmatprep.subr.bf16.mxu0 0
        %2665 = vmatpush1.bf16.msra.mxu0 0
        %2666 = vmatprep.subr.bf16.mxu0 0
        %2667 = vmatpush1.bf16.msra.mxu0 0
        %2668 = vmatprep.subr.bf16.mxu0 0
        %2669 = vmatpush1.bf16.msra.mxu0 0
        %2670 = vmatprep.subr.bf16.mxu0 0
        %2671 = vmatpush1.bf16.msra.mxu0 0
        %2672 = vmatprep.subr.bf16.mxu0 0
        %2673 = vmatpush1.bf16.msra.mxu0 0
        %2674 = vmatprep.subr.bf16.mxu0 0
        %2675 = vmatpush1.bf16.msra.mxu0 0
        %2676 = vmatprep.subr.bf16.mxu0 0
        %2677 = vmatpush1.bf16.msra.mxu0 0
        %2678 = vmatprep.subr.bf16.mxu0 0
        %2679 = vmatpush1.bf16.msra.mxu0 0
        %2680 = vmatprep.mubr.bf16.mxu0 0
        %2681 = vmatmul.mubr.bf16.gmra.mrb[0].mxu0 %v2625
        %v2682 = vpop.f32.mrb[0].mxu0
        %v2683 = vadd.f32 0.0, %v2682
        %v2684 = vpop.f32.mrb[0].mxu0
        %v2685 = vadd.f32 0.0, %v2684
        %v2686 = vpop.f32.mrb[0].mxu0
        %v2687 = vpop.f32.mrb[0].mxu0
        %2688 = vdwg.mxu0
        %2689 = vmatprep.subr.bf16.mxu0 %v2637
        %2690 = vmatpush1.bf16.msra.mxu0 %v2634
        %2691 = vmatprep.subr.bf16.mxu0 0
        %2692 = vmatpush1.bf16.msra.mxu0 0
        %2693 = vmatprep.subr.bf16.mxu0 0
        %2694 = vmatpush1.bf16.msra.mxu0 0
        %2695 = vmatprep.subr.bf16.mxu0 0
        %2696 = vmatpush1.bf16.msra.mxu0 0
        %2697 = vmatprep.subr.bf16.mxu0 0
        %2698 = vmatpush1.bf16.msra.mxu0 0
        %2699 = vmatprep.subr.bf16.mxu0 0
        %2700 = vmatpush1.bf16.msra.mxu0 0
        %2701 = vmatprep.subr.bf16.mxu0 0
        %2702 = vmatpush1.bf16.msra.mxu0 0
        %2703 = vmatprep.subr.bf16.mxu0 0
        %2704 = vmatpush1.bf16.msra.mxu0 0
        %2705 = vmatprep.subr.bf16.mxu0 0
        %2706 = vmatpush1.bf16.msra.mxu0 0
        %2707 = vmatprep.subr.bf16.mxu0 0
        %2708 = vmatpush1.bf16.msra.mxu0 0
        %2709 = vmatprep.subr.bf16.mxu0 0
        %2710 = vmatpush1.bf16.msra.mxu0 0
        %2711 = vmatprep.subr.bf16.mxu0 0
        %2712 = vmatpush1.bf16.msra.mxu0 0
        %2713 = vmatprep.subr.bf16.mxu0 0
        %2714 = vmatpush1.bf16.msra.mxu0 0
        %2715 = vmatprep.subr.bf16.mxu0 0
        %2716 = vmatpush1.bf16.msra.mxu0 0
        %2717 = vmatprep.subr.bf16.mxu0 0
        %2718 = vmatpush1.bf16.msra.mxu0 0
        %2719 = vmatprep.subr.bf16.mxu0 0
        %2720 = vmatpush1.bf16.msra.mxu0 0
        %2721 = vmatprep.mubr.bf16.mxu0 0
        %2722 = vmatmul.mubr.bf16.gmra.mrb[0].mxu0 %v2625
        %v2723 = vpop.f32.mrb[0].mxu0
        %v2724 = vadd.f32 0.0, %v2723
        %v2725 = vpop.f32.mrb[0].mxu0
        %v2726 = vadd.f32 0.0, %v2725
        %v2727 = vpop.f32.mrb[0].mxu0
        %v2728 = vpop.f32.mrb[0].mxu0
        %2729 = vdwg.mxu0
        %2730 = vmatprep.subr.bf16.mxu0 %v2643
        %2731 = vmatpush1.bf16.msra.mxu0 %v2640
        %2732 = vmatprep.subr.bf16.mxu0 0
        %2733 = vmatpush1.bf16.msra.mxu0 0
        %2734 = vmatprep.subr.bf16.mxu0 0
        %2735 = vmatpush1.bf16.msra.mxu0 0
        %2736 = vmatprep.subr.bf16.mxu0 0
        %2737 = vmatpush1.bf16.msra.mxu0 0
        %2738 = vmatprep.subr.bf16.mxu0 0
        %2739 = vmatpush1.bf16.msra.mxu0 0
        %2740 = vmatprep.subr.bf16.mxu0 0
        %2741 = vmatpush1.bf16.msra.mxu0 0
        %2742 = vmatprep.subr.bf16.mxu0 0
        %2743 = vmatpush1.bf16.msra.mxu0 0
        %2744 = vmatprep.subr.bf16.mxu0 0
        %2745 = vmatpush1.bf16.msra.mxu0 0
        %2746 = vmatprep.subr.bf16.mxu0 0
        %2747 = vmatpush1.bf16.msra.mxu0 0
        %2748 = vmatprep.subr.bf16.mxu0 0
        %2749 = vmatpush1.bf16.msra.mxu0 0
        %2750 = vmatprep.subr.bf16.mxu0 0
        %2751 = vmatpush1.bf16.msra.mxu0 0
        %2752 = vmatprep.subr.bf16.mxu0 0
        %2753 = vmatpush1.bf16.msra.mxu0 0
        %2754 = vmatprep.subr.bf16.mxu0 0
        %2755 = vmatpush1.bf16.msra.mxu0 0
        %2756 = vmatprep.subr.bf16.mxu0 0
        %2757 = vmatpush1.bf16.msra.mxu0 0
        %2758 = vmatprep.subr.bf16.mxu0 0
        %2759 = vmatpush1.bf16.msra.mxu0 0
        %2760 = vmatprep.subr.bf16.mxu0 0
        %2761 = vmatpush1.bf16.msra.mxu0 0
        %2762 = vmatprep.mubr.bf16.mxu0 0
        %2763 = vmatmul.mubr.bf16.gmra.mrb[0].mxu0 %v2625
        %v2764 = vpop.f32.mrb[0].mxu0
        %v2765 = vadd.f32 0.0, %v2764
        %v2766 = vpop.f32.mrb[0].mxu0
        %v2767 = vadd.f32 0.0, %v2766
        %v2768 = vpop.f32.mrb[0].mxu0
        %v2769 = vpop.f32.mrb[0].mxu0
        %2770 = vdwg.mxu0
        %2771 = vmatprep.subr.bf16.mxu0 0
        %2772 = vmatpush1.bf16.msra.mxu0 %v2646
        %2773 = vmatprep.subr.bf16.mxu0 0
        %2774 = vmatpush1.bf16.msra.mxu0 0
        %2775 = vmatprep.subr.bf16.mxu0 0
        %2776 = vmatpush1.bf16.msra.mxu0 0
        %2777 = vmatprep.subr.bf16.mxu0 0
        %2778 = vmatpush1.bf16.msra.mxu0 0
        %2779 = vmatprep.subr.bf16.mxu0 0
        %2780 = vmatpush1.bf16.msra.mxu0 0
        %2781 = vmatprep.subr.bf16.mxu0 0
        %2782 = vmatpush1.bf16.msra.mxu0 0
        %2783 = vmatprep.subr.bf16.mxu0 0
        %2784 = vmatpush1.bf16.msra.mxu0 0
        %2785 = vmatprep.subr.bf16.mxu0 0
        %2786 = vmatpush1.bf16.msra.mxu0 0
        %2787 = vmatprep.subr.bf16.mxu0 0
        %2788 = vmatpush1.bf16.msra.mxu0 0
        %2789 = vmatprep.subr.bf16.mxu0 0
        %2790 = vmatpush1.bf16.msra.mxu0 0
        %2791 = vmatprep.subr.bf16.mxu0 0
        %2792 = vmatpush1.bf16.msra.mxu0 0
        %2793 = vmatprep.subr.bf16.mxu0 0
        %2794 = vmatpush1.bf16.msra.mxu0 0
        %2795 = vmatprep.subr.bf16.mxu0 0
        %2796 = vmatpush1.bf16.msra.mxu0 0
        %2797 = vmatprep.subr.bf16.mxu0 0
        %2798 = vmatpush1.bf16.msra.mxu0 0
        %2799 = vmatprep.subr.bf16.mxu0 0
        %2800 = vmatpush1.bf16.msra.mxu0 0
        %2801 = vmatprep.subr.bf16.mxu0 0
        %2802 = vmatpush1.bf16.msra.mxu0 0
        %2803 = vmatprep.mubr.bf16.mxu0 0
        %2804 = vmatmul.mubr.bf16.gmra.mrb[0].mxu0 %v2625
        %v2805 = vpop.f32.mrb[0].mxu0
        %v2806 = vadd.f32 0.0, %v2805
        %v2807 = vpop.f32.mrb[0].mxu0
        %v2808 = vpop.f32.mrb[0].mxu0
        %v2809 = vpop.f32.mrb[0].mxu0
        %2810 = vdwg.mxu0
        %v2811 = vadd.f32 %v2591, %v2683
        %v2812 = vadd.f32 %v2592, %v2685
        %v2813 = vadd.f32 %v2593, %v2724
        %v2814 = vadd.f32 %v2594, %v2726
        %v2815 = vadd.f32 %v2595, %v2765
        %v2816 = vadd.f32 %v2596, %v2767
        %v2817 = vadd.f32 %v2597, %v2806
        %s2818 = scalar_lea.vmem %s1, 44
        %v2819 = vld [vmem:[%s2818] sm:$0x7]
        %2820 = vrot.lane.b32.xlu0 %v427, 63
        %v2821 = vpop.permute.xlu0 %2820
        %2822 = vrot.lane.b32.xlu0 %v428, 63
        %v2823 = vpop.permute.xlu0 %2822
        %2824 = vrot.lane.b32.xlu0 %v429, 63
        %v2825 = vpop.permute.xlu0 %2824
        %2826 = vrot.lane.b32.xlu0 %v430, 63
        %v2827 = vpop.permute.xlu0 %2826
        %2828 = vrot.lane.b32.xlu0 %v431, 63
        %v2829 = vpop.permute.xlu0 %2828
        %2830 = vrot.lane.b32.xlu0 %v432, 63
        %v2831 = vpop.permute.xlu0 %2830
        %2832 = vrot.lane.b32.xlu0 %v433, 63
        %v2833 = vpop.permute.xlu0 %2832
        %2834 = vrot.lane.b32.xlu0 %v1498, 63
        %v2835 = vpop.permute.xlu0 %2834
        %vm2836 = vcmask 515072
        %v2837 = vsel %vm2836, %v2821, %v2823
        %v2838 = vsel %vm2836, %v2823, %v2825
        %v2839 = vsel %vm2836, %v2825, %v2827
        %v2840 = vsel %vm2836, %v2827, %v2829
        %v2841 = vsel %vm2836, %v2829, %v2831
        %v2842 = vsel %vm2836, %v2831, %v2833
        %v2843 = vsel %vm2836, %v2833, %v2835
        %v2845 = vsel %vm464, %v2819, 0
        %v2848 = vand.u32 %v2837, %v471
        %v2851 = vand.u32 %v2838, %v471
        %v2854 = vand.u32 %v2839, %v471
        %v2857 = vand.u32 %v2840, %v471
        %v2860 = vand.u32 %v2841, %v471
        %v2863 = vand.u32 %v2842, %v471
        %v2866 = vand.u32 %v2843, %v471
        %2868 = vmatprep.subr.bf16.mxu0 %v2851
        %2869 = vmatpush1.bf16.msra.mxu0 %v2848
        %2870 = vmatprep.subr.bf16.mxu0 0
        %2871 = vmatpush1.bf16.msra.mxu0 0
        %2872 = vmatprep.subr.bf16.mxu0 0
        %2873 = vmatpush1.bf16.msra.mxu0 0
        %2874 = vmatprep.subr.bf16.mxu0 0
        %2875 = vmatpush1.bf16.msra.mxu0 0
        %2876 = vmatprep.subr.bf16.mxu0 0
        %2877 = vmatpush1.bf16.msra.mxu0 0
        %2878 = vmatprep.subr.bf16.mxu0 0
        %2879 = vmatpush1.bf16.msra.mxu0 0
        %2880 = vmatprep.subr.bf16.mxu0 0
        %2881 = vmatpush1.bf16.msra.mxu0 0
        %2882 = vmatprep.subr.bf16.mxu0 0
        %2883 = vmatpush1.bf16.msra.mxu0 0
        %2884 = vmatprep.subr.bf16.mxu0 0
        %2885 = vmatpush1.bf16.msra.mxu0 0
        %2886 = vmatprep.subr.bf16.mxu0 0
        %2887 = vmatpush1.bf16.msra.mxu0 0
        %2888 = vmatprep.subr.bf16.mxu0 0
        %2889 = vmatpush1.bf16.msra.mxu0 0
        %2890 = vmatprep.subr.bf16.mxu0 0
        %2891 = vmatpush1.bf16.msra.mxu0 0
        %2892 = vmatprep.subr.bf16.mxu0 0
        %2893 = vmatpush1.bf16.msra.mxu0 0
        %2894 = vmatprep.subr.bf16.mxu0 0
        %2895 = vmatpush1.bf16.msra.mxu0 0
        %2896 = vmatprep.subr.bf16.mxu0 0
        %2897 = vmatpush1.bf16.msra.mxu0 0
        %2898 = vmatprep.subr.bf16.mxu0 0
        %2899 = vmatpush1.bf16.msra.mxu0 0
        %2900 = vmatprep.mubr.bf16.mxu0 0
        %2901 = vmatmul.mubr.bf16.gmra.mrb[0].mxu0 %v2845
        %v2902 = vpop.f32.mrb[0].mxu0
        %v2903 = vadd.f32 0.0, %v2902
        %v2904 = vpop.f32.mrb[0].mxu0
        %v2905 = vadd.f32 0.0, %v2904
        %v2906 = vpop.f32.mrb[0].mxu0
        %v2907 = vpop.f32.mrb[0].mxu0
        %2908 = vdwg.mxu0
        %2909 = vmatprep.subr.bf16.mxu0 %v2857
        %2910 = vmatpush1.bf16.msra.mxu0 %v2854
        %2911 = vmatprep.subr.bf16.mxu0 0
        %2912 = vmatpush1.bf16.msra.mxu0 0
        %2913 = vmatprep.subr.bf16.mxu0 0
        %2914 = vmatpush1.bf16.msra.mxu0 0
        %2915 = vmatprep.subr.bf16.mxu0 0
        %2916 = vmatpush1.bf16.msra.mxu0 0
        %2917 = vmatprep.subr.bf16.mxu0 0
        %2918 = vmatpush1.bf16.msra.mxu0 0
        %2919 = vmatprep.subr.bf16.mxu0 0
        %2920 = vmatpush1.bf16.msra.mxu0 0
        %2921 = vmatprep.subr.bf16.mxu0 0
        %2922 = vmatpush1.bf16.msra.mxu0 0
        %2923 = vmatprep.subr.bf16.mxu0 0
        %2924 = vmatpush1.bf16.msra.mxu0 0
        %2925 = vmatprep.subr.bf16.mxu0 0
        %2926 = vmatpush1.bf16.msra.mxu0 0
        %2927 = vmatprep.subr.bf16.mxu0 0
        %2928 = vmatpush1.bf16.msra.mxu0 0
        %2929 = vmatprep.subr.bf16.mxu0 0
        %2930 = vmatpush1.bf16.msra.mxu0 0
        %2931 = vmatprep.subr.bf16.mxu0 0
        %2932 = vmatpush1.bf16.msra.mxu0 0
        %2933 = vmatprep.subr.bf16.mxu0 0
        %2934 = vmatpush1.bf16.msra.mxu0 0
        %2935 = vmatprep.subr.bf16.mxu0 0
        %2936 = vmatpush1.bf16.msra.mxu0 0
        %2937 = vmatprep.subr.bf16.mxu0 0
        %2938 = vmatpush1.bf16.msra.mxu0 0
        %2939 = vmatprep.subr.bf16.mxu0 0
        %2940 = vmatpush1.bf16.msra.mxu0 0
        %2941 = vmatprep.mubr.bf16.mxu0 0
        %2942 = vmatmul.mubr.bf16.gmra.mrb[0].mxu0 %v2845
        %v2943 = vpop.f32.mrb[0].mxu0
        %v2944 = vadd.f32 0.0, %v2943
        %v2945 = vpop.f32.mrb[0].mxu0
        %v2946 = vadd.f32 0.0, %v2945
        %v2947 = vpop.f32.mrb[0].mxu0
        %v2948 = vpop.f32.mrb[0].mxu0
        %2949 = vdwg.mxu0
        %2950 = vmatprep.subr.bf16.mxu0 %v2863
        %2951 = vmatpush1.bf16.msra.mxu0 %v2860
        %2952 = vmatprep.subr.bf16.mxu0 0
        %2953 = vmatpush1.bf16.msra.mxu0 0
        %2954 = vmatprep.subr.bf16.mxu0 0
        %2955 = vmatpush1.bf16.msra.mxu0 0
        %2956 = vmatprep.subr.bf16.mxu0 0
        %2957 = vmatpush1.bf16.msra.mxu0 0
        %2958 = vmatprep.subr.bf16.mxu0 0
        %2959 = vmatpush1.bf16.msra.mxu0 0
        %2960 = vmatprep.subr.bf16.mxu0 0
        %2961 = vmatpush1.bf16.msra.mxu0 0
        %2962 = vmatprep.subr.bf16.mxu0 0
        %2963 = vmatpush1.bf16.msra.mxu0 0
        %2964 = vmatprep.subr.bf16.mxu0 0
        %2965 = vmatpush1.bf16.msra.mxu0 0
        %2966 = vmatprep.subr.bf16.mxu0 0
        %2967 = vmatpush1.bf16.msra.mxu0 0
        %2968 = vmatprep.subr.bf16.mxu0 0
        %2969 = vmatpush1.bf16.msra.mxu0 0
        %2970 = vmatprep.subr.bf16.mxu0 0
        %2971 = vmatpush1.bf16.msra.mxu0 0
        %2972 = vmatprep.subr.bf16.mxu0 0
        %2973 = vmatpush1.bf16.msra.mxu0 0
        %2974 = vmatprep.subr.bf16.mxu0 0
        %2975 = vmatpush1.bf16.msra.mxu0 0
        %2976 = vmatprep.subr.bf16.mxu0 0
        %2977 = vmatpush1.bf16.msra.mxu0 0
        %2978 = vmatprep.subr.bf16.mxu0 0
        %2979 = vmatpush1.bf16.msra.mxu0 0
        %2980 = vmatprep.subr.bf16.mxu0 0
        %2981 = vmatpush1.bf16.msra.mxu0 0
        %2982 = vmatprep.mubr.bf16.mxu0 0
        %2983 = vmatmul.mubr.bf16.gmra.mrb[0].mxu0 %v2845
        %v2984 = vpop.f32.mrb[0].mxu0
        %v2985 = vadd.f32 0.0, %v2984
        %v2986 = vpop.f32.mrb[0].mxu0
        %v2987 = vadd.f32 0.0, %v2986
        %v2988 = vpop.f32.mrb[0].mxu0
        %v2989 = vpop.f32.mrb[0].mxu0
        %2990 = vdwg.mxu0
        %2991 = vmatprep.subr.bf16.mxu0 0
        %2992 = vmatpush1.bf16.msra.mxu0 %v2866
        %2993 = vmatprep.subr.bf16.mxu0 0
        %2994 = vmatpush1.bf16.msra.mxu0 0
        %2995 = vmatprep.subr.bf16.mxu0 0
        %2996 = vmatpush1.bf16.msra.mxu0 0
        %2997 = vmatprep.subr.bf16.mxu0 0
        %2998 = vmatpush1.bf16.msra.mxu0 0
        %2999 = vmatprep.subr.bf16.mxu0 0
        %3000 = vmatpush1.bf16.msra.mxu0 0
        %3001 = vmatprep.subr.bf16.mxu0 0
        %3002 = vmatpush1.bf16.msra.mxu0 0
        %3003 = vmatprep.subr.bf16.mxu0 0
        %3004 = vmatpush1.bf16.msra.mxu0 0
        %3005 = vmatprep.subr.bf16.mxu0 0
        %3006 = vmatpush1.bf16.msra.mxu0 0
        %3007 = vmatprep.subr.bf16.mxu0 0
        %3008 = vmatpush1.bf16.msra.mxu0 0
        %3009 = vmatprep.subr.bf16.mxu0 0
        %3010 = vmatpush1.bf16.msra.mxu0 0
        %3011 = vmatprep.subr.bf16.mxu0 0
        %3012 = vmatpush1.bf16.msra.mxu0 0
        %3013 = vmatprep.subr.bf16.mxu0 0
        %3014 = vmatpush1.bf16.msra.mxu0 0
        %3015 = vmatprep.subr.bf16.mxu0 0
        %3016 = vmatpush1.bf16.msra.mxu0 0
        %3017 = vmatprep.subr.bf16.mxu0 0
        %3018 = vmatpush1.bf16.msra.mxu0 0
        %3019 = vmatprep.subr.bf16.mxu0 0
        %3020 = vmatpush1.bf16.msra.mxu0 0
        %3021 = vmatprep.subr.bf16.mxu0 0
        %3022 = vmatpush1.bf16.msra.mxu0 0
        %3023 = vmatprep.mubr.bf16.mxu0 0
        %3024 = vmatmul.mubr.bf16.gmra.mrb[0].mxu0 %v2845
        %v3025 = vpop.f32.mrb[0].mxu0
        %v3026 = vadd.f32 0.0, %v3025
        %v3027 = vpop.f32.mrb[0].mxu0
        %v3028 = vpop.f32.mrb[0].mxu0
        %v3029 = vpop.f32.mrb[0].mxu0
        %3030 = vdwg.mxu0
        %v3031 = vadd.f32 %v2811, %v2903
        %v3032 = vadd.f32 %v2812, %v2905
        %v3033 = vadd.f32 %v2813, %v2944
        %v3034 = vadd.f32 %v2814, %v2946
        %v3035 = vadd.f32 %v2815, %v2985
        %v3036 = vadd.f32 %v2816, %v2987
        %v3037 = vadd.f32 %v2817, %v3026
        %s3038 = scalar_lea.vmem %s1, 48
        %v3039 = vld [vmem:[%s3038] sm:$0x7]
        %3040 = vrot.lane.b32.xlu0 %v427, 62
        %v3041 = vpop.permute.xlu0 %3040
        %3042 = vrot.lane.b32.xlu0 %v428, 62
        %v3043 = vpop.permute.xlu0 %3042
        %3044 = vrot.lane.b32.xlu0 %v429, 62
        %v3045 = vpop.permute.xlu0 %3044
        %3046 = vrot.lane.b32.xlu0 %v430, 62
        %v3047 = vpop.permute.xlu0 %3046
        %3048 = vrot.lane.b32.xlu0 %v431, 62
        %v3049 = vpop.permute.xlu0 %3048
        %3050 = vrot.lane.b32.xlu0 %v432, 62
        %v3051 = vpop.permute.xlu0 %3050
        %3052 = vrot.lane.b32.xlu0 %v433, 62
        %v3053 = vpop.permute.xlu0 %3052
        %3054 = vrot.lane.b32.xlu0 %v1498, 62
        %v3055 = vpop.permute.xlu0 %3054
        %vm3056 = vcmask 506880
        %v3057 = vsel %vm3056, %v3041, %v3043
        %v3058 = vsel %vm3056, %v3043, %v3045
        %v3059 = vsel %vm3056, %v3045, %v3047
        %v3060 = vsel %vm3056, %v3047, %v3049
        %v3061 = vsel %vm3056, %v3049, %v3051
        %v3062 = vsel %vm3056, %v3051, %v3053
        %v3063 = vsel %vm3056, %v3053, %v3055
        %v3065 = vsel %vm464, %v3039, 0
        %v3068 = vand.u32 %v3057, %v471
        %v3071 = vand.u32 %v3058, %v471
        %v3074 = vand.u32 %v3059, %v471
        %v3077 = vand.u32 %v3060, %v471
        %v3080 = vand.u32 %v3061, %v471
        %v3083 = vand.u32 %v3062, %v471
        %v3086 = vand.u32 %v3063, %v471
        %3088 = vmatprep.subr.bf16.mxu0 %v3071
        %3089 = vmatpush1.bf16.msra.mxu0 %v3068
        %3090 = vmatprep.subr.bf16.mxu0 0
        %3091 = vmatpush1.bf16.msra.mxu0 0
        %3092 = vmatprep.subr.bf16.mxu0 0
        %3093 = vmatpush1.bf16.msra.mxu0 0
        %3094 = vmatprep.subr.bf16.mxu0 0
        %3095 = vmatpush1.bf16.msra.mxu0 0
        %3096 = vmatprep.subr.bf16.mxu0 0
        %3097 = vmatpush1.bf16.msra.mxu0 0
        %3098 = vmatprep.subr.bf16.mxu0 0
        %3099 = vmatpush1.bf16.msra.mxu0 0
        %3100 = vmatprep.subr.bf16.mxu0 0
        %3101 = vmatpush1.bf16.msra.mxu0 0
        %3102 = vmatprep.subr.bf16.mxu0 0
        %3103 = vmatpush1.bf16.msra.mxu0 0
        %3104 = vmatprep.subr.bf16.mxu0 0
        %3105 = vmatpush1.bf16.msra.mxu0 0
        %3106 = vmatprep.subr.bf16.mxu0 0
        %3107 = vmatpush1.bf16.msra.mxu0 0
        %3108 = vmatprep.subr.bf16.mxu0 0
        %3109 = vmatpush1.bf16.msra.mxu0 0
        %3110 = vmatprep.subr.bf16.mxu0 0
        %3111 = vmatpush1.bf16.msra.mxu0 0
        %3112 = vmatprep.subr.bf16.mxu0 0
        %3113 = vmatpush1.bf16.msra.mxu0 0
        %3114 = vmatprep.subr.bf16.mxu0 0
        %3115 = vmatpush1.bf16.msra.mxu0 0
        %3116 = vmatprep.subr.bf16.mxu0 0
        %3117 = vmatpush1.bf16.msra.mxu0 0
        %3118 = vmatprep.subr.bf16.mxu0 0
        %3119 = vmatpush1.bf16.msra.mxu0 0
        %3120 = vmatprep.mubr.bf16.mxu0 0
        %3121 = vmatmul.mubr.bf16.gmra.mrb[0].mxu0 %v3065
        %v3122 = vpop.f32.mrb[0].mxu0
        %v3123 = vadd.f32 0.0, %v3122
        %v3124 = vpop.f32.mrb[0].mxu0
        %v3125 = vadd.f32 0.0, %v3124
        %v3126 = vpop.f32.mrb[0].mxu0
        %v3127 = vpop.f32.mrb[0].mxu0
        %3128 = vdwg.mxu0
        %3129 = vmatprep.subr.bf16.mxu0 %v3077
        %3130 = vmatpush1.bf16.msra.mxu0 %v3074
        %3131 = vmatprep.subr.bf16.mxu0 0
        %3132 = vmatpush1.bf16.msra.mxu0 0
        %3133 = vmatprep.subr.bf16.mxu0 0
        %3134 = vmatpush1.bf16.msra.mxu0 0
        %3135 = vmatprep.subr.bf16.mxu0 0
        %3136 = vmatpush1.bf16.msra.mxu0 0
        %3137 = vmatprep.subr.bf16.mxu0 0
        %3138 = vmatpush1.bf16.msra.mxu0 0
        %3139 = vmatprep.subr.bf16.mxu0 0
        %3140 = vmatpush1.bf16.msra.mxu0 0
        %3141 = vmatprep.subr.bf16.mxu0 0
        %3142 = vmatpush1.bf16.msra.mxu0 0
        %3143 = vmatprep.subr.bf16.mxu0 0
        %3144 = vmatpush1.bf16.msra.mxu0 0
        %3145 = vmatprep.subr.bf16.mxu0 0
        %3146 = vmatpush1.bf16.msra.mxu0 0
        %3147 = vmatprep.subr.bf16.mxu0 0
        %3148 = vmatpush1.bf16.msra.mxu0 0
        %3149 = vmatprep.subr.bf16.mxu0 0
        %3150 = vmatpush1.bf16.msra.mxu0 0
        %3151 = vmatprep.subr.bf16.mxu0 0
        %3152 = vmatpush1.bf16.msra.mxu0 0
        %3153 = vmatprep.subr.bf16.mxu0 0
        %3154 = vmatpush1.bf16.msra.mxu0 0
        %3155 = vmatprep.subr.bf16.mxu0 0
        %3156 = vmatpush1.bf16.msra.mxu0 0
        %3157 = vmatprep.subr.bf16.mxu0 0
        %3158 = vmatpush1.bf16.msra.mxu0 0
        %3159 = vmatprep.subr.bf16.mxu0 0
        %3160 = vmatpush1.bf16.msra.mxu0 0
        %3161 = vmatprep.mubr.bf16.mxu0 0
        %3162 = vmatmul.mubr.bf16.gmra.mrb[0].mxu0 %v3065
        %v3163 = vpop.f32.mrb[0].mxu0
        %v3164 = vadd.f32 0.0, %v3163
        %v3165 = vpop.f32.mrb[0].mxu0
        %v3166 = vadd.f32 0.0, %v3165
        %v3167 = vpop.f32.mrb[0].mxu0
        %v3168 = vpop.f32.mrb[0].mxu0
        %3169 = vdwg.mxu0
        %3170 = vmatprep.subr.bf16.mxu0 %v3083
        %3171 = vmatpush1.bf16.msra.mxu0 %v3080
        %3172 = vmatprep.subr.bf16.mxu0 0
        %3173 = vmatpush1.bf16.msra.mxu0 0
        %3174 = vmatprep.subr.bf16.mxu0 0
        %3175 = vmatpush1.bf16.msra.mxu0 0
        %3176 = vmatprep.subr.bf16.mxu0 0
        %3177 = vmatpush1.bf16.msra.mxu0 0
        %3178 = vmatprep.subr.bf16.mxu0 0
        %3179 = vmatpush1.bf16.msra.mxu0 0
        %3180 = vmatprep.subr.bf16.mxu0 0
        %3181 = vmatpush1.bf16.msra.mxu0 0
        %3182 = vmatprep.subr.bf16.mxu0 0
        %3183 = vmatpush1.bf16.msra.mxu0 0
        %3184 = vmatprep.subr.bf16.mxu0 0
        %3185 = vmatpush1.bf16.msra.mxu0 0
        %3186 = vmatprep.subr.bf16.mxu0 0
        %3187 = vmatpush1.bf16.msra.mxu0 0
        %3188 = vmatprep.subr.bf16.mxu0 0
        %3189 = vmatpush1.bf16.msra.mxu0 0
        %3190 = vmatprep.subr.bf16.mxu0 0
        %3191 = vmatpush1.bf16.msra.mxu0 0
        %3192 = vmatprep.subr.bf16.mxu0 0
        %3193 = vmatpush1.bf16.msra.mxu0 0
        %3194 = vmatprep.subr.bf16.mxu0 0
        %3195 = vmatpush1.bf16.msra.mxu0 0
        %3196 = vmatprep.subr.bf16.mxu0 0
        %3197 = vmatpush1.bf16.msra.mxu0 0
        %3198 = vmatprep.subr.bf16.mxu0 0
        %3199 = vmatpush1.bf16.msra.mxu0 0
        %3200 = vmatprep.subr.bf16.mxu0 0
        %3201 = vmatpush1.bf16.msra.mxu0 0
        %3202 = vmatprep.mubr.bf16.mxu0 0
        %3203 = vmatmul.mubr.bf16.gmra.mrb[0].mxu0 %v3065
        %v3204 = vpop.f32.mrb[0].mxu0
        %v3205 = vadd.f32 0.0, %v3204
        %v3206 = vpop.f32.mrb[0].mxu0
        %v3207 = vadd.f32 0.0, %v3206
        %v3208 = vpop.f32.mrb[0].mxu0
        %v3209 = vpop.f32.mrb[0].mxu0
        %3210 = vdwg.mxu0
        %3211 = vmatprep.subr.bf16.mxu0 0
        %3212 = vmatpush1.bf16.msra.mxu0 %v3086
        %3213 = vmatprep.subr.bf16.mxu0 0
        %3214 = vmatpush1.bf16.msra.mxu0 0
        %3215 = vmatprep.subr.bf16.mxu0 0
        %3216 = vmatpush1.bf16.msra.mxu0 0
        %3217 = vmatprep.subr.bf16.mxu0 0
        %3218 = vmatpush1.bf16.msra.mxu0 0
        %3219 = vmatprep.subr.bf16.mxu0 0
        %3220 = vmatpush1.bf16.msra.mxu0 0
        %3221 = vmatprep.subr.bf16.mxu0 0
        %3222 = vmatpush1.bf16.msra.mxu0 0
        %3223 = vmatprep.subr.bf16.mxu0 0
        %3224 = vmatpush1.bf16.msra.mxu0 0
        %3225 = vmatprep.subr.bf16.mxu0 0
        %3226 = vmatpush1.bf16.msra.mxu0 0
        %3227 = vmatprep.subr.bf16.mxu0 0
        %3228 = vmatpush1.bf16.msra.mxu0 0
        %3229 = vmatprep.subr.bf16.mxu0 0
        %3230 = vmatpush1.bf16.msra.mxu0 0
        %3231 = vmatprep.subr.bf16.mxu0 0
        %3232 = vmatpush1.bf16.msra.mxu0 0
        %3233 = vmatprep.subr.bf16.mxu0 0
        %3234 = vmatpush1.bf16.msra.mxu0 0
        %3235 = vmatprep.subr.bf16.mxu0 0
        %3236 = vmatpush1.bf16.msra.mxu0 0
        %3237 = vmatprep.subr.bf16.mxu0 0
        %3238 = vmatpush1.bf16.msra.mxu0 0
        %3239 = vmatprep.subr.bf16.mxu0 0
        %3240 = vmatpush1.bf16.msra.mxu0 0
        %3241 = vmatprep.subr.bf16.mxu0 0
        %3242 = vmatpush1.bf16.msra.mxu0 0
        %3243 = vmatprep.mubr.bf16.mxu0 0
        %3244 = vmatmul.mubr.bf16.gmra.mrb[0].mxu0 %v3065
        %v3245 = vpop.f32.mrb[0].mxu0
        %v3246 = vadd.f32 0.0, %v3245
        %v3247 = vpop.f32.mrb[0].mxu0
        %v3248 = vpop.f32.mrb[0].mxu0
        %v3249 = vpop.f32.mrb[0].mxu0
        %3250 = vdwg.mxu0
        %v3251 = vadd.f32 %v3031, %v3123
        %v3252 = vadd.f32 %v3032, %v3125
        %v3253 = vadd.f32 %v3033, %v3164
        %v3254 = vadd.f32 %v3034, %v3166
        %v3255 = vadd.f32 %v3035, %v3205
        %v3256 = vadd.f32 %v3036, %v3207
        %v3257 = vadd.f32 %v3037, %v3246
        %s3258 = scalar_lea.vmem %s1, 52
        %v3259 = vld [vmem:[%s3258] sm:$0x7]
        %3260 = vrot.lane.b32.xlu0 %v427, 61
        %v3261 = vpop.permute.xlu0 %3260
        %3262 = vrot.lane.b32.xlu0 %v428, 61
        %v3263 = vpop.permute.xlu0 %3262
        %3264 = vrot.lane.b32.xlu0 %v429, 61
        %v3265 = vpop.permute.xlu0 %3264
        %3266 = vrot.lane.b32.xlu0 %v430, 61
        %v3267 = vpop.permute.xlu0 %3266
        %3268 = vrot.lane.b32.xlu0 %v431, 61
        %v3269 = vpop.permute.xlu0 %3268
        %3270 = vrot.lane.b32.xlu0 %v432, 61
        %v3271 = vpop.permute.xlu0 %3270
        %3272 = vrot.lane.b32.xlu0 %v433, 61
        %v3273 = vpop.permute.xlu0 %3272
        %3274 = vrot.lane.b32.xlu0 %v1498, 61
        %v3275 = vpop.permute.xlu0 %3274
        %vm3276 = vcmask 498688
        %v3277 = vsel %vm3276, %v3261, %v3263
        %v3278 = vsel %vm3276, %v3263, %v3265
        %v3279 = vsel %vm3276, %v3265, %v3267
        %v3280 = vsel %vm3276, %v3267, %v3269
        %v3281 = vsel %vm3276, %v3269, %v3271
        %v3282 = vsel %vm3276, %v3271, %v3273
        %v3283 = vsel %vm3276, %v3273, %v3275
        %v3285 = vsel %vm464, %v3259, 0
        %v3288 = vand.u32 %v3277, %v471
        %v3291 = vand.u32 %v3278, %v471
        %v3294 = vand.u32 %v3279, %v471
        %v3297 = vand.u32 %v3280, %v471
        %v3300 = vand.u32 %v3281, %v471
        %v3303 = vand.u32 %v3282, %v471
        %v3306 = vand.u32 %v3283, %v471
        %3308 = vmatprep.subr.bf16.mxu0 %v3291
        %3309 = vmatpush1.bf16.msra.mxu0 %v3288
        %3310 = vmatprep.subr.bf16.mxu0 0
        %3311 = vmatpush1.bf16.msra.mxu0 0
        %3312 = vmatprep.subr.bf16.mxu0 0
        %3313 = vmatpush1.bf16.msra.mxu0 0
        %3314 = vmatprep.subr.bf16.mxu0 0
        %3315 = vmatpush1.bf16.msra.mxu0 0
        %3316 = vmatprep.subr.bf16.mxu0 0
        %3317 = vmatpush1.bf16.msra.mxu0 0
        %3318 = vmatprep.subr.bf16.mxu0 0
        %3319 = vmatpush1.bf16.msra.mxu0 0
        %3320 = vmatprep.subr.bf16.mxu0 0
        %3321 = vmatpush1.bf16.msra.mxu0 0
        %3322 = vmatprep.subr.bf16.mxu0 0
        %3323 = vmatpush1.bf16.msra.mxu0 0
        %3324 = vmatprep.subr.bf16.mxu0 0
        %3325 = vmatpush1.bf16.msra.mxu0 0
        %3326 = vmatprep.subr.bf16.mxu0 0
        %3327 = vmatpush1.bf16.msra.mxu0 0
        %3328 = vmatprep.subr.bf16.mxu0 0
        %3329 = vmatpush1.bf16.msra.mxu0 0
        %3330 = vmatprep.subr.bf16.mxu0 0
        %3331 = vmatpush1.bf16.msra.mxu0 0
        %3332 = vmatprep.subr.bf16.mxu0 0
        %3333 = vmatpush1.bf16.msra.mxu0 0
        %3334 = vmatprep.subr.bf16.mxu0 0
        %3335 = vmatpush1.bf16.msra.mxu0 0
        %3336 = vmatprep.subr.bf16.mxu0 0
        %3337 = vmatpush1.bf16.msra.mxu0 0
        %3338 = vmatprep.subr.bf16.mxu0 0
        %3339 = vmatpush1.bf16.msra.mxu0 0
        %3340 = vmatprep.mubr.bf16.mxu0 0
        %3341 = vmatmul.mubr.bf16.gmra.mrb[0].mxu0 %v3285
        %v3342 = vpop.f32.mrb[0].mxu0
        %v3343 = vadd.f32 0.0, %v3342
        %v3344 = vpop.f32.mrb[0].mxu0
        %v3345 = vadd.f32 0.0, %v3344
        %v3346 = vpop.f32.mrb[0].mxu0
        %v3347 = vpop.f32.mrb[0].mxu0
        %3348 = vdwg.mxu0
        %3349 = vmatprep.subr.bf16.mxu0 %v3297
        %3350 = vmatpush1.bf16.msra.mxu0 %v3294
        %3351 = vmatprep.subr.bf16.mxu0 0
        %3352 = vmatpush1.bf16.msra.mxu0 0
        %3353 = vmatprep.subr.bf16.mxu0 0
        %3354 = vmatpush1.bf16.msra.mxu0 0
        %3355 = vmatprep.subr.bf16.mxu0 0
        %3356 = vmatpush1.bf16.msra.mxu0 0
        %3357 = vmatprep.subr.bf16.mxu0 0
        %3358 = vmatpush1.bf16.msra.mxu0 0
        %3359 = vmatprep.subr.bf16.mxu0 0
        %3360 = vmatpush1.bf16.msra.mxu0 0
        %3361 = vmatprep.subr.bf16.mxu0 0
        %3362 = vmatpush1.bf16.msra.mxu0 0
        %3363 = vmatprep.subr.bf16.mxu0 0
        %3364 = vmatpush1.bf16.msra.mxu0 0
        %3365 = vmatprep.subr.bf16.mxu0 0
        %3366 = vmatpush1.bf16.msra.mxu0 0
        %3367 = vmatprep.subr.bf16.mxu0 0
        %3368 = vmatpush1.bf16.msra.mxu0 0
        %3369 = vmatprep.subr.bf16.mxu0 0
        %3370 = vmatpush1.bf16.msra.mxu0 0
        %3371 = vmatprep.subr.bf16.mxu0 0
        %3372 = vmatpush1.bf16.msra.mxu0 0
        %3373 = vmatprep.subr.bf16.mxu0 0
        %3374 = vmatpush1.bf16.msra.mxu0 0
        %3375 = vmatprep.subr.bf16.mxu0 0
        %3376 = vmatpush1.bf16.msra.mxu0 0
        %3377 = vmatprep.subr.bf16.mxu0 0
        %3378 = vmatpush1.bf16.msra.mxu0 0
        %3379 = vmatprep.subr.bf16.mxu0 0
        %3380 = vmatpush1.bf16.msra.mxu0 0
        %3381 = vmatprep.mubr.bf16.mxu0 0
        %3382 = vmatmul.mubr.bf16.gmra.mrb[0].mxu0 %v3285
        %v3383 = vpop.f32.mrb[0].mxu0
        %v3384 = vadd.f32 0.0, %v3383
        %v3385 = vpop.f32.mrb[0].mxu0
        %v3386 = vadd.f32 0.0, %v3385
        %v3387 = vpop.f32.mrb[0].mxu0
        %v3388 = vpop.f32.mrb[0].mxu0
        %3389 = vdwg.mxu0
        %3390 = vmatprep.subr.bf16.mxu0 %v3303
        %3391 = vmatpush1.bf16.msra.mxu0 %v3300
        %3392 = vmatprep.subr.bf16.mxu0 0
        %3393 = vmatpush1.bf16.msra.mxu0 0
        %3394 = vmatprep.subr.bf16.mxu0 0
        %3395 = vmatpush1.bf16.msra.mxu0 0
        %3396 = vmatprep.subr.bf16.mxu0 0
        %3397 = vmatpush1.bf16.msra.mxu0 0
        %3398 = vmatprep.subr.bf16.mxu0 0
        %3399 = vmatpush1.bf16.msra.mxu0 0
        %3400 = vmatprep.subr.bf16.mxu0 0
        %3401 = vmatpush1.bf16.msra.mxu0 0
        %3402 = vmatprep.subr.bf16.mxu0 0
        %3403 = vmatpush1.bf16.msra.mxu0 0
        %3404 = vmatprep.subr.bf16.mxu0 0
        %3405 = vmatpush1.bf16.msra.mxu0 0
        %3406 = vmatprep.subr.bf16.mxu0 0
        %3407 = vmatpush1.bf16.msra.mxu0 0
        %3408 = vmatprep.subr.bf16.mxu0 0
        %3409 = vmatpush1.bf16.msra.mxu0 0
        %3410 = vmatprep.subr.bf16.mxu0 0
        %3411 = vmatpush1.bf16.msra.mxu0 0
        %3412 = vmatprep.subr.bf16.mxu0 0
        %3413 = vmatpush1.bf16.msra.mxu0 0
        %3414 = vmatprep.subr.bf16.mxu0 0
        %3415 = vmatpush1.bf16.msra.mxu0 0
        %3416 = vmatprep.subr.bf16.mxu0 0
        %3417 = vmatpush1.bf16.msra.mxu0 0
        %3418 = vmatprep.subr.bf16.mxu0 0
        %3419 = vmatpush1.bf16.msra.mxu0 0
        %3420 = vmatprep.subr.bf16.mxu0 0
        %3421 = vmatpush1.bf16.msra.mxu0 0
        %3422 = vmatprep.mubr.bf16.mxu0 0
        %3423 = vmatmul.mubr.bf16.gmra.mrb[0].mxu0 %v3285
        %v3424 = vpop.f32.mrb[0].mxu0
        %v3425 = vadd.f32 0.0, %v3424
        %v3426 = vpop.f32.mrb[0].mxu0
        %v3427 = vadd.f32 0.0, %v3426
        %v3428 = vpop.f32.mrb[0].mxu0
        %v3429 = vpop.f32.mrb[0].mxu0
        %3430 = vdwg.mxu0
        %3431 = vmatprep.subr.bf16.mxu0 0
        %3432 = vmatpush1.bf16.msra.mxu0 %v3306
        %3433 = vmatprep.subr.bf16.mxu0 0
        %3434 = vmatpush1.bf16.msra.mxu0 0
        %3435 = vmatprep.subr.bf16.mxu0 0
        %3436 = vmatpush1.bf16.msra.mxu0 0
        %3437 = vmatprep.subr.bf16.mxu0 0
        %3438 = vmatpush1.bf16.msra.mxu0 0
        %3439 = vmatprep.subr.bf16.mxu0 0
        %3440 = vmatpush1.bf16.msra.mxu0 0
        %3441 = vmatprep.subr.bf16.mxu0 0
        %3442 = vmatpush1.bf16.msra.mxu0 0
        %3443 = vmatprep.subr.bf16.mxu0 0
        %3444 = vmatpush1.bf16.msra.mxu0 0
        %3445 = vmatprep.subr.bf16.mxu0 0
        %3446 = vmatpush1.bf16.msra.mxu0 0
        %3447 = vmatprep.subr.bf16.mxu0 0
        %3448 = vmatpush1.bf16.msra.mxu0 0
        %3449 = vmatprep.subr.bf16.mxu0 0
        %3450 = vmatpush1.bf16.msra.mxu0 0
        %3451 = vmatprep.subr.bf16.mxu0 0
        %3452 = vmatpush1.bf16.msra.mxu0 0
        %3453 = vmatprep.subr.bf16.mxu0 0
        %3454 = vmatpush1.bf16.msra.mxu0 0
        %3455 = vmatprep.subr.bf16.mxu0 0
        %3456 = vmatpush1.bf16.msra.mxu0 0
        %3457 = vmatprep.subr.bf16.mxu0 0
        %3458 = vmatpush1.bf16.msra.mxu0 0
        %3459 = vmatprep.subr.bf16.mxu0 0
        %3460 = vmatpush1.bf16.msra.mxu0 0
        %3461 = vmatprep.subr.bf16.mxu0 0
        %3462 = vmatpush1.bf16.msra.mxu0 0
        %3463 = vmatprep.mubr.bf16.mxu0 0
        %3464 = vmatmul.mubr.bf16.gmra.mrb[0].mxu0 %v3285
        %v3465 = vpop.f32.mrb[0].mxu0
        %v3466 = vadd.f32 0.0, %v3465
        %v3467 = vpop.f32.mrb[0].mxu0
        %v3468 = vpop.f32.mrb[0].mxu0
        %v3469 = vpop.f32.mrb[0].mxu0
        %3470 = vdwg.mxu0
        %v3471 = vadd.f32 %v3251, %v3343
        %v3472 = vadd.f32 %v3252, %v3345
        %v3473 = vadd.f32 %v3253, %v3384
        %v3474 = vadd.f32 %v3254, %v3386
        %v3475 = vadd.f32 %v3255, %v3425
        %v3476 = vadd.f32 %v3256, %v3427
        %v3477 = vadd.f32 %v3257, %v3466
        %s3478 = scalar_lea.vmem %s1, 56
        %v3479 = vld [vmem:[%s3478] sm:$0x7]
        %3480 = vrot.lane.b32.xlu0 %v427, 60
        %v3481 = vpop.permute.xlu0 %3480
        %3482 = vrot.lane.b32.xlu0 %v428, 60
        %v3483 = vpop.permute.xlu0 %3482
        %3484 = vrot.lane.b32.xlu0 %v429, 60
        %v3485 = vpop.permute.xlu0 %3484
        %3486 = vrot.lane.b32.xlu0 %v430, 60
        %v3487 = vpop.permute.xlu0 %3486
        %3488 = vrot.lane.b32.xlu0 %v431, 60
        %v3489 = vpop.permute.xlu0 %3488
        %3490 = vrot.lane.b32.xlu0 %v432, 60
        %v3491 = vpop.permute.xlu0 %3490
        %3492 = vrot.lane.b32.xlu0 %v433, 60
        %v3493 = vpop.permute.xlu0 %3492
        %3494 = vrot.lane.b32.xlu0 %v1498, 60
        %v3495 = vpop.permute.xlu0 %3494
        %vm3496 = vcmask 490496
        %v3497 = vsel %vm3496, %v3481, %v3483
        %v3498 = vsel %vm3496, %v3483, %v3485
        %v3499 = vsel %vm3496, %v3485, %v3487
        %v3500 = vsel %vm3496, %v3487, %v3489
        %v3501 = vsel %vm3496, %v3489, %v3491
        %v3502 = vsel %vm3496, %v3491, %v3493
        %v3503 = vsel %vm3496, %v3493, %v3495
        %v3505 = vsel %vm464, %v3479, 0
        %v3508 = vand.u32 %v3497, %v471
        %v3511 = vand.u32 %v3498, %v471
        %v3514 = vand.u32 %v3499, %v471
        %v3517 = vand.u32 %v3500, %v471
        %v3520 = vand.u32 %v3501, %v471
        %v3523 = vand.u32 %v3502, %v471
        %v3526 = vand.u32 %v3503, %v471
        %3528 = vmatprep.subr.bf16.mxu0 %v3511
        %3529 = vmatpush1.bf16.msra.mxu0 %v3508
        %3530 = vmatprep.subr.bf16.mxu0 0
        %3531 = vmatpush1.bf16.msra.mxu0 0
        %3532 = vmatprep.subr.bf16.mxu0 0
        %3533 = vmatpush1.bf16.msra.mxu0 0
        %3534 = vmatprep.subr.bf16.mxu0 0
        %3535 = vmatpush1.bf16.msra.mxu0 0
        %3536 = vmatprep.subr.bf16.mxu0 0
        %3537 = vmatpush1.bf16.msra.mxu0 0
        %3538 = vmatprep.subr.bf16.mxu0 0
        %3539 = vmatpush1.bf16.msra.mxu0 0
        %3540 = vmatprep.subr.bf16.mxu0 0
        %3541 = vmatpush1.bf16.msra.mxu0 0
        %3542 = vmatprep.subr.bf16.mxu0 0
        %3543 = vmatpush1.bf16.msra.mxu0 0
        %3544 = vmatprep.subr.bf16.mxu0 0
        %3545 = vmatpush1.bf16.msra.mxu0 0
        %3546 = vmatprep.subr.bf16.mxu0 0
        %3547 = vmatpush1.bf16.msra.mxu0 0
        %3548 = vmatprep.subr.bf16.mxu0 0
        %3549 = vmatpush1.bf16.msra.mxu0 0
        %3550 = vmatprep.subr.bf16.mxu0 0
        %3551 = vmatpush1.bf16.msra.mxu0 0
        %3552 = vmatprep.subr.bf16.mxu0 0
        %3553 = vmatpush1.bf16.msra.mxu0 0
        %3554 = vmatprep.subr.bf16.mxu0 0
        %3555 = vmatpush1.bf16.msra.mxu0 0
        %3556 = vmatprep.subr.bf16.mxu0 0
        %3557 = vmatpush1.bf16.msra.mxu0 0
        %3558 = vmatprep.subr.bf16.mxu0 0
        %3559 = vmatpush1.bf16.msra.mxu0 0
        %3560 = vmatprep.mubr.bf16.mxu0 0
        %3561 = vmatmul.mubr.bf16.gmra.mrb[0].mxu0 %v3505
        %v3562 = vpop.f32.mrb[0].mxu0
        %v3563 = vadd.f32 0.0, %v3562
        %v3564 = vpop.f32.mrb[0].mxu0
        %v3565 = vadd.f32 0.0, %v3564
        %v3566 = vpop.f32.mrb[0].mxu0
        %v3567 = vpop.f32.mrb[0].mxu0
        %3568 = vdwg.mxu0
        %3569 = vmatprep.subr.bf16.mxu0 %v3517
        %3570 = vmatpush1.bf16.msra.mxu0 %v3514
        %3571 = vmatprep.subr.bf16.mxu0 0
        %3572 = vmatpush1.bf16.msra.mxu0 0
        %3573 = vmatprep.subr.bf16.mxu0 0
        %3574 = vmatpush1.bf16.msra.mxu0 0
        %3575 = vmatprep.subr.bf16.mxu0 0
        %3576 = vmatpush1.bf16.msra.mxu0 0
        %3577 = vmatprep.subr.bf16.mxu0 0
        %3578 = vmatpush1.bf16.msra.mxu0 0
        %3579 = vmatprep.subr.bf16.mxu0 0
        %3580 = vmatpush1.bf16.msra.mxu0 0
        %3581 = vmatprep.subr.bf16.mxu0 0
        %3582 = vmatpush1.bf16.msra.mxu0 0
        %3583 = vmatprep.subr.bf16.mxu0 0
        %3584 = vmatpush1.bf16.msra.mxu0 0
        %3585 = vmatprep.subr.bf16.mxu0 0
        %3586 = vmatpush1.bf16.msra.mxu0 0
        %3587 = vmatprep.subr.bf16.mxu0 0
        %3588 = vmatpush1.bf16.msra.mxu0 0
        %3589 = vmatprep.subr.bf16.mxu0 0
        %3590 = vmatpush1.bf16.msra.mxu0 0
        %3591 = vmatprep.subr.bf16.mxu0 0
        %3592 = vmatpush1.bf16.msra.mxu0 0
        %3593 = vmatprep.subr.bf16.mxu0 0
        %3594 = vmatpush1.bf16.msra.mxu0 0
        %3595 = vmatprep.subr.bf16.mxu0 0
        %3596 = vmatpush1.bf16.msra.mxu0 0
        %3597 = vmatprep.subr.bf16.mxu0 0
        %3598 = vmatpush1.bf16.msra.mxu0 0
        %3599 = vmatprep.subr.bf16.mxu0 0
        %3600 = vmatpush1.bf16.msra.mxu0 0
        %3601 = vmatprep.mubr.bf16.mxu0 0
        %3602 = vmatmul.mubr.bf16.gmra.mrb[0].mxu0 %v3505
        %v3603 = vpop.f32.mrb[0].mxu0
        %v3604 = vadd.f32 0.0, %v3603
        %v3605 = vpop.f32.mrb[0].mxu0
        %v3606 = vadd.f32 0.0, %v3605
        %v3607 = vpop.f32.mrb[0].mxu0
        %v3608 = vpop.f32.mrb[0].mxu0
        %3609 = vdwg.mxu0
        %3610 = vmatprep.subr.bf16.mxu0 %v3523
        %3611 = vmatpush1.bf16.msra.mxu0 %v3520
        %3612 = vmatprep.subr.bf16.mxu0 0
        %3613 = vmatpush1.bf16.msra.mxu0 0
        %3614 = vmatprep.subr.bf16.mxu0 0
        %3615 = vmatpush1.bf16.msra.mxu0 0
        %3616 = vmatprep.subr.bf16.mxu0 0
        %3617 = vmatpush1.bf16.msra.mxu0 0
        %3618 = vmatprep.subr.bf16.mxu0 0
        %3619 = vmatpush1.bf16.msra.mxu0 0
        %3620 = vmatprep.subr.bf16.mxu0 0
        %3621 = vmatpush1.bf16.msra.mxu0 0
        %3622 = vmatprep.subr.bf16.mxu0 0
        %3623 = vmatpush1.bf16.msra.mxu0 0
        %3624 = vmatprep.subr.bf16.mxu0 0
        %3625 = vmatpush1.bf16.msra.mxu0 0
        %3626 = vmatprep.subr.bf16.mxu0 0
        %3627 = vmatpush1.bf16.msra.mxu0 0
        %3628 = vmatprep.subr.bf16.mxu0 0
        %3629 = vmatpush1.bf16.msra.mxu0 0
        %3630 = vmatprep.subr.bf16.mxu0 0
        %3631 = vmatpush1.bf16.msra.mxu0 0
        %3632 = vmatprep.subr.bf16.mxu0 0
        %3633 = vmatpush1.bf16.msra.mxu0 0
        %3634 = vmatprep.subr.bf16.mxu0 0
        %3635 = vmatpush1.bf16.msra.mxu0 0
        %3636 = vmatprep.subr.bf16.mxu0 0
        %3637 = vmatpush1.bf16.msra.mxu0 0
        %3638 = vmatprep.subr.bf16.mxu0 0
        %3639 = vmatpush1.bf16.msra.mxu0 0
        %3640 = vmatprep.subr.bf16.mxu0 0
        %3641 = vmatpush1.bf16.msra.mxu0 0
        %3642 = vmatprep.mubr.bf16.mxu0 0
        %3643 = vmatmul.mubr.bf16.gmra.mrb[0].mxu0 %v3505
        %v3644 = vpop.f32.mrb[0].mxu0
        %v3645 = vadd.f32 0.0, %v3644
        %v3646 = vpop.f32.mrb[0].mxu0
        %v3647 = vadd.f32 0.0, %v3646
        %v3648 = vpop.f32.mrb[0].mxu0
        %v3649 = vpop.f32.mrb[0].mxu0
        %3650 = vdwg.mxu0
        %3651 = vmatprep.subr.bf16.mxu0 0
        %3652 = vmatpush1.bf16.msra.mxu0 %v3526
        %3653 = vmatprep.subr.bf16.mxu0 0
        %3654 = vmatpush1.bf16.msra.mxu0 0
        %3655 = vmatprep.subr.bf16.mxu0 0
        %3656 = vmatpush1.bf16.msra.mxu0 0
        %3657 = vmatprep.subr.bf16.mxu0 0
        %3658 = vmatpush1.bf16.msra.mxu0 0
        %3659 = vmatprep.subr.bf16.mxu0 0
        %3660 = vmatpush1.bf16.msra.mxu0 0
        %3661 = vmatprep.subr.bf16.mxu0 0
        %3662 = vmatpush1.bf16.msra.mxu0 0
        %3663 = vmatprep.subr.bf16.mxu0 0
        %3664 = vmatpush1.bf16.msra.mxu0 0
        %3665 = vmatprep.subr.bf16.mxu0 0
        %3666 = vmatpush1.bf16.msra.mxu0 0
        %3667 = vmatprep.subr.bf16.mxu0 0
        %3668 = vmatpush1.bf16.msra.mxu0 0
        %3669 = vmatprep.subr.bf16.mxu0 0
        %3670 = vmatpush1.bf16.msra.mxu0 0
        %3671 = vmatprep.subr.bf16.mxu0 0
        %3672 = vmatpush1.bf16.msra.mxu0 0
        %3673 = vmatprep.subr.bf16.mxu0 0
        %3674 = vmatpush1.bf16.msra.mxu0 0
        %3675 = vmatprep.subr.bf16.mxu0 0
        %3676 = vmatpush1.bf16.msra.mxu0 0
        %3677 = vmatprep.subr.bf16.mxu0 0
        %3678 = vmatpush1.bf16.msra.mxu0 0
        %3679 = vmatprep.subr.bf16.mxu0 0
        %3680 = vmatpush1.bf16.msra.mxu0 0
        %3681 = vmatprep.subr.bf16.mxu0 0
        %3682 = vmatpush1.bf16.msra.mxu0 0
        %3683 = vmatprep.mubr.bf16.mxu0 0
        %3684 = vmatmul.mubr.bf16.gmra.mrb[0].mxu0 %v3505
        %v3685 = vpop.f32.mrb[0].mxu0
        %v3686 = vadd.f32 0.0, %v3685
        %v3687 = vpop.f32.mrb[0].mxu0
        %v3688 = vpop.f32.mrb[0].mxu0
        %v3689 = vpop.f32.mrb[0].mxu0
        %3690 = vdwg.mxu0
        %v3691 = vadd.f32 %v3471, %v3563
        %v3692 = vadd.f32 %v3472, %v3565
        %v3693 = vadd.f32 %v3473, %v3604
        %v3694 = vadd.f32 %v3474, %v3606
        %v3695 = vadd.f32 %v3475, %v3645
        %v3696 = vadd.f32 %v3476, %v3647
        %v3697 = vadd.f32 %v3477, %v3686
        %s3698 = scalar_lea.vmem %s1, 60
        %v3699 = vld [vmem:[%s3698] sm:$0x7]
        %3700 = vrot.lane.b32.xlu0 %v427, 32
        %v3701 = vpop.permute.xlu0 %3700
        %3702 = vrot.lane.b32.xlu0 %v428, 32
        %v3703 = vpop.permute.xlu0 %3702
        %3704 = vrot.lane.b32.xlu0 %v429, 32
        %v3705 = vpop.permute.xlu0 %3704
        %3706 = vrot.lane.b32.xlu0 %v430, 32
        %v3707 = vpop.permute.xlu0 %3706
        %3708 = vrot.lane.b32.xlu0 %v431, 32
        %v3709 = vpop.permute.xlu0 %3708
        %3710 = vrot.lane.b32.xlu0 %v432, 32
        %v3711 = vpop.permute.xlu0 %3710
        %3712 = vrot.lane.b32.xlu0 %v433, 32
        %v3713 = vpop.permute.xlu0 %3712
        %3714 = vrot.lane.b32.xlu0 %v1498, 32
        %v3715 = vpop.permute.xlu0 %3714
        %vm3716 = vcmask 261120
        %v3717 = vsel %vm3716, %v3701, %v3703
        %v3718 = vsel %vm3716, %v3703, %v3705
        %v3719 = vsel %vm3716, %v3705, %v3707
        %v3720 = vsel %vm3716, %v3707, %v3709
        %v3721 = vsel %vm3716, %v3709, %v3711
        %v3722 = vsel %vm3716, %v3711, %v3713
        %v3723 = vsel %vm3716, %v3713, %v3715
        %v3725 = vsel %vm464, %v3699, 0
        %v3728 = vand.u32 %v3717, %v471
        %v3731 = vand.u32 %v3718, %v471
        %v3734 = vand.u32 %v3719, %v471
        %v3737 = vand.u32 %v3720, %v471
        %v3740 = vand.u32 %v3721, %v471
        %v3743 = vand.u32 %v3722, %v471
        %v3746 = vand.u32 %v3723, %v471
        %3748 = vmatprep.subr.bf16.mxu0 %v3731
        %3749 = vmatpush1.bf16.msra.mxu0 %v3728
        %3750 = vmatprep.subr.bf16.mxu0 0
        %3751 = vmatpush1.bf16.msra.mxu0 0
        %3752 = vmatprep.subr.bf16.mxu0 0
        %3753 = vmatpush1.bf16.msra.mxu0 0
        %3754 = vmatprep.subr.bf16.mxu0 0
        %3755 = vmatpush1.bf16.msra.mxu0 0
        %3756 = vmatprep.subr.bf16.mxu0 0
        %3757 = vmatpush1.bf16.msra.mxu0 0
        %3758 = vmatprep.subr.bf16.mxu0 0
        %3759 = vmatpush1.bf16.msra.mxu0 0
        %3760 = vmatprep.subr.bf16.mxu0 0
        %3761 = vmatpush1.bf16.msra.mxu0 0
        %3762 = vmatprep.subr.bf16.mxu0 0
        %3763 = vmatpush1.bf16.msra.mxu0 0
        %3764 = vmatprep.subr.bf16.mxu0 0
        %3765 = vmatpush1.bf16.msra.mxu0 0
        %3766 = vmatprep.subr.bf16.mxu0 0
        %3767 = vmatpush1.bf16.msra.mxu0 0
        %3768 = vmatprep.subr.bf16.mxu0 0
        %3769 = vmatpush1.bf16.msra.mxu0 0
        %3770 = vmatprep.subr.bf16.mxu0 0
        %3771 = vmatpush1.bf16.msra.mxu0 0
        %3772 = vmatprep.subr.bf16.mxu0 0
        %3773 = vmatpush1.bf16.msra.mxu0 0
        %3774 = vmatprep.subr.bf16.mxu0 0
        %3775 = vmatpush1.bf16.msra.mxu0 0
        %3776 = vmatprep.subr.bf16.mxu0 0
        %3777 = vmatpush1.bf16.msra.mxu0 0
        %3778 = vmatprep.subr.bf16.mxu0 0
        %3779 = vmatpush1.bf16.msra.mxu0 0
        %3780 = vmatprep.mubr.bf16.mxu0 0
        %3781 = vmatmul.mubr.bf16.gmra.mrb[0].mxu0 %v3725
        %v3782 = vpop.f32.mrb[0].mxu0
        %v3783 = vadd.f32 0.0, %v3782
        %v3784 = vpop.f32.mrb[0].mxu0
        %v3785 = vadd.f32 0.0, %v3784
        %v3786 = vpop.f32.mrb[0].mxu0
        %v3787 = vpop.f32.mrb[0].mxu0
        %3788 = vdwg.mxu0
        %3789 = vmatprep.subr.bf16.mxu0 %v3737
        %3790 = vmatpush1.bf16.msra.mxu0 %v3734
        %3791 = vmatprep.subr.bf16.mxu0 0
        %3792 = vmatpush1.bf16.msra.mxu0 0
        %3793 = vmatprep.subr.bf16.mxu0 0
        %3794 = vmatpush1.bf16.msra.mxu0 0
        %3795 = vmatprep.subr.bf16.mxu0 0
        %3796 = vmatpush1.bf16.msra.mxu0 0
        %3797 = vmatprep.subr.bf16.mxu0 0
        %3798 = vmatpush1.bf16.msra.mxu0 0
        %3799 = vmatprep.subr.bf16.mxu0 0
        %3800 = vmatpush1.bf16.msra.mxu0 0
        %3801 = vmatprep.subr.bf16.mxu0 0
        %3802 = vmatpush1.bf16.msra.mxu0 0
        %3803 = vmatprep.subr.bf16.mxu0 0
        %3804 = vmatpush1.bf16.msra.mxu0 0
        %3805 = vmatprep.subr.bf16.mxu0 0
        %3806 = vmatpush1.bf16.msra.mxu0 0
        %3807 = vmatprep.subr.bf16.mxu0 0
        %3808 = vmatpush1.bf16.msra.mxu0 0
        %3809 = vmatprep.subr.bf16.mxu0 0
        %3810 = vmatpush1.bf16.msra.mxu0 0
        %3811 = vmatprep.subr.bf16.mxu0 0
        %3812 = vmatpush1.bf16.msra.mxu0 0
        %3813 = vmatprep.subr.bf16.mxu0 0
        %3814 = vmatpush1.bf16.msra.mxu0 0
        %3815 = vmatprep.subr.bf16.mxu0 0
        %3816 = vmatpush1.bf16.msra.mxu0 0
        %3817 = vmatprep.subr.bf16.mxu0 0
        %3818 = vmatpush1.bf16.msra.mxu0 0
        %3819 = vmatprep.subr.bf16.mxu0 0
        %3820 = vmatpush1.bf16.msra.mxu0 0
        %3821 = vmatprep.mubr.bf16.mxu0 0
        %3822 = vmatmul.mubr.bf16.gmra.mrb[0].mxu0 %v3725
        %v3823 = vpop.f32.mrb[0].mxu0
        %v3824 = vadd.f32 0.0, %v3823
        %v3825 = vpop.f32.mrb[0].mxu0
        %v3826 = vadd.f32 0.0, %v3825
        %v3827 = vpop.f32.mrb[0].mxu0
        %v3828 = vpop.f32.mrb[0].mxu0
        %3829 = vdwg.mxu0
        %3830 = vmatprep.subr.bf16.mxu0 %v3743
        %3831 = vmatpush1.bf16.msra.mxu0 %v3740
        %3832 = vmatprep.subr.bf16.mxu0 0
        %3833 = vmatpush1.bf16.msra.mxu0 0
        %3834 = vmatprep.subr.bf16.mxu0 0
        %3835 = vmatpush1.bf16.msra.mxu0 0
        %3836 = vmatprep.subr.bf16.mxu0 0
        %3837 = vmatpush1.bf16.msra.mxu0 0
        %3838 = vmatprep.subr.bf16.mxu0 0
        %3839 = vmatpush1.bf16.msra.mxu0 0
        %3840 = vmatprep.subr.bf16.mxu0 0
        %3841 = vmatpush1.bf16.msra.mxu0 0
        %3842 = vmatprep.subr.bf16.mxu0 0
        %3843 = vmatpush1.bf16.msra.mxu0 0
        %3844 = vmatprep.subr.bf16.mxu0 0
        %3845 = vmatpush1.bf16.msra.mxu0 0
        %3846 = vmatprep.subr.bf16.mxu0 0
        %3847 = vmatpush1.bf16.msra.mxu0 0
        %3848 = vmatprep.subr.bf16.mxu0 0
        %3849 = vmatpush1.bf16.msra.mxu0 0
        %3850 = vmatprep.subr.bf16.mxu0 0
        %3851 = vmatpush1.bf16.msra.mxu0 0
        %3852 = vmatprep.subr.bf16.mxu0 0
        %3853 = vmatpush1.bf16.msra.mxu0 0
        %3854 = vmatprep.subr.bf16.mxu0 0
        %3855 = vmatpush1.bf16.msra.mxu0 0
        %3856 = vmatprep.subr.bf16.mxu0 0
        %3857 = vmatpush1.bf16.msra.mxu0 0
        %3858 = vmatprep.subr.bf16.mxu0 0
        %3859 = vmatpush1.bf16.msra.mxu0 0
        %3860 = vmatprep.subr.bf16.mxu0 0
        %3861 = vmatpush1.bf16.msra.mxu0 0
        %3862 = vmatprep.mubr.bf16.mxu0 0
        %3863 = vmatmul.mubr.bf16.gmra.mrb[0].mxu0 %v3725
        %v3864 = vpop.f32.mrb[0].mxu0
        %v3865 = vadd.f32 0.0, %v3864
        %v3866 = vpop.f32.mrb[0].mxu0
        %v3867 = vadd.f32 0.0, %v3866
        %v3868 = vpop.f32.mrb[0].mxu0
        %v3869 = vpop.f32.mrb[0].mxu0
        %3870 = vdwg.mxu0
        %3871 = vmatprep.subr.bf16.mxu0 0
        %3872 = vmatpush1.bf16.msra.mxu0 %v3746
        %3873 = vmatprep.subr.bf16.mxu0 0
        %3874 = vmatpush1.bf16.msra.mxu0 0
        %3875 = vmatprep.subr.bf16.mxu0 0
        %3876 = vmatpush1.bf16.msra.mxu0 0
        %3877 = vmatprep.subr.bf16.mxu0 0
        %3878 = vmatpush1.bf16.msra.mxu0 0
        %3879 = vmatprep.subr.bf16.mxu0 0
        %3880 = vmatpush1.bf16.msra.mxu0 0
        %3881 = vmatprep.subr.bf16.mxu0 0
        %3882 = vmatpush1.bf16.msra.mxu0 0
        %3883 = vmatprep.subr.bf16.mxu0 0
        %3884 = vmatpush1.bf16.msra.mxu0 0
        %3885 = vmatprep.subr.bf16.mxu0 0
        %3886 = vmatpush1.bf16.msra.mxu0 0
        %3887 = vmatprep.subr.bf16.mxu0 0
        %3888 = vmatpush1.bf16.msra.mxu0 0
        %3889 = vmatprep.subr.bf16.mxu0 0
        %3890 = vmatpush1.bf16.msra.mxu0 0
        %3891 = vmatprep.subr.bf16.mxu0 0
        %3892 = vmatpush1.bf16.msra.mxu0 0
        %3893 = vmatprep.subr.bf16.mxu0 0
        %3894 = vmatpush1.bf16.msra.mxu0 0
        %3895 = vmatprep.subr.bf16.mxu0 0
        %3896 = vmatpush1.bf16.msra.mxu0 0
        %3897 = vmatprep.subr.bf16.mxu0 0
        %3898 = vmatpush1.bf16.msra.mxu0 0
        %3899 = vmatprep.subr.bf16.mxu0 0
        %3900 = vmatpush1.bf16.msra.mxu0 0
        %3901 = vmatprep.subr.bf16.mxu0 0
        %3902 = vmatpush1.bf16.msra.mxu0 0
        %3903 = vmatprep.mubr.bf16.mxu0 0
        %3904 = vmatmul.mubr.bf16.gmra.mrb[0].mxu0 %v3725
        %v3905 = vpop.f32.mrb[0].mxu0
        %v3906 = vadd.f32 0.0, %v3905
        %v3907 = vpop.f32.mrb[0].mxu0
        %v3908 = vpop.f32.mrb[0].mxu0
        %v3909 = vpop.f32.mrb[0].mxu0
        %3910 = vdwg.mxu0
        %v3911 = vadd.f32 %v3691, %v3783
        %v3912 = vadd.f32 %v3692, %v3785
        %v3913 = vadd.f32 %v3693, %v3824
        %v3914 = vadd.f32 %v3694, %v3826
        %v3915 = vadd.f32 %v3695, %v3865
        %v3916 = vadd.f32 %v3696, %v3867
        %v3917 = vadd.f32 %v3697, %v3906
        %s3918 = scalar_lea.vmem %s1, 64
        %v3919 = vld [vmem:[%s3918] sm:$0x7]
        %3920 = vrot.lane.b32.xlu0 %v427, 31
        %v3921 = vpop.permute.xlu0 %3920
        %3922 = vrot.lane.b32.xlu0 %v428, 31
        %v3923 = vpop.permute.xlu0 %3922
        %3924 = vrot.lane.b32.xlu0 %v429, 31
        %v3925 = vpop.permute.xlu0 %3924
        %3926 = vrot.lane.b32.xlu0 %v430, 31
        %v3927 = vpop.permute.xlu0 %3926
        %3928 = vrot.lane.b32.xlu0 %v431, 31
        %v3929 = vpop.permute.xlu0 %3928
        %3930 = vrot.lane.b32.xlu0 %v432, 31
        %v3931 = vpop.permute.xlu0 %3930
        %3932 = vrot.lane.b32.xlu0 %v433, 31
        %v3933 = vpop.permute.xlu0 %3932
        %3934 = vrot.lane.b32.xlu0 %v1498, 31
        %v3935 = vpop.permute.xlu0 %3934
        %vm3936 = vcmask 252928
        %v3937 = vsel %vm3936, %v3921, %v3923
        %v3938 = vsel %vm3936, %v3923, %v3925
        %v3939 = vsel %vm3936, %v3925, %v3927
        %v3940 = vsel %vm3936, %v3927, %v3929
        %v3941 = vsel %vm3936, %v3929, %v3931
        %v3942 = vsel %vm3936, %v3931, %v3933
        %v3943 = vsel %vm3936, %v3933, %v3935
        %v3945 = vsel %vm464, %v3919, 0
        %v3948 = vand.u32 %v3937, %v471
        %v3951 = vand.u32 %v3938, %v471
        %v3954 = vand.u32 %v3939, %v471
        %v3957 = vand.u32 %v3940, %v471
        %v3960 = vand.u32 %v3941, %v471
        %v3963 = vand.u32 %v3942, %v471
        %v3966 = vand.u32 %v3943, %v471
        %3968 = vmatprep.subr.bf16.mxu0 %v3951
        %3969 = vmatpush1.bf16.msra.mxu0 %v3948
        %3970 = vmatprep.subr.bf16.mxu0 0
        %3971 = vmatpush1.bf16.msra.mxu0 0
        %3972 = vmatprep.subr.bf16.mxu0 0
        %3973 = vmatpush1.bf16.msra.mxu0 0
        %3974 = vmatprep.subr.bf16.mxu0 0
        %3975 = vmatpush1.bf16.msra.mxu0 0
        %3976 = vmatprep.subr.bf16.mxu0 0
        %3977 = vmatpush1.bf16.msra.mxu0 0
        %3978 = vmatprep.subr.bf16.mxu0 0
        %3979 = vmatpush1.bf16.msra.mxu0 0
        %3980 = vmatprep.subr.bf16.mxu0 0
        %3981 = vmatpush1.bf16.msra.mxu0 0
        %3982 = vmatprep.subr.bf16.mxu0 0
        %3983 = vmatpush1.bf16.msra.mxu0 0
        %3984 = vmatprep.subr.bf16.mxu0 0
        %3985 = vmatpush1.bf16.msra.mxu0 0
        %3986 = vmatprep.subr.bf16.mxu0 0
        %3987 = vmatpush1.bf16.msra.mxu0 0
        %3988 = vmatprep.subr.bf16.mxu0 0
        %3989 = vmatpush1.bf16.msra.mxu0 0
        %3990 = vmatprep.subr.bf16.mxu0 0
        %3991 = vmatpush1.bf16.msra.mxu0 0
        %3992 = vmatprep.subr.bf16.mxu0 0
        %3993 = vmatpush1.bf16.msra.mxu0 0
        %3994 = vmatprep.subr.bf16.mxu0 0
        %3995 = vmatpush1.bf16.msra.mxu0 0
        %3996 = vmatprep.subr.bf16.mxu0 0
        %3997 = vmatpush1.bf16.msra.mxu0 0
        %3998 = vmatprep.subr.bf16.mxu0 0
        %3999 = vmatpush1.bf16.msra.mxu0 0
        %4000 = vmatprep.mubr.bf16.mxu0 0
        %4001 = vmatmul.mubr.bf16.gmra.mrb[0].mxu0 %v3945
        %v4002 = vpop.f32.mrb[0].mxu0
        %v4003 = vadd.f32 0.0, %v4002
        %v4004 = vpop.f32.mrb[0].mxu0
        %v4005 = vadd.f32 0.0, %v4004
        %v4006 = vpop.f32.mrb[0].mxu0
        %v4007 = vpop.f32.mrb[0].mxu0
        %4008 = vdwg.mxu0
        %4009 = vmatprep.subr.bf16.mxu0 %v3957
        %4010 = vmatpush1.bf16.msra.mxu0 %v3954
        %4011 = vmatprep.subr.bf16.mxu0 0
        %4012 = vmatpush1.bf16.msra.mxu0 0
        %4013 = vmatprep.subr.bf16.mxu0 0
        %4014 = vmatpush1.bf16.msra.mxu0 0
        %4015 = vmatprep.subr.bf16.mxu0 0
        %4016 = vmatpush1.bf16.msra.mxu0 0
        %4017 = vmatprep.subr.bf16.mxu0 0
        %4018 = vmatpush1.bf16.msra.mxu0 0
        %4019 = vmatprep.subr.bf16.mxu0 0
        %4020 = vmatpush1.bf16.msra.mxu0 0
        %4021 = vmatprep.subr.bf16.mxu0 0
        %4022 = vmatpush1.bf16.msra.mxu0 0
        %4023 = vmatprep.subr.bf16.mxu0 0
        %4024 = vmatpush1.bf16.msra.mxu0 0
        %4025 = vmatprep.subr.bf16.mxu0 0
        %4026 = vmatpush1.bf16.msra.mxu0 0
        %4027 = vmatprep.subr.bf16.mxu0 0
        %4028 = vmatpush1.bf16.msra.mxu0 0
        %4029 = vmatprep.subr.bf16.mxu0 0
        %4030 = vmatpush1.bf16.msra.mxu0 0
        %4031 = vmatprep.subr.bf16.mxu0 0
        %4032 = vmatpush1.bf16.msra.mxu0 0
        %4033 = vmatprep.subr.bf16.mxu0 0
        %4034 = vmatpush1.bf16.msra.mxu0 0
        %4035 = vmatprep.subr.bf16.mxu0 0
        %4036 = vmatpush1.bf16.msra.mxu0 0
        %4037 = vmatprep.subr.bf16.mxu0 0
        %4038 = vmatpush1.bf16.msra.mxu0 0
        %4039 = vmatprep.subr.bf16.mxu0 0
        %4040 = vmatpush1.bf16.msra.mxu0 0
        %4041 = vmatprep.mubr.bf16.mxu0 0
        %4042 = vmatmul.mubr.bf16.gmra.mrb[0].mxu0 %v3945
        %v4043 = vpop.f32.mrb[0].mxu0
        %v4044 = vadd.f32 0.0, %v4043
        %v4045 = vpop.f32.mrb[0].mxu0
        %v4046 = vadd.f32 0.0, %v4045
        %v4047 = vpop.f32.mrb[0].mxu0
        %v4048 = vpop.f32.mrb[0].mxu0
        %4049 = vdwg.mxu0
        %4050 = vmatprep.subr.bf16.mxu0 %v3963
        %4051 = vmatpush1.bf16.msra.mxu0 %v3960
        %4052 = vmatprep.subr.bf16.mxu0 0
        %4053 = vmatpush1.bf16.msra.mxu0 0
        %4054 = vmatprep.subr.bf16.mxu0 0
        %4055 = vmatpush1.bf16.msra.mxu0 0
        %4056 = vmatprep.subr.bf16.mxu0 0
        %4057 = vmatpush1.bf16.msra.mxu0 0
        %4058 = vmatprep.subr.bf16.mxu0 0
        %4059 = vmatpush1.bf16.msra.mxu0 0
        %4060 = vmatprep.subr.bf16.mxu0 0
        %4061 = vmatpush1.bf16.msra.mxu0 0
        %4062 = vmatprep.subr.bf16.mxu0 0
        %4063 = vmatpush1.bf16.msra.mxu0 0
        %4064 = vmatprep.subr.bf16.mxu0 0
        %4065 = vmatpush1.bf16.msra.mxu0 0
        %4066 = vmatprep.subr.bf16.mxu0 0
        %4067 = vmatpush1.bf16.msra.mxu0 0
        %4068 = vmatprep.subr.bf16.mxu0 0
        %4069 = vmatpush1.bf16.msra.mxu0 0
        %4070 = vmatprep.subr.bf16.mxu0 0
        %4071 = vmatpush1.bf16.msra.mxu0 0
        %4072 = vmatprep.subr.bf16.mxu0 0
        %4073 = vmatpush1.bf16.msra.mxu0 0
        %4074 = vmatprep.subr.bf16.mxu0 0
        %4075 = vmatpush1.bf16.msra.mxu0 0
        %4076 = vmatprep.subr.bf16.mxu0 0
        %4077 = vmatpush1.bf16.msra.mxu0 0
        %4078 = vmatprep.subr.bf16.mxu0 0
        %4079 = vmatpush1.bf16.msra.mxu0 0
        %4080 = vmatprep.subr.bf16.mxu0 0
        %4081 = vmatpush1.bf16.msra.mxu0 0
        %4082 = vmatprep.mubr.bf16.mxu0 0
        %4083 = vmatmul.mubr.bf16.gmra.mrb[0].mxu0 %v3945
        %v4084 = vpop.f32.mrb[0].mxu0
        %v4085 = vadd.f32 0.0, %v4084
        %v4086 = vpop.f32.mrb[0].mxu0
        %v4087 = vadd.f32 0.0, %v4086
        %v4088 = vpop.f32.mrb[0].mxu0
        %v4089 = vpop.f32.mrb[0].mxu0
        %4090 = vdwg.mxu0
        %4091 = vmatprep.subr.bf16.mxu0 0
        %4092 = vmatpush1.bf16.msra.mxu0 %v3966
        %4093 = vmatprep.subr.bf16.mxu0 0
        %4094 = vmatpush1.bf16.msra.mxu0 0
        %4095 = vmatprep.subr.bf16.mxu0 0
        %4096 = vmatpush1.bf16.msra.mxu0 0
        %4097 = vmatprep.subr.bf16.mxu0 0
        %4098 = vmatpush1.bf16.msra.mxu0 0
        %4099 = vmatprep.subr.bf16.mxu0 0
        %4100 = vmatpush1.bf16.msra.mxu0 0
        %4101 = vmatprep.subr.bf16.mxu0 0
        %4102 = vmatpush1.bf16.msra.mxu0 0
        %4103 = vmatprep.subr.bf16.mxu0 0
        %4104 = vmatpush1.bf16.msra.mxu0 0
        %4105 = vmatprep.subr.bf16.mxu0 0
        %4106 = vmatpush1.bf16.msra.mxu0 0
        %4107 = vmatprep.subr.bf16.mxu0 0
        %4108 = vmatpush1.bf16.msra.mxu0 0
        %4109 = vmatprep.subr.bf16.mxu0 0
        %4110 = vmatpush1.bf16.msra.mxu0 0
        %4111 = vmatprep.subr.bf16.mxu0 0
        %4112 = vmatpush1.bf16.msra.mxu0 0
        %4113 = vmatprep.subr.bf16.mxu0 0
        %4114 = vmatpush1.bf16.msra.mxu0 0
        %4115 = vmatprep.subr.bf16.mxu0 0
        %4116 = vmatpush1.bf16.msra.mxu0 0
        %4117 = vmatprep.subr.bf16.mxu0 0
        %4118 = vmatpush1.bf16.msra.mxu0 0
        %4119 = vmatprep.subr.bf16.mxu0 0
        %4120 = vmatpush1.bf16.msra.mxu0 0
        %4121 = vmatprep.subr.bf16.mxu0 0
        %4122 = vmatpush1.bf16.msra.mxu0 0
        %4123 = vmatprep.mubr.bf16.mxu0 0
        %4124 = vmatmul.mubr.bf16.gmra.mrb[0].mxu0 %v3945
        %v4125 = vpop.f32.mrb[0].mxu0
        %v4126 = vadd.f32 0.0, %v4125
        %v4127 = vpop.f32.mrb[0].mxu0
        %v4128 = vpop.f32.mrb[0].mxu0
        %v4129 = vpop.f32.mrb[0].mxu0
        %4130 = vdwg.mxu0
        %v4131 = vadd.f32 %v3911, %v4003
        %v4132 = vadd.f32 %v3912, %v4005
        %v4133 = vadd.f32 %v3913, %v4044
        %v4134 = vadd.f32 %v3914, %v4046
        %v4135 = vadd.f32 %v3915, %v4085
        %v4136 = vadd.f32 %v3916, %v4087
        %v4137 = vadd.f32 %v3917, %v4126
        %s4138 = scalar_lea.vmem %s1, 68
        %v4139 = vld [vmem:[%s4138] sm:$0x7]
        %4140 = vrot.lane.b32.xlu0 %v427, 30
        %v4141 = vpop.permute.xlu0 %4140
        %4142 = vrot.lane.b32.xlu0 %v428, 30
        %v4143 = vpop.permute.xlu0 %4142
        %4144 = vrot.lane.b32.xlu0 %v429, 30
        %v4145 = vpop.permute.xlu0 %4144
        %4146 = vrot.lane.b32.xlu0 %v430, 30
        %v4147 = vpop.permute.xlu0 %4146
        %4148 = vrot.lane.b32.xlu0 %v431, 30
        %v4149 = vpop.permute.xlu0 %4148
        %4150 = vrot.lane.b32.xlu0 %v432, 30
        %v4151 = vpop.permute.xlu0 %4150
        %4152 = vrot.lane.b32.xlu0 %v433, 30
        %v4153 = vpop.permute.xlu0 %4152
        %4154 = vrot.lane.b32.xlu0 %v1498, 30
        %v4155 = vpop.permute.xlu0 %4154
        %vm4156 = vcmask 244736
        %v4157 = vsel %vm4156, %v4141, %v4143
        %v4158 = vsel %vm4156, %v4143, %v4145
        %v4159 = vsel %vm4156, %v4145, %v4147
        %v4160 = vsel %vm4156, %v4147, %v4149
        %v4161 = vsel %vm4156, %v4149, %v4151
        %v4162 = vsel %vm4156, %v4151, %v4153
        %v4163 = vsel %vm4156, %v4153, %v4155
        %v4165 = vsel %vm464, %v4139, 0
        %v4168 = vand.u32 %v4157, %v471
        %v4171 = vand.u32 %v4158, %v471
        %v4174 = vand.u32 %v4159, %v471
        %v4177 = vand.u32 %v4160, %v471
        %v4180 = vand.u32 %v4161, %v471
        %v4183 = vand.u32 %v4162, %v471
        %v4186 = vand.u32 %v4163, %v471
        %4188 = vmatprep.subr.bf16.mxu0 %v4171
        %4189 = vmatpush1.bf16.msra.mxu0 %v4168
        %4190 = vmatprep.subr.bf16.mxu0 0
        %4191 = vmatpush1.bf16.msra.mxu0 0
        %4192 = vmatprep.subr.bf16.mxu0 0
        %4193 = vmatpush1.bf16.msra.mxu0 0
        %4194 = vmatprep.subr.bf16.mxu0 0
        %4195 = vmatpush1.bf16.msra.mxu0 0
        %4196 = vmatprep.subr.bf16.mxu0 0
        %4197 = vmatpush1.bf16.msra.mxu0 0
        %4198 = vmatprep.subr.bf16.mxu0 0
        %4199 = vmatpush1.bf16.msra.mxu0 0
        %4200 = vmatprep.subr.bf16.mxu0 0
        %4201 = vmatpush1.bf16.msra.mxu0 0
        %4202 = vmatprep.subr.bf16.mxu0 0
        %4203 = vmatpush1.bf16.msra.mxu0 0
        %4204 = vmatprep.subr.bf16.mxu0 0
        %4205 = vmatpush1.bf16.msra.mxu0 0
        %4206 = vmatprep.subr.bf16.mxu0 0
        %4207 = vmatpush1.bf16.msra.mxu0 0
        %4208 = vmatprep.subr.bf16.mxu0 0
        %4209 = vmatpush1.bf16.msra.mxu0 0
        %4210 = vmatprep.subr.bf16.mxu0 0
        %4211 = vmatpush1.bf16.msra.mxu0 0
        %4212 = vmatprep.subr.bf16.mxu0 0
        %4213 = vmatpush1.bf16.msra.mxu0 0
        %4214 = vmatprep.subr.bf16.mxu0 0
        %4215 = vmatpush1.bf16.msra.mxu0 0
        %4216 = vmatprep.subr.bf16.mxu0 0
        %4217 = vmatpush1.bf16.msra.mxu0 0
        %4218 = vmatprep.subr.bf16.mxu0 0
        %4219 = vmatpush1.bf16.msra.mxu0 0
        %4220 = vmatprep.mubr.bf16.mxu0 0
        %4221 = vmatmul.mubr.bf16.gmra.mrb[0].mxu0 %v4165
        %v4222 = vpop.f32.mrb[0].mxu0
        %v4223 = vadd.f32 0.0, %v4222
        %v4224 = vpop.f32.mrb[0].mxu0
        %v4225 = vadd.f32 0.0, %v4224
        %v4226 = vpop.f32.mrb[0].mxu0
        %v4227 = vpop.f32.mrb[0].mxu0
        %4228 = vdwg.mxu0
        %4229 = vmatprep.subr.bf16.mxu0 %v4177
        %4230 = vmatpush1.bf16.msra.mxu0 %v4174
        %4231 = vmatprep.subr.bf16.mxu0 0
        %4232 = vmatpush1.bf16.msra.mxu0 0
        %4233 = vmatprep.subr.bf16.mxu0 0
        %4234 = vmatpush1.bf16.msra.mxu0 0
        %4235 = vmatprep.subr.bf16.mxu0 0
        %4236 = vmatpush1.bf16.msra.mxu0 0
        %4237 = vmatprep.subr.bf16.mxu0 0
        %4238 = vmatpush1.bf16.msra.mxu0 0
        %4239 = vmatprep.subr.bf16.mxu0 0
        %4240 = vmatpush1.bf16.msra.mxu0 0
        %4241 = vmatprep.subr.bf16.mxu0 0
        %4242 = vmatpush1.bf16.msra.mxu0 0
        %4243 = vmatprep.subr.bf16.mxu0 0
        %4244 = vmatpush1.bf16.msra.mxu0 0
        %4245 = vmatprep.subr.bf16.mxu0 0
        %4246 = vmatpush1.bf16.msra.mxu0 0
        %4247 = vmatprep.subr.bf16.mxu0 0
        %4248 = vmatpush1.bf16.msra.mxu0 0
        %4249 = vmatprep.subr.bf16.mxu0 0
        %4250 = vmatpush1.bf16.msra.mxu0 0
        %4251 = vmatprep.subr.bf16.mxu0 0
        %4252 = vmatpush1.bf16.msra.mxu0 0
        %4253 = vmatprep.subr.bf16.mxu0 0
        %4254 = vmatpush1.bf16.msra.mxu0 0
        %4255 = vmatprep.subr.bf16.mxu0 0
        %4256 = vmatpush1.bf16.msra.mxu0 0
        %4257 = vmatprep.subr.bf16.mxu0 0
        %4258 = vmatpush1.bf16.msra.mxu0 0
        %4259 = vmatprep.subr.bf16.mxu0 0
        %4260 = vmatpush1.bf16.msra.mxu0 0
        %4261 = vmatprep.mubr.bf16.mxu0 0
        %4262 = vmatmul.mubr.bf16.gmra.mrb[0].mxu0 %v4165
        %v4263 = vpop.f32.mrb[0].mxu0
        %v4264 = vadd.f32 0.0, %v4263
        %v4265 = vpop.f32.mrb[0].mxu0
        %v4266 = vadd.f32 0.0, %v4265
        %v4267 = vpop.f32.mrb[0].mxu0
        %v4268 = vpop.f32.mrb[0].mxu0
        %4269 = vdwg.mxu0
        %4270 = vmatprep.subr.bf16.mxu0 %v4183
        %4271 = vmatpush1.bf16.msra.mxu0 %v4180
        %4272 = vmatprep.subr.bf16.mxu0 0
        %4273 = vmatpush1.bf16.msra.mxu0 0
        %4274 = vmatprep.subr.bf16.mxu0 0
        %4275 = vmatpush1.bf16.msra.mxu0 0
        %4276 = vmatprep.subr.bf16.mxu0 0
        %4277 = vmatpush1.bf16.msra.mxu0 0
        %4278 = vmatprep.subr.bf16.mxu0 0
        %4279 = vmatpush1.bf16.msra.mxu0 0
        %4280 = vmatprep.subr.bf16.mxu0 0
        %4281 = vmatpush1.bf16.msra.mxu0 0
        %4282 = vmatprep.subr.bf16.mxu0 0
        %4283 = vmatpush1.bf16.msra.mxu0 0
        %4284 = vmatprep.subr.bf16.mxu0 0
        %4285 = vmatpush1.bf16.msra.mxu0 0
        %4286 = vmatprep.subr.bf16.mxu0 0
        %4287 = vmatpush1.bf16.msra.mxu0 0
        %4288 = vmatprep.subr.bf16.mxu0 0
        %4289 = vmatpush1.bf16.msra.mxu0 0
        %4290 = vmatprep.subr.bf16.mxu0 0
        %4291 = vmatpush1.bf16.msra.mxu0 0
        %4292 = vmatprep.subr.bf16.mxu0 0
        %4293 = vmatpush1.bf16.msra.mxu0 0
        %4294 = vmatprep.subr.bf16.mxu0 0
        %4295 = vmatpush1.bf16.msra.mxu0 0
        %4296 = vmatprep.subr.bf16.mxu0 0
        %4297 = vmatpush1.bf16.msra.mxu0 0
        %4298 = vmatprep.subr.bf16.mxu0 0
        %4299 = vmatpush1.bf16.msra.mxu0 0
        %4300 = vmatprep.subr.bf16.mxu0 0
        %4301 = vmatpush1.bf16.msra.mxu0 0
        %4302 = vmatprep.mubr.bf16.mxu0 0
        %4303 = vmatmul.mubr.bf16.gmra.mrb[0].mxu0 %v4165
        %v4304 = vpop.f32.mrb[0].mxu0
        %v4305 = vadd.f32 0.0, %v4304
        %v4306 = vpop.f32.mrb[0].mxu0
        %v4307 = vadd.f32 0.0, %v4306
        %v4308 = vpop.f32.mrb[0].mxu0
        %v4309 = vpop.f32.mrb[0].mxu0
        %4310 = vdwg.mxu0
        %4311 = vmatprep.subr.bf16.mxu0 0
        %4312 = vmatpush1.bf16.msra.mxu0 %v4186
        %4313 = vmatprep.subr.bf16.mxu0 0
        %4314 = vmatpush1.bf16.msra.mxu0 0
        %4315 = vmatprep.subr.bf16.mxu0 0
        %4316 = vmatpush1.bf16.msra.mxu0 0
        %4317 = vmatprep.subr.bf16.mxu0 0
        %4318 = vmatpush1.bf16.msra.mxu0 0
        %4319 = vmatprep.subr.bf16.mxu0 0
        %4320 = vmatpush1.bf16.msra.mxu0 0
        %4321 = vmatprep.subr.bf16.mxu0 0
        %4322 = vmatpush1.bf16.msra.mxu0 0
        %4323 = vmatprep.subr.bf16.mxu0 0
        %4324 = vmatpush1.bf16.msra.mxu0 0
        %4325 = vmatprep.subr.bf16.mxu0 0
        %4326 = vmatpush1.bf16.msra.mxu0 0
        %4327 = vmatprep.subr.bf16.mxu0 0
        %4328 = vmatpush1.bf16.msra.mxu0 0
        %4329 = vmatprep.subr.bf16.mxu0 0
        %4330 = vmatpush1.bf16.msra.mxu0 0
        %4331 = vmatprep.subr.bf16.mxu0 0
        %4332 = vmatpush1.bf16.msra.mxu0 0
        %4333 = vmatprep.subr.bf16.mxu0 0
        %4334 = vmatpush1.bf16.msra.mxu0 0
        %4335 = vmatprep.subr.bf16.mxu0 0
        %4336 = vmatpush1.bf16.msra.mxu0 0
        %4337 = vmatprep.subr.bf16.mxu0 0
        %4338 = vmatpush1.bf16.msra.mxu0 0
        %4339 = vmatprep.subr.bf16.mxu0 0
        %4340 = vmatpush1.bf16.msra.mxu0 0
        %4341 = vmatprep.subr.bf16.mxu0 0
        %4342 = vmatpush1.bf16.msra.mxu0 0
        %4343 = vmatprep.mubr.bf16.mxu0 0
        %4344 = vmatmul.mubr.bf16.gmra.mrb[0].mxu0 %v4165
        %v4345 = vpop.f32.mrb[0].mxu0
        %v4346 = vadd.f32 0.0, %v4345
        %v4347 = vpop.f32.mrb[0].mxu0
        %v4348 = vpop.f32.mrb[0].mxu0
        %v4349 = vpop.f32.mrb[0].mxu0
        %4350 = vdwg.mxu0
        %v4351 = vadd.f32 %v4131, %v4223
        %v4352 = vadd.f32 %v4132, %v4225
        %v4353 = vadd.f32 %v4133, %v4264
        %v4354 = vadd.f32 %v4134, %v4266
        %v4355 = vadd.f32 %v4135, %v4305
        %v4356 = vadd.f32 %v4136, %v4307
        %v4357 = vadd.f32 %v4137, %v4346
        %s4358 = scalar_lea.vmem %s1, 72
        %v4359 = vld [vmem:[%s4358] sm:$0x7]
        %4360 = vrot.lane.b32.xlu0 %v427, 29
        %v4361 = vpop.permute.xlu0 %4360
        %4362 = vrot.lane.b32.xlu0 %v428, 29
        %v4363 = vpop.permute.xlu0 %4362
        %4364 = vrot.lane.b32.xlu0 %v429, 29
        %v4365 = vpop.permute.xlu0 %4364
        %4366 = vrot.lane.b32.xlu0 %v430, 29
        %v4367 = vpop.permute.xlu0 %4366
        %4368 = vrot.lane.b32.xlu0 %v431, 29
        %v4369 = vpop.permute.xlu0 %4368
        %4370 = vrot.lane.b32.xlu0 %v432, 29
        %v4371 = vpop.permute.xlu0 %4370
        %4372 = vrot.lane.b32.xlu0 %v433, 29
        %v4373 = vpop.permute.xlu0 %4372
        %4374 = vrot.lane.b32.xlu0 %v1498, 29
        %v4375 = vpop.permute.xlu0 %4374
        %vm4376 = vcmask 236544
        %v4377 = vsel %vm4376, %v4361, %v4363
        %v4378 = vsel %vm4376, %v4363, %v4365
        %v4379 = vsel %vm4376, %v4365, %v4367
        %v4380 = vsel %vm4376, %v4367, %v4369
        %v4381 = vsel %vm4376, %v4369, %v4371
        %v4382 = vsel %vm4376, %v4371, %v4373
        %v4383 = vsel %vm4376, %v4373, %v4375
        %v4385 = vsel %vm464, %v4359, 0
        %v4388 = vand.u32 %v4377, %v471
        %v4391 = vand.u32 %v4378, %v471
        %v4394 = vand.u32 %v4379, %v471
        %v4397 = vand.u32 %v4380, %v471
        %v4400 = vand.u32 %v4381, %v471
        %v4403 = vand.u32 %v4382, %v471
        %v4406 = vand.u32 %v4383, %v471
        %4408 = vmatprep.subr.bf16.mxu0 %v4391
        %4409 = vmatpush1.bf16.msra.mxu0 %v4388
        %4410 = vmatprep.subr.bf16.mxu0 0
        %4411 = vmatpush1.bf16.msra.mxu0 0
        %4412 = vmatprep.subr.bf16.mxu0 0
        %4413 = vmatpush1.bf16.msra.mxu0 0
        %4414 = vmatprep.subr.bf16.mxu0 0
        %4415 = vmatpush1.bf16.msra.mxu0 0
        %4416 = vmatprep.subr.bf16.mxu0 0
        %4417 = vmatpush1.bf16.msra.mxu0 0
        %4418 = vmatprep.subr.bf16.mxu0 0
        %4419 = vmatpush1.bf16.msra.mxu0 0
        %4420 = vmatprep.subr.bf16.mxu0 0
        %4421 = vmatpush1.bf16.msra.mxu0 0
        %4422 = vmatprep.subr.bf16.mxu0 0
        %4423 = vmatpush1.bf16.msra.mxu0 0
        %4424 = vmatprep.subr.bf16.mxu0 0
        %4425 = vmatpush1.bf16.msra.mxu0 0
        %4426 = vmatprep.subr.bf16.mxu0 0
        %4427 = vmatpush1.bf16.msra.mxu0 0
        %4428 = vmatprep.subr.bf16.mxu0 0
        %4429 = vmatpush1.bf16.msra.mxu0 0
        %4430 = vmatprep.subr.bf16.mxu0 0
        %4431 = vmatpush1.bf16.msra.mxu0 0
        %4432 = vmatprep.subr.bf16.mxu0 0
        %4433 = vmatpush1.bf16.msra.mxu0 0
        %4434 = vmatprep.subr.bf16.mxu0 0
        %4435 = vmatpush1.bf16.msra.mxu0 0
        %4436 = vmatprep.subr.bf16.mxu0 0
        %4437 = vmatpush1.bf16.msra.mxu0 0
        %4438 = vmatprep.subr.bf16.mxu0 0
        %4439 = vmatpush1.bf16.msra.mxu0 0
        %4440 = vmatprep.mubr.bf16.mxu0 0
        %4441 = vmatmul.mubr.bf16.gmra.mrb[0].mxu0 %v4385
        %v4442 = vpop.f32.mrb[0].mxu0
        %v4443 = vadd.f32 0.0, %v4442
        %v4444 = vpop.f32.mrb[0].mxu0
        %v4445 = vadd.f32 0.0, %v4444
        %v4446 = vpop.f32.mrb[0].mxu0
        %v4447 = vpop.f32.mrb[0].mxu0
        %4448 = vdwg.mxu0
        %4449 = vmatprep.subr.bf16.mxu0 %v4397
        %4450 = vmatpush1.bf16.msra.mxu0 %v4394
        %4451 = vmatprep.subr.bf16.mxu0 0
        %4452 = vmatpush1.bf16.msra.mxu0 0
        %4453 = vmatprep.subr.bf16.mxu0 0
        %4454 = vmatpush1.bf16.msra.mxu0 0
        %4455 = vmatprep.subr.bf16.mxu0 0
        %4456 = vmatpush1.bf16.msra.mxu0 0
        %4457 = vmatprep.subr.bf16.mxu0 0
        %4458 = vmatpush1.bf16.msra.mxu0 0
        %4459 = vmatprep.subr.bf16.mxu0 0
        %4460 = vmatpush1.bf16.msra.mxu0 0
        %4461 = vmatprep.subr.bf16.mxu0 0
        %4462 = vmatpush1.bf16.msra.mxu0 0
        %4463 = vmatprep.subr.bf16.mxu0 0
        %4464 = vmatpush1.bf16.msra.mxu0 0
        %4465 = vmatprep.subr.bf16.mxu0 0
        %4466 = vmatpush1.bf16.msra.mxu0 0
        %4467 = vmatprep.subr.bf16.mxu0 0
        %4468 = vmatpush1.bf16.msra.mxu0 0
        %4469 = vmatprep.subr.bf16.mxu0 0
        %4470 = vmatpush1.bf16.msra.mxu0 0
        %4471 = vmatprep.subr.bf16.mxu0 0
        %4472 = vmatpush1.bf16.msra.mxu0 0
        %4473 = vmatprep.subr.bf16.mxu0 0
        %4474 = vmatpush1.bf16.msra.mxu0 0
        %4475 = vmatprep.subr.bf16.mxu0 0
        %4476 = vmatpush1.bf16.msra.mxu0 0
        %4477 = vmatprep.subr.bf16.mxu0 0
        %4478 = vmatpush1.bf16.msra.mxu0 0
        %4479 = vmatprep.subr.bf16.mxu0 0
        %4480 = vmatpush1.bf16.msra.mxu0 0
        %4481 = vmatprep.mubr.bf16.mxu0 0
        %4482 = vmatmul.mubr.bf16.gmra.mrb[0].mxu0 %v4385
        %v4483 = vpop.f32.mrb[0].mxu0
        %v4484 = vadd.f32 0.0, %v4483
        %v4485 = vpop.f32.mrb[0].mxu0
        %v4486 = vadd.f32 0.0, %v4485
        %v4487 = vpop.f32.mrb[0].mxu0
        %v4488 = vpop.f32.mrb[0].mxu0
        %4489 = vdwg.mxu0
        %4490 = vmatprep.subr.bf16.mxu0 %v4403
        %4491 = vmatpush1.bf16.msra.mxu0 %v4400
        %4492 = vmatprep.subr.bf16.mxu0 0
        %4493 = vmatpush1.bf16.msra.mxu0 0
        %4494 = vmatprep.subr.bf16.mxu0 0
        %4495 = vmatpush1.bf16.msra.mxu0 0
        %4496 = vmatprep.subr.bf16.mxu0 0
        %4497 = vmatpush1.bf16.msra.mxu0 0
        %4498 = vmatprep.subr.bf16.mxu0 0
        %4499 = vmatpush1.bf16.msra.mxu0 0
        %4500 = vmatprep.subr.bf16.mxu0 0
        %4501 = vmatpush1.bf16.msra.mxu0 0
        %4502 = vmatprep.subr.bf16.mxu0 0
        %4503 = vmatpush1.bf16.msra.mxu0 0
        %4504 = vmatprep.subr.bf16.mxu0 0
        %4505 = vmatpush1.bf16.msra.mxu0 0
        %4506 = vmatprep.subr.bf16.mxu0 0
        %4507 = vmatpush1.bf16.msra.mxu0 0
        %4508 = vmatprep.subr.bf16.mxu0 0
        %4509 = vmatpush1.bf16.msra.mxu0 0
        %4510 = vmatprep.subr.bf16.mxu0 0
        %4511 = vmatpush1.bf16.msra.mxu0 0
        %4512 = vmatprep.subr.bf16.mxu0 0
        %4513 = vmatpush1.bf16.msra.mxu0 0
        %4514 = vmatprep.subr.bf16.mxu0 0
        %4515 = vmatpush1.bf16.msra.mxu0 0
        %4516 = vmatprep.subr.bf16.mxu0 0
        %4517 = vmatpush1.bf16.msra.mxu0 0
        %4518 = vmatprep.subr.bf16.mxu0 0
        %4519 = vmatpush1.bf16.msra.mxu0 0
        %4520 = vmatprep.subr.bf16.mxu0 0
        %4521 = vmatpush1.bf16.msra.mxu0 0
        %4522 = vmatprep.mubr.bf16.mxu0 0
        %4523 = vmatmul.mubr.bf16.gmra.mrb[0].mxu0 %v4385
        %v4524 = vpop.f32.mrb[0].mxu0
        %v4525 = vadd.f32 0.0, %v4524
        %v4526 = vpop.f32.mrb[0].mxu0
        %v4527 = vadd.f32 0.0, %v4526
        %v4528 = vpop.f32.mrb[0].mxu0
        %v4529 = vpop.f32.mrb[0].mxu0
        %4530 = vdwg.mxu0
        %4531 = vmatprep.subr.bf16.mxu0 0
        %4532 = vmatpush1.bf16.msra.mxu0 %v4406
        %4533 = vmatprep.subr.bf16.mxu0 0
        %4534 = vmatpush1.bf16.msra.mxu0 0
        %4535 = vmatprep.subr.bf16.mxu0 0
        %4536 = vmatpush1.bf16.msra.mxu0 0
        %4537 = vmatprep.subr.bf16.mxu0 0
        %4538 = vmatpush1.bf16.msra.mxu0 0
        %4539 = vmatprep.subr.bf16.mxu0 0
        %4540 = vmatpush1.bf16.msra.mxu0 0
        %4541 = vmatprep.subr.bf16.mxu0 0
        %4542 = vmatpush1.bf16.msra.mxu0 0
        %4543 = vmatprep.subr.bf16.mxu0 0
        %4544 = vmatpush1.bf16.msra.mxu0 0
        %4545 = vmatprep.subr.bf16.mxu0 0
        %4546 = vmatpush1.bf16.msra.mxu0 0
        %4547 = vmatprep.subr.bf16.mxu0 0
        %4548 = vmatpush1.bf16.msra.mxu0 0
        %4549 = vmatprep.subr.bf16.mxu0 0
        %4550 = vmatpush1.bf16.msra.mxu0 0
        %4551 = vmatprep.subr.bf16.mxu0 0
        %4552 = vmatpush1.bf16.msra.mxu0 0
        %4553 = vmatprep.subr.bf16.mxu0 0
        %4554 = vmatpush1.bf16.msra.mxu0 0
        %4555 = vmatprep.subr.bf16.mxu0 0
        %4556 = vmatpush1.bf16.msra.mxu0 0
        %4557 = vmatprep.subr.bf16.mxu0 0
        %4558 = vmatpush1.bf16.msra.mxu0 0
        %4559 = vmatprep.subr.bf16.mxu0 0
        %4560 = vmatpush1.bf16.msra.mxu0 0
        %4561 = vmatprep.subr.bf16.mxu0 0
        %4562 = vmatpush1.bf16.msra.mxu0 0
        %4563 = vmatprep.mubr.bf16.mxu0 0
        %4564 = vmatmul.mubr.bf16.gmra.mrb[0].mxu0 %v4385
        %v4565 = vpop.f32.mrb[0].mxu0
        %v4566 = vadd.f32 0.0, %v4565
        %v4567 = vpop.f32.mrb[0].mxu0
        %v4568 = vpop.f32.mrb[0].mxu0
        %v4569 = vpop.f32.mrb[0].mxu0
        %4570 = vdwg.mxu0
        %v4571 = vadd.f32 %v4351, %v4443
        %v4572 = vadd.f32 %v4352, %v4445
        %v4573 = vadd.f32 %v4353, %v4484
        %v4574 = vadd.f32 %v4354, %v4486
        %v4575 = vadd.f32 %v4355, %v4525
        %v4576 = vadd.f32 %v4356, %v4527
        %v4577 = vadd.f32 %v4357, %v4566
        %s4578 = scalar_lea.vmem %s1, 76
        %v4579 = vld [vmem:[%s4578] sm:$0x7]
        %4580 = vrot.lane.b32.xlu0 %v427, 28
        %v4581 = vpop.permute.xlu0 %4580
        %4582 = vrot.lane.b32.xlu0 %v428, 28
        %v4583 = vpop.permute.xlu0 %4582
        %4584 = vrot.lane.b32.xlu0 %v429, 28
        %v4585 = vpop.permute.xlu0 %4584
        %4586 = vrot.lane.b32.xlu0 %v430, 28
        %v4587 = vpop.permute.xlu0 %4586
        %4588 = vrot.lane.b32.xlu0 %v431, 28
        %v4589 = vpop.permute.xlu0 %4588
        %4590 = vrot.lane.b32.xlu0 %v432, 28
        %v4591 = vpop.permute.xlu0 %4590
        %4592 = vrot.lane.b32.xlu0 %v433, 28
        %v4593 = vpop.permute.xlu0 %4592
        %4594 = vrot.lane.b32.xlu0 %v1498, 28
        %v4595 = vpop.permute.xlu0 %4594
        %vm4596 = vcmask 228352
        %v4597 = vsel %vm4596, %v4581, %v4583
        %v4598 = vsel %vm4596, %v4583, %v4585
        %v4599 = vsel %vm4596, %v4585, %v4587
        %v4600 = vsel %vm4596, %v4587, %v4589
        %v4601 = vsel %vm4596, %v4589, %v4591
        %v4602 = vsel %vm4596, %v4591, %v4593
        %v4603 = vsel %vm4596, %v4593, %v4595
        %v4605 = vsel %vm464, %v4579, 0
        %v4608 = vand.u32 %v4597, %v471
        %v4611 = vand.u32 %v4598, %v471
        %v4614 = vand.u32 %v4599, %v471
        %v4617 = vand.u32 %v4600, %v471
        %v4620 = vand.u32 %v4601, %v471
        %v4623 = vand.u32 %v4602, %v471
        %v4626 = vand.u32 %v4603, %v471
        %4628 = vmatprep.subr.bf16.mxu0 %v4611
        %4629 = vmatpush1.bf16.msra.mxu0 %v4608
        %4630 = vmatprep.subr.bf16.mxu0 0
        %4631 = vmatpush1.bf16.msra.mxu0 0
        %4632 = vmatprep.subr.bf16.mxu0 0
        %4633 = vmatpush1.bf16.msra.mxu0 0
        %4634 = vmatprep.subr.bf16.mxu0 0
        %4635 = vmatpush1.bf16.msra.mxu0 0
        %4636 = vmatprep.subr.bf16.mxu0 0
        %4637 = vmatpush1.bf16.msra.mxu0 0
        %4638 = vmatprep.subr.bf16.mxu0 0
        %4639 = vmatpush1.bf16.msra.mxu0 0
        %4640 = vmatprep.subr.bf16.mxu0 0
        %4641 = vmatpush1.bf16.msra.mxu0 0
        %4642 = vmatprep.subr.bf16.mxu0 0
        %4643 = vmatpush1.bf16.msra.mxu0 0
        %4644 = vmatprep.subr.bf16.mxu0 0
        %4645 = vmatpush1.bf16.msra.mxu0 0
        %4646 = vmatprep.subr.bf16.mxu0 0
        %4647 = vmatpush1.bf16.msra.mxu0 0
        %4648 = vmatprep.subr.bf16.mxu0 0
        %4649 = vmatpush1.bf16.msra.mxu0 0
        %4650 = vmatprep.subr.bf16.mxu0 0
        %4651 = vmatpush1.bf16.msra.mxu0 0
        %4652 = vmatprep.subr.bf16.mxu0 0
        %4653 = vmatpush1.bf16.msra.mxu0 0
        %4654 = vmatprep.subr.bf16.mxu0 0
        %4655 = vmatpush1.bf16.msra.mxu0 0
        %4656 = vmatprep.subr.bf16.mxu0 0
        %4657 = vmatpush1.bf16.msra.mxu0 0
        %4658 = vmatprep.subr.bf16.mxu0 0
        %4659 = vmatpush1.bf16.msra.mxu0 0
        %4660 = vmatprep.mubr.bf16.mxu0 0
        %4661 = vmatmul.mubr.bf16.gmra.mrb[0].mxu0 %v4605
        %v4662 = vpop.f32.mrb[0].mxu0
        %v4663 = vadd.f32 0.0, %v4662
        %v4664 = vpop.f32.mrb[0].mxu0
        %v4665 = vadd.f32 0.0, %v4664
        %v4666 = vpop.f32.mrb[0].mxu0
        %v4667 = vpop.f32.mrb[0].mxu0
        %4668 = vdwg.mxu0
        %4669 = vmatprep.subr.bf16.mxu0 %v4617
        %4670 = vmatpush1.bf16.msra.mxu0 %v4614
        %4671 = vmatprep.subr.bf16.mxu0 0
        %4672 = vmatpush1.bf16.msra.mxu0 0
        %4673 = vmatprep.subr.bf16.mxu0 0
        %4674 = vmatpush1.bf16.msra.mxu0 0
        %4675 = vmatprep.subr.bf16.mxu0 0
        %4676 = vmatpush1.bf16.msra.mxu0 0
        %4677 = vmatprep.subr.bf16.mxu0 0
        %4678 = vmatpush1.bf16.msra.mxu0 0
        %4679 = vmatprep.subr.bf16.mxu0 0
        %4680 = vmatpush1.bf16.msra.mxu0 0
        %4681 = vmatprep.subr.bf16.mxu0 0
        %4682 = vmatpush1.bf16.msra.mxu0 0
        %4683 = vmatprep.subr.bf16.mxu0 0
        %4684 = vmatpush1.bf16.msra.mxu0 0
        %4685 = vmatprep.subr.bf16.mxu0 0
        %4686 = vmatpush1.bf16.msra.mxu0 0
        %4687 = vmatprep.subr.bf16.mxu0 0
        %4688 = vmatpush1.bf16.msra.mxu0 0
        %4689 = vmatprep.subr.bf16.mxu0 0
        %4690 = vmatpush1.bf16.msra.mxu0 0
        %4691 = vmatprep.subr.bf16.mxu0 0
        %4692 = vmatpush1.bf16.msra.mxu0 0
        %4693 = vmatprep.subr.bf16.mxu0 0
        %4694 = vmatpush1.bf16.msra.mxu0 0
        %4695 = vmatprep.subr.bf16.mxu0 0
        %4696 = vmatpush1.bf16.msra.mxu0 0
        %4697 = vmatprep.subr.bf16.mxu0 0
        %4698 = vmatpush1.bf16.msra.mxu0 0
        %4699 = vmatprep.subr.bf16.mxu0 0
        %4700 = vmatpush1.bf16.msra.mxu0 0
        %4701 = vmatprep.mubr.bf16.mxu0 0
        %4702 = vmatmul.mubr.bf16.gmra.mrb[0].mxu0 %v4605
        %v4703 = vpop.f32.mrb[0].mxu0
        %v4704 = vadd.f32 0.0, %v4703
        %v4705 = vpop.f32.mrb[0].mxu0
        %v4706 = vadd.f32 0.0, %v4705
        %v4707 = vpop.f32.mrb[0].mxu0
        %v4708 = vpop.f32.mrb[0].mxu0
        %4709 = vdwg.mxu0
        %4710 = vmatprep.subr.bf16.mxu0 %v4623
        %4711 = vmatpush1.bf16.msra.mxu0 %v4620
        %4712 = vmatprep.subr.bf16.mxu0 0
        %4713 = vmatpush1.bf16.msra.mxu0 0
        %4714 = vmatprep.subr.bf16.mxu0 0
        %4715 = vmatpush1.bf16.msra.mxu0 0
        %4716 = vmatprep.subr.bf16.mxu0 0
        %4717 = vmatpush1.bf16.msra.mxu0 0
        %4718 = vmatprep.subr.bf16.mxu0 0
        %4719 = vmatpush1.bf16.msra.mxu0 0
        %4720 = vmatprep.subr.bf16.mxu0 0
        %4721 = vmatpush1.bf16.msra.mxu0 0
        %4722 = vmatprep.subr.bf16.mxu0 0
        %4723 = vmatpush1.bf16.msra.mxu0 0
        %4724 = vmatprep.subr.bf16.mxu0 0
        %4725 = vmatpush1.bf16.msra.mxu0 0
        %4726 = vmatprep.subr.bf16.mxu0 0
        %4727 = vmatpush1.bf16.msra.mxu0 0
        %4728 = vmatprep.subr.bf16.mxu0 0
        %4729 = vmatpush1.bf16.msra.mxu0 0
        %4730 = vmatprep.subr.bf16.mxu0 0
        %4731 = vmatpush1.bf16.msra.mxu0 0
        %4732 = vmatprep.subr.bf16.mxu0 0
        %4733 = vmatpush1.bf16.msra.mxu0 0
        %4734 = vmatprep.subr.bf16.mxu0 0
        %4735 = vmatpush1.bf16.msra.mxu0 0
        %4736 = vmatprep.subr.bf16.mxu0 0
        %4737 = vmatpush1.bf16.msra.mxu0 0
        %4738 = vmatprep.subr.bf16.mxu0 0
        %4739 = vmatpush1.bf16.msra.mxu0 0
        %4740 = vmatprep.subr.bf16.mxu0 0
        %4741 = vmatpush1.bf16.msra.mxu0 0
        %4742 = vmatprep.mubr.bf16.mxu0 0
        %4743 = vmatmul.mubr.bf16.gmra.mrb[0].mxu0 %v4605
        %v4744 = vpop.f32.mrb[0].mxu0
        %v4745 = vadd.f32 0.0, %v4744
        %v4746 = vpop.f32.mrb[0].mxu0
        %v4747 = vadd.f32 0.0, %v4746
        %v4748 = vpop.f32.mrb[0].mxu0
        %v4749 = vpop.f32.mrb[0].mxu0
        %4750 = vdwg.mxu0
        %4751 = vmatprep.subr.bf16.mxu0 0
        %4752 = vmatpush1.bf16.msra.mxu0 %v4626
        %4753 = vmatprep.subr.bf16.mxu0 0
        %4754 = vmatpush1.bf16.msra.mxu0 0
        %4755 = vmatprep.subr.bf16.mxu0 0
        %4756 = vmatpush1.bf16.msra.mxu0 0
        %4757 = vmatprep.subr.bf16.mxu0 0
        %4758 = vmatpush1.bf16.msra.mxu0 0
        %4759 = vmatprep.subr.bf16.mxu0 0
        %4760 = vmatpush1.bf16.msra.mxu0 0
        %4761 = vmatprep.subr.bf16.mxu0 0
        %4762 = vmatpush1.bf16.msra.mxu0 0
        %4763 = vmatprep.subr.bf16.mxu0 0
        %4764 = vmatpush1.bf16.msra.mxu0 0
        %4765 = vmatprep.subr.bf16.mxu0 0
        %4766 = vmatpush1.bf16.msra.mxu0 0
        %4767 = vmatprep.subr.bf16.mxu0 0
        %4768 = vmatpush1.bf16.msra.mxu0 0
        %4769 = vmatprep.subr.bf16.mxu0 0
        %4770 = vmatpush1.bf16.msra.mxu0 0
        %4771 = vmatprep.subr.bf16.mxu0 0
        %4772 = vmatpush1.bf16.msra.mxu0 0
        %4773 = vmatprep.subr.bf16.mxu0 0
        %4774 = vmatpush1.bf16.msra.mxu0 0
        %4775 = vmatprep.subr.bf16.mxu0 0
        %4776 = vmatpush1.bf16.msra.mxu0 0
        %4777 = vmatprep.subr.bf16.mxu0 0
        %4778 = vmatpush1.bf16.msra.mxu0 0
        %4779 = vmatprep.subr.bf16.mxu0 0
        %4780 = vmatpush1.bf16.msra.mxu0 0
        %4781 = vmatprep.subr.bf16.mxu0 0
        %4782 = vmatpush1.bf16.msra.mxu0 0
        %4783 = vmatprep.mubr.bf16.mxu0 0
        %4784 = vmatmul.mubr.bf16.gmra.mrb[0].mxu0 %v4605
        %v4785 = vpop.f32.mrb[0].mxu0
        %v4786 = vadd.f32 0.0, %v4785
        %v4787 = vpop.f32.mrb[0].mxu0
        %v4788 = vpop.f32.mrb[0].mxu0
        %v4789 = vpop.f32.mrb[0].mxu0
        %4790 = vdwg.mxu0
        %v4791 = vadd.f32 %v4571, %v4663
        %v4792 = vadd.f32 %v4572, %v4665
        %v4793 = vadd.f32 %v4573, %v4704
        %v4794 = vadd.f32 %v4574, %v4706
        %v4795 = vadd.f32 %v4575, %v4745
        %v4796 = vadd.f32 %v4576, %v4747
        %v4797 = vadd.f32 %v4577, %v4786
        %s4798 = scalar_lea.vmem %s1, 80
        %v4799 = vld [vmem:[%s4798] sm:$0x7]
        %v4801 = vsel %vm464, %v4799, 0
        %v4804 = vand.u32 %v1498, %v471
        %4806 = vmatprep.subr.bf16.mxu0 %v666
        %4807 = vmatpush1.bf16.msra.mxu0 %v663
        %4808 = vmatprep.subr.bf16.mxu0 0
        %4809 = vmatpush1.bf16.msra.mxu0 0
        %4810 = vmatprep.subr.bf16.mxu0 0
        %4811 = vmatpush1.bf16.msra.mxu0 0
        %4812 = vmatprep.subr.bf16.mxu0 0
        %4813 = vmatpush1.bf16.msra.mxu0 0
        %4814 = vmatprep.subr.bf16.mxu0 0
        %4815 = vmatpush1.bf16.msra.mxu0 0
        %4816 = vmatprep.subr.bf16.mxu0 0
        %4817 = vmatpush1.bf16.msra.mxu0 0
        %4818 = vmatprep.subr.bf16.mxu0 0
        %4819 = vmatpush1.bf16.msra.mxu0 0
        %4820 = vmatprep.subr.bf16.mxu0 0
        %4821 = vmatpush1.bf16.msra.mxu0 0
        %4822 = vmatprep.subr.bf16.mxu0 0
        %4823 = vmatpush1.bf16.msra.mxu0 0
        %4824 = vmatprep.subr.bf16.mxu0 0
        %4825 = vmatpush1.bf16.msra.mxu0 0
        %4826 = vmatprep.subr.bf16.mxu0 0
        %4827 = vmatpush1.bf16.msra.mxu0 0
        %4828 = vmatprep.subr.bf16.mxu0 0
        %4829 = vmatpush1.bf16.msra.mxu0 0
        %4830 = vmatprep.subr.bf16.mxu0 0
        %4831 = vmatpush1.bf16.msra.mxu0 0
        %4832 = vmatprep.subr.bf16.mxu0 0
        %4833 = vmatpush1.bf16.msra.mxu0 0
        %4834 = vmatprep.subr.bf16.mxu0 0
        %4835 = vmatpush1.bf16.msra.mxu0 0
        %4836 = vmatprep.subr.bf16.mxu0 0
        %4837 = vmatpush1.bf16.msra.mxu0 0
        %4838 = vmatprep.mubr.bf16.mxu0 0
        %4839 = vmatmul.mubr.bf16.gmra.mrb[0].mxu0 %v4801
        %v4840 = vpop.f32.mrb[0].mxu0
        %v4841 = vadd.f32 0.0, %v4840
        %v4842 = vpop.f32.mrb[0].mxu0
        %v4843 = vadd.f32 0.0, %v4842
        %v4844 = vpop.f32.mrb[0].mxu0
        %v4845 = vpop.f32.mrb[0].mxu0
        %4846 = vdwg.mxu0
        %4847 = vmatprep.subr.bf16.mxu0 %v672
        %4848 = vmatpush1.bf16.msra.mxu0 %v669
        %4849 = vmatprep.subr.bf16.mxu0 0
        %4850 = vmatpush1.bf16.msra.mxu0 0
        %4851 = vmatprep.subr.bf16.mxu0 0
        %4852 = vmatpush1.bf16.msra.mxu0 0
        %4853 = vmatprep.subr.bf16.mxu0 0
        %4854 = vmatpush1.bf16.msra.mxu0 0
        %4855 = vmatprep.subr.bf16.mxu0 0
        %4856 = vmatpush1.bf16.msra.mxu0 0
        %4857 = vmatprep.subr.bf16.mxu0 0
        %4858 = vmatpush1.bf16.msra.mxu0 0
        %4859 = vmatprep.subr.bf16.mxu0 0
        %4860 = vmatpush1.bf16.msra.mxu0 0
        %4861 = vmatprep.subr.bf16.mxu0 0
        %4862 = vmatpush1.bf16.msra.mxu0 0
        %4863 = vmatprep.subr.bf16.mxu0 0
        %4864 = vmatpush1.bf16.msra.mxu0 0
        %4865 = vmatprep.subr.bf16.mxu0 0
        %4866 = vmatpush1.bf16.msra.mxu0 0
        %4867 = vmatprep.subr.bf16.mxu0 0
        %4868 = vmatpush1.bf16.msra.mxu0 0
        %4869 = vmatprep.subr.bf16.mxu0 0
        %4870 = vmatpush1.bf16.msra.mxu0 0
        %4871 = vmatprep.subr.bf16.mxu0 0
        %4872 = vmatpush1.bf16.msra.mxu0 0
        %4873 = vmatprep.subr.bf16.mxu0 0
        %4874 = vmatpush1.bf16.msra.mxu0 0
        %4875 = vmatprep.subr.bf16.mxu0 0
        %4876 = vmatpush1.bf16.msra.mxu0 0
        %4877 = vmatprep.subr.bf16.mxu0 0
        %4878 = vmatpush1.bf16.msra.mxu0 0
        %4879 = vmatprep.mubr.bf16.mxu0 0
        %4880 = vmatmul.mubr.bf16.gmra.mrb[0].mxu0 %v4801
        %v4881 = vpop.f32.mrb[0].mxu0
        %v4882 = vadd.f32 0.0, %v4881
        %v4883 = vpop.f32.mrb[0].mxu0
        %v4884 = vadd.f32 0.0, %v4883
        %v4885 = vpop.f32.mrb[0].mxu0
        %v4886 = vpop.f32.mrb[0].mxu0
        %4887 = vdwg.mxu0
        %4888 = vmatprep.subr.bf16.mxu0 %v678
        %4889 = vmatpush1.bf16.msra.mxu0 %v675
        %4890 = vmatprep.subr.bf16.mxu0 0
        %4891 = vmatpush1.bf16.msra.mxu0 0
        %4892 = vmatprep.subr.bf16.mxu0 0
        %4893 = vmatpush1.bf16.msra.mxu0 0
        %4894 = vmatprep.subr.bf16.mxu0 0
        %4895 = vmatpush1.bf16.msra.mxu0 0
        %4896 = vmatprep.subr.bf16.mxu0 0
        %4897 = vmatpush1.bf16.msra.mxu0 0
        %4898 = vmatprep.subr.bf16.mxu0 0
        %4899 = vmatpush1.bf16.msra.mxu0 0
        %4900 = vmatprep.subr.bf16.mxu0 0
        %4901 = vmatpush1.bf16.msra.mxu0 0
        %4902 = vmatprep.subr.bf16.mxu0 0
        %4903 = vmatpush1.bf16.msra.mxu0 0
        %4904 = vmatprep.subr.bf16.mxu0 0
        %4905 = vmatpush1.bf16.msra.mxu0 0
        %4906 = vmatprep.subr.bf16.mxu0 0
        %4907 = vmatpush1.bf16.msra.mxu0 0
        %4908 = vmatprep.subr.bf16.mxu0 0
        %4909 = vmatpush1.bf16.msra.mxu0 0
        %4910 = vmatprep.subr.bf16.mxu0 0
        %4911 = vmatpush1.bf16.msra.mxu0 0
        %4912 = vmatprep.subr.bf16.mxu0 0
        %4913 = vmatpush1.bf16.msra.mxu0 0
        %4914 = vmatprep.subr.bf16.mxu0 0
        %4915 = vmatpush1.bf16.msra.mxu0 0
        %4916 = vmatprep.subr.bf16.mxu0 0
        %4917 = vmatpush1.bf16.msra.mxu0 0
        %4918 = vmatprep.subr.bf16.mxu0 0
        %4919 = vmatpush1.bf16.msra.mxu0 0
        %4920 = vmatprep.mubr.bf16.mxu0 0
        %4921 = vmatmul.mubr.bf16.gmra.mrb[0].mxu0 %v4801
        %v4922 = vpop.f32.mrb[0].mxu0
        %v4923 = vadd.f32 0.0, %v4922
        %v4924 = vpop.f32.mrb[0].mxu0
        %v4925 = vadd.f32 0.0, %v4924
        %v4926 = vpop.f32.mrb[0].mxu0
        %v4927 = vpop.f32.mrb[0].mxu0
        %4928 = vdwg.mxu0
        %4929 = vmatprep.subr.bf16.mxu0 0
        %4930 = vmatpush1.bf16.msra.mxu0 %v4804
        %4931 = vmatprep.subr.bf16.mxu0 0
        %4932 = vmatpush1.bf16.msra.mxu0 0
        %4933 = vmatprep.subr.bf16.mxu0 0
        %4934 = vmatpush1.bf16.msra.mxu0 0
        %4935 = vmatprep.subr.bf16.mxu0 0
        %4936 = vmatpush1.bf16.msra.mxu0 0
        %4937 = vmatprep.subr.bf16.mxu0 0
        %4938 = vmatpush1.bf16.msra.mxu0 0
        %4939 = vmatprep.subr.bf16.mxu0 0
        %4940 = vmatpush1.bf16.msra.mxu0 0
        %4941 = vmatprep.subr.bf16.mxu0 0
        %4942 = vmatpush1.bf16.msra.mxu0 0
        %4943 = vmatprep.subr.bf16.mxu0 0
        %4944 = vmatpush1.bf16.msra.mxu0 0
        %4945 = vmatprep.subr.bf16.mxu0 0
        %4946 = vmatpush1.bf16.msra.mxu0 0
        %4947 = vmatprep.subr.bf16.mxu0 0
        %4948 = vmatpush1.bf16.msra.mxu0 0
        %4949 = vmatprep.subr.bf16.mxu0 0
        %4950 = vmatpush1.bf16.msra.mxu0 0
        %4951 = vmatprep.subr.bf16.mxu0 0
        %4952 = vmatpush1.bf16.msra.mxu0 0
        %4953 = vmatprep.subr.bf16.mxu0 0
        %4954 = vmatpush1.bf16.msra.mxu0 0
        %4955 = vmatprep.subr.bf16.mxu0 0
        %4956 = vmatpush1.bf16.msra.mxu0 0
        %4957 = vmatprep.subr.bf16.mxu0 0
        %4958 = vmatpush1.bf16.msra.mxu0 0
        %4959 = vmatprep.subr.bf16.mxu0 0
        %4960 = vmatpush1.bf16.msra.mxu0 0
        %4961 = vmatprep.mubr.bf16.mxu0 0
        %4962 = vmatmul.mubr.bf16.gmra.mrb[0].mxu0 %v4801
        %v4963 = vpop.f32.mrb[0].mxu0
        %v4964 = vadd.f32 0.0, %v4963
        %v4965 = vpop.f32.mrb[0].mxu0
        %v4966 = vpop.f32.mrb[0].mxu0
        %v4967 = vpop.f32.mrb[0].mxu0
        %4968 = vdwg.mxu0
        %v4969 = vadd.f32 %v4791, %v4841
        %v4970 = vadd.f32 %v4792, %v4843
        %v4971 = vadd.f32 %v4793, %v4882
        %v4972 = vadd.f32 %v4794, %v4884
        %v4973 = vadd.f32 %v4795, %v4923
        %v4974 = vadd.f32 %v4796, %v4925
        %v4975 = vadd.f32 %v4797, %v4964
        %s4976 = scalar_lea.vmem %s1, 84
        %v4977 = vld [vmem:[%s4976] sm:$0x7]
        %4978 = vrot.lane.b32.xlu0 %v421, 127
        %v4979 = vpop.permute.xlu0 %4978
        %4980 = vrot.lane.b32.xlu0 %v413, 127
        %v4981 = vpop.permute.xlu0 %4980
        %4982 = vrot.lane.b32.xlu0 %v422, 127
        %v4983 = vpop.permute.xlu0 %4982
        %4984 = vrot.lane.b32.xlu0 %v414, 127
        %v4985 = vpop.permute.xlu0 %4984
        %4986 = vrot.lane.b32.xlu0 %v423, 127
        %v4987 = vpop.permute.xlu0 %4986
        %4988 = vrot.lane.b32.xlu0 %v415, 127
        %v4989 = vpop.permute.xlu0 %4988
        %4990 = vrot.lane.b32.xlu0 %v1496, 127
        %v4991 = vpop.permute.xlu0 %4990
        %vm4992 = vcmask 1039360
        %v4993 = vsel %vm4992, %v4979, %v4981
        %v4994 = vsel %vm4992, %v4981, %v4983
        %v4995 = vsel %vm4992, %v4983, %v4985
        %v4996 = vsel %vm4992, %v4985, %v4987
        %v4997 = vsel %vm4992, %v4987, %v4989
        %v4998 = vsel %vm4992, %v4989, %v4991
        %v5006 = vpack.c.bf16 %v4993, %v4993
        %v5007 = vpack.c.bf16 %v4994, %v4994
        %v5008 = vpack.c.bf16 %v4995, %v4995
        %v5009 = vpack.c.bf16 %v4996, %v4996
        %v5010 = vpack.c.bf16 %v4997, %v4997
        %v5011 = vpack.c.bf16 %v4998, %v4998
        %v5012 = vpack.c.bf16 %v4991, %v4991
        %v5014 = vsel %vm464, %v4977, 0
        %v5017 = vand.u32 %v5006, %v471
        %v5020 = vand.u32 %v5007, %v471
        %v5023 = vand.u32 %v5008, %v471
        %v5026 = vand.u32 %v5009, %v471
        %v5029 = vand.u32 %v5010, %v471
        %v5032 = vand.u32 %v5011, %v471
        %v5035 = vand.u32 %v5012, %v471
        %5037 = vmatprep.subr.bf16.mxu0 %v5020
        %5038 = vmatpush1.bf16.msra.mxu0 %v5017
        %5039 = vmatprep.subr.bf16.mxu0 0
        %5040 = vmatpush1.bf16.msra.mxu0 0
        %5041 = vmatprep.subr.bf16.mxu0 0
        %5042 = vmatpush1.bf16.msra.mxu0 0
        %5043 = vmatprep.subr.bf16.mxu0 0
        %5044 = vmatpush1.bf16.msra.mxu0 0
        %5045 = vmatprep.subr.bf16.mxu0 0
        %5046 = vmatpush1.bf16.msra.mxu0 0
        %5047 = vmatprep.subr.bf16.mxu0 0
        %5048 = vmatpush1.bf16.msra.mxu0 0
        %5049 = vmatprep.subr.bf16.mxu0 0
        %5050 = vmatpush1.bf16.msra.mxu0 0
        %5051 = vmatprep.subr.bf16.mxu0 0
        %5052 = vmatpush1.bf16.msra.mxu0 0
        %5053 = vmatprep.subr.bf16.mxu0 0
        %5054 = vmatpush1.bf16.msra.mxu0 0
        %5055 = vmatprep.subr.bf16.mxu0 0
        %5056 = vmatpush1.bf16.msra.mxu0 0
        %5057 = vmatprep.subr.bf16.mxu0 0
        %5058 = vmatpush1.bf16.msra.mxu0 0
        %5059 = vmatprep.subr.bf16.mxu0 0
        %5060 = vmatpush1.bf16.msra.mxu0 0
        %5061 = vmatprep.subr.bf16.mxu0 0
        %5062 = vmatpush1.bf16.msra.mxu0 0
        %5063 = vmatprep.subr.bf16.mxu0 0
        %5064 = vmatpush1.bf16.msra.mxu0 0
        %5065 = vmatprep.subr.bf16.mxu0 0
        %5066 = vmatpush1.bf16.msra.mxu0 0
        %5067 = vmatprep.subr.bf16.mxu0 0
        %5068 = vmatpush1.bf16.msra.mxu0 0
        %5069 = vmatprep.mubr.bf16.mxu0 0
        %5070 = vmatmul.mubr.bf16.gmra.mrb[0].mxu0 %v5014
        %v5071 = vpop.f32.mrb[0].mxu0
        %v5072 = vadd.f32 0.0, %v5071
        %v5073 = vpop.f32.mrb[0].mxu0
        %v5074 = vadd.f32 0.0, %v5073
        %v5075 = vpop.f32.mrb[0].mxu0
        %v5076 = vpop.f32.mrb[0].mxu0
        %5077 = vdwg.mxu0
        %5078 = vmatprep.subr.bf16.mxu0 %v5026
        %5079 = vmatpush1.bf16.msra.mxu0 %v5023
        %5080 = vmatprep.subr.bf16.mxu0 0
        %5081 = vmatpush1.bf16.msra.mxu0 0
        %5082 = vmatprep.subr.bf16.mxu0 0
        %5083 = vmatpush1.bf16.msra.mxu0 0
        %5084 = vmatprep.subr.bf16.mxu0 0
        %5085 = vmatpush1.bf16.msra.mxu0 0
        %5086 = vmatprep.subr.bf16.mxu0 0
        %5087 = vmatpush1.bf16.msra.mxu0 0
        %5088 = vmatprep.subr.bf16.mxu0 0
        %5089 = vmatpush1.bf16.msra.mxu0 0
        %5090 = vmatprep.subr.bf16.mxu0 0
        %5091 = vmatpush1.bf16.msra.mxu0 0
        %5092 = vmatprep.subr.bf16.mxu0 0
        %5093 = vmatpush1.bf16.msra.mxu0 0
        %5094 = vmatprep.subr.bf16.mxu0 0
        %5095 = vmatpush1.bf16.msra.mxu0 0
        %5096 = vmatprep.subr.bf16.mxu0 0
        %5097 = vmatpush1.bf16.msra.mxu0 0
        %5098 = vmatprep.subr.bf16.mxu0 0
        %5099 = vmatpush1.bf16.msra.mxu0 0
        %5100 = vmatprep.subr.bf16.mxu0 0
        %5101 = vmatpush1.bf16.msra.mxu0 0
        %5102 = vmatprep.subr.bf16.mxu0 0
        %5103 = vmatpush1.bf16.msra.mxu0 0
        %5104 = vmatprep.subr.bf16.mxu0 0
        %5105 = vmatpush1.bf16.msra.mxu0 0
        %5106 = vmatprep.subr.bf16.mxu0 0
        %5107 = vmatpush1.bf16.msra.mxu0 0
        %5108 = vmatprep.subr.bf16.mxu0 0
        %5109 = vmatpush1.bf16.msra.mxu0 0
        %5110 = vmatprep.mubr.bf16.mxu0 0
        %5111 = vmatmul.mubr.bf16.gmra.mrb[0].mxu0 %v5014
        %v5112 = vpop.f32.mrb[0].mxu0
        %v5113 = vadd.f32 0.0, %v5112
        %v5114 = vpop.f32.mrb[0].mxu0
        %v5115 = vadd.f32 0.0, %v5114
        %v5116 = vpop.f32.mrb[0].mxu0
        %v5117 = vpop.f32.mrb[0].mxu0
        %5118 = vdwg.mxu0
        %5119 = vmatprep.subr.bf16.mxu0 %v5032
        %5120 = vmatpush1.bf16.msra.mxu0 %v5029
        %5121 = vmatprep.subr.bf16.mxu0 0
        %5122 = vmatpush1.bf16.msra.mxu0 0
        %5123 = vmatprep.subr.bf16.mxu0 0
        %5124 = vmatpush1.bf16.msra.mxu0 0
        %5125 = vmatprep.subr.bf16.mxu0 0
        %5126 = vmatpush1.bf16.msra.mxu0 0
        %5127 = vmatprep.subr.bf16.mxu0 0
        %5128 = vmatpush1.bf16.msra.mxu0 0
        %5129 = vmatprep.subr.bf16.mxu0 0
        %5130 = vmatpush1.bf16.msra.mxu0 0
        %5131 = vmatprep.subr.bf16.mxu0 0
        %5132 = vmatpush1.bf16.msra.mxu0 0
        %5133 = vmatprep.subr.bf16.mxu0 0
        %5134 = vmatpush1.bf16.msra.mxu0 0
        %5135 = vmatprep.subr.bf16.mxu0 0
        %5136 = vmatpush1.bf16.msra.mxu0 0
        %5137 = vmatprep.subr.bf16.mxu0 0
        %5138 = vmatpush1.bf16.msra.mxu0 0
        %5139 = vmatprep.subr.bf16.mxu0 0
        %5140 = vmatpush1.bf16.msra.mxu0 0
        %5141 = vmatprep.subr.bf16.mxu0 0
        %5142 = vmatpush1.bf16.msra.mxu0 0
        %5143 = vmatprep.subr.bf16.mxu0 0
        %5144 = vmatpush1.bf16.msra.mxu0 0
        %5145 = vmatprep.subr.bf16.mxu0 0
        %5146 = vmatpush1.bf16.msra.mxu0 0
        %5147 = vmatprep.subr.bf16.mxu0 0
        %5148 = vmatpush1.bf16.msra.mxu0 0
        %5149 = vmatprep.subr.bf16.mxu0 0
        %5150 = vmatpush1.bf16.msra.mxu0 0
        %5151 = vmatprep.mubr.bf16.mxu0 0
        %5152 = vmatmul.mubr.bf16.gmra.mrb[0].mxu0 %v5014
        %v5153 = vpop.f32.mrb[0].mxu0
        %v5154 = vadd.f32 0.0, %v5153
        %v5155 = vpop.f32.mrb[0].mxu0
        %v5156 = vadd.f32 0.0, %v5155
        %v5157 = vpop.f32.mrb[0].mxu0
        %v5158 = vpop.f32.mrb[0].mxu0
        %5159 = vdwg.mxu0
        %5160 = vmatprep.subr.bf16.mxu0 0
        %5161 = vmatpush1.bf16.msra.mxu0 %v5035
        %5162 = vmatprep.subr.bf16.mxu0 0
        %5163 = vmatpush1.bf16.msra.mxu0 0
        %5164 = vmatprep.subr.bf16.mxu0 0
        %5165 = vmatpush1.bf16.msra.mxu0 0
        %5166 = vmatprep.subr.bf16.mxu0 0
        %5167 = vmatpush1.bf16.msra.mxu0 0
        %5168 = vmatprep.subr.bf16.mxu0 0
        %5169 = vmatpush1.bf16.msra.mxu0 0
        %5170 = vmatprep.subr.bf16.mxu0 0
        %5171 = vmatpush1.bf16.msra.mxu0 0
        %5172 = vmatprep.subr.bf16.mxu0 0
        %5173 = vmatpush1.bf16.msra.mxu0 0
        %5174 = vmatprep.subr.bf16.mxu0 0
        %5175 = vmatpush1.bf16.msra.mxu0 0
        %5176 = vmatprep.subr.bf16.mxu0 0
        %5177 = vmatpush1.bf16.msra.mxu0 0
        %5178 = vmatprep.subr.bf16.mxu0 0
        %5179 = vmatpush1.bf16.msra.mxu0 0
        %5180 = vmatprep.subr.bf16.mxu0 0
        %5181 = vmatpush1.bf16.msra.mxu0 0
        %5182 = vmatprep.subr.bf16.mxu0 0
        %5183 = vmatpush1.bf16.msra.mxu0 0
        %5184 = vmatprep.subr.bf16.mxu0 0
        %5185 = vmatpush1.bf16.msra.mxu0 0
        %5186 = vmatprep.subr.bf16.mxu0 0
        %5187 = vmatpush1.bf16.msra.mxu0 0
        %5188 = vmatprep.subr.bf16.mxu0 0
        %5189 = vmatpush1.bf16.msra.mxu0 0
        %5190 = vmatprep.subr.bf16.mxu0 0
        %5191 = vmatpush1.bf16.msra.mxu0 0
        %5192 = vmatprep.mubr.bf16.mxu0 0
        %5193 = vmatmul.mubr.bf16.gmra.mrb[0].mxu0 %v5014
        %v5194 = vpop.f32.mrb[0].mxu0
        %v5195 = vadd.f32 0.0, %v5194
        %v5196 = vpop.f32.mrb[0].mxu0
        %v5197 = vpop.f32.mrb[0].mxu0
        %v5198 = vpop.f32.mrb[0].mxu0
        %5199 = vdwg.mxu0
        %v5200 = vadd.f32 %v4969, %v5072
        %v5201 = vadd.f32 %v4970, %v5074
        %v5202 = vadd.f32 %v4971, %v5113
        %v5203 = vadd.f32 %v4972, %v5115
        %v5204 = vadd.f32 %v4973, %v5154
        %v5205 = vadd.f32 %v4974, %v5156
        %v5206 = vadd.f32 %v4975, %v5195
        %s5207 = scalar_lea.vmem %s1, 88
        %v5208 = vld [vmem:[%s5207] sm:$0x7]
        %5209 = vrot.lane.b32.xlu0 %v421, 126
        %v5210 = vpop.permute.xlu0 %5209
        %5211 = vrot.lane.b32.xlu0 %v413, 126
        %v5212 = vpop.permute.xlu0 %5211
        %5213 = vrot.lane.b32.xlu0 %v422, 126
        %v5214 = vpop.permute.xlu0 %5213
        %5215 = vrot.lane.b32.xlu0 %v414, 126
        %v5216 = vpop.permute.xlu0 %5215
        %5217 = vrot.lane.b32.xlu0 %v423, 126
        %v5218 = vpop.permute.xlu0 %5217
        %5219 = vrot.lane.b32.xlu0 %v415, 126
        %v5220 = vpop.permute.xlu0 %5219
        %5221 = vrot.lane.b32.xlu0 %v1496, 126
        %v5222 = vpop.permute.xlu0 %5221
        %vm5223 = vcmask 1031168
        %v5224 = vsel %vm5223, %v5210, %v5212
        %v5225 = vsel %vm5223, %v5212, %v5214
        %v5226 = vsel %vm5223, %v5214, %v5216
        %v5227 = vsel %vm5223, %v5216, %v5218
        %v5228 = vsel %vm5223, %v5218, %v5220
        %v5229 = vsel %vm5223, %v5220, %v5222
        %v5237 = vpack.c.bf16 %v5224, %v5224
        %v5238 = vpack.c.bf16 %v5225, %v5225
        %v5239 = vpack.c.bf16 %v5226, %v5226
        %v5240 = vpack.c.bf16 %v5227, %v5227
        %v5241 = vpack.c.bf16 %v5228, %v5228
        %v5242 = vpack.c.bf16 %v5229, %v5229
        %v5243 = vpack.c.bf16 %v5222, %v5222
        %v5245 = vsel %vm464, %v5208, 0
        %v5248 = vand.u32 %v5237, %v471
        %v5251 = vand.u32 %v5238, %v471
        %v5254 = vand.u32 %v5239, %v471
        %v5257 = vand.u32 %v5240, %v471
        %v5260 = vand.u32 %v5241, %v471
        %v5263 = vand.u32 %v5242, %v471
        %v5266 = vand.u32 %v5243, %v471
        %5268 = vmatprep.subr.bf16.mxu0 %v5251
        %5269 = vmatpush1.bf16.msra.mxu0 %v5248
        %5270 = vmatprep.subr.bf16.mxu0 0
        %5271 = vmatpush1.bf16.msra.mxu0 0
        %5272 = vmatprep.subr.bf16.mxu0 0
        %5273 = vmatpush1.bf16.msra.mxu0 0
        %5274 = vmatprep.subr.bf16.mxu0 0
        %5275 = vmatpush1.bf16.msra.mxu0 0
        %5276 = vmatprep.subr.bf16.mxu0 0
        %5277 = vmatpush1.bf16.msra.mxu0 0
        %5278 = vmatprep.subr.bf16.mxu0 0
        %5279 = vmatpush1.bf16.msra.mxu0 0
        %5280 = vmatprep.subr.bf16.mxu0 0
        %5281 = vmatpush1.bf16.msra.mxu0 0
        %5282 = vmatprep.subr.bf16.mxu0 0
        %5283 = vmatpush1.bf16.msra.mxu0 0
        %5284 = vmatprep.subr.bf16.mxu0 0
        %5285 = vmatpush1.bf16.msra.mxu0 0
        %5286 = vmatprep.subr.bf16.mxu0 0
        %5287 = vmatpush1.bf16.msra.mxu0 0
        %5288 = vmatprep.subr.bf16.mxu0 0
        %5289 = vmatpush1.bf16.msra.mxu0 0
        %5290 = vmatprep.subr.bf16.mxu0 0
        %5291 = vmatpush1.bf16.msra.mxu0 0
        %5292 = vmatprep.subr.bf16.mxu0 0
        %5293 = vmatpush1.bf16.msra.mxu0 0
        %5294 = vmatprep.subr.bf16.mxu0 0
        %5295 = vmatpush1.bf16.msra.mxu0 0
        %5296 = vmatprep.subr.bf16.mxu0 0
        %5297 = vmatpush1.bf16.msra.mxu0 0
        %5298 = vmatprep.subr.bf16.mxu0 0
        %5299 = vmatpush1.bf16.msra.mxu0 0
        %5300 = vmatprep.mubr.bf16.mxu0 0
        %5301 = vmatmul.mubr.bf16.gmra.mrb[0].mxu0 %v5245
        %v5302 = vpop.f32.mrb[0].mxu0
        %v5303 = vadd.f32 0.0, %v5302
        %v5304 = vpop.f32.mrb[0].mxu0
        %v5305 = vadd.f32 0.0, %v5304
        %v5306 = vpop.f32.mrb[0].mxu0
        %v5307 = vpop.f32.mrb[0].mxu0
        %5308 = vdwg.mxu0
        %5309 = vmatprep.subr.bf16.mxu0 %v5257
        %5310 = vmatpush1.bf16.msra.mxu0 %v5254
        %5311 = vmatprep.subr.bf16.mxu0 0
        %5312 = vmatpush1.bf16.msra.mxu0 0
        %5313 = vmatprep.subr.bf16.mxu0 0
        %5314 = vmatpush1.bf16.msra.mxu0 0
        %5315 = vmatprep.subr.bf16.mxu0 0
        %5316 = vmatpush1.bf16.msra.mxu0 0
        %5317 = vmatprep.subr.bf16.mxu0 0
        %5318 = vmatpush1.bf16.msra.mxu0 0
        %5319 = vmatprep.subr.bf16.mxu0 0
        %5320 = vmatpush1.bf16.msra.mxu0 0
        %5321 = vmatprep.subr.bf16.mxu0 0
        %5322 = vmatpush1.bf16.msra.mxu0 0
        %5323 = vmatprep.subr.bf16.mxu0 0
        %5324 = vmatpush1.bf16.msra.mxu0 0
        %5325 = vmatprep.subr.bf16.mxu0 0
        %5326 = vmatpush1.bf16.msra.mxu0 0
        %5327 = vmatprep.subr.bf16.mxu0 0
        %5328 = vmatpush1.bf16.msra.mxu0 0
        %5329 = vmatprep.subr.bf16.mxu0 0
        %5330 = vmatpush1.bf16.msra.mxu0 0
        %5331 = vmatprep.subr.bf16.mxu0 0
        %5332 = vmatpush1.bf16.msra.mxu0 0
        %5333 = vmatprep.subr.bf16.mxu0 0
        %5334 = vmatpush1.bf16.msra.mxu0 0
        %5335 = vmatprep.subr.bf16.mxu0 0
        %5336 = vmatpush1.bf16.msra.mxu0 0
        %5337 = vmatprep.subr.bf16.mxu0 0
        %5338 = vmatpush1.bf16.msra.mxu0 0
        %5339 = vmatprep.subr.bf16.mxu0 0
        %5340 = vmatpush1.bf16.msra.mxu0 0
        %5341 = vmatprep.mubr.bf16.mxu0 0
        %5342 = vmatmul.mubr.bf16.gmra.mrb[0].mxu0 %v5245
        %v5343 = vpop.f32.mrb[0].mxu0
        %v5344 = vadd.f32 0.0, %v5343
        %v5345 = vpop.f32.mrb[0].mxu0
        %v5346 = vadd.f32 0.0, %v5345
        %v5347 = vpop.f32.mrb[0].mxu0
        %v5348 = vpop.f32.mrb[0].mxu0
        %5349 = vdwg.mxu0
        %5350 = vmatprep.subr.bf16.mxu0 %v5263
        %5351 = vmatpush1.bf16.msra.mxu0 %v5260
        %5352 = vmatprep.subr.bf16.mxu0 0
        %5353 = vmatpush1.bf16.msra.mxu0 0
        %5354 = vmatprep.subr.bf16.mxu0 0
        %5355 = vmatpush1.bf16.msra.mxu0 0
        %5356 = vmatprep.subr.bf16.mxu0 0
        %5357 = vmatpush1.bf16.msra.mxu0 0
        %5358 = vmatprep.subr.bf16.mxu0 0
        %5359 = vmatpush1.bf16.msra.mxu0 0
        %5360 = vmatprep.subr.bf16.mxu0 0
        %5361 = vmatpush1.bf16.msra.mxu0 0
        %5362 = vmatprep.subr.bf16.mxu0 0
        %5363 = vmatpush1.bf16.msra.mxu0 0
        %5364 = vmatprep.subr.bf16.mxu0 0
        %5365 = vmatpush1.bf16.msra.mxu0 0
        %5366 = vmatprep.subr.bf16.mxu0 0
        %5367 = vmatpush1.bf16.msra.mxu0 0
        %5368 = vmatprep.subr.bf16.mxu0 0
        %5369 = vmatpush1.bf16.msra.mxu0 0
        %5370 = vmatprep.subr.bf16.mxu0 0
        %5371 = vmatpush1.bf16.msra.mxu0 0
        %5372 = vmatprep.subr.bf16.mxu0 0
        %5373 = vmatpush1.bf16.msra.mxu0 0
        %5374 = vmatprep.subr.bf16.mxu0 0
        %5375 = vmatpush1.bf16.msra.mxu0 0
        %5376 = vmatprep.subr.bf16.mxu0 0
        %5377 = vmatpush1.bf16.msra.mxu0 0
        %5378 = vmatprep.subr.bf16.mxu0 0
        %5379 = vmatpush1.bf16.msra.mxu0 0
        %5380 = vmatprep.subr.bf16.mxu0 0
        %5381 = vmatpush1.bf16.msra.mxu0 0
        %5382 = vmatprep.mubr.bf16.mxu0 0
        %5383 = vmatmul.mubr.bf16.gmra.mrb[0].mxu0 %v5245
        %v5384 = vpop.f32.mrb[0].mxu0
        %v5385 = vadd.f32 0.0, %v5384
        %v5386 = vpop.f32.mrb[0].mxu0
        %v5387 = vadd.f32 0.0, %v5386
        %v5388 = vpop.f32.mrb[0].mxu0
        %v5389 = vpop.f32.mrb[0].mxu0
        %5390 = vdwg.mxu0
        %5391 = vmatprep.subr.bf16.mxu0 0
        %5392 = vmatpush1.bf16.msra.mxu0 %v5266
        %5393 = vmatprep.subr.bf16.mxu0 0
        %5394 = vmatpush1.bf16.msra.mxu0 0
        %5395 = vmatprep.subr.bf16.mxu0 0
        %5396 = vmatpush1.bf16.msra.mxu0 0
        %5397 = vmatprep.subr.bf16.mxu0 0
        %5398 = vmatpush1.bf16.msra.mxu0 0
        %5399 = vmatprep.subr.bf16.mxu0 0
        %5400 = vmatpush1.bf16.msra.mxu0 0
        %5401 = vmatprep.subr.bf16.mxu0 0
        %5402 = vmatpush1.bf16.msra.mxu0 0
        %5403 = vmatprep.subr.bf16.mxu0 0
        %5404 = vmatpush1.bf16.msra.mxu0 0
        %5405 = vmatprep.subr.bf16.mxu0 0
        %5406 = vmatpush1.bf16.msra.mxu0 0
        %5407 = vmatprep.subr.bf16.mxu0 0
        %5408 = vmatpush1.bf16.msra.mxu0 0
        %5409 = vmatprep.subr.bf16.mxu0 0
        %5410 = vmatpush1.bf16.msra.mxu0 0
        %5411 = vmatprep.subr.bf16.mxu0 0
        %5412 = vmatpush1.bf16.msra.mxu0 0
        %5413 = vmatprep.subr.bf16.mxu0 0
        %5414 = vmatpush1.bf16.msra.mxu0 0
        %5415 = vmatprep.subr.bf16.mxu0 0
        %5416 = vmatpush1.bf16.msra.mxu0 0
        %5417 = vmatprep.subr.bf16.mxu0 0
        %5418 = vmatpush1.bf16.msra.mxu0 0
        %5419 = vmatprep.subr.bf16.mxu0 0
        %5420 = vmatpush1.bf16.msra.mxu0 0
        %5421 = vmatprep.subr.bf16.mxu0 0
        %5422 = vmatpush1.bf16.msra.mxu0 0
        %5423 = vmatprep.mubr.bf16.mxu0 0
        %5424 = vmatmul.mubr.bf16.gmra.mrb[0].mxu0 %v5245
        %v5425 = vpop.f32.mrb[0].mxu0
        %v5426 = vadd.f32 0.0, %v5425
        %v5427 = vpop.f32.mrb[0].mxu0
        %v5428 = vpop.f32.mrb[0].mxu0
        %v5429 = vpop.f32.mrb[0].mxu0
        %5430 = vdwg.mxu0
        %v5431 = vadd.f32 %v5200, %v5303
        %v5432 = vadd.f32 %v5201, %v5305
        %v5433 = vadd.f32 %v5202, %v5344
        %v5434 = vadd.f32 %v5203, %v5346
        %v5435 = vadd.f32 %v5204, %v5385
        %v5436 = vadd.f32 %v5205, %v5387
        %v5437 = vadd.f32 %v5206, %v5426
        %s5438 = scalar_lea.vmem %s1, 92
        %v5439 = vld [vmem:[%s5438] sm:$0x7]
        %5440 = vrot.lane.b32.xlu0 %v421, 125
        %v5441 = vpop.permute.xlu0 %5440
        %5442 = vrot.lane.b32.xlu0 %v413, 125
        %v5443 = vpop.permute.xlu0 %5442
        %5444 = vrot.lane.b32.xlu0 %v422, 125
        %v5445 = vpop.permute.xlu0 %5444
        %5446 = vrot.lane.b32.xlu0 %v414, 125
        %v5447 = vpop.permute.xlu0 %5446
        %5448 = vrot.lane.b32.xlu0 %v423, 125
        %v5449 = vpop.permute.xlu0 %5448
        %5450 = vrot.lane.b32.xlu0 %v415, 125
        %v5451 = vpop.permute.xlu0 %5450
        %5452 = vrot.lane.b32.xlu0 %v1496, 125
        %v5453 = vpop.permute.xlu0 %5452
        %vm5454 = vcmask 1022976
        %v5455 = vsel %vm5454, %v5441, %v5443
        %v5456 = vsel %vm5454, %v5443, %v5445
        %v5457 = vsel %vm5454, %v5445, %v5447
        %v5458 = vsel %vm5454, %v5447, %v5449
        %v5459 = vsel %vm5454, %v5449, %v5451
        %v5460 = vsel %vm5454, %v5451, %v5453
        %v5468 = vpack.c.bf16 %v5455, %v5455
        %v5469 = vpack.c.bf16 %v5456, %v5456
        %v5470 = vpack.c.bf16 %v5457, %v5457
        %v5471 = vpack.c.bf16 %v5458, %v5458
        %v5472 = vpack.c.bf16 %v5459, %v5459
        %v5473 = vpack.c.bf16 %v5460, %v5460
        %v5474 = vpack.c.bf16 %v5453, %v5453
        %v5476 = vsel %vm464, %v5439, 0
        %v5479 = vand.u32 %v5468, %v471
        %v5482 = vand.u32 %v5469, %v471
        %v5485 = vand.u32 %v5470, %v471
        %v5488 = vand.u32 %v5471, %v471
        %v5491 = vand.u32 %v5472, %v471
        %v5494 = vand.u32 %v5473, %v471
        %v5497 = vand.u32 %v5474, %v471
        %5499 = vmatprep.subr.bf16.mxu0 %v5482
        %5500 = vmatpush1.bf16.msra.mxu0 %v5479
        %5501 = vmatprep.subr.bf16.mxu0 0
        %5502 = vmatpush1.bf16.msra.mxu0 0
        %5503 = vmatprep.subr.bf16.mxu0 0
        %5504 = vmatpush1.bf16.msra.mxu0 0
        %5505 = vmatprep.subr.bf16.mxu0 0
        %5506 = vmatpush1.bf16.msra.mxu0 0
        %5507 = vmatprep.subr.bf16.mxu0 0
        %5508 = vmatpush1.bf16.msra.mxu0 0
        %5509 = vmatprep.subr.bf16.mxu0 0
        %5510 = vmatpush1.bf16.msra.mxu0 0
        %5511 = vmatprep.subr.bf16.mxu0 0
        %5512 = vmatpush1.bf16.msra.mxu0 0
        %5513 = vmatprep.subr.bf16.mxu0 0
        %5514 = vmatpush1.bf16.msra.mxu0 0
        %5515 = vmatprep.subr.bf16.mxu0 0
        %5516 = vmatpush1.bf16.msra.mxu0 0
        %5517 = vmatprep.subr.bf16.mxu0 0
        %5518 = vmatpush1.bf16.msra.mxu0 0
        %5519 = vmatprep.subr.bf16.mxu0 0
        %5520 = vmatpush1.bf16.msra.mxu0 0
        %5521 = vmatprep.subr.bf16.mxu0 0
        %5522 = vmatpush1.bf16.msra.mxu0 0
        %5523 = vmatprep.subr.bf16.mxu0 0
        %5524 = vmatpush1.bf16.msra.mxu0 0
        %5525 = vmatprep.subr.bf16.mxu0 0
        %5526 = vmatpush1.bf16.msra.mxu0 0
        %5527 = vmatprep.subr.bf16.mxu0 0
        %5528 = vmatpush1.bf16.msra.mxu0 0
        %5529 = vmatprep.subr.bf16.mxu0 0
        %5530 = vmatpush1.bf16.msra.mxu0 0
        %5531 = vmatprep.mubr.bf16.mxu0 0
        %5532 = vmatmul.mubr.bf16.gmra.mrb[0].mxu0 %v5476
        %v5533 = vpop.f32.mrb[0].mxu0
        %v5534 = vadd.f32 0.0, %v5533
        %v5535 = vpop.f32.mrb[0].mxu0
        %v5536 = vadd.f32 0.0, %v5535
        %v5537 = vpop.f32.mrb[0].mxu0
        %v5538 = vpop.f32.mrb[0].mxu0
        %5539 = vdwg.mxu0
        %5540 = vmatprep.subr.bf16.mxu0 %v5488
        %5541 = vmatpush1.bf16.msra.mxu0 %v5485
        %5542 = vmatprep.subr.bf16.mxu0 0
        %5543 = vmatpush1.bf16.msra.mxu0 0
        %5544 = vmatprep.subr.bf16.mxu0 0
        %5545 = vmatpush1.bf16.msra.mxu0 0
        %5546 = vmatprep.subr.bf16.mxu0 0
        %5547 = vmatpush1.bf16.msra.mxu0 0
        %5548 = vmatprep.subr.bf16.mxu0 0
        %5549 = vmatpush1.bf16.msra.mxu0 0
        %5550 = vmatprep.subr.bf16.mxu0 0
        %5551 = vmatpush1.bf16.msra.mxu0 0
        %5552 = vmatprep.subr.bf16.mxu0 0
        %5553 = vmatpush1.bf16.msra.mxu0 0
        %5554 = vmatprep.subr.bf16.mxu0 0
        %5555 = vmatpush1.bf16.msra.mxu0 0
        %5556 = vmatprep.subr.bf16.mxu0 0
        %5557 = vmatpush1.bf16.msra.mxu0 0
        %5558 = vmatprep.subr.bf16.mxu0 0
        %5559 = vmatpush1.bf16.msra.mxu0 0
        %5560 = vmatprep.subr.bf16.mxu0 0
        %5561 = vmatpush1.bf16.msra.mxu0 0
        %5562 = vmatprep.subr.bf16.mxu0 0
        %5563 = vmatpush1.bf16.msra.mxu0 0
        %5564 = vmatprep.subr.bf16.mxu0 0
        %5565 = vmatpush1.bf16.msra.mxu0 0
        %5566 = vmatprep.subr.bf16.mxu0 0
        %5567 = vmatpush1.bf16.msra.mxu0 0
        %5568 = vmatprep.subr.bf16.mxu0 0
        %5569 = vmatpush1.bf16.msra.mxu0 0
        %5570 = vmatprep.subr.bf16.mxu0 0
        %5571 = vmatpush1.bf16.msra.mxu0 0
        %5572 = vmatprep.mubr.bf16.mxu0 0
        %5573 = vmatmul.mubr.bf16.gmra.mrb[0].mxu0 %v5476
        %v5574 = vpop.f32.mrb[0].mxu0
        %v5575 = vadd.f32 0.0, %v5574
        %v5576 = vpop.f32.mrb[0].mxu0
        %v5577 = vadd.f32 0.0, %v5576
        %v5578 = vpop.f32.mrb[0].mxu0
        %v5579 = vpop.f32.mrb[0].mxu0
        %5580 = vdwg.mxu0
        %5581 = vmatprep.subr.bf16.mxu0 %v5494
        %5582 = vmatpush1.bf16.msra.mxu0 %v5491
        %5583 = vmatprep.subr.bf16.mxu0 0
        %5584 = vmatpush1.bf16.msra.mxu0 0
        %5585 = vmatprep.subr.bf16.mxu0 0
        %5586 = vmatpush1.bf16.msra.mxu0 0
        %5587 = vmatprep.subr.bf16.mxu0 0
        %5588 = vmatpush1.bf16.msra.mxu0 0
        %5589 = vmatprep.subr.bf16.mxu0 0
        %5590 = vmatpush1.bf16.msra.mxu0 0
        %5591 = vmatprep.subr.bf16.mxu0 0
        %5592 = vmatpush1.bf16.msra.mxu0 0
        %5593 = vmatprep.subr.bf16.mxu0 0
        %5594 = vmatpush1.bf16.msra.mxu0 0
        %5595 = vmatprep.subr.bf16.mxu0 0
        %5596 = vmatpush1.bf16.msra.mxu0 0
        %5597 = vmatprep.subr.bf16.mxu0 0
        %5598 = vmatpush1.bf16.msra.mxu0 0
        %5599 = vmatprep.subr.bf16.mxu0 0
        %5600 = vmatpush1.bf16.msra.mxu0 0
        %5601 = vmatprep.subr.bf16.mxu0 0
        %5602 = vmatpush1.bf16.msra.mxu0 0
        %5603 = vmatprep.subr.bf16.mxu0 0
        %5604 = vmatpush1.bf16.msra.mxu0 0
        %5605 = vmatprep.subr.bf16.mxu0 0
        %5606 = vmatpush1.bf16.msra.mxu0 0
        %5607 = vmatprep.subr.bf16.mxu0 0
        %5608 = vmatpush1.bf16.msra.mxu0 0
        %5609 = vmatprep.subr.bf16.mxu0 0
        %5610 = vmatpush1.bf16.msra.mxu0 0
        %5611 = vmatprep.subr.bf16.mxu0 0
        %5612 = vmatpush1.bf16.msra.mxu0 0
        %5613 = vmatprep.mubr.bf16.mxu0 0
        %5614 = vmatmul.mubr.bf16.gmra.mrb[0].mxu0 %v5476
        %v5615 = vpop.f32.mrb[0].mxu0
        %v5616 = vadd.f32 0.0, %v5615
        %v5617 = vpop.f32.mrb[0].mxu0
        %v5618 = vadd.f32 0.0, %v5617
        %v5619 = vpop.f32.mrb[0].mxu0
        %v5620 = vpop.f32.mrb[0].mxu0
        %5621 = vdwg.mxu0
        %5622 = vmatprep.subr.bf16.mxu0 0
        %5623 = vmatpush1.bf16.msra.mxu0 %v5497
        %5624 = vmatprep.subr.bf16.mxu0 0
        %5625 = vmatpush1.bf16.msra.mxu0 0
        %5626 = vmatprep.subr.bf16.mxu0 0
        %5627 = vmatpush1.bf16.msra.mxu0 0
        %5628 = vmatprep.subr.bf16.mxu0 0
        %5629 = vmatpush1.bf16.msra.mxu0 0
        %5630 = vmatprep.subr.bf16.mxu0 0
        %5631 = vmatpush1.bf16.msra.mxu0 0
        %5632 = vmatprep.subr.bf16.mxu0 0
        %5633 = vmatpush1.bf16.msra.mxu0 0
        %5634 = vmatprep.subr.bf16.mxu0 0
        %5635 = vmatpush1.bf16.msra.mxu0 0
        %5636 = vmatprep.subr.bf16.mxu0 0
        %5637 = vmatpush1.bf16.msra.mxu0 0
        %5638 = vmatprep.subr.bf16.mxu0 0
        %5639 = vmatpush1.bf16.msra.mxu0 0
        %5640 = vmatprep.subr.bf16.mxu0 0
        %5641 = vmatpush1.bf16.msra.mxu0 0
        %5642 = vmatprep.subr.bf16.mxu0 0
        %5643 = vmatpush1.bf16.msra.mxu0 0
        %5644 = vmatprep.subr.bf16.mxu0 0
        %5645 = vmatpush1.bf16.msra.mxu0 0
        %5646 = vmatprep.subr.bf16.mxu0 0
        %5647 = vmatpush1.bf16.msra.mxu0 0
        %5648 = vmatprep.subr.bf16.mxu0 0
        %5649 = vmatpush1.bf16.msra.mxu0 0
        %5650 = vmatprep.subr.bf16.mxu0 0
        %5651 = vmatpush1.bf16.msra.mxu0 0
        %5652 = vmatprep.subr.bf16.mxu0 0
        %5653 = vmatpush1.bf16.msra.mxu0 0
        %5654 = vmatprep.mubr.bf16.mxu0 0
        %5655 = vmatmul.mubr.bf16.gmra.mrb[0].mxu0 %v5476
        %v5656 = vpop.f32.mrb[0].mxu0
        %v5657 = vadd.f32 0.0, %v5656
        %v5658 = vpop.f32.mrb[0].mxu0
        %v5659 = vpop.f32.mrb[0].mxu0
        %v5660 = vpop.f32.mrb[0].mxu0
        %5661 = vdwg.mxu0
        %v5662 = vadd.f32 %v5431, %v5534
        %v5663 = vadd.f32 %v5432, %v5536
        %v5664 = vadd.f32 %v5433, %v5575
        %v5665 = vadd.f32 %v5434, %v5577
        %v5666 = vadd.f32 %v5435, %v5616
        %v5667 = vadd.f32 %v5436, %v5618
        %v5668 = vadd.f32 %v5437, %v5657
        %s5669 = scalar_lea.vmem %s1, 96
        %v5670 = vld [vmem:[%s5669] sm:$0x7]
        %5671 = vrot.lane.b32.xlu0 %v421, 124
        %v5672 = vpop.permute.xlu0 %5671
        %5673 = vrot.lane.b32.xlu0 %v413, 124
        %v5674 = vpop.permute.xlu0 %5673
        %5675 = vrot.lane.b32.xlu0 %v422, 124
        %v5676 = vpop.permute.xlu0 %5675
        %5677 = vrot.lane.b32.xlu0 %v414, 124
        %v5678 = vpop.permute.xlu0 %5677
        %5679 = vrot.lane.b32.xlu0 %v423, 124
        %v5680 = vpop.permute.xlu0 %5679
        %5681 = vrot.lane.b32.xlu0 %v415, 124
        %v5682 = vpop.permute.xlu0 %5681
        %5683 = vrot.lane.b32.xlu0 %v1496, 124
        %v5684 = vpop.permute.xlu0 %5683
        %vm5685 = vcmask 1014784
        %v5686 = vsel %vm5685, %v5672, %v5674
        %v5687 = vsel %vm5685, %v5674, %v5676
        %v5688 = vsel %vm5685, %v5676, %v5678
        %v5689 = vsel %vm5685, %v5678, %v5680
        %v5690 = vsel %vm5685, %v5680, %v5682
        %v5691 = vsel %vm5685, %v5682, %v5684
        %v5699 = vpack.c.bf16 %v5686, %v5686
        %v5700 = vpack.c.bf16 %v5687, %v5687
        %v5701 = vpack.c.bf16 %v5688, %v5688
        %v5702 = vpack.c.bf16 %v5689, %v5689
        %v5703 = vpack.c.bf16 %v5690, %v5690
        %v5704 = vpack.c.bf16 %v5691, %v5691
        %v5705 = vpack.c.bf16 %v5684, %v5684
        %v5707 = vsel %vm464, %v5670, 0
        %v5710 = vand.u32 %v5699, %v471
        %v5713 = vand.u32 %v5700, %v471
        %v5716 = vand.u32 %v5701, %v471
        %v5719 = vand.u32 %v5702, %v471
        %v5722 = vand.u32 %v5703, %v471
        %v5725 = vand.u32 %v5704, %v471
        %v5728 = vand.u32 %v5705, %v471
        %5730 = vmatprep.subr.bf16.mxu0 %v5713
        %5731 = vmatpush1.bf16.msra.mxu0 %v5710
        %5732 = vmatprep.subr.bf16.mxu0 0
        %5733 = vmatpush1.bf16.msra.mxu0 0
        %5734 = vmatprep.subr.bf16.mxu0 0
        %5735 = vmatpush1.bf16.msra.mxu0 0
        %5736 = vmatprep.subr.bf16.mxu0 0
        %5737 = vmatpush1.bf16.msra.mxu0 0
        %5738 = vmatprep.subr.bf16.mxu0 0
        %5739 = vmatpush1.bf16.msra.mxu0 0
        %5740 = vmatprep.subr.bf16.mxu0 0
        %5741 = vmatpush1.bf16.msra.mxu0 0
        %5742 = vmatprep.subr.bf16.mxu0 0
        %5743 = vmatpush1.bf16.msra.mxu0 0
        %5744 = vmatprep.subr.bf16.mxu0 0
        %5745 = vmatpush1.bf16.msra.mxu0 0
        %5746 = vmatprep.subr.bf16.mxu0 0
        %5747 = vmatpush1.bf16.msra.mxu0 0
        %5748 = vmatprep.subr.bf16.mxu0 0
        %5749 = vmatpush1.bf16.msra.mxu0 0
        %5750 = vmatprep.subr.bf16.mxu0 0
        %5751 = vmatpush1.bf16.msra.mxu0 0
        %5752 = vmatprep.subr.bf16.mxu0 0
        %5753 = vmatpush1.bf16.msra.mxu0 0
        %5754 = vmatprep.subr.bf16.mxu0 0
        %5755 = vmatpush1.bf16.msra.mxu0 0
        %5756 = vmatprep.subr.bf16.mxu0 0
        %5757 = vmatpush1.bf16.msra.mxu0 0
        %5758 = vmatprep.subr.bf16.mxu0 0
        %5759 = vmatpush1.bf16.msra.mxu0 0
        %5760 = vmatprep.subr.bf16.mxu0 0
        %5761 = vmatpush1.bf16.msra.mxu0 0
        %5762 = vmatprep.mubr.bf16.mxu0 0
        %5763 = vmatmul.mubr.bf16.gmra.mrb[0].mxu0 %v5707
        %v5764 = vpop.f32.mrb[0].mxu0
        %v5765 = vadd.f32 0.0, %v5764
        %v5766 = vpop.f32.mrb[0].mxu0
        %v5767 = vadd.f32 0.0, %v5766
        %v5768 = vpop.f32.mrb[0].mxu0
        %v5769 = vpop.f32.mrb[0].mxu0
        %5770 = vdwg.mxu0
        %5771 = vmatprep.subr.bf16.mxu0 %v5719
        %5772 = vmatpush1.bf16.msra.mxu0 %v5716
        %5773 = vmatprep.subr.bf16.mxu0 0
        %5774 = vmatpush1.bf16.msra.mxu0 0
        %5775 = vmatprep.subr.bf16.mxu0 0
        %5776 = vmatpush1.bf16.msra.mxu0 0
        %5777 = vmatprep.subr.bf16.mxu0 0
        %5778 = vmatpush1.bf16.msra.mxu0 0
        %5779 = vmatprep.subr.bf16.mxu0 0
        %5780 = vmatpush1.bf16.msra.mxu0 0
        %5781 = vmatprep.subr.bf16.mxu0 0
        %5782 = vmatpush1.bf16.msra.mxu0 0
        %5783 = vmatprep.subr.bf16.mxu0 0
        %5784 = vmatpush1.bf16.msra.mxu0 0
        %5785 = vmatprep.subr.bf16.mxu0 0
        %5786 = vmatpush1.bf16.msra.mxu0 0
        %5787 = vmatprep.subr.bf16.mxu0 0
        %5788 = vmatpush1.bf16.msra.mxu0 0
        %5789 = vmatprep.subr.bf16.mxu0 0
        %5790 = vmatpush1.bf16.msra.mxu0 0
        %5791 = vmatprep.subr.bf16.mxu0 0
        %5792 = vmatpush1.bf16.msra.mxu0 0
        %5793 = vmatprep.subr.bf16.mxu0 0
        %5794 = vmatpush1.bf16.msra.mxu0 0
        %5795 = vmatprep.subr.bf16.mxu0 0
        %5796 = vmatpush1.bf16.msra.mxu0 0
        %5797 = vmatprep.subr.bf16.mxu0 0
        %5798 = vmatpush1.bf16.msra.mxu0 0
        %5799 = vmatprep.subr.bf16.mxu0 0
        %5800 = vmatpush1.bf16.msra.mxu0 0
        %5801 = vmatprep.subr.bf16.mxu0 0
        %5802 = vmatpush1.bf16.msra.mxu0 0
        %5803 = vmatprep.mubr.bf16.mxu0 0
        %5804 = vmatmul.mubr.bf16.gmra.mrb[0].mxu0 %v5707
        %v5805 = vpop.f32.mrb[0].mxu0
        %v5806 = vadd.f32 0.0, %v5805
        %v5807 = vpop.f32.mrb[0].mxu0
        %v5808 = vadd.f32 0.0, %v5807
        %v5809 = vpop.f32.mrb[0].mxu0
        %v5810 = vpop.f32.mrb[0].mxu0
        %5811 = vdwg.mxu0
        %5812 = vmatprep.subr.bf16.mxu0 %v5725
        %5813 = vmatpush1.bf16.msra.mxu0 %v5722
        %5814 = vmatprep.subr.bf16.mxu0 0
        %5815 = vmatpush1.bf16.msra.mxu0 0
        %5816 = vmatprep.subr.bf16.mxu0 0
        %5817 = vmatpush1.bf16.msra.mxu0 0
        %5818 = vmatprep.subr.bf16.mxu0 0
        %5819 = vmatpush1.bf16.msra.mxu0 0
        %5820 = vmatprep.subr.bf16.mxu0 0
        %5821 = vmatpush1.bf16.msra.mxu0 0
        %5822 = vmatprep.subr.bf16.mxu0 0
        %5823 = vmatpush1.bf16.msra.mxu0 0
        %5824 = vmatprep.subr.bf16.mxu0 0
        %5825 = vmatpush1.bf16.msra.mxu0 0
        %5826 = vmatprep.subr.bf16.mxu0 0
        %5827 = vmatpush1.bf16.msra.mxu0 0
        %5828 = vmatprep.subr.bf16.mxu0 0
        %5829 = vmatpush1.bf16.msra.mxu0 0
        %5830 = vmatprep.subr.bf16.mxu0 0
        %5831 = vmatpush1.bf16.msra.mxu0 0
        %5832 = vmatprep.subr.bf16.mxu0 0
        %5833 = vmatpush1.bf16.msra.mxu0 0
        %5834 = vmatprep.subr.bf16.mxu0 0
        %5835 = vmatpush1.bf16.msra.mxu0 0
        %5836 = vmatprep.subr.bf16.mxu0 0
        %5837 = vmatpush1.bf16.msra.mxu0 0
        %5838 = vmatprep.subr.bf16.mxu0 0
        %5839 = vmatpush1.bf16.msra.mxu0 0
        %5840 = vmatprep.subr.bf16.mxu0 0
        %5841 = vmatpush1.bf16.msra.mxu0 0
        %5842 = vmatprep.subr.bf16.mxu0 0
        %5843 = vmatpush1.bf16.msra.mxu0 0
        %5844 = vmatprep.mubr.bf16.mxu0 0
        %5845 = vmatmul.mubr.bf16.gmra.mrb[0].mxu0 %v5707
        %v5846 = vpop.f32.mrb[0].mxu0
        %v5847 = vadd.f32 0.0, %v5846
        %v5848 = vpop.f32.mrb[0].mxu0
        %v5849 = vadd.f32 0.0, %v5848
        %v5850 = vpop.f32.mrb[0].mxu0
        %v5851 = vpop.f32.mrb[0].mxu0
        %5852 = vdwg.mxu0
        %5853 = vmatprep.subr.bf16.mxu0 0
        %5854 = vmatpush1.bf16.msra.mxu0 %v5728
        %5855 = vmatprep.subr.bf16.mxu0 0
        %5856 = vmatpush1.bf16.msra.mxu0 0
        %5857 = vmatprep.subr.bf16.mxu0 0
        %5858 = vmatpush1.bf16.msra.mxu0 0
        %5859 = vmatprep.subr.bf16.mxu0 0
        %5860 = vmatpush1.bf16.msra.mxu0 0
        %5861 = vmatprep.subr.bf16.mxu0 0
        %5862 = vmatpush1.bf16.msra.mxu0 0
        %5863 = vmatprep.subr.bf16.mxu0 0
        %5864 = vmatpush1.bf16.msra.mxu0 0
        %5865 = vmatprep.subr.bf16.mxu0 0
        %5866 = vmatpush1.bf16.msra.mxu0 0
        %5867 = vmatprep.subr.bf16.mxu0 0
        %5868 = vmatpush1.bf16.msra.mxu0 0
        %5869 = vmatprep.subr.bf16.mxu0 0
        %5870 = vmatpush1.bf16.msra.mxu0 0
        %5871 = vmatprep.subr.bf16.mxu0 0
        %5872 = vmatpush1.bf16.msra.mxu0 0
        %5873 = vmatprep.subr.bf16.mxu0 0
        %5874 = vmatpush1.bf16.msra.mxu0 0
        %5875 = vmatprep.subr.bf16.mxu0 0
        %5876 = vmatpush1.bf16.msra.mxu0 0
        %5877 = vmatprep.subr.bf16.mxu0 0
        %5878 = vmatpush1.bf16.msra.mxu0 0
        %5879 = vmatprep.subr.bf16.mxu0 0
        %5880 = vmatpush1.bf16.msra.mxu0 0
        %5881 = vmatprep.subr.bf16.mxu0 0
        %5882 = vmatpush1.bf16.msra.mxu0 0
        %5883 = vmatprep.subr.bf16.mxu0 0
        %5884 = vmatpush1.bf16.msra.mxu0 0
        %5885 = vmatprep.mubr.bf16.mxu0 0
        %5886 = vmatmul.mubr.bf16.gmra.mrb[0].mxu0 %v5707
        %v5887 = vpop.f32.mrb[0].mxu0
        %v5888 = vadd.f32 0.0, %v5887
        %v5889 = vpop.f32.mrb[0].mxu0
        %v5890 = vpop.f32.mrb[0].mxu0
        %v5891 = vpop.f32.mrb[0].mxu0
        %5892 = vdwg.mxu0
        %v5893 = vadd.f32 %v5662, %v5765
        %v5894 = vadd.f32 %v5663, %v5767
        %v5895 = vadd.f32 %v5664, %v5806
        %v5896 = vadd.f32 %v5665, %v5808
        %v5897 = vadd.f32 %v5666, %v5847
        %v5898 = vadd.f32 %v5667, %v5849
        %v5899 = vadd.f32 %v5668, %v5888
        %v5900 = vld [vmem:[%s2] sm:$0x3f]
        %5902 = vset.pattern.permute.xlu0 0
        %5903 = vperm.xlu0 %5902, %v5900
        %v5904 = vpop.permute.xlu0 %5903
        %v5906 = vadd.f32 %v5893, %v5904
        %v5907 = vadd.f32 %v5894, %v5904
        %v5908 = vadd.f32 %v5895, %v5904
        %v5909 = vadd.f32 %v5896, %v5904
        %v5910 = vadd.f32 %v5897, %v5904
        %v5911 = vadd.f32 %v5898, %v5904
        %v5912 = vadd.f32 %v5899, %v5904
        %v5913 = vmax.f32 %v5906, 0.0
        %v5914 = vmax.f32 %v5907, 0.0
        %v5915 = vmax.f32 %v5908, 0.0
        %v5916 = vmax.f32 %v5909, 0.0
        %v5917 = vmax.f32 %v5910, 0.0
        %v5918 = vmax.f32 %v5911, 0.0
        %v5919 = vmax.f32 %v5912, 0.0
        %5927 = vrot.lane.b32.xlu0 %v5913, 127
        %v5928 = vpop.permute.xlu0 %5927
        %5929 = vrot.lane.b32.xlu0 %v5914, 127
        %v5930 = vpop.permute.xlu0 %5929
        %5931 = vrot.lane.b32.xlu0 %v5915, 127
        %v5932 = vpop.permute.xlu0 %5931
        %5933 = vrot.lane.b32.xlu0 %v5916, 127
        %v5934 = vpop.permute.xlu0 %5933
        %5935 = vrot.lane.b32.xlu0 %v5917, 127
        %v5936 = vpop.permute.xlu0 %5935
        %5937 = vrot.lane.b32.xlu0 %v5918, 127
        %v5938 = vpop.permute.xlu0 %5937
        %5939 = vrot.lane.b32.xlu0 %v5919, 127
        %v5940 = vpop.permute.xlu0 %5939
        %v5941 = vsel %vm4992, %v5928, %v5930
        %v5942 = vsel %vm4992, %v5930, %v5932
        %v5943 = vsel %vm4992, %v5932, %v5934
        %v5944 = vsel %vm4992, %v5934, %v5936
        %v5945 = vsel %vm4992, %v5936, %v5938
        %v5946 = vsel %vm4992, %v5938, %v5940
        %v5954 = vmax.f32 %v5913, %v5941
        %v5955 = vmax.f32 %v5914, %v5942
        %v5956 = vmax.f32 %v5915, %v5943
        %v5957 = vmax.f32 %v5916, %v5944
        %v5958 = vmax.f32 %v5917, %v5945
        %v5959 = vmax.f32 %v5918, %v5946
        %v5960 = vmax.f32 %v5919, %v5940
        %5968 = vrot.lane.b32.xlu0 %v5954, 96
        %v5969 = vpop.permute.xlu0 %5968
        %5970 = vrot.lane.b32.xlu0 %v5955, 96
        %v5971 = vpop.permute.xlu0 %5970
        %5972 = vrot.lane.b32.xlu0 %v5956, 96
        %v5973 = vpop.permute.xlu0 %5972
        %5974 = vrot.lane.b32.xlu0 %v5957, 96
        %v5975 = vpop.permute.xlu0 %5974
        %5976 = vrot.lane.b32.xlu0 %v5958, 96
        %v5977 = vpop.permute.xlu0 %5976
        %5978 = vrot.lane.b32.xlu0 %v5959, 96
        %v5979 = vpop.permute.xlu0 %5978
        %5980 = vrot.lane.b32.xlu0 %v5960, 96
        %v5981 = vpop.permute.xlu0 %5980
        %vm5982 = vcmask 785408
        %v5983 = vsel %vm5982, %v5969, %v5971
        %v5984 = vsel %vm5982, %v5971, %v5973
        %v5985 = vsel %vm5982, %v5973, %v5975
        %v5986 = vsel %vm5982, %v5975, %v5977
        %v5987 = vsel %vm5982, %v5977, %v5979
        %v5988 = vsel %vm5982, %v5979, %v5981
        %v5996 = vmax.f32 %v5954, %v5983
        %v5997 = vmax.f32 %v5955, %v5984
        %v5998 = vmax.f32 %v5956, %v5985
        %v5999 = vmax.f32 %v5957, %v5986
        %v6000 = vmax.f32 %v5958, %v5987
        %v6001 = vmax.f32 %v5959, %v5988
        %v6002 = vmax.f32 %v5960, %v5981
        %v6003 = vpack.c.bf16 %v5996, %v5996
        %v6004 = vpack.c.bf16 %v5997, %v5997
        %v6005 = vpack.c.bf16 %v5998, %v5998
        %v6006 = vpack.c.bf16 %v5999, %v5999
        %v6007 = vpack.c.bf16 %v6000, %v6000
        %v6008 = vpack.c.bf16 %v6001, %v6001
        %v6009 = vpack.c.bf16 %v6002, %v6002
        %v6010 = vld [vmem:[%s3] sm:$0xff]
        %v6011 = vld [vmem:[%s3 + $0x8] sm:$0xff]
        %v6012 = vld [vmem:[%s3 + $0x10] sm:$0xff]
        %v6013 = vld [vmem:[%s3 + $0x18] sm:$0xff]
        %v6014 = vld [vmem:[%s3 + $0x20] sm:$0xff]
        %v6015 = vld [vmem:[%s3 + $0x28] sm:$0xff]
        %v6016 = vld [vmem:[%s3 + $0x30] sm:$0xff]
        %v6017 = vld [vmem:[%s3 + $0x38] sm:$0xff]
        %v6018 = vld [vmem:[%s3 + $0x40] sm:$0xff]
        %v6019 = vld [vmem:[%s3 + $0x48] sm:$0xff]
        %v6020 = vld [vmem:[%s3 + $0x50] sm:$0xff]
        %v6021 = vld [vmem:[%s3 + $0x58] sm:$0xff]
        %v6022 = vld [vmem:[%s3 + $0x60] sm:$0xff]
        %v6023 = vld [vmem:[%s3 + $0x68] sm:$0xff]
        %v6024 = vld [vmem:[%s3 + $0x70] sm:$0xff]
        %v6025 = vld [vmem:[%s3 + $0x78] sm:$0xff]
        %v6026 = vld [vmem:[%s3 + $0x80] sm:$0xff]
        %v6027 = vld [vmem:[%s3 + $0x88] sm:$0xff]
        %v6028 = vld [vmem:[%s3 + $0x90] sm:$0xff]
        %v6029 = vld [vmem:[%s3 + $0x98] sm:$0xff]
        %v6030 = vld [vmem:[%s3 + $0xa0] sm:$0xff]
        %v6031 = vld [vmem:[%s3 + $0xa8] sm:$0xff]
        %v6032 = vld [vmem:[%s3 + $0xb0] sm:$0xff]
        %v6033 = vld [vmem:[%s3 + $0xb8] sm:$0xff]
        %v6034 = vld [vmem:[%s3 + $0xc0] sm:$0xff]
        %v6035 = vld [vmem:[%s3 + $0xc8] sm:$0xff]
        %v6036 = vld [vmem:[%s3 + $0xd0] sm:$0xff]
        %v6037 = vld [vmem:[%s3 + $0xd8] sm:$0xff]
        %v6038 = vld [vmem:[%s3 + $0xe0] sm:$0xff]
        %v6039 = vld [vmem:[%s3 + $0xe8] sm:$0xff]
        %v6040 = vld [vmem:[%s3 + $0xf0] sm:$0xff]
        %v6041 = vld [vmem:[%s3 + $0xf8] sm:$0xff]
        %v6042 = vld [vmem:[%s3 + $0x100] sm:$0xff]
        %v6043 = vld [vmem:[%s3 + $0x108] sm:$0xff]
        %v6044 = vld [vmem:[%s3 + $0x110] sm:$0xff]
        %v6045 = vld [vmem:[%s3 + $0x118] sm:$0xff]
        %v6046 = vld [vmem:[%s3 + $0x120] sm:$0xff]
        %v6047 = vld [vmem:[%s3 + $0x128] sm:$0xff]
        %v6048 = vld [vmem:[%s3 + $0x130] sm:$0xff]
        %v6049 = vld [vmem:[%s3 + $0x138] sm:$0xff]
        %v6050 = vld [vmem:[%s3 + $0x140] sm:$0xff]
        %v6051 = vld [vmem:[%s3 + $0x148] sm:$0xff]
        %v6052 = vld [vmem:[%s3 + $0x150] sm:$0xff]
        %v6053 = vld [vmem:[%s3 + $0x158] sm:$0xff]
        %v6054 = vld [vmem:[%s3 + $0x160] sm:$0xff]
        %v6055 = vld [vmem:[%s3 + $0x168] sm:$0xff]
        %v6056 = vld [vmem:[%s3 + $0x170] sm:$0xff]
        %v6057 = vld [vmem:[%s3 + $0x178] sm:$0xff]
        %v6058 = vld [vmem:[%s3 + $0x180] sm:$0xff]
        %v6059 = vld [vmem:[%s3 + $0x188] sm:$0xff]
        %v6060 = vld [vmem:[%s3 + $0x190] sm:$0xff]
        %v6061 = vld [vmem:[%s3 + $0x198] sm:$0xff]
        %v6062 = vld [vmem:[%s3 + $0x1a0] sm:$0xff]
        %v6063 = vld [vmem:[%s3 + $0x1a8] sm:$0xff]
        %v6064 = vld [vmem:[%s3 + $0x1b0] sm:$0xff]
        %v6065 = vld [vmem:[%s3 + $0x1b8] sm:$0xff]
        %v6066 = vld [vmem:[%s3 + $0x1c0] sm:$0xff]
        %v6067 = vld [vmem:[%s3 + $0x1c8] sm:$0xff]
        %v6068 = vld [vmem:[%s3 + $0x1d0] sm:$0xff]
        %v6069 = vld [vmem:[%s3 + $0x1d8] sm:$0xff]
        %v6070 = vld [vmem:[%s3 + $0x1e0] sm:$0xff]
        %v6071 = vld [vmem:[%s3 + $0x1e8] sm:$0xff]
        %v6072 = vld [vmem:[%s3 + $0x1f0] sm:$0xff]
        %v6073 = vld [vmem:[%s3 + $0x1f8] sm:$0xff]
        %v6074 = vld [vmem:[%s3 + $0x200] sm:$0xff]
        %v6075 = vld [vmem:[%s3 + $0x208] sm:$0xff]
        %v6076 = vld [vmem:[%s3 + $0x210] sm:$0xff]
        %v6077 = vld [vmem:[%s3 + $0x218] sm:$0xff]
        %v6078 = vld [vmem:[%s3 + $0x220] sm:$0xff]
        %v6079 = vld [vmem:[%s3 + $0x228] sm:$0xff]
        %v6080 = vld [vmem:[%s3 + $0x230] sm:$0xff]
        %v6081 = vld [vmem:[%s3 + $0x238] sm:$0xff]
        %v6082 = vld [vmem:[%s3 + $0x240] sm:$0xff]
        %v6083 = vld [vmem:[%s3 + $0x248] sm:$0xff]
        %v6084 = vld [vmem:[%s3 + $0x250] sm:$0xff]
        %v6085 = vld [vmem:[%s3 + $0x258] sm:$0xff]
        %v6086 = vld [vmem:[%s3 + $0x260] sm:$0xff]
        %v6087 = vld [vmem:[%s3 + $0x268] sm:$0xff]
        %v6088 = vld [vmem:[%s3 + $0x270] sm:$0xff]
        %v6089 = vld [vmem:[%s3 + $0x278] sm:$0xff]
        %v6090 = vld [vmem:[%s3 + $0x280] sm:$0xff]
        %v6091 = vld [vmem:[%s3 + $0x288] sm:$0xff]
        %v6092 = vld [vmem:[%s3 + $0x290] sm:$0xff]
        %v6093 = vld [vmem:[%s3 + $0x298] sm:$0xff]
        %v6094 = vld [vmem:[%s3 + $0x2a0] sm:$0xff]
        %v6095 = vld [vmem:[%s3 + $0x2a8] sm:$0xff]
        %v6096 = vld [vmem:[%s3 + $0x2b0] sm:$0xff]
        %v6097 = vld [vmem:[%s3 + $0x2b8] sm:$0xff]
        %v6098 = vld [vmem:[%s3 + $0x2c0] sm:$0xff]
        %v6099 = vld [vmem:[%s3 + $0x2c8] sm:$0xff]
        %v6100 = vld [vmem:[%s3 + $0x2d0] sm:$0xff]
        %v6101 = vld [vmem:[%s3 + $0x2d8] sm:$0xff]
        %v6102 = vld [vmem:[%s3 + $0x2e0] sm:$0xff]
        %v6103 = vld [vmem:[%s3 + $0x2e8] sm:$0xff]
        %v6104 = vld [vmem:[%s3 + $0x2f0] sm:$0xff]
        %v6105 = vld [vmem:[%s3 + $0x2f8] sm:$0xff]
        %v6106 = vld [vmem:[%s3 + $0x300] sm:$0xff]
        %v6107 = vld [vmem:[%s3 + $0x308] sm:$0xff]
        %v6108 = vld [vmem:[%s3 + $0x310] sm:$0xff]
        %v6109 = vld [vmem:[%s3 + $0x318] sm:$0xff]
        %v6110 = vld [vmem:[%s3 + $0x320] sm:$0xff]
        %v6111 = vld [vmem:[%s3 + $0x328] sm:$0xff]
        %v6112 = vld [vmem:[%s3 + $0x330] sm:$0xff]
        %v6113 = vld [vmem:[%s3 + $0x338] sm:$0xff]
        %v6114 = vld [vmem:[%s3 + $0x340] sm:$0xff]
        %v6115 = vld [vmem:[%s3 + $0x348] sm:$0xff]
        %v6116 = vld [vmem:[%s3 + $0x350] sm:$0xff]
        %v6117 = vld [vmem:[%s3 + $0x358] sm:$0x33]
        %v6226 = vunpack.c.l.b16 %v6010
        %v6227 = vunpack.c.h.b16 %v6010
        %v6228 = vunpack.c.l.b16 %v6011
        %v6229 = vunpack.c.h.b16 %v6011
        %v6230 = vunpack.c.l.b16 %v6012
        %v6231 = vunpack.c.h.b16 %v6012
        %v6232 = vunpack.c.l.b16 %v6013
        %v6233 = vunpack.c.h.b16 %v6013
        %v6234 = vunpack.c.l.b16 %v6014
        %v6235 = vunpack.c.h.b16 %v6014
        %v6236 = vunpack.c.l.b16 %v6015
        %v6237 = vunpack.c.h.b16 %v6015
        %v6238 = vunpack.c.l.b16 %v6016
        %v6239 = vunpack.c.h.b16 %v6016
        %v6240 = vunpack.c.l.b16 %v6017
        %v6241 = vunpack.c.h.b16 %v6017
        %v6242 = vunpack.c.l.b16 %v6018
        %v6243 = vunpack.c.h.b16 %v6018
        %v6244 = vunpack.c.l.b16 %v6019
        %v6245 = vunpack.c.h.b16 %v6019
        %v6246 = vunpack.c.l.b16 %v6020
        %v6247 = vunpack.c.h.b16 %v6020
        %v6248 = vunpack.c.l.b16 %v6021
        %v6249 = vunpack.c.h.b16 %v6021
        %v6250 = vunpack.c.l.b16 %v6022
        %v6251 = vunpack.c.h.b16 %v6022
        %v6252 = vunpack.c.l.b16 %v6023
        %v6253 = vunpack.c.h.b16 %v6023
        %v6254 = vunpack.c.l.b16 %v6024
        %v6255 = vunpack.c.h.b16 %v6024
        %v6256 = vunpack.c.l.b16 %v6025
        %v6257 = vunpack.c.h.b16 %v6025
        %v6258 = vunpack.c.l.b16 %v6026
        %v6259 = vunpack.c.h.b16 %v6026
        %v6260 = vunpack.c.l.b16 %v6027
        %v6261 = vunpack.c.h.b16 %v6027
        %v6262 = vunpack.c.l.b16 %v6028
        %v6263 = vunpack.c.h.b16 %v6028
        %v6264 = vunpack.c.l.b16 %v6029
        %v6265 = vunpack.c.h.b16 %v6029
        %v6266 = vunpack.c.l.b16 %v6030
        %v6267 = vunpack.c.h.b16 %v6030
        %v6268 = vunpack.c.l.b16 %v6031
        %v6269 = vunpack.c.h.b16 %v6031
        %v6270 = vunpack.c.l.b16 %v6032
        %v6271 = vunpack.c.h.b16 %v6032
        %v6272 = vunpack.c.l.b16 %v6033
        %v6273 = vunpack.c.h.b16 %v6033
        %v6274 = vunpack.c.l.b16 %v6034
        %v6275 = vunpack.c.h.b16 %v6034
        %v6276 = vunpack.c.l.b16 %v6035
        %v6277 = vunpack.c.h.b16 %v6035
        %v6278 = vunpack.c.l.b16 %v6036
        %v6279 = vunpack.c.h.b16 %v6036
        %v6280 = vunpack.c.l.b16 %v6037
        %v6281 = vunpack.c.h.b16 %v6037
        %v6282 = vunpack.c.l.b16 %v6038
        %v6283 = vunpack.c.h.b16 %v6038
        %v6284 = vunpack.c.l.b16 %v6039
        %v6285 = vunpack.c.h.b16 %v6039
        %v6286 = vunpack.c.l.b16 %v6040
        %v6287 = vunpack.c.h.b16 %v6040
        %v6288 = vunpack.c.l.b16 %v6041
        %v6289 = vunpack.c.h.b16 %v6041
        %v6290 = vunpack.c.l.b16 %v6042
        %v6291 = vunpack.c.h.b16 %v6042
        %v6292 = vunpack.c.l.b16 %v6043
        %v6293 = vunpack.c.h.b16 %v6043
        %v6294 = vunpack.c.l.b16 %v6044
        %v6295 = vunpack.c.h.b16 %v6044
        %v6296 = vunpack.c.l.b16 %v6045
        %v6297 = vunpack.c.h.b16 %v6045
        %v6298 = vunpack.c.l.b16 %v6046
        %v6299 = vunpack.c.h.b16 %v6046
        %v6300 = vunpack.c.l.b16 %v6047
        %v6301 = vunpack.c.h.b16 %v6047
        %v6302 = vunpack.c.l.b16 %v6048
        %v6303 = vunpack.c.h.b16 %v6048
        %v6304 = vunpack.c.l.b16 %v6049
        %v6305 = vunpack.c.h.b16 %v6049
        %v6306 = vunpack.c.l.b16 %v6050
        %v6307 = vunpack.c.h.b16 %v6050
        %v6308 = vunpack.c.l.b16 %v6051
        %v6309 = vunpack.c.h.b16 %v6051
        %v6310 = vunpack.c.l.b16 %v6052
        %v6311 = vunpack.c.h.b16 %v6052
        %v6312 = vunpack.c.l.b16 %v6053
        %v6313 = vunpack.c.h.b16 %v6053
        %v6314 = vunpack.c.l.b16 %v6054
        %v6315 = vunpack.c.h.b16 %v6054
        %v6316 = vunpack.c.l.b16 %v6055
        %v6317 = vunpack.c.h.b16 %v6055
        %v6318 = vunpack.c.l.b16 %v6056
        %v6319 = vunpack.c.h.b16 %v6056
        %v6320 = vunpack.c.l.b16 %v6057
        %v6321 = vunpack.c.h.b16 %v6057
        %v6322 = vunpack.c.l.b16 %v6058
        %v6323 = vunpack.c.h.b16 %v6058
        %v6324 = vunpack.c.l.b16 %v6059
        %v6325 = vunpack.c.h.b16 %v6059
        %v6326 = vunpack.c.l.b16 %v6060
        %v6327 = vunpack.c.h.b16 %v6060
        %v6328 = vunpack.c.l.b16 %v6061
        %v6329 = vunpack.c.h.b16 %v6061
        %v6330 = vunpack.c.l.b16 %v6062
        %v6331 = vunpack.c.h.b16 %v6062
        %v6332 = vunpack.c.l.b16 %v6063
        %v6333 = vunpack.c.h.b16 %v6063
        %v6334 = vunpack.c.l.b16 %v6064
        %v6335 = vunpack.c.h.b16 %v6064
        %v6336 = vunpack.c.l.b16 %v6065
        %v6337 = vunpack.c.h.b16 %v6065
        %v6338 = vunpack.c.l.b16 %v6066
        %v6339 = vunpack.c.h.b16 %v6066
        %v6340 = vunpack.c.l.b16 %v6067
        %v6341 = vunpack.c.h.b16 %v6067
        %v6342 = vunpack.c.l.b16 %v6068
        %v6343 = vunpack.c.h.b16 %v6068
        %v6344 = vunpack.c.l.b16 %v6069
        %v6345 = vunpack.c.h.b16 %v6069
        %v6346 = vunpack.c.l.b16 %v6070
        %v6347 = vunpack.c.h.b16 %v6070
        %v6348 = vunpack.c.l.b16 %v6071
        %v6349 = vunpack.c.h.b16 %v6071
        %v6350 = vunpack.c.l.b16 %v6072
        %v6351 = vunpack.c.h.b16 %v6072
        %v6352 = vunpack.c.l.b16 %v6073
        %v6353 = vunpack.c.h.b16 %v6073
        %v6354 = vunpack.c.l.b16 %v6074
        %v6355 = vunpack.c.h.b16 %v6074
        %v6356 = vunpack.c.l.b16 %v6075
        %v6357 = vunpack.c.h.b16 %v6075
        %v6358 = vunpack.c.l.b16 %v6076
        %v6359 = vunpack.c.h.b16 %v6076
        %v6360 = vunpack.c.l.b16 %v6077
        %v6361 = vunpack.c.h.b16 %v6077
        %v6362 = vunpack.c.l.b16 %v6078
        %v6363 = vunpack.c.h.b16 %v6078
        %v6364 = vunpack.c.l.b16 %v6079
        %v6365 = vunpack.c.h.b16 %v6079
        %v6366 = vunpack.c.l.b16 %v6080
        %v6367 = vunpack.c.h.b16 %v6080
        %v6368 = vunpack.c.l.b16 %v6081
        %v6369 = vunpack.c.h.b16 %v6081
        %v6370 = vunpack.c.l.b16 %v6082
        %v6371 = vunpack.c.h.b16 %v6082
        %v6372 = vunpack.c.l.b16 %v6083
        %v6373 = vunpack.c.h.b16 %v6083
        %v6374 = vunpack.c.l.b16 %v6084
        %v6375 = vunpack.c.h.b16 %v6084
        %v6376 = vunpack.c.l.b16 %v6085
        %v6377 = vunpack.c.h.b16 %v6085
        %v6378 = vunpack.c.l.b16 %v6086
        %v6379 = vunpack.c.h.b16 %v6086
        %v6380 = vunpack.c.l.b16 %v6087
        %v6381 = vunpack.c.h.b16 %v6087
        %v6382 = vunpack.c.l.b16 %v6088
        %v6383 = vunpack.c.h.b16 %v6088
        %v6384 = vunpack.c.l.b16 %v6089
        %v6385 = vunpack.c.h.b16 %v6089
        %v6386 = vunpack.c.l.b16 %v6090
        %v6387 = vunpack.c.h.b16 %v6090
        %v6388 = vunpack.c.l.b16 %v6091
        %v6389 = vunpack.c.h.b16 %v6091
        %v6390 = vunpack.c.l.b16 %v6092
        %v6391 = vunpack.c.h.b16 %v6092
        %v6392 = vunpack.c.l.b16 %v6093
        %v6393 = vunpack.c.h.b16 %v6093
        %v6394 = vunpack.c.l.b16 %v6094
        %v6395 = vunpack.c.h.b16 %v6094
        %v6396 = vunpack.c.l.b16 %v6095
        %v6397 = vunpack.c.h.b16 %v6095
        %v6398 = vunpack.c.l.b16 %v6096
        %v6399 = vunpack.c.h.b16 %v6096
        %v6400 = vunpack.c.l.b16 %v6097
        %v6401 = vunpack.c.h.b16 %v6097
        %v6402 = vunpack.c.l.b16 %v6098
        %v6403 = vunpack.c.h.b16 %v6098
        %v6404 = vunpack.c.l.b16 %v6099
        %v6405 = vunpack.c.h.b16 %v6099
        %v6406 = vunpack.c.l.b16 %v6100
        %v6407 = vunpack.c.h.b16 %v6100
        %v6408 = vunpack.c.l.b16 %v6101
        %v6409 = vunpack.c.h.b16 %v6101
        %v6410 = vunpack.c.l.b16 %v6102
        %v6411 = vunpack.c.h.b16 %v6102
        %v6412 = vunpack.c.l.b16 %v6103
        %v6413 = vunpack.c.h.b16 %v6103
        %v6414 = vunpack.c.l.b16 %v6104
        %v6415 = vunpack.c.h.b16 %v6104
        %v6416 = vunpack.c.l.b16 %v6105
        %v6417 = vunpack.c.h.b16 %v6105
        %v6418 = vunpack.c.l.b16 %v6106
        %v6419 = vunpack.c.h.b16 %v6106
        %v6420 = vunpack.c.l.b16 %v6107
        %v6421 = vunpack.c.h.b16 %v6107
        %v6422 = vunpack.c.l.b16 %v6108
        %v6423 = vunpack.c.h.b16 %v6108
        %v6424 = vunpack.c.l.b16 %v6109
        %v6425 = vunpack.c.h.b16 %v6109
        %v6426 = vunpack.c.l.b16 %v6110
        %v6427 = vunpack.c.h.b16 %v6110
        %v6428 = vunpack.c.l.b16 %v6111
        %v6429 = vunpack.c.h.b16 %v6111
        %v6430 = vunpack.c.l.b16 %v6112
        %v6431 = vunpack.c.h.b16 %v6112
        %v6432 = vunpack.c.l.b16 %v6113
        %v6433 = vunpack.c.h.b16 %v6113
        %v6434 = vunpack.c.l.b16 %v6114
        %v6435 = vunpack.c.h.b16 %v6114
        %v6436 = vunpack.c.l.b16 %v6115
        %v6437 = vunpack.c.h.b16 %v6115
        %v6438 = vunpack.c.l.b16 %v6116
        %v6439 = vunpack.c.h.b16 %v6116
        %v6440 = vunpack.c.l.b16 %v6117
        %v6441 = vunpack.c.h.b16 %v6117
        %v6442 = vpack.c.b16 %v6228, %v6226
        %v6443 = vpack.c.b16 %v6229, %v6227
        %v6444 = vpack.c.b16 %v6232, %v6230
        %v6445 = vpack.c.b16 %v6233, %v6231
        %v6446 = vpack.c.b16 %v6236, %v6234
        %v6447 = vpack.c.b16 %v6237, %v6235
        %v6448 = vpack.c.b16 %v6240, %v6238
        %v6449 = vpack.c.b16 %v6241, %v6239
        %v6450 = vpack.c.b16 %v6244, %v6242
        %v6451 = vpack.c.b16 %v6245, %v6243
        %v6452 = vpack.c.b16 %v6248, %v6246
        %v6453 = vpack.c.b16 %v6249, %v6247
        %v6454 = vpack.c.b16 %v6252, %v6250
        %v6455 = vpack.c.b16 %v6253, %v6251
        %v6456 = vpack.c.b16 %v6256, %v6254
        %v6457 = vpack.c.b16 %v6257, %v6255
        %v6458 = vpack.c.b16 %v6260, %v6258
        %v6459 = vpack.c.b16 %v6261, %v6259
        %v6460 = vpack.c.b16 %v6264, %v6262
        %v6461 = vpack.c.b16 %v6265, %v6263
        %v6462 = vpack.c.b16 %v6268, %v6266
        %v6463 = vpack.c.b16 %v6269, %v6267
        %v6464 = vpack.c.b16 %v6272, %v6270
        %v6465 = vpack.c.b16 %v6273, %v6271
        %v6466 = vpack.c.b16 %v6276, %v6274
        %v6467 = vpack.c.b16 %v6277, %v6275
        %v6468 = vpack.c.b16 %v6280, %v6278
        %v6469 = vpack.c.b16 %v6281, %v6279
        %v6470 = vpack.c.b16 %v6284, %v6282
        %v6471 = vpack.c.b16 %v6285, %v6283
        %v6472 = vpack.c.b16 %v6288, %v6286
        %v6473 = vpack.c.b16 %v6289, %v6287
        %v6474 = vpack.c.b16 %v6292, %v6290
        %v6475 = vpack.c.b16 %v6293, %v6291
        %v6476 = vpack.c.b16 %v6296, %v6294
        %v6477 = vpack.c.b16 %v6297, %v6295
        %v6478 = vpack.c.b16 %v6300, %v6298
        %v6479 = vpack.c.b16 %v6301, %v6299
        %v6480 = vpack.c.b16 %v6304, %v6302
        %v6481 = vpack.c.b16 %v6305, %v6303
        %v6482 = vpack.c.b16 %v6308, %v6306
        %v6483 = vpack.c.b16 %v6309, %v6307
        %v6484 = vpack.c.b16 %v6312, %v6310
        %v6485 = vpack.c.b16 %v6313, %v6311
        %v6486 = vpack.c.b16 %v6316, %v6314
        %v6487 = vpack.c.b16 %v6317, %v6315
        %v6488 = vpack.c.b16 %v6320, %v6318
        %v6489 = vpack.c.b16 %v6321, %v6319
        %v6490 = vpack.c.b16 %v6324, %v6322
        %v6491 = vpack.c.b16 %v6325, %v6323
        %v6492 = vpack.c.b16 %v6328, %v6326
        %v6493 = vpack.c.b16 %v6329, %v6327
        %v6494 = vpack.c.b16 %v6332, %v6330
        %v6495 = vpack.c.b16 %v6333, %v6331
        %v6496 = vpack.c.b16 %v6336, %v6334
        %v6497 = vpack.c.b16 %v6337, %v6335
        %v6498 = vpack.c.b16 %v6340, %v6338
        %v6499 = vpack.c.b16 %v6341, %v6339
        %v6500 = vpack.c.b16 %v6344, %v6342
        %v6501 = vpack.c.b16 %v6345, %v6343
        %v6502 = vpack.c.b16 %v6348, %v6346
        %v6503 = vpack.c.b16 %v6349, %v6347
        %v6504 = vpack.c.b16 %v6352, %v6350
        %v6505 = vpack.c.b16 %v6353, %v6351
        %v6506 = vpack.c.b16 %v6356, %v6354
        %v6507 = vpack.c.b16 %v6357, %v6355
        %v6508 = vpack.c.b16 %v6360, %v6358
        %v6509 = vpack.c.b16 %v6361, %v6359
        %v6510 = vpack.c.b16 %v6364, %v6362
        %v6511 = vpack.c.b16 %v6365, %v6363
        %v6512 = vpack.c.b16 %v6368, %v6366
        %v6513 = vpack.c.b16 %v6369, %v6367
        %v6514 = vpack.c.b16 %v6372, %v6370
        %v6515 = vpack.c.b16 %v6373, %v6371
        %v6516 = vpack.c.b16 %v6376, %v6374
        %v6517 = vpack.c.b16 %v6377, %v6375
        %v6518 = vpack.c.b16 %v6380, %v6378
        %v6519 = vpack.c.b16 %v6381, %v6379
        %v6520 = vpack.c.b16 %v6384, %v6382
        %v6521 = vpack.c.b16 %v6385, %v6383
        %v6522 = vpack.c.b16 %v6388, %v6386
        %v6523 = vpack.c.b16 %v6389, %v6387
        %v6524 = vpack.c.b16 %v6392, %v6390
        %v6525 = vpack.c.b16 %v6393, %v6391
        %v6526 = vpack.c.b16 %v6396, %v6394
        %v6527 = vpack.c.b16 %v6397, %v6395
        %v6528 = vpack.c.b16 %v6400, %v6398
        %v6529 = vpack.c.b16 %v6401, %v6399
        %v6530 = vpack.c.b16 %v6404, %v6402
        %v6531 = vpack.c.b16 %v6405, %v6403
        %v6532 = vpack.c.b16 %v6408, %v6406
        %v6533 = vpack.c.b16 %v6409, %v6407
        %v6534 = vpack.c.b16 %v6412, %v6410
        %v6535 = vpack.c.b16 %v6413, %v6411
        %v6536 = vpack.c.b16 %v6416, %v6414
        %v6537 = vpack.c.b16 %v6417, %v6415
        %v6538 = vpack.c.b16 %v6420, %v6418
        %v6539 = vpack.c.b16 %v6421, %v6419
        %v6540 = vpack.c.b16 %v6424, %v6422
        %v6541 = vpack.c.b16 %v6425, %v6423
        %v6542 = vpack.c.b16 %v6428, %v6426
        %v6543 = vpack.c.b16 %v6429, %v6427
        %v6544 = vpack.c.b16 %v6432, %v6430
        %v6545 = vpack.c.b16 %v6433, %v6431
        %v6546 = vpack.c.b16 %v6436, %v6434
        %v6547 = vpack.c.b16 %v6437, %v6435
        %v6548 = vpack.c.b16 %v6440, %v6438
        %v6549 = vpack.c.b16 %v6441, %v6439
        %vm6656 = vcmask 744448
        %v6658 = vsel %vm6656, %v6009, 0
        %vm6660 = vcmask 1044480
        %vm6661 = vcmask 1045504
        %v6662 = vsel %vm6660, 4294967295, 65535
        %v6663 = vsel %vm6661, %v6662, 0
        %v6665 = vand.u32 %v6548, %v6663
        %v6668 = vand.u32 %v6549, %v6663
        %6670 = vmatprep.subr.bf16.mxu0 %v6443
        %6671 = vmatpush1.bf16.msra.mxu0 %v6442
        %6672 = vmatprep.subr.bf16.mxu0 %v6445
        %6673 = vmatpush1.bf16.msra.mxu0 %v6444
        %6674 = vmatprep.subr.bf16.mxu0 %v6447
        %6675 = vmatpush1.bf16.msra.mxu0 %v6446
        %6676 = vmatprep.subr.bf16.mxu0 %v6449
        %6677 = vmatpush1.bf16.msra.mxu0 %v6448
        %6678 = vmatprep.subr.bf16.mxu0 %v6451
        %6679 = vmatpush1.bf16.msra.mxu0 %v6450
        %6680 = vmatprep.subr.bf16.mxu0 %v6453
        %6681 = vmatpush1.bf16.msra.mxu0 %v6452
        %6682 = vmatprep.subr.bf16.mxu0 %v6455
        %6683 = vmatpush1.bf16.msra.mxu0 %v6454
        %6684 = vmatprep.subr.bf16.mxu0 %v6457
        %6685 = vmatpush1.bf16.msra.mxu0 %v6456
        %6686 = vmatprep.subr.bf16.mxu0 %v6459
        %6687 = vmatpush1.bf16.msra.mxu0 %v6458
        %6688 = vmatprep.subr.bf16.mxu0 %v6461
        %6689 = vmatpush1.bf16.msra.mxu0 %v6460
        %6690 = vmatprep.subr.bf16.mxu0 %v6463
        %6691 = vmatpush1.bf16.msra.mxu0 %v6462
        %6692 = vmatprep.subr.bf16.mxu0 %v6465
        %6693 = vmatpush1.bf16.msra.mxu0 %v6464
        %6694 = vmatprep.subr.bf16.mxu0 %v6467
        %6695 = vmatpush1.bf16.msra.mxu0 %v6466
        %6696 = vmatprep.subr.bf16.mxu0 %v6469
        %6697 = vmatpush1.bf16.msra.mxu0 %v6468
        %6698 = vmatprep.subr.bf16.mxu0 %v6471
        %6699 = vmatpush1.bf16.msra.mxu0 %v6470
        %6700 = vmatprep.subr.bf16.mxu0 %v6473
        %6701 = vmatpush1.bf16.msra.mxu0 %v6472
        %6702 = vmatprep.mubr.bf16.mxu0 %v6004
        %6703 = vmatmul.mubr.bf16.gmra.mrb[0].mxu0 %v6003
        %v6704 = vpop.f32.mrb[0].mxu0
        %v6705 = vadd.f32 0.0, %v6704
        %v6706 = vpop.f32.mrb[0].mxu0
        %v6707 = vadd.f32 0.0, %v6706
        %v6708 = vpop.f32.mrb[0].mxu0
        %v6709 = vpop.f32.mrb[0].mxu0
        %6710 = vdwg.mxu0
        %6711 = vmatprep.subr.bf16.mxu0 %v6475
        %6712 = vmatpush1.bf16.msra.mxu0 %v6474
        %6713 = vmatprep.subr.bf16.mxu0 %v6477
        %6714 = vmatpush1.bf16.msra.mxu0 %v6476
        %6715 = vmatprep.subr.bf16.mxu0 %v6479
        %6716 = vmatpush1.bf16.msra.mxu0 %v6478
        %6717 = vmatprep.subr.bf16.mxu0 %v6481
        %6718 = vmatpush1.bf16.msra.mxu0 %v6480
        %6719 = vmatprep.subr.bf16.mxu0 %v6483
        %6720 = vmatpush1.bf16.msra.mxu0 %v6482
        %6721 = vmatprep.subr.bf16.mxu0 %v6485
        %6722 = vmatpush1.bf16.msra.mxu0 %v6484
        %6723 = vmatprep.subr.bf16.mxu0 %v6487
        %6724 = vmatpush1.bf16.msra.mxu0 %v6486
        %6725 = vmatprep.subr.bf16.mxu0 %v6489
        %6726 = vmatpush1.bf16.msra.mxu0 %v6488
        %6727 = vmatprep.subr.bf16.mxu0 %v6491
        %6728 = vmatpush1.bf16.msra.mxu0 %v6490
        %6729 = vmatprep.subr.bf16.mxu0 %v6493
        %6730 = vmatpush1.bf16.msra.mxu0 %v6492
        %6731 = vmatprep.subr.bf16.mxu0 %v6495
        %6732 = vmatpush1.bf16.msra.mxu0 %v6494
        %6733 = vmatprep.subr.bf16.mxu0 %v6497
        %6734 = vmatpush1.bf16.msra.mxu0 %v6496
        %6735 = vmatprep.subr.bf16.mxu0 %v6499
        %6736 = vmatpush1.bf16.msra.mxu0 %v6498
        %6737 = vmatprep.subr.bf16.mxu0 %v6501
        %6738 = vmatpush1.bf16.msra.mxu0 %v6500
        %6739 = vmatprep.subr.bf16.mxu0 %v6503
        %6740 = vmatpush1.bf16.msra.mxu0 %v6502
        %6741 = vmatprep.subr.bf16.mxu0 %v6505
        %6742 = vmatpush1.bf16.msra.mxu0 %v6504
        %6743 = vmatprep.mubr.bf16.mxu0 %v6006
        %6744 = vmatmul.mubr.bf16.gmra.mrb[0].mxu0 %v6005
        %v6745 = vpop.f32.mrb[0].mxu0
        %v6746 = vadd.f32 %v6705, %v6745
        %v6747 = vpop.f32.mrb[0].mxu0
        %v6748 = vadd.f32 %v6707, %v6747
        %v6749 = vpop.f32.mrb[0].mxu0
        %v6750 = vpop.f32.mrb[0].mxu0
        %6751 = vdwg.mxu0
        %6752 = vmatprep.subr.bf16.mxu0 %v6507
        %6753 = vmatpush1.bf16.msra.mxu0 %v6506
        %6754 = vmatprep.subr.bf16.mxu0 %v6509
        %6755 = vmatpush1.bf16.msra.mxu0 %v6508
        %6756 = vmatprep.subr.bf16.mxu0 %v6511
        %6757 = vmatpush1.bf16.msra.mxu0 %v6510
        %6758 = vmatprep.subr.bf16.mxu0 %v6513
        %6759 = vmatpush1.bf16.msra.mxu0 %v6512
        %6760 = vmatprep.subr.bf16.mxu0 %v6515
        %6761 = vmatpush1.bf16.msra.mxu0 %v6514
        %6762 = vmatprep.subr.bf16.mxu0 %v6517
        %6763 = vmatpush1.bf16.msra.mxu0 %v6516
        %6764 = vmatprep.subr.bf16.mxu0 %v6519
        %6765 = vmatpush1.bf16.msra.mxu0 %v6518
        %6766 = vmatprep.subr.bf16.mxu0 %v6521
        %6767 = vmatpush1.bf16.msra.mxu0 %v6520
        %6768 = vmatprep.subr.bf16.mxu0 %v6523
        %6769 = vmatpush1.bf16.msra.mxu0 %v6522
        %6770 = vmatprep.subr.bf16.mxu0 %v6525
        %6771 = vmatpush1.bf16.msra.mxu0 %v6524
        %6772 = vmatprep.subr.bf16.mxu0 %v6527
        %6773 = vmatpush1.bf16.msra.mxu0 %v6526
        %6774 = vmatprep.subr.bf16.mxu0 %v6529
        %6775 = vmatpush1.bf16.msra.mxu0 %v6528
        %6776 = vmatprep.subr.bf16.mxu0 %v6531
        %6777 = vmatpush1.bf16.msra.mxu0 %v6530
        %6778 = vmatprep.subr.bf16.mxu0 %v6533
        %6779 = vmatpush1.bf16.msra.mxu0 %v6532
        %6780 = vmatprep.subr.bf16.mxu0 %v6535
        %6781 = vmatpush1.bf16.msra.mxu0 %v6534
        %6782 = vmatprep.subr.bf16.mxu0 %v6537
        %6783 = vmatpush1.bf16.msra.mxu0 %v6536
        %6784 = vmatprep.mubr.bf16.mxu0 %v6008
        %6785 = vmatmul.mubr.bf16.gmra.mrb[0].mxu0 %v6007
        %v6786 = vpop.f32.mrb[0].mxu0
        %v6787 = vadd.f32 %v6746, %v6786
        %v6788 = vpop.f32.mrb[0].mxu0
        %v6789 = vadd.f32 %v6748, %v6788
        %v6790 = vpop.f32.mrb[0].mxu0
        %v6791 = vpop.f32.mrb[0].mxu0
        %6792 = vdwg.mxu0
        %6793 = vmatprep.subr.bf16.mxu0 %v6539
        %6794 = vmatpush1.bf16.msra.mxu0 %v6538
        %6795 = vmatprep.subr.bf16.mxu0 %v6541
        %6796 = vmatpush1.bf16.msra.mxu0 %v6540
        %6797 = vmatprep.subr.bf16.mxu0 %v6543
        %6798 = vmatpush1.bf16.msra.mxu0 %v6542
        %6799 = vmatprep.subr.bf16.mxu0 %v6545
        %6800 = vmatpush1.bf16.msra.mxu0 %v6544
        %6801 = vmatprep.subr.bf16.mxu0 %v6547
        %6802 = vmatpush1.bf16.msra.mxu0 %v6546
        %6803 = vmatprep.subr.bf16.mxu0 %v6668
        %6804 = vmatpush1.bf16.msra.mxu0 %v6665
        %6805 = vmatprep.subr.bf16.mxu0 0
        %6806 = vmatpush1.bf16.msra.mxu0 0
        %6807 = vmatprep.subr.bf16.mxu0 0
        %6808 = vmatpush1.bf16.msra.mxu0 0
        %6809 = vmatprep.subr.bf16.mxu0 0
        %6810 = vmatpush1.bf16.msra.mxu0 0
        %6811 = vmatprep.subr.bf16.mxu0 0
        %6812 = vmatpush1.bf16.msra.mxu0 0
        %6813 = vmatprep.subr.bf16.mxu0 0
        %6814 = vmatpush1.bf16.msra.mxu0 0
        %6815 = vmatprep.subr.bf16.mxu0 0
        %6816 = vmatpush1.bf16.msra.mxu0 0
        %6817 = vmatprep.subr.bf16.mxu0 0
        %6818 = vmatpush1.bf16.msra.mxu0 0
        %6819 = vmatprep.subr.bf16.mxu0 0
        %6820 = vmatpush1.bf16.msra.mxu0 0
        %6821 = vmatprep.subr.bf16.mxu0 0
        %6822 = vmatpush1.bf16.msra.mxu0 0
        %6823 = vmatprep.subr.bf16.mxu0 0
        %6824 = vmatpush1.bf16.msra.mxu0 0
        %6825 = vmatprep.mubr.bf16.mxu0 0
        %6826 = vmatmul.mubr.bf16.gmra.mrb[0].mxu0 %v6658
        %v6827 = vpop.f32.mrb[0].mxu0
        %v6828 = vadd.f32 %v6787, %v6827
        %v6829 = vpop.f32.mrb[0].mxu0
        %v6830 = vadd.f32 %v6789, %v6829
        %v6831 = vpop.f32.mrb[0].mxu0
        %v6832 = vpop.f32.mrb[0].mxu0
        %6833 = vdwg.mxu0
        %v6834 = vld [vmem:[%s4] sm:$0xf]
        %v6835 = vld [vmem:[%s4 + $0x4] sm:$0xf]
        %v6836 = vpack.c.bf16 %v6828, %v6828
        %v6837 = vpack.c.bf16 %v6830, %v6830
        %s6838 = scalar_lea.vmem %s4, 8
        %v6839 = vld [vmem:[%s6838] sm:$0xf]
        %v6840 = vld [vmem:[%s6838 + $0x4] sm:$0xf]
        %v6843 = vunpack.c.l.b16 %v6839
        %v6844 = vunpack.c.l.b16 %v6840
        %v6845 = vpack.c.b16 %v6844, %v6843
        %6848 = vrot.lane.b32.xlu0 %v6836, 127
        %v6849 = vpop.permute.xlu0 %6848
        %6850 = vrot.lane.b32.xlu0 %v6837, 127
        %v6851 = vpop.permute.xlu0 %6850
        %v6852 = vsel %vm457, %v6849, %v6851
        %vm6853 = vcmask 48128
        %v6855 = vsel %vm6853, %v6845, 0
        %vm6857 = vcmask 1042432
        %v6859 = vsel %vm6857, %v6852, 0
        %v6862 = vsel %vm6857, %v6851, 0
        %6864 = vmatprep.subr.bf16.mxu0 %v6862
        %6865 = vmatpush1.bf16.msra.mxu0 %v6859
        %6866 = vmatprep.subr.bf16.mxu0 0
        %6867 = vmatpush1.bf16.msra.mxu0 0
        %6868 = vmatprep.subr.bf16.mxu0 0
        %6869 = vmatpush1.bf16.msra.mxu0 0
        %6870 = vmatprep.subr.bf16.mxu0 0
        %6871 = vmatpush1.bf16.msra.mxu0 0
        %6872 = vmatprep.subr.bf16.mxu0 0
        %6873 = vmatpush1.bf16.msra.mxu0 0
        %6874 = vmatprep.subr.bf16.mxu0 0
        %6875 = vmatpush1.bf16.msra.mxu0 0
        %6876 = vmatprep.subr.bf16.mxu0 0
        %6877 = vmatpush1.bf16.msra.mxu0 0
        %6878 = vmatprep.subr.bf16.mxu0 0
        %6879 = vmatpush1.bf16.msra.mxu0 0
        %6880 = vmatprep.subr.bf16.mxu0 0
        %6881 = vmatpush1.bf16.msra.mxu0 0
        %6882 = vmatprep.subr.bf16.mxu0 0
        %6883 = vmatpush1.bf16.msra.mxu0 0
        %6884 = vmatprep.subr.bf16.mxu0 0
        %6885 = vmatpush1.bf16.msra.mxu0 0
        %6886 = vmatprep.subr.bf16.mxu0 0
        %6887 = vmatpush1.bf16.msra.mxu0 0
        %6888 = vmatprep.subr.bf16.mxu0 0
        %6889 = vmatpush1.bf16.msra.mxu0 0
        %6890 = vmatprep.subr.bf16.mxu0 0
        %6891 = vmatpush1.bf16.msra.mxu0 0
        %6892 = vmatprep.subr.bf16.mxu0 0
        %6893 = vmatpush1.bf16.msra.mxu0 0
        %6894 = vmatprep.subr.bf16.mxu0 0
        %6895 = vmatpush1.bf16.msra.mxu0 0
        %6896 = vmatprep.mubr.bf16.mxu0 0
        %6897 = vmatmul.mubr.bf16.gmra.mrb[0].mxu0 %v6855
        %v6898 = vpop.f32.mrb[0].mxu0
        %v6899 = vadd.f32 0.0, %v6898
        %v6900 = vpop.f32.mrb[0].mxu0
        %v6901 = vadd.f32 0.0, %v6900
        %v6902 = vpop.f32.mrb[0].mxu0
        %v6903 = vadd.f32 0.0, %v6902
        %v6904 = vpop.f32.mrb[0].mxu0
        %v6905 = vadd.f32 0.0, %v6904
        %6906 = vdwg.mxu0
        %v6909 = vunpack.c.l.b16 %v6834
        %v6910 = vunpack.c.l.b16 %v6835
        %v6911 = vpack.c.b16 %v6910, %v6909
        %v6913 = vsel %vm6853, %v6911, 0
        %v6916 = vsel %vm6857, %v6836, 0
        %v6919 = vsel %vm6857, %v6837, 0
        %6921 = vmatprep.subr.bf16.mxu0 %v6919
        %6922 = vmatpush1.bf16.msra.mxu0 %v6916
        %6923 = vmatprep.subr.bf16.mxu0 0
        %6924 = vmatpush1.bf16.msra.mxu0 0
        %6925 = vmatprep.subr.bf16.mxu0 0
        %6926 = vmatpush1.bf16.msra.mxu0 0
        %6927 = vmatprep.subr.bf16.mxu0 0
        %6928 = vmatpush1.bf16.msra.mxu0 0
        %6929 = vmatprep.subr.bf16.mxu0 0
        %6930 = vmatpush1.bf16.msra.mxu0 0
        %6931 = vmatprep.subr.bf16.mxu0 0
        %6932 = vmatpush1.bf16.msra.mxu0 0
        %6933 = vmatprep.subr.bf16.mxu0 0
        %6934 = vmatpush1.bf16.msra.mxu0 0
        %6935 = vmatprep.subr.bf16.mxu0 0
        %6936 = vmatpush1.bf16.msra.mxu0 0
        %6937 = vmatprep.subr.bf16.mxu0 0
        %6938 = vmatpush1.bf16.msra.mxu0 0
        %6939 = vmatprep.subr.bf16.mxu0 0
        %6940 = vmatpush1.bf16.msra.mxu0 0
        %6941 = vmatprep.subr.bf16.mxu0 0
        %6942 = vmatpush1.bf16.msra.mxu0 0
        %6943 = vmatprep.subr.bf16.mxu0 0
        %6944 = vmatpush1.bf16.msra.mxu0 0
        %6945 = vmatprep.subr.bf16.mxu0 0
        %6946 = vmatpush1.bf16.msra.mxu0 0
        %6947 = vmatprep.subr.bf16.mxu0 0
        %6948 = vmatpush1.bf16.msra.mxu0 0
        %6949 = vmatprep.subr.bf16.mxu0 0
        %6950 = vmatpush1.bf16.msra.mxu0 0
        %6951 = vmatprep.subr.bf16.mxu0 0
        %6952 = vmatpush1.bf16.msra.mxu0 0
        %6953 = vmatprep.mubr.bf16.mxu0 0
        %6954 = vmatmul.mubr.bf16.gmra.mrb[0].mxu0 %v6913
        %v6955 = vpop.f32.mrb[0].mxu0
        %v6956 = vadd.f32 %v6899, %v6955
        %v6957 = vpop.f32.mrb[0].mxu0
        %v6958 = vadd.f32 %v6901, %v6957
        %v6959 = vpop.f32.mrb[0].mxu0
        %v6960 = vadd.f32 %v6903, %v6959
        %v6961 = vpop.f32.mrb[0].mxu0
        %v6962 = vadd.f32 %v6905, %v6961
        %6963 = vdwg.mxu0
        %s6964 = scalar_lea.vmem %s4, 16
        %v6965 = vld [vmem:[%s6964] sm:$0xf]
        %v6966 = vld [vmem:[%s6964 + $0x4] sm:$0xf]
        %v6969 = vunpack.c.l.b16 %v6965
        %v6970 = vunpack.c.l.b16 %v6966
        %v6971 = vpack.c.b16 %v6970, %v6969
        %6972 = vrot.lane.b32.xlu0 %v6836, 126
        %v6973 = vpop.permute.xlu0 %6972
        %6974 = vrot.lane.b32.xlu0 %v6837, 126
        %v6975 = vpop.permute.xlu0 %6974
        %v6976 = vsel %vm859, %v6973, %v6975
        %v6978 = vsel %vm6853, %v6971, 0
        %v6981 = vsel %vm6857, %v6976, 0
        %v6984 = vsel %vm6857, %v6975, 0
        %6986 = vmatprep.subr.bf16.mxu0 %v6984
        %6987 = vmatpush1.bf16.msra.mxu0 %v6981
        %6988 = vmatprep.subr.bf16.mxu0 0
        %6989 = vmatpush1.bf16.msra.mxu0 0
        %6990 = vmatprep.subr.bf16.mxu0 0
        %6991 = vmatpush1.bf16.msra.mxu0 0
        %6992 = vmatprep.subr.bf16.mxu0 0
        %6993 = vmatpush1.bf16.msra.mxu0 0
        %6994 = vmatprep.subr.bf16.mxu0 0
        %6995 = vmatpush1.bf16.msra.mxu0 0
        %6996 = vmatprep.subr.bf16.mxu0 0
        %6997 = vmatpush1.bf16.msra.mxu0 0
        %6998 = vmatprep.subr.bf16.mxu0 0
        %6999 = vmatpush1.bf16.msra.mxu0 0
        %7000 = vmatprep.subr.bf16.mxu0 0
        %7001 = vmatpush1.bf16.msra.mxu0 0
        %7002 = vmatprep.subr.bf16.mxu0 0
        %7003 = vmatpush1.bf16.msra.mxu0 0
        %7004 = vmatprep.subr.bf16.mxu0 0
        %7005 = vmatpush1.bf16.msra.mxu0 0
        %7006 = vmatprep.subr.bf16.mxu0 0
        %7007 = vmatpush1.bf16.msra.mxu0 0
        %7008 = vmatprep.subr.bf16.mxu0 0
        %7009 = vmatpush1.bf16.msra.mxu0 0
        %7010 = vmatprep.subr.bf16.mxu0 0
        %7011 = vmatpush1.bf16.msra.mxu0 0
        %7012 = vmatprep.subr.bf16.mxu0 0
        %7013 = vmatpush1.bf16.msra.mxu0 0
        %7014 = vmatprep.subr.bf16.mxu0 0
        %7015 = vmatpush1.bf16.msra.mxu0 0
        %7016 = vmatprep.subr.bf16.mxu0 0
        %7017 = vmatpush1.bf16.msra.mxu0 0
        %7018 = vmatprep.mubr.bf16.mxu0 0
        %7019 = vmatmul.mubr.bf16.gmra.mrb[0].mxu0 %v6978
        %v7020 = vpop.f32.mrb[0].mxu0
        %v7021 = vadd.f32 0.0, %v7020
        %v7022 = vpop.f32.mrb[0].mxu0
        %v7023 = vadd.f32 0.0, %v7022
        %v7024 = vpop.f32.mrb[0].mxu0
        %v7025 = vadd.f32 0.0, %v7024
        %v7026 = vpop.f32.mrb[0].mxu0
        %v7027 = vadd.f32 0.0, %v7026
        %7028 = vdwg.mxu0
        %v7029 = vadd.f32 %v6956, %v7021
        %v7030 = vadd.f32 %v6958, %v7023
        %v7031 = vadd.f32 %v6960, %v7025
        %v7032 = vadd.f32 %v6962, %v7027
        %s7033 = scalar_lea.vmem %s4, 24
        %v7034 = vld [vmem:[%s7033] sm:$0xf]
        %v7035 = vld [vmem:[%s7033 + $0x4] sm:$0xf]
        %v7038 = vunpack.c.l.b16 %v7034
        %v7039 = vunpack.c.l.b16 %v7035
        %v7040 = vpack.c.b16 %v7039, %v7038
        %7041 = vrot.lane.b32.xlu0 %v6836, 125
        %v7042 = vpop.permute.xlu0 %7041
        %7043 = vrot.lane.b32.xlu0 %v6837, 125
        %v7044 = vpop.permute.xlu0 %7043
        %v7045 = vsel %vm1076, %v7042, %v7044
        %v7047 = vsel %vm6853, %v7040, 0
        %v7050 = vsel %vm6857, %v7045, 0
        %v7053 = vsel %vm6857, %v7044, 0
        %7055 = vmatprep.subr.bf16.mxu0 %v7053
        %7056 = vmatpush1.bf16.msra.mxu0 %v7050
        %7057 = vmatprep.subr.bf16.mxu0 0
        %7058 = vmatpush1.bf16.msra.mxu0 0
        %7059 = vmatprep.subr.bf16.mxu0 0
        %7060 = vmatpush1.bf16.msra.mxu0 0
        %7061 = vmatprep.subr.bf16.mxu0 0
        %7062 = vmatpush1.bf16.msra.mxu0 0
        %7063 = vmatprep.subr.bf16.mxu0 0
        %7064 = vmatpush1.bf16.msra.mxu0 0
        %7065 = vmatprep.subr.bf16.mxu0 0
        %7066 = vmatpush1.bf16.msra.mxu0 0
        %7067 = vmatprep.subr.bf16.mxu0 0
        %7068 = vmatpush1.bf16.msra.mxu0 0
        %7069 = vmatprep.subr.bf16.mxu0 0
        %7070 = vmatpush1.bf16.msra.mxu0 0
        %7071 = vmatprep.subr.bf16.mxu0 0
        %7072 = vmatpush1.bf16.msra.mxu0 0
        %7073 = vmatprep.subr.bf16.mxu0 0
        %7074 = vmatpush1.bf16.msra.mxu0 0
        %7075 = vmatprep.subr.bf16.mxu0 0
        %7076 = vmatpush1.bf16.msra.mxu0 0
        %7077 = vmatprep.subr.bf16.mxu0 0
        %7078 = vmatpush1.bf16.msra.mxu0 0
        %7079 = vmatprep.subr.bf16.mxu0 0
        %7080 = vmatpush1.bf16.msra.mxu0 0
        %7081 = vmatprep.subr.bf16.mxu0 0
        %7082 = vmatpush1.bf16.msra.mxu0 0
        %7083 = vmatprep.subr.bf16.mxu0 0
        %7084 = vmatpush1.bf16.msra.mxu0 0
        %7085 = vmatprep.subr.bf16.mxu0 0
        %7086 = vmatpush1.bf16.msra.mxu0 0
        %7087 = vmatprep.mubr.bf16.mxu0 0
        %7088 = vmatmul.mubr.bf16.gmra.mrb[0].mxu0 %v7047
        %v7089 = vpop.f32.mrb[0].mxu0
        %v7090 = vadd.f32 0.0, %v7089
        %v7091 = vpop.f32.mrb[0].mxu0
        %v7092 = vadd.f32 0.0, %v7091
        %v7093 = vpop.f32.mrb[0].mxu0
        %v7094 = vadd.f32 0.0, %v7093
        %v7095 = vpop.f32.mrb[0].mxu0
        %v7096 = vadd.f32 0.0, %v7095
        %7097 = vdwg.mxu0
        %v7098 = vadd.f32 %v7029, %v7090
        %v7099 = vadd.f32 %v7030, %v7092
        %v7100 = vadd.f32 %v7031, %v7094
        %v7101 = vadd.f32 %v7032, %v7096
        %s7102 = scalar_lea.vmem %s4, 32
        %v7103 = vld [vmem:[%s7102] sm:$0xf]
        %v7104 = vld [vmem:[%s7102 + $0x4] sm:$0xf]
        %v7107 = vunpack.c.l.b16 %v7103
        %v7108 = vunpack.c.l.b16 %v7104
        %v7109 = vpack.c.b16 %v7108, %v7107
        %7110 = vrot.lane.b32.xlu0 %v6836, 124
        %v7111 = vpop.permute.xlu0 %7110
        %7112 = vrot.lane.b32.xlu0 %v6837, 124
        %v7113 = vpop.permute.xlu0 %7112
        %v7114 = vsel %vm1293, %v7111, %v7113
        %v7116 = vsel %vm6853, %v7109, 0
        %v7119 = vsel %vm6857, %v7114, 0
        %v7122 = vsel %vm6857, %v7113, 0
        %7124 = vmatprep.subr.bf16.mxu0 %v7122
        %7125 = vmatpush1.bf16.msra.mxu0 %v7119
        %7126 = vmatprep.subr.bf16.mxu0 0
        %7127 = vmatpush1.bf16.msra.mxu0 0
        %7128 = vmatprep.subr.bf16.mxu0 0
        %7129 = vmatpush1.bf16.msra.mxu0 0
        %7130 = vmatprep.subr.bf16.mxu0 0
        %7131 = vmatpush1.bf16.msra.mxu0 0
        %7132 = vmatprep.subr.bf16.mxu0 0
        %7133 = vmatpush1.bf16.msra.mxu0 0
        %7134 = vmatprep.subr.bf16.mxu0 0
        %7135 = vmatpush1.bf16.msra.mxu0 0
        %7136 = vmatprep.subr.bf16.mxu0 0
        %7137 = vmatpush1.bf16.msra.mxu0 0
        %7138 = vmatprep.subr.bf16.mxu0 0
        %7139 = vmatpush1.bf16.msra.mxu0 0
        %7140 = vmatprep.subr.bf16.mxu0 0
        %7141 = vmatpush1.bf16.msra.mxu0 0
        %7142 = vmatprep.subr.bf16.mxu0 0
        %7143 = vmatpush1.bf16.msra.mxu0 0
        %7144 = vmatprep.subr.bf16.mxu0 0
        %7145 = vmatpush1.bf16.msra.mxu0 0
        %7146 = vmatprep.subr.bf16.mxu0 0
        %7147 = vmatpush1.bf16.msra.mxu0 0
        %7148 = vmatprep.subr.bf16.mxu0 0
        %7149 = vmatpush1.bf16.msra.mxu0 0
        %7150 = vmatprep.subr.bf16.mxu0 0
        %7151 = vmatpush1.bf16.msra.mxu0 0
        %7152 = vmatprep.subr.bf16.mxu0 0
        %7153 = vmatpush1.bf16.msra.mxu0 0
        %7154 = vmatprep.subr.bf16.mxu0 0
        %7155 = vmatpush1.bf16.msra.mxu0 0
        %7156 = vmatprep.mubr.bf16.mxu0 0
        %7157 = vmatmul.mubr.bf16.gmra.mrb[0].mxu0 %v7116
        %v7158 = vpop.f32.mrb[0].mxu0
        %v7159 = vadd.f32 0.0, %v7158
        %v7160 = vpop.f32.mrb[0].mxu0
        %v7161 = vadd.f32 0.0, %v7160
        %v7162 = vpop.f32.mrb[0].mxu0
        %v7163 = vadd.f32 0.0, %v7162
        %v7164 = vpop.f32.mrb[0].mxu0
        %v7165 = vadd.f32 0.0, %v7164
        %7166 = vdwg.mxu0
        %v7167 = vadd.f32 %v7098, %v7159
        %v7168 = vadd.f32 %v7099, %v7161
        %v7169 = vadd.f32 %v7100, %v7163
        %v7170 = vadd.f32 %v7101, %v7165
        %s7171 = scalar_lea.vmem %s4, 40
        %v7172 = vld [vmem:[%s7171] sm:$0xf]
        %v7173 = vld [vmem:[%s7171 + $0x4] sm:$0xf]
        %v7176 = vunpack.c.l.b16 %v7172
        %v7177 = vunpack.c.l.b16 %v7173
        %v7178 = vpack.c.b16 %v7177, %v7176
        %7179 = vrot.lane.b32.xlu0 %v6836, 112
        %v7180 = vpop.permute.xlu0 %7179
        %7181 = vrot.lane.b32.xlu0 %v6837, 112
        %v7182 = vpop.permute.xlu0 %7181
        %vm7183 = vcmask 916480
        %v7184 = vsel %vm7183, %v7180, %v7182
        %v7186 = vsel %vm6853, %v7178, 0
        %v7189 = vsel %vm6857, %v7184, 0
        %v7192 = vsel %vm6857, %v7182, 0
        %7194 = vmatprep.subr.bf16.mxu0 %v7192
        %7195 = vmatpush1.bf16.msra.mxu0 %v7189
        %7196 = vmatprep.subr.bf16.mxu0 0
        %7197 = vmatpush1.bf16.msra.mxu0 0
        %7198 = vmatprep.subr.bf16.mxu0 0
        %7199 = vmatpush1.bf16.msra.mxu0 0
        %7200 = vmatprep.subr.bf16.mxu0 0
        %7201 = vmatpush1.bf16.msra.mxu0 0
        %7202 = vmatprep.subr.bf16.mxu0 0
        %7203 = vmatpush1.bf16.msra.mxu0 0
        %7204 = vmatprep.subr.bf16.mxu0 0
        %7205 = vmatpush1.bf16.msra.mxu0 0
        %7206 = vmatprep.subr.bf16.mxu0 0
        %7207 = vmatpush1.bf16.msra.mxu0 0
        %7208 = vmatprep.subr.bf16.mxu0 0
        %7209 = vmatpush1.bf16.msra.mxu0 0
        %7210 = vmatprep.subr.bf16.mxu0 0
        %7211 = vmatpush1.bf16.msra.mxu0 0
        %7212 = vmatprep.subr.bf16.mxu0 0
        %7213 = vmatpush1.bf16.msra.mxu0 0
        %7214 = vmatprep.subr.bf16.mxu0 0
        %7215 = vmatpush1.bf16.msra.mxu0 0
        %7216 = vmatprep.subr.bf16.mxu0 0
        %7217 = vmatpush1.bf16.msra.mxu0 0
        %7218 = vmatprep.subr.bf16.mxu0 0
        %7219 = vmatpush1.bf16.msra.mxu0 0
        %7220 = vmatprep.subr.bf16.mxu0 0
        %7221 = vmatpush1.bf16.msra.mxu0 0
        %7222 = vmatprep.subr.bf16.mxu0 0
        %7223 = vmatpush1.bf16.msra.mxu0 0
        %7224 = vmatprep.subr.bf16.mxu0 0
        %7225 = vmatpush1.bf16.msra.mxu0 0
        %7226 = vmatprep.mubr.bf16.mxu0 0
        %7227 = vmatmul.mubr.bf16.gmra.mrb[0].mxu0 %v7186
        %v7228 = vpop.f32.mrb[0].mxu0
        %v7229 = vadd.f32 0.0, %v7228
        %v7230 = vpop.f32.mrb[0].mxu0
        %v7231 = vadd.f32 0.0, %v7230
        %v7232 = vpop.f32.mrb[0].mxu0
        %v7233 = vadd.f32 0.0, %v7232
        %v7234 = vpop.f32.mrb[0].mxu0
        %v7235 = vadd.f32 0.0, %v7234
        %7236 = vdwg.mxu0
        %v7237 = vadd.f32 %v7167, %v7229
        %v7238 = vadd.f32 %v7168, %v7231
        %v7239 = vadd.f32 %v7169, %v7233
        %v7240 = vadd.f32 %v7170, %v7235
        %s7241 = scalar_lea.vmem %s4, 48
        %v7242 = vld [vmem:[%s7241] sm:$0xf]
        %v7243 = vld [vmem:[%s7241 + $0x4] sm:$0xf]
        %v7246 = vunpack.c.l.b16 %v7242
        %v7247 = vunpack.c.l.b16 %v7243
        %v7248 = vpack.c.b16 %v7247, %v7246
        %7249 = vrot.lane.b32.xlu0 %v6836, 111
        %v7250 = vpop.permute.xlu0 %7249
        %7251 = vrot.lane.b32.xlu0 %v6837, 111
        %v7252 = vpop.permute.xlu0 %7251
        %vm7253 = vcmask 908288
        %v7254 = vsel %vm7253, %v7250, %v7252
        %v7256 = vsel %vm6853, %v7248, 0
        %v7259 = vsel %vm6857, %v7254, 0
        %v7262 = vsel %vm6857, %v7252, 0
        %7264 = vmatprep.subr.bf16.mxu0 %v7262
        %7265 = vmatpush1.bf16.msra.mxu0 %v7259
        %7266 = vmatprep.subr.bf16.mxu0 0
        %7267 = vmatpush1.bf16.msra.mxu0 0
        %7268 = vmatprep.subr.bf16.mxu0 0
        %7269 = vmatpush1.bf16.msra.mxu0 0
        %7270 = vmatprep.subr.bf16.mxu0 0
        %7271 = vmatpush1.bf16.msra.mxu0 0
        %7272 = vmatprep.subr.bf16.mxu0 0
        %7273 = vmatpush1.bf16.msra.mxu0 0
        %7274 = vmatprep.subr.bf16.mxu0 0
        %7275 = vmatpush1.bf16.msra.mxu0 0
        %7276 = vmatprep.subr.bf16.mxu0 0
        %7277 = vmatpush1.bf16.msra.mxu0 0
        %7278 = vmatprep.subr.bf16.mxu0 0
        %7279 = vmatpush1.bf16.msra.mxu0 0
        %7280 = vmatprep.subr.bf16.mxu0 0
        %7281 = vmatpush1.bf16.msra.mxu0 0
        %7282 = vmatprep.subr.bf16.mxu0 0
        %7283 = vmatpush1.bf16.msra.mxu0 0
        %7284 = vmatprep.subr.bf16.mxu0 0
        %7285 = vmatpush1.bf16.msra.mxu0 0
        %7286 = vmatprep.subr.bf16.mxu0 0
        %7287 = vmatpush1.bf16.msra.mxu0 0
        %7288 = vmatprep.subr.bf16.mxu0 0
        %7289 = vmatpush1.bf16.msra.mxu0 0
        %7290 = vmatprep.subr.bf16.mxu0 0
        %7291 = vmatpush1.bf16.msra.mxu0 0
        %7292 = vmatprep.subr.bf16.mxu0 0
        %7293 = vmatpush1.bf16.msra.mxu0 0
        %7294 = vmatprep.subr.bf16.mxu0 0
        %7295 = vmatpush1.bf16.msra.mxu0 0
        %7296 = vmatprep.mubr.bf16.mxu0 0
        %7297 = vmatmul.mubr.bf16.gmra.mrb[0].mxu0 %v7256
        %v7298 = vpop.f32.mrb[0].mxu0
        %v7299 = vadd.f32 0.0, %v7298
        %v7300 = vpop.f32.mrb[0].mxu0
        %v7301 = vadd.f32 0.0, %v7300
        %v7302 = vpop.f32.mrb[0].mxu0
        %v7303 = vadd.f32 0.0, %v7302
        %v7304 = vpop.f32.mrb[0].mxu0
        %v7305 = vadd.f32 0.0, %v7304
        %7306 = vdwg.mxu0
        %v7307 = vadd.f32 %v7237, %v7299
        %v7308 = vadd.f32 %v7238, %v7301
        %v7309 = vadd.f32 %v7239, %v7303
        %v7310 = vadd.f32 %v7240, %v7305
        %s7311 = scalar_lea.vmem %s4, 56
        %v7312 = vld [vmem:[%s7311] sm:$0xf]
        %v7313 = vld [vmem:[%s7311 + $0x4] sm:$0xf]
        %v7316 = vunpack.c.l.b16 %v7312
        %v7317 = vunpack.c.l.b16 %v7313
        %v7318 = vpack.c.b16 %v7317, %v7316
        %7319 = vrot.lane.b32.xlu0 %v6836, 110
        %v7320 = vpop.permute.xlu0 %7319
        %7321 = vrot.lane.b32.xlu0 %v6837, 110
        %v7322 = vpop.permute.xlu0 %7321
        %vm7323 = vcmask 900096
        %v7324 = vsel %vm7323, %v7320, %v7322
        %v7326 = vsel %vm6853, %v7318, 0
        %v7329 = vsel %vm6857, %v7324, 0
        %v7332 = vsel %vm6857, %v7322, 0
        %7334 = vmatprep.subr.bf16.mxu0 %v7332
        %7335 = vmatpush1.bf16.msra.mxu0 %v7329
        %7336 = vmatprep.subr.bf16.mxu0 0
        %7337 = vmatpush1.bf16.msra.mxu0 0
        %7338 = vmatprep.subr.bf16.mxu0 0
        %7339 = vmatpush1.bf16.msra.mxu0 0
        %7340 = vmatprep.subr.bf16.mxu0 0
        %7341 = vmatpush1.bf16.msra.mxu0 0
        %7342 = vmatprep.subr.bf16.mxu0 0
        %7343 = vmatpush1.bf16.msra.mxu0 0
        %7344 = vmatprep.subr.bf16.mxu0 0
        %7345 = vmatpush1.bf16.msra.mxu0 0
        %7346 = vmatprep.subr.bf16.mxu0 0
        %7347 = vmatpush1.bf16.msra.mxu0 0
        %7348 = vmatprep.subr.bf16.mxu0 0
        %7349 = vmatpush1.bf16.msra.mxu0 0
        %7350 = vmatprep.subr.bf16.mxu0 0
        %7351 = vmatpush1.bf16.msra.mxu0 0
        %7352 = vmatprep.subr.bf16.mxu0 0
        %7353 = vmatpush1.bf16.msra.mxu0 0
        %7354 = vmatprep.subr.bf16.mxu0 0
        %7355 = vmatpush1.bf16.msra.mxu0 0
        %7356 = vmatprep.subr.bf16.mxu0 0
        %7357 = vmatpush1.bf16.msra.mxu0 0
        %7358 = vmatprep.subr.bf16.mxu0 0
        %7359 = vmatpush1.bf16.msra.mxu0 0
        %7360 = vmatprep.subr.bf16.mxu0 0
        %7361 = vmatpush1.bf16.msra.mxu0 0
        %7362 = vmatprep.subr.bf16.mxu0 0
        %7363 = vmatpush1.bf16.msra.mxu0 0
        %7364 = vmatprep.subr.bf16.mxu0 0
        %7365 = vmatpush1.bf16.msra.mxu0 0
        %7366 = vmatprep.mubr.bf16.mxu0 0
        %7367 = vmatmul.mubr.bf16.gmra.mrb[0].mxu0 %v7326
        %v7368 = vpop.f32.mrb[0].mxu0
        %v7369 = vadd.f32 0.0, %v7368
        %v7370 = vpop.f32.mrb[0].mxu0
        %v7371 = vadd.f32 0.0, %v7370
        %v7372 = vpop.f32.mrb[0].mxu0
        %v7373 = vadd.f32 0.0, %v7372
        %v7374 = vpop.f32.mrb[0].mxu0
        %v7375 = vadd.f32 0.0, %v7374
        %7376 = vdwg.mxu0
        %v7377 = vadd.f32 %v7307, %v7369
        %v7378 = vadd.f32 %v7308, %v7371
        %v7379 = vadd.f32 %v7309, %v7373
        %v7380 = vadd.f32 %v7310, %v7375
        %s7381 = scalar_lea.vmem %s4, 64
        %v7382 = vld [vmem:[%s7381] sm:$0xf]
        %v7383 = vld [vmem:[%s7381 + $0x4] sm:$0xf]
        %v7386 = vunpack.c.l.b16 %v7382
        %v7387 = vunpack.c.l.b16 %v7383
        %v7388 = vpack.c.b16 %v7387, %v7386
        %7389 = vrot.lane.b32.xlu0 %v6836, 109
        %v7390 = vpop.permute.xlu0 %7389
        %7391 = vrot.lane.b32.xlu0 %v6837, 109
        %v7392 = vpop.permute.xlu0 %7391
        %vm7393 = vcmask 891904
        %v7394 = vsel %vm7393, %v7390, %v7392
        %v7396 = vsel %vm6853, %v7388, 0
        %v7399 = vsel %vm6857, %v7394, 0
        %v7402 = vsel %vm6857, %v7392, 0
        %7404 = vmatprep.subr.bf16.mxu0 %v7402
        %7405 = vmatpush1.bf16.msra.mxu0 %v7399
        %7406 = vmatprep.subr.bf16.mxu0 0
        %7407 = vmatpush1.bf16.msra.mxu0 0
        %7408 = vmatprep.subr.bf16.mxu0 0
        %7409 = vmatpush1.bf16.msra.mxu0 0
        %7410 = vmatprep.subr.bf16.mxu0 0
        %7411 = vmatpush1.bf16.msra.mxu0 0
        %7412 = vmatprep.subr.bf16.mxu0 0
        %7413 = vmatpush1.bf16.msra.mxu0 0
        %7414 = vmatprep.subr.bf16.mxu0 0
        %7415 = vmatpush1.bf16.msra.mxu0 0
        %7416 = vmatprep.subr.bf16.mxu0 0
        %7417 = vmatpush1.bf16.msra.mxu0 0
        %7418 = vmatprep.subr.bf16.mxu0 0
        %7419 = vmatpush1.bf16.msra.mxu0 0
        %7420 = vmatprep.subr.bf16.mxu0 0
        %7421 = vmatpush1.bf16.msra.mxu0 0
        %7422 = vmatprep.subr.bf16.mxu0 0
        %7423 = vmatpush1.bf16.msra.mxu0 0
        %7424 = vmatprep.subr.bf16.mxu0 0
        %7425 = vmatpush1.bf16.msra.mxu0 0
        %7426 = vmatprep.subr.bf16.mxu0 0
        %7427 = vmatpush1.bf16.msra.mxu0 0
        %7428 = vmatprep.subr.bf16.mxu0 0
        %7429 = vmatpush1.bf16.msra.mxu0 0
        %7430 = vmatprep.subr.bf16.mxu0 0
        %7431 = vmatpush1.bf16.msra.mxu0 0
        %7432 = vmatprep.subr.bf16.mxu0 0
        %7433 = vmatpush1.bf16.msra.mxu0 0
        %7434 = vmatprep.subr.bf16.mxu0 0
        %7435 = vmatpush1.bf16.msra.mxu0 0
        %7436 = vmatprep.mubr.bf16.mxu0 0
        %7437 = vmatmul.mubr.bf16.gmra.mrb[0].mxu0 %v7396
        %v7438 = vpop.f32.mrb[0].mxu0
        %v7439 = vadd.f32 0.0, %v7438
        %v7440 = vpop.f32.mrb[0].mxu0
        %v7441 = vadd.f32 0.0, %v7440
        %v7442 = vpop.f32.mrb[0].mxu0
        %v7443 = vadd.f32 0.0, %v7442
        %v7444 = vpop.f32.mrb[0].mxu0
        %v7445 = vadd.f32 0.0, %v7444
        %7446 = vdwg.mxu0
        %v7447 = vadd.f32 %v7377, %v7439
        %v7448 = vadd.f32 %v7378, %v7441
        %v7449 = vadd.f32 %v7379, %v7443
        %v7450 = vadd.f32 %v7380, %v7445
        %s7451 = scalar_lea.vmem %s4, 72
        %v7452 = vld [vmem:[%s7451] sm:$0xf]
        %v7453 = vld [vmem:[%s7451 + $0x4] sm:$0xf]
        %v7456 = vunpack.c.l.b16 %v7452
        %v7457 = vunpack.c.l.b16 %v7453
        %v7458 = vpack.c.b16 %v7457, %v7456
        %7459 = vrot.lane.b32.xlu0 %v6836, 108
        %v7460 = vpop.permute.xlu0 %7459
        %7461 = vrot.lane.b32.xlu0 %v6837, 108
        %v7462 = vpop.permute.xlu0 %7461
        %vm7463 = vcmask 883712
        %v7464 = vsel %vm7463, %v7460, %v7462
        %v7466 = vsel %vm6853, %v7458, 0
        %v7469 = vsel %vm6857, %v7464, 0
        %v7472 = vsel %vm6857, %v7462, 0
        %7474 = vmatprep.subr.bf16.mxu0 %v7472
        %7475 = vmatpush1.bf16.msra.mxu0 %v7469
        %7476 = vmatprep.subr.bf16.mxu0 0
        %7477 = vmatpush1.bf16.msra.mxu0 0
        %7478 = vmatprep.subr.bf16.mxu0 0
        %7479 = vmatpush1.bf16.msra.mxu0 0
        %7480 = vmatprep.subr.bf16.mxu0 0
        %7481 = vmatpush1.bf16.msra.mxu0 0
        %7482 = vmatprep.subr.bf16.mxu0 0
        %7483 = vmatpush1.bf16.msra.mxu0 0
        %7484 = vmatprep.subr.bf16.mxu0 0
        %7485 = vmatpush1.bf16.msra.mxu0 0
        %7486 = vmatprep.subr.bf16.mxu0 0
        %7487 = vmatpush1.bf16.msra.mxu0 0
        %7488 = vmatprep.subr.bf16.mxu0 0
        %7489 = vmatpush1.bf16.msra.mxu0 0
        %7490 = vmatprep.subr.bf16.mxu0 0
        %7491 = vmatpush1.bf16.msra.mxu0 0
        %7492 = vmatprep.subr.bf16.mxu0 0
        %7493 = vmatpush1.bf16.msra.mxu0 0
        %7494 = vmatprep.subr.bf16.mxu0 0
        %7495 = vmatpush1.bf16.msra.mxu0 0
        %7496 = vmatprep.subr.bf16.mxu0 0
        %7497 = vmatpush1.bf16.msra.mxu0 0
        %7498 = vmatprep.subr.bf16.mxu0 0
        %7499 = vmatpush1.bf16.msra.mxu0 0
        %7500 = vmatprep.subr.bf16.mxu0 0
        %7501 = vmatpush1.bf16.msra.mxu0 0
        %7502 = vmatprep.subr.bf16.mxu0 0
        %7503 = vmatpush1.bf16.msra.mxu0 0
        %7504 = vmatprep.subr.bf16.mxu0 0
        %7505 = vmatpush1.bf16.msra.mxu0 0
        %7506 = vmatprep.mubr.bf16.mxu0 0
        %7507 = vmatmul.mubr.bf16.gmra.mrb[0].mxu0 %v7466
        %v7508 = vpop.f32.mrb[0].mxu0
        %v7509 = vadd.f32 0.0, %v7508
        %v7510 = vpop.f32.mrb[0].mxu0
        %v7511 = vadd.f32 0.0, %v7510
        %v7512 = vpop.f32.mrb[0].mxu0
        %v7513 = vadd.f32 0.0, %v7512
        %v7514 = vpop.f32.mrb[0].mxu0
        %v7515 = vadd.f32 0.0, %v7514
        %7516 = vdwg.mxu0
        %v7517 = vadd.f32 %v7447, %v7509
        %v7518 = vadd.f32 %v7448, %v7511
        %v7519 = vadd.f32 %v7449, %v7513
        %v7520 = vadd.f32 %v7450, %v7515
        %s7521 = scalar_lea.vmem %s4, 80
        %v7522 = vld [vmem:[%s7521] sm:$0xf]
        %v7523 = vld [vmem:[%s7521 + $0x4] sm:$0xf]
        %v7526 = vunpack.c.l.b16 %v7522
        %v7527 = vunpack.c.l.b16 %v7523
        %v7528 = vpack.c.b16 %v7527, %v7526
        %7529 = vrot.lane.b32.xlu0 %v6836, 96
        %v7530 = vpop.permute.xlu0 %7529
        %7531 = vrot.lane.b32.xlu0 %v6837, 96
        %v7532 = vpop.permute.xlu0 %7531
        %v7533 = vsel %vm1516, %v7530, %v7532
        %v7535 = vsel %vm6853, %v7528, 0
        %v7538 = vsel %vm6857, %v7533, 0
        %v7541 = vsel %vm6857, %v7532, 0
        %7543 = vmatprep.subr.bf16.mxu0 %v7541
        %7544 = vmatpush1.bf16.msra.mxu0 %v7538
        %7545 = vmatprep.subr.bf16.mxu0 0
        %7546 = vmatpush1.bf16.msra.mxu0 0
        %7547 = vmatprep.subr.bf16.mxu0 0
        %7548 = vmatpush1.bf16.msra.mxu0 0
        %7549 = vmatprep.subr.bf16.mxu0 0
        %7550 = vmatpush1.bf16.msra.mxu0 0
        %7551 = vmatprep.subr.bf16.mxu0 0
        %7552 = vmatpush1.bf16.msra.mxu0 0
        %7553 = vmatprep.subr.bf16.mxu0 0
        %7554 = vmatpush1.bf16.msra.mxu0 0
        %7555 = vmatprep.subr.bf16.mxu0 0
        %7556 = vmatpush1.bf16.msra.mxu0 0
        %7557 = vmatprep.subr.bf16.mxu0 0
        %7558 = vmatpush1.bf16.msra.mxu0 0
        %7559 = vmatprep.subr.bf16.mxu0 0
        %7560 = vmatpush1.bf16.msra.mxu0 0
        %7561 = vmatprep.subr.bf16.mxu0 0
        %7562 = vmatpush1.bf16.msra.mxu0 0
        %7563 = vmatprep.subr.bf16.mxu0 0
        %7564 = vmatpush1.bf16.msra.mxu0 0
        %7565 = vmatprep.subr.bf16.mxu0 0
        %7566 = vmatpush1.bf16.msra.mxu0 0
        %7567 = vmatprep.subr.bf16.mxu0 0
        %7568 = vmatpush1.bf16.msra.mxu0 0
        %7569 = vmatprep.subr.bf16.mxu0 0
        %7570 = vmatpush1.bf16.msra.mxu0 0
        %7571 = vmatprep.subr.bf16.mxu0 0
        %7572 = vmatpush1.bf16.msra.mxu0 0
        %7573 = vmatprep.subr.bf16.mxu0 0
        %7574 = vmatpush1.bf16.msra.mxu0 0
        %7575 = vmatprep.mubr.bf16.mxu0 0
        %7576 = vmatmul.mubr.bf16.gmra.mrb[0].mxu0 %v7535
        %v7577 = vpop.f32.mrb[0].mxu0
        %v7578 = vadd.f32 0.0, %v7577
        %v7579 = vpop.f32.mrb[0].mxu0
        %v7580 = vadd.f32 0.0, %v7579
        %v7581 = vpop.f32.mrb[0].mxu0
        %v7582 = vadd.f32 0.0, %v7581
        %v7583 = vpop.f32.mrb[0].mxu0
        %v7584 = vadd.f32 0.0, %v7583
        %7585 = vdwg.mxu0
        %v7586 = vadd.f32 %v7517, %v7578
        %v7587 = vadd.f32 %v7518, %v7580
        %v7588 = vadd.f32 %v7519, %v7582
        %v7589 = vadd.f32 %v7520, %v7584
        %s7590 = scalar_lea.vmem %s4, 88
        %v7591 = vld [vmem:[%s7590] sm:$0xf]
        %v7592 = vld [vmem:[%s7590 + $0x4] sm:$0xf]
        %v7595 = vunpack.c.l.b16 %v7591
        %v7596 = vunpack.c.l.b16 %v7592
        %v7597 = vpack.c.b16 %v7596, %v7595
        %7598 = vrot.lane.b32.xlu0 %v6836, 95
        %v7599 = vpop.permute.xlu0 %7598
        %7600 = vrot.lane.b32.xlu0 %v6837, 95
        %v7601 = vpop.permute.xlu0 %7600
        %v7602 = vsel %vm1736, %v7599, %v7601
        %v7604 = vsel %vm6853, %v7597, 0
        %v7607 = vsel %vm6857, %v7602, 0
        %v7610 = vsel %vm6857, %v7601, 0
        %7612 = vmatprep.subr.bf16.mxu0 %v7610
        %7613 = vmatpush1.bf16.msra.mxu0 %v7607
        %7614 = vmatprep.subr.bf16.mxu0 0
        %7615 = vmatpush1.bf16.msra.mxu0 0
        %7616 = vmatprep.subr.bf16.mxu0 0
        %7617 = vmatpush1.bf16.msra.mxu0 0
        %7618 = vmatprep.subr.bf16.mxu0 0
        %7619 = vmatpush1.bf16.msra.mxu0 0
        %7620 = vmatprep.subr.bf16.mxu0 0
        %7621 = vmatpush1.bf16.msra.mxu0 0
        %7622 = vmatprep.subr.bf16.mxu0 0
        %7623 = vmatpush1.bf16.msra.mxu0 0
        %7624 = vmatprep.subr.bf16.mxu0 0
        %7625 = vmatpush1.bf16.msra.mxu0 0
        %7626 = vmatprep.subr.bf16.mxu0 0
        %7627 = vmatpush1.bf16.msra.mxu0 0
        %7628 = vmatprep.subr.bf16.mxu0 0
        %7629 = vmatpush1.bf16.msra.mxu0 0
        %7630 = vmatprep.subr.bf16.mxu0 0
        %7631 = vmatpush1.bf16.msra.mxu0 0
        %7632 = vmatprep.subr.bf16.mxu0 0
        %7633 = vmatpush1.bf16.msra.mxu0 0
        %7634 = vmatprep.subr.bf16.mxu0 0
        %7635 = vmatpush1.bf16.msra.mxu0 0
        %7636 = vmatprep.subr.bf16.mxu0 0
        %7637 = vmatpush1.bf16.msra.mxu0 0
        %7638 = vmatprep.subr.bf16.mxu0 0
        %7639 = vmatpush1.bf16.msra.mxu0 0
        %7640 = vmatprep.subr.bf16.mxu0 0
        %7641 = vmatpush1.bf16.msra.mxu0 0
        %7642 = vmatprep.subr.bf16.mxu0 0
        %7643 = vmatpush1.bf16.msra.mxu0 0
        %7644 = vmatprep.mubr.bf16.mxu0 0
        %7645 = vmatmul.mubr.bf16.gmra.mrb[0].mxu0 %v7604
        %v7646 = vpop.f32.mrb[0].mxu0
        %v7647 = vadd.f32 0.0, %v7646
        %v7648 = vpop.f32.mrb[0].mxu0
        %v7649 = vadd.f32 0.0, %v7648
        %v7650 = vpop.f32.mrb[0].mxu0
        %v7651 = vadd.f32 0.0, %v7650
        %v7652 = vpop.f32.mrb[0].mxu0
        %v7653 = vadd.f32 0.0, %v7652
        %7654 = vdwg.mxu0
        %v7655 = vadd.f32 %v7586, %v7647
        %v7656 = vadd.f32 %v7587, %v7649
        %v7657 = vadd.f32 %v7588, %v7651
        %v7658 = vadd.f32 %v7589, %v7653
        %s7659 = scalar_lea.vmem %s4, 96
        %v7660 = vld [vmem:[%s7659] sm:$0xf]
        %v7661 = vld [vmem:[%s7659 + $0x4] sm:$0xf]
        %v7664 = vunpack.c.l.b16 %v7660
        %v7665 = vunpack.c.l.b16 %v7661
        %v7666 = vpack.c.b16 %v7665, %v7664
        %7667 = vrot.lane.b32.xlu0 %v6836, 94
        %v7668 = vpop.permute.xlu0 %7667
        %7669 = vrot.lane.b32.xlu0 %v6837, 94
        %v7670 = vpop.permute.xlu0 %7669
        %v7671 = vsel %vm1956, %v7668, %v7670
        %v7673 = vsel %vm6853, %v7666, 0
        %v7676 = vsel %vm6857, %v7671, 0
        %v7679 = vsel %vm6857, %v7670, 0
        %7681 = vmatprep.subr.bf16.mxu0 %v7679
        %7682 = vmatpush1.bf16.msra.mxu0 %v7676
        %7683 = vmatprep.subr.bf16.mxu0 0
        %7684 = vmatpush1.bf16.msra.mxu0 0
        %7685 = vmatprep.subr.bf16.mxu0 0
        %7686 = vmatpush1.bf16.msra.mxu0 0
        %7687 = vmatprep.subr.bf16.mxu0 0
        %7688 = vmatpush1.bf16.msra.mxu0 0
        %7689 = vmatprep.subr.bf16.mxu0 0
        %7690 = vmatpush1.bf16.msra.mxu0 0
        %7691 = vmatprep.subr.bf16.mxu0 0
        %7692 = vmatpush1.bf16.msra.mxu0 0
        %7693 = vmatprep.subr.bf16.mxu0 0
        %7694 = vmatpush1.bf16.msra.mxu0 0
        %7695 = vmatprep.subr.bf16.mxu0 0
        %7696 = vmatpush1.bf16.msra.mxu0 0
        %7697 = vmatprep.subr.bf16.mxu0 0
        %7698 = vmatpush1.bf16.msra.mxu0 0
        %7699 = vmatprep.subr.bf16.mxu0 0
        %7700 = vmatpush1.bf16.msra.mxu0 0
        %7701 = vmatprep.subr.bf16.mxu0 0
        %7702 = vmatpush1.bf16.msra.mxu0 0
        %7703 = vmatprep.subr.bf16.mxu0 0
        %7704 = vmatpush1.bf16.msra.mxu0 0
        %7705 = vmatprep.subr.bf16.mxu0 0
        %7706 = vmatpush1.bf16.msra.mxu0 0
        %7707 = vmatprep.subr.bf16.mxu0 0
        %7708 = vmatpush1.bf16.msra.mxu0 0
        %7709 = vmatprep.subr.bf16.mxu0 0
        %7710 = vmatpush1.bf16.msra.mxu0 0
        %7711 = vmatprep.subr.bf16.mxu0 0
        %7712 = vmatpush1.bf16.msra.mxu0 0
        %7713 = vmatprep.mubr.bf16.mxu0 0
        %7714 = vmatmul.mubr.bf16.gmra.mrb[0].mxu0 %v7673
        %v7715 = vpop.f32.mrb[0].mxu0
        %v7716 = vadd.f32 0.0, %v7715
        %v7717 = vpop.f32.mrb[0].mxu0
        %v7718 = vadd.f32 0.0, %v7717
        %v7719 = vpop.f32.mrb[0].mxu0
        %v7720 = vadd.f32 0.0, %v7719
        %v7721 = vpop.f32.mrb[0].mxu0
        %v7722 = vadd.f32 0.0, %v7721
        %7723 = vdwg.mxu0
        %v7724 = vadd.f32 %v7655, %v7716
        %v7725 = vadd.f32 %v7656, %v7718
        %v7726 = vadd.f32 %v7657, %v7720
        %v7727 = vadd.f32 %v7658, %v7722
        %s7728 = scalar_lea.vmem %s4, 104
        %v7729 = vld [vmem:[%s7728] sm:$0xf]
        %v7730 = vld [vmem:[%s7728 + $0x4] sm:$0xf]
        %v7733 = vunpack.c.l.b16 %v7729
        %v7734 = vunpack.c.l.b16 %v7730
        %v7735 = vpack.c.b16 %v7734, %v7733
        %7736 = vrot.lane.b32.xlu0 %v6836, 93
        %v7737 = vpop.permute.xlu0 %7736
        %7738 = vrot.lane.b32.xlu0 %v6837, 93
        %v7739 = vpop.permute.xlu0 %7738
        %v7740 = vsel %vm2176, %v7737, %v7739
        %v7742 = vsel %vm6853, %v7735, 0
        %v7745 = vsel %vm6857, %v7740, 0
        %v7748 = vsel %vm6857, %v7739, 0
        %7750 = vmatprep.subr.bf16.mxu0 %v7748
        %7751 = vmatpush1.bf16.msra.mxu0 %v7745
        %7752 = vmatprep.subr.bf16.mxu0 0
        %7753 = vmatpush1.bf16.msra.mxu0 0
        %7754 = vmatprep.subr.bf16.mxu0 0
        %7755 = vmatpush1.bf16.msra.mxu0 0
        %7756 = vmatprep.subr.bf16.mxu0 0
        %7757 = vmatpush1.bf16.msra.mxu0 0
        %7758 = vmatprep.subr.bf16.mxu0 0
        %7759 = vmatpush1.bf16.msra.mxu0 0
        %7760 = vmatprep.subr.bf16.mxu0 0
        %7761 = vmatpush1.bf16.msra.mxu0 0
        %7762 = vmatprep.subr.bf16.mxu0 0
        %7763 = vmatpush1.bf16.msra.mxu0 0
        %7764 = vmatprep.subr.bf16.mxu0 0
        %7765 = vmatpush1.bf16.msra.mxu0 0
        %7766 = vmatprep.subr.bf16.mxu0 0
        %7767 = vmatpush1.bf16.msra.mxu0 0
        %7768 = vmatprep.subr.bf16.mxu0 0
        %7769 = vmatpush1.bf16.msra.mxu0 0
        %7770 = vmatprep.subr.bf16.mxu0 0
        %7771 = vmatpush1.bf16.msra.mxu0 0
        %7772 = vmatprep.subr.bf16.mxu0 0
        %7773 = vmatpush1.bf16.msra.mxu0 0
        %7774 = vmatprep.subr.bf16.mxu0 0
        %7775 = vmatpush1.bf16.msra.mxu0 0
        %7776 = vmatprep.subr.bf16.mxu0 0
        %7777 = vmatpush1.bf16.msra.mxu0 0
        %7778 = vmatprep.subr.bf16.mxu0 0
        %7779 = vmatpush1.bf16.msra.mxu0 0
        %7780 = vmatprep.subr.bf16.mxu0 0
        %7781 = vmatpush1.bf16.msra.mxu0 0
        %7782 = vmatprep.mubr.bf16.mxu0 0
        %7783 = vmatmul.mubr.bf16.gmra.mrb[0].mxu0 %v7742
        %v7784 = vpop.f32.mrb[0].mxu0
        %v7785 = vadd.f32 0.0, %v7784
        %v7786 = vpop.f32.mrb[0].mxu0
        %v7787 = vadd.f32 0.0, %v7786
        %v7788 = vpop.f32.mrb[0].mxu0
        %v7789 = vadd.f32 0.0, %v7788
        %v7790 = vpop.f32.mrb[0].mxu0
        %v7791 = vadd.f32 0.0, %v7790
        %7792 = vdwg.mxu0
        %v7793 = vadd.f32 %v7724, %v7785
        %v7794 = vadd.f32 %v7725, %v7787
        %v7795 = vadd.f32 %v7726, %v7789
        %v7796 = vadd.f32 %v7727, %v7791
        %s7797 = scalar_lea.vmem %s4, 112
        %v7798 = vld [vmem:[%s7797] sm:$0xf]
        %v7799 = vld [vmem:[%s7797 + $0x4] sm:$0xf]
        %v7802 = vunpack.c.l.b16 %v7798
        %v7803 = vunpack.c.l.b16 %v7799
        %v7804 = vpack.c.b16 %v7803, %v7802
        %7805 = vrot.lane.b32.xlu0 %v6836, 92
        %v7806 = vpop.permute.xlu0 %7805
        %7807 = vrot.lane.b32.xlu0 %v6837, 92
        %v7808 = vpop.permute.xlu0 %7807
        %v7809 = vsel %vm2396, %v7806, %v7808
        %v7811 = vsel %vm6853, %v7804, 0
        %v7814 = vsel %vm6857, %v7809, 0
        %v7817 = vsel %vm6857, %v7808, 0
        %7819 = vmatprep.subr.bf16.mxu0 %v7817
        %7820 = vmatpush1.bf16.msra.mxu0 %v7814
        %7821 = vmatprep.subr.bf16.mxu0 0
        %7822 = vmatpush1.bf16.msra.mxu0 0
        %7823 = vmatprep.subr.bf16.mxu0 0
        %7824 = vmatpush1.bf16.msra.mxu0 0
        %7825 = vmatprep.subr.bf16.mxu0 0
        %7826 = vmatpush1.bf16.msra.mxu0 0
        %7827 = vmatprep.subr.bf16.mxu0 0
        %7828 = vmatpush1.bf16.msra.mxu0 0
        %7829 = vmatprep.subr.bf16.mxu0 0
        %7830 = vmatpush1.bf16.msra.mxu0 0
        %7831 = vmatprep.subr.bf16.mxu0 0
        %7832 = vmatpush1.bf16.msra.mxu0 0
        %7833 = vmatprep.subr.bf16.mxu0 0
        %7834 = vmatpush1.bf16.msra.mxu0 0
        %7835 = vmatprep.subr.bf16.mxu0 0
        %7836 = vmatpush1.bf16.msra.mxu0 0
        %7837 = vmatprep.subr.bf16.mxu0 0
        %7838 = vmatpush1.bf16.msra.mxu0 0
        %7839 = vmatprep.subr.bf16.mxu0 0
        %7840 = vmatpush1.bf16.msra.mxu0 0
        %7841 = vmatprep.subr.bf16.mxu0 0
        %7842 = vmatpush1.bf16.msra.mxu0 0
        %7843 = vmatprep.subr.bf16.mxu0 0
        %7844 = vmatpush1.bf16.msra.mxu0 0
        %7845 = vmatprep.subr.bf16.mxu0 0
        %7846 = vmatpush1.bf16.msra.mxu0 0
        %7847 = vmatprep.subr.bf16.mxu0 0
        %7848 = vmatpush1.bf16.msra.mxu0 0
        %7849 = vmatprep.subr.bf16.mxu0 0
        %7850 = vmatpush1.bf16.msra.mxu0 0
        %7851 = vmatprep.mubr.bf16.mxu0 0
        %7852 = vmatmul.mubr.bf16.gmra.mrb[0].mxu0 %v7811
        %v7853 = vpop.f32.mrb[0].mxu0
        %v7854 = vadd.f32 0.0, %v7853
        %v7855 = vpop.f32.mrb[0].mxu0
        %v7856 = vadd.f32 0.0, %v7855
        %v7857 = vpop.f32.mrb[0].mxu0
        %v7858 = vadd.f32 0.0, %v7857
        %v7859 = vpop.f32.mrb[0].mxu0
        %v7860 = vadd.f32 0.0, %v7859
        %7861 = vdwg.mxu0
        %v7862 = vadd.f32 %v7793, %v7854
        %v7863 = vadd.f32 %v7794, %v7856
        %v7864 = vadd.f32 %v7795, %v7858
        %v7865 = vadd.f32 %v7796, %v7860
        %s7866 = scalar_lea.vmem %s4, 120
        %v7867 = vld [vmem:[%s7866] sm:$0xf]
        %v7868 = vld [vmem:[%s7866 + $0x4] sm:$0xf]
        %v7871 = vunpack.c.l.b16 %v7867
        %v7872 = vunpack.c.l.b16 %v7868
        %v7873 = vpack.c.b16 %v7872, %v7871
        %7874 = vrot.lane.b32.xlu0 %v6836, 80
        %v7875 = vpop.permute.xlu0 %7874
        %7876 = vrot.lane.b32.xlu0 %v6837, 80
        %v7877 = vpop.permute.xlu0 %7876
        %vm7878 = vcmask 654336
        %v7879 = vsel %vm7878, %v7875, %v7877
        %v7881 = vsel %vm6853, %v7873, 0
        %v7884 = vsel %vm6857, %v7879, 0
        %v7887 = vsel %vm6857, %v7877, 0
        %7889 = vmatprep.subr.bf16.mxu0 %v7887
        %7890 = vmatpush1.bf16.msra.mxu0 %v7884
        %7891 = vmatprep.subr.bf16.mxu0 0
        %7892 = vmatpush1.bf16.msra.mxu0 0
        %7893 = vmatprep.subr.bf16.mxu0 0
        %7894 = vmatpush1.bf16.msra.mxu0 0
        %7895 = vmatprep.subr.bf16.mxu0 0
        %7896 = vmatpush1.bf16.msra.mxu0 0
        %7897 = vmatprep.subr.bf16.mxu0 0
        %7898 = vmatpush1.bf16.msra.mxu0 0
        %7899 = vmatprep.subr.bf16.mxu0 0
        %7900 = vmatpush1.bf16.msra.mxu0 0
        %7901 = vmatprep.subr.bf16.mxu0 0
        %7902 = vmatpush1.bf16.msra.mxu0 0
        %7903 = vmatprep.subr.bf16.mxu0 0
        %7904 = vmatpush1.bf16.msra.mxu0 0
        %7905 = vmatprep.subr.bf16.mxu0 0
        %7906 = vmatpush1.bf16.msra.mxu0 0
        %7907 = vmatprep.subr.bf16.mxu0 0
        %7908 = vmatpush1.bf16.msra.mxu0 0
        %7909 = vmatprep.subr.bf16.mxu0 0
        %7910 = vmatpush1.bf16.msra.mxu0 0
        %7911 = vmatprep.subr.bf16.mxu0 0
        %7912 = vmatpush1.bf16.msra.mxu0 0
        %7913 = vmatprep.subr.bf16.mxu0 0
        %7914 = vmatpush1.bf16.msra.mxu0 0
        %7915 = vmatprep.subr.bf16.mxu0 0
        %7916 = vmatpush1.bf16.msra.mxu0 0
        %7917 = vmatprep.subr.bf16.mxu0 0
        %7918 = vmatpush1.bf16.msra.mxu0 0
        %7919 = vmatprep.subr.bf16.mxu0 0
        %7920 = vmatpush1.bf16.msra.mxu0 0
        %7921 = vmatprep.mubr.bf16.mxu0 0
        %7922 = vmatmul.mubr.bf16.gmra.mrb[0].mxu0 %v7881
        %v7923 = vpop.f32.mrb[0].mxu0
        %v7924 = vadd.f32 0.0, %v7923
        %v7925 = vpop.f32.mrb[0].mxu0
        %v7926 = vadd.f32 0.0, %v7925
        %v7927 = vpop.f32.mrb[0].mxu0
        %v7928 = vadd.f32 0.0, %v7927
        %v7929 = vpop.f32.mrb[0].mxu0
        %v7930 = vadd.f32 0.0, %v7929
        %7931 = vdwg.mxu0
        %v7932 = vadd.f32 %v7862, %v7924
        %v7933 = vadd.f32 %v7863, %v7926
        %v7934 = vadd.f32 %v7864, %v7928
        %v7935 = vadd.f32 %v7865, %v7930
        %s7936 = scalar_lea.vmem %s4, 128
        %v7937 = vld [vmem:[%s7936] sm:$0xf]
        %v7938 = vld [vmem:[%s7936 + $0x4] sm:$0xf]
        %v7941 = vunpack.c.l.b16 %v7937
        %v7942 = vunpack.c.l.b16 %v7938
        %v7943 = vpack.c.b16 %v7942, %v7941
        %7944 = vrot.lane.b32.xlu0 %v6836, 79
        %v7945 = vpop.permute.xlu0 %7944
        %7946 = vrot.lane.b32.xlu0 %v6837, 79
        %v7947 = vpop.permute.xlu0 %7946
        %vm7948 = vcmask 646144
        %v7949 = vsel %vm7948, %v7945, %v7947
        %v7951 = vsel %vm6853, %v7943, 0
        %v7954 = vsel %vm6857, %v7949, 0
        %v7957 = vsel %vm6857, %v7947, 0
        %7959 = vmatprep.subr.bf16.mxu0 %v7957
        %7960 = vmatpush1.bf16.msra.mxu0 %v7954
        %7961 = vmatprep.subr.bf16.mxu0 0
        %7962 = vmatpush1.bf16.msra.mxu0 0
        %7963 = vmatprep.subr.bf16.mxu0 0
        %7964 = vmatpush1.bf16.msra.mxu0 0
        %7965 = vmatprep.subr.bf16.mxu0 0
        %7966 = vmatpush1.bf16.msra.mxu0 0
        %7967 = vmatprep.subr.bf16.mxu0 0
        %7968 = vmatpush1.bf16.msra.mxu0 0
        %7969 = vmatprep.subr.bf16.mxu0 0
        %7970 = vmatpush1.bf16.msra.mxu0 0
        %7971 = vmatprep.subr.bf16.mxu0 0
        %7972 = vmatpush1.bf16.msra.mxu0 0
        %7973 = vmatprep.subr.bf16.mxu0 0
        %7974 = vmatpush1.bf16.msra.mxu0 0
        %7975 = vmatprep.subr.bf16.mxu0 0
        %7976 = vmatpush1.bf16.msra.mxu0 0
        %7977 = vmatprep.subr.bf16.mxu0 0
        %7978 = vmatpush1.bf16.msra.mxu0 0
        %7979 = vmatprep.subr.bf16.mxu0 0
        %7980 = vmatpush1.bf16.msra.mxu0 0
        %7981 = vmatprep.subr.bf16.mxu0 0
        %7982 = vmatpush1.bf16.msra.mxu0 0
        %7983 = vmatprep.subr.bf16.mxu0 0
        %7984 = vmatpush1.bf16.msra.mxu0 0
        %7985 = vmatprep.subr.bf16.mxu0 0
        %7986 = vmatpush1.bf16.msra.mxu0 0
        %7987 = vmatprep.subr.bf16.mxu0 0
        %7988 = vmatpush1.bf16.msra.mxu0 0
        %7989 = vmatprep.subr.bf16.mxu0 0
        %7990 = vmatpush1.bf16.msra.mxu0 0
        %7991 = vmatprep.mubr.bf16.mxu0 0
        %7992 = vmatmul.mubr.bf16.gmra.mrb[0].mxu0 %v7951
        %v7993 = vpop.f32.mrb[0].mxu0
        %v7994 = vadd.f32 0.0, %v7993
        %v7995 = vpop.f32.mrb[0].mxu0
        %v7996 = vadd.f32 0.0, %v7995
        %v7997 = vpop.f32.mrb[0].mxu0
        %v7998 = vadd.f32 0.0, %v7997
        %v7999 = vpop.f32.mrb[0].mxu0
        %v8000 = vadd.f32 0.0, %v7999
        %8001 = vdwg.mxu0
        %v8002 = vadd.f32 %v7932, %v7994
        %v8003 = vadd.f32 %v7933, %v7996
        %v8004 = vadd.f32 %v7934, %v7998
        %v8005 = vadd.f32 %v7935, %v8000
        %s8006 = scalar_lea.vmem %s4, 136
        %v8007 = vld [vmem:[%s8006] sm:$0xf]
        %v8008 = vld [vmem:[%s8006 + $0x4] sm:$0xf]
        %v8011 = vunpack.c.l.b16 %v8007
        %v8012 = vunpack.c.l.b16 %v8008
        %v8013 = vpack.c.b16 %v8012, %v8011
        %8014 = vrot.lane.b32.xlu0 %v6836, 78
        %v8015 = vpop.permute.xlu0 %8014
        %8016 = vrot.lane.b32.xlu0 %v6837, 78
        %v8017 = vpop.permute.xlu0 %8016
        %vm8018 = vcmask 637952
        %v8019 = vsel %vm8018, %v8015, %v8017
        %v8021 = vsel %vm6853, %v8013, 0
        %v8024 = vsel %vm6857, %v8019, 0
        %v8027 = vsel %vm6857, %v8017, 0
        %8029 = vmatprep.subr.bf16.mxu0 %v8027
        %8030 = vmatpush1.bf16.msra.mxu0 %v8024
        %8031 = vmatprep.subr.bf16.mxu0 0
        %8032 = vmatpush1.bf16.msra.mxu0 0
        %8033 = vmatprep.subr.bf16.mxu0 0
        %8034 = vmatpush1.bf16.msra.mxu0 0
        %8035 = vmatprep.subr.bf16.mxu0 0
        %8036 = vmatpush1.bf16.msra.mxu0 0
        %8037 = vmatprep.subr.bf16.mxu0 0
        %8038 = vmatpush1.bf16.msra.mxu0 0
        %8039 = vmatprep.subr.bf16.mxu0 0
        %8040 = vmatpush1.bf16.msra.mxu0 0
        %8041 = vmatprep.subr.bf16.mxu0 0
        %8042 = vmatpush1.bf16.msra.mxu0 0
        %8043 = vmatprep.subr.bf16.mxu0 0
        %8044 = vmatpush1.bf16.msra.mxu0 0
        %8045 = vmatprep.subr.bf16.mxu0 0
        %8046 = vmatpush1.bf16.msra.mxu0 0
        %8047 = vmatprep.subr.bf16.mxu0 0
        %8048 = vmatpush1.bf16.msra.mxu0 0
        %8049 = vmatprep.subr.bf16.mxu0 0
        %8050 = vmatpush1.bf16.msra.mxu0 0
        %8051 = vmatprep.subr.bf16.mxu0 0
        %8052 = vmatpush1.bf16.msra.mxu0 0
        %8053 = vmatprep.subr.bf16.mxu0 0
        %8054 = vmatpush1.bf16.msra.mxu0 0
        %8055 = vmatprep.subr.bf16.mxu0 0
        %8056 = vmatpush1.bf16.msra.mxu0 0
        %8057 = vmatprep.subr.bf16.mxu0 0
        %8058 = vmatpush1.bf16.msra.mxu0 0
        %8059 = vmatprep.subr.bf16.mxu0 0
        %8060 = vmatpush1.bf16.msra.mxu0 0
        %8061 = vmatprep.mubr.bf16.mxu0 0
        %8062 = vmatmul.mubr.bf16.gmra.mrb[0].mxu0 %v8021
        %v8063 = vpop.f32.mrb[0].mxu0
        %v8064 = vadd.f32 0.0, %v8063
        %v8065 = vpop.f32.mrb[0].mxu0
        %v8066 = vadd.f32 0.0, %v8065
        %v8067 = vpop.f32.mrb[0].mxu0
        %v8068 = vadd.f32 0.0, %v8067
        %v8069 = vpop.f32.mrb[0].mxu0
        %v8070 = vadd.f32 0.0, %v8069
        %8071 = vdwg.mxu0
        %v8072 = vadd.f32 %v8002, %v8064
        %v8073 = vadd.f32 %v8003, %v8066
        %v8074 = vadd.f32 %v8004, %v8068
        %v8075 = vadd.f32 %v8005, %v8070
        %s8076 = scalar_lea.vmem %s4, 144
        %v8077 = vld [vmem:[%s8076] sm:$0xf]
        %v8078 = vld [vmem:[%s8076 + $0x4] sm:$0xf]
        %v8081 = vunpack.c.l.b16 %v8077
        %v8082 = vunpack.c.l.b16 %v8078
        %v8083 = vpack.c.b16 %v8082, %v8081
        %8084 = vrot.lane.b32.xlu0 %v6836, 77
        %v8085 = vpop.permute.xlu0 %8084
        %8086 = vrot.lane.b32.xlu0 %v6837, 77
        %v8087 = vpop.permute.xlu0 %8086
        %vm8088 = vcmask 629760
        %v8089 = vsel %vm8088, %v8085, %v8087
        %v8091 = vsel %vm6853, %v8083, 0
        %v8094 = vsel %vm6857, %v8089, 0
        %v8097 = vsel %vm6857, %v8087, 0
        %8099 = vmatprep.subr.bf16.mxu0 %v8097
        %8100 = vmatpush1.bf16.msra.mxu0 %v8094
        %8101 = vmatprep.subr.bf16.mxu0 0
        %8102 = vmatpush1.bf16.msra.mxu0 0
        %8103 = vmatprep.subr.bf16.mxu0 0
        %8104 = vmatpush1.bf16.msra.mxu0 0
        %8105 = vmatprep.subr.bf16.mxu0 0
        %8106 = vmatpush1.bf16.msra.mxu0 0
        %8107 = vmatprep.subr.bf16.mxu0 0
        %8108 = vmatpush1.bf16.msra.mxu0 0
        %8109 = vmatprep.subr.bf16.mxu0 0
        %8110 = vmatpush1.bf16.msra.mxu0 0
        %8111 = vmatprep.subr.bf16.mxu0 0
        %8112 = vmatpush1.bf16.msra.mxu0 0
        %8113 = vmatprep.subr.bf16.mxu0 0
        %8114 = vmatpush1.bf16.msra.mxu0 0
        %8115 = vmatprep.subr.bf16.mxu0 0
        %8116 = vmatpush1.bf16.msra.mxu0 0
        %8117 = vmatprep.subr.bf16.mxu0 0
        %8118 = vmatpush1.bf16.msra.mxu0 0
        %8119 = vmatprep.subr.bf16.mxu0 0
        %8120 = vmatpush1.bf16.msra.mxu0 0
        %8121 = vmatprep.subr.bf16.mxu0 0
        %8122 = vmatpush1.bf16.msra.mxu0 0
        %8123 = vmatprep.subr.bf16.mxu0 0
        %8124 = vmatpush1.bf16.msra.mxu0 0
        %8125 = vmatprep.subr.bf16.mxu0 0
        %8126 = vmatpush1.bf16.msra.mxu0 0
        %8127 = vmatprep.subr.bf16.mxu0 0
        %8128 = vmatpush1.bf16.msra.mxu0 0
        %8129 = vmatprep.subr.bf16.mxu0 0
        %8130 = vmatpush1.bf16.msra.mxu0 0
        %8131 = vmatprep.mubr.bf16.mxu0 0
        %8132 = vmatmul.mubr.bf16.gmra.mrb[0].mxu0 %v8091
        %v8133 = vpop.f32.mrb[0].mxu0
        %v8134 = vadd.f32 0.0, %v8133
        %v8135 = vpop.f32.mrb[0].mxu0
        %v8136 = vadd.f32 0.0, %v8135
        %v8137 = vpop.f32.mrb[0].mxu0
        %v8138 = vadd.f32 0.0, %v8137
        %v8139 = vpop.f32.mrb[0].mxu0
        %v8140 = vadd.f32 0.0, %v8139
        %8141 = vdwg.mxu0
        %v8142 = vadd.f32 %v8072, %v8134
        %v8143 = vadd.f32 %v8073, %v8136
        %v8144 = vadd.f32 %v8074, %v8138
        %v8145 = vadd.f32 %v8075, %v8140
        %s8146 = scalar_lea.vmem %s4, 152
        %v8147 = vld [vmem:[%s8146] sm:$0xf]
        %v8148 = vld [vmem:[%s8146 + $0x4] sm:$0xf]
        %v8151 = vunpack.c.l.b16 %v8147
        %v8152 = vunpack.c.l.b16 %v8148
        %v8153 = vpack.c.b16 %v8152, %v8151
        %8154 = vrot.lane.b32.xlu0 %v6836, 76
        %v8155 = vpop.permute.xlu0 %8154
        %8156 = vrot.lane.b32.xlu0 %v6837, 76
        %v8157 = vpop.permute.xlu0 %8156
        %vm8158 = vcmask 621568
        %v8159 = vsel %vm8158, %v8155, %v8157
        %v8161 = vsel %vm6853, %v8153, 0
        %v8164 = vsel %vm6857, %v8159, 0
        %v8167 = vsel %vm6857, %v8157, 0
        %8169 = vmatprep.subr.bf16.mxu0 %v8167
        %8170 = vmatpush1.bf16.msra.mxu0 %v8164
        %8171 = vmatprep.subr.bf16.mxu0 0
        %8172 = vmatpush1.bf16.msra.mxu0 0
        %8173 = vmatprep.subr.bf16.mxu0 0
        %8174 = vmatpush1.bf16.msra.mxu0 0
        %8175 = vmatprep.subr.bf16.mxu0 0
        %8176 = vmatpush1.bf16.msra.mxu0 0
        %8177 = vmatprep.subr.bf16.mxu0 0
        %8178 = vmatpush1.bf16.msra.mxu0 0
        %8179 = vmatprep.subr.bf16.mxu0 0
        %8180 = vmatpush1.bf16.msra.mxu0 0
        %8181 = vmatprep.subr.bf16.mxu0 0
        %8182 = vmatpush1.bf16.msra.mxu0 0
        %8183 = vmatprep.subr.bf16.mxu0 0
        %8184 = vmatpush1.bf16.msra.mxu0 0
        %8185 = vmatprep.subr.bf16.mxu0 0
        %8186 = vmatpush1.bf16.msra.mxu0 0
        %8187 = vmatprep.subr.bf16.mxu0 0
        %8188 = vmatpush1.bf16.msra.mxu0 0
        %8189 = vmatprep.subr.bf16.mxu0 0
        %8190 = vmatpush1.bf16.msra.mxu0 0
        %8191 = vmatprep.subr.bf16.mxu0 0
        %8192 = vmatpush1.bf16.msra.mxu0 0
        %8193 = vmatprep.subr.bf16.mxu0 0
        %8194 = vmatpush1.bf16.msra.mxu0 0
        %8195 = vmatprep.subr.bf16.mxu0 0
        %8196 = vmatpush1.bf16.msra.mxu0 0
        %8197 = vmatprep.subr.bf16.mxu0 0
        %8198 = vmatpush1.bf16.msra.mxu0 0
        %8199 = vmatprep.subr.bf16.mxu0 0
        %8200 = vmatpush1.bf16.msra.mxu0 0
        %8201 = vmatprep.mubr.bf16.mxu0 0
        %8202 = vmatmul.mubr.bf16.gmra.mrb[0].mxu0 %v8161
        %v8203 = vpop.f32.mrb[0].mxu0
        %v8204 = vadd.f32 0.0, %v8203
        %v8205 = vpop.f32.mrb[0].mxu0
        %v8206 = vadd.f32 0.0, %v8205
        %v8207 = vpop.f32.mrb[0].mxu0
        %v8208 = vadd.f32 0.0, %v8207
        %v8209 = vpop.f32.mrb[0].mxu0
        %v8210 = vadd.f32 0.0, %v8209
        %8211 = vdwg.mxu0
        %v8212 = vadd.f32 %v8142, %v8204
        %v8213 = vadd.f32 %v8143, %v8206
        %v8214 = vadd.f32 %v8144, %v8208
        %v8215 = vadd.f32 %v8145, %v8210
        %s8216 = scalar_lea.vmem %s4, 160
        %v8217 = vld [vmem:[%s8216] sm:$0xf]
        %v8218 = vld [vmem:[%s8216 + $0x4] sm:$0xf]
        %v8221 = vunpack.c.l.b16 %v8217
        %v8222 = vunpack.c.l.b16 %v8218
        %v8223 = vpack.c.b16 %v8222, %v8221
        %8224 = vrot.lane.b32.xlu0 %v6836, 64
        %v8225 = vpop.permute.xlu0 %8224
        %8226 = vrot.lane.b32.xlu0 %v6837, 64
        %v8227 = vpop.permute.xlu0 %8226
        %v8228 = vsel %vm2616, %v8225, %v8227
        %v8230 = vsel %vm6853, %v8223, 0
        %v8233 = vsel %vm6857, %v8228, 0
        %v8236 = vsel %vm6857, %v8227, 0
        %8238 = vmatprep.subr.bf16.mxu0 %v8236
        %8239 = vmatpush1.bf16.msra.mxu0 %v8233
        %8240 = vmatprep.subr.bf16.mxu0 0
        %8241 = vmatpush1.bf16.msra.mxu0 0
        %8242 = vmatprep.subr.bf16.mxu0 0
        %8243 = vmatpush1.bf16.msra.mxu0 0
        %8244 = vmatprep.subr.bf16.mxu0 0
        %8245 = vmatpush1.bf16.msra.mxu0 0
        %8246 = vmatprep.subr.bf16.mxu0 0
        %8247 = vmatpush1.bf16.msra.mxu0 0
        %8248 = vmatprep.subr.bf16.mxu0 0
        %8249 = vmatpush1.bf16.msra.mxu0 0
        %8250 = vmatprep.subr.bf16.mxu0 0
        %8251 = vmatpush1.bf16.msra.mxu0 0
        %8252 = vmatprep.subr.bf16.mxu0 0
        %8253 = vmatpush1.bf16.msra.mxu0 0
        %8254 = vmatprep.subr.bf16.mxu0 0
        %8255 = vmatpush1.bf16.msra.mxu0 0
        %8256 = vmatprep.subr.bf16.mxu0 0
        %8257 = vmatpush1.bf16.msra.mxu0 0
        %8258 = vmatprep.subr.bf16.mxu0 0
        %8259 = vmatpush1.bf16.msra.mxu0 0
        %8260 = vmatprep.subr.bf16.mxu0 0
        %8261 = vmatpush1.bf16.msra.mxu0 0
        %8262 = vmatprep.subr.bf16.mxu0 0
        %8263 = vmatpush1.bf16.msra.mxu0 0
        %8264 = vmatprep.subr.bf16.mxu0 0
        %8265 = vmatpush1.bf16.msra.mxu0 0
        %8266 = vmatprep.subr.bf16.mxu0 0
        %8267 = vmatpush1.bf16.msra.mxu0 0
        %8268 = vmatprep.subr.bf16.mxu0 0
        %8269 = vmatpush1.bf16.msra.mxu0 0
        %8270 = vmatprep.mubr.bf16.mxu0 0
        %8271 = vmatmul.mubr.bf16.gmra.mrb[0].mxu0 %v8230
        %v8272 = vpop.f32.mrb[0].mxu0
        %v8273 = vadd.f32 0.0, %v8272
        %v8274 = vpop.f32.mrb[0].mxu0
        %v8275 = vadd.f32 0.0, %v8274
        %v8276 = vpop.f32.mrb[0].mxu0
        %v8277 = vadd.f32 0.0, %v8276
        %v8278 = vpop.f32.mrb[0].mxu0
        %v8279 = vadd.f32 0.0, %v8278
        %8280 = vdwg.mxu0
        %v8281 = vadd.f32 %v8212, %v8273
        %v8282 = vadd.f32 %v8213, %v8275
        %v8283 = vadd.f32 %v8214, %v8277
        %v8284 = vadd.f32 %v8215, %v8279
        %s8285 = scalar_lea.vmem %s4, 168
        %v8286 = vld [vmem:[%s8285] sm:$0xf]
        %v8287 = vld [vmem:[%s8285 + $0x4] sm:$0xf]
        %v8290 = vunpack.c.l.b16 %v8286
        %v8291 = vunpack.c.l.b16 %v8287
        %v8292 = vpack.c.b16 %v8291, %v8290
        %8293 = vrot.lane.b32.xlu0 %v6836, 63
        %v8294 = vpop.permute.xlu0 %8293
        %8295 = vrot.lane.b32.xlu0 %v6837, 63
        %v8296 = vpop.permute.xlu0 %8295
        %v8297 = vsel %vm2836, %v8294, %v8296
        %v8299 = vsel %vm6853, %v8292, 0
        %v8302 = vsel %vm6857, %v8297, 0
        %v8305 = vsel %vm6857, %v8296, 0
        %8307 = vmatprep.subr.bf16.mxu0 %v8305
        %8308 = vmatpush1.bf16.msra.mxu0 %v8302
        %8309 = vmatprep.subr.bf16.mxu0 0
        %8310 = vmatpush1.bf16.msra.mxu0 0
        %8311 = vmatprep.subr.bf16.mxu0 0
        %8312 = vmatpush1.bf16.msra.mxu0 0
        %8313 = vmatprep.subr.bf16.mxu0 0
        %8314 = vmatpush1.bf16.msra.mxu0 0
        %8315 = vmatprep.subr.bf16.mxu0 0
        %8316 = vmatpush1.bf16.msra.mxu0 0
        %8317 = vmatprep.subr.bf16.mxu0 0
        %8318 = vmatpush1.bf16.msra.mxu0 0
        %8319 = vmatprep.subr.bf16.mxu0 0
        %8320 = vmatpush1.bf16.msra.mxu0 0
        %8321 = vmatprep.subr.bf16.mxu0 0
        %8322 = vmatpush1.bf16.msra.mxu0 0
        %8323 = vmatprep.subr.bf16.mxu0 0
        %8324 = vmatpush1.bf16.msra.mxu0 0
        %8325 = vmatprep.subr.bf16.mxu0 0
        %8326 = vmatpush1.bf16.msra.mxu0 0
        %8327 = vmatprep.subr.bf16.mxu0 0
        %8328 = vmatpush1.bf16.msra.mxu0 0
        %8329 = vmatprep.subr.bf16.mxu0 0
        %8330 = vmatpush1.bf16.msra.mxu0 0
        %8331 = vmatprep.subr.bf16.mxu0 0
        %8332 = vmatpush1.bf16.msra.mxu0 0
        %8333 = vmatprep.subr.bf16.mxu0 0
        %8334 = vmatpush1.bf16.msra.mxu0 0
        %8335 = vmatprep.subr.bf16.mxu0 0
        %8336 = vmatpush1.bf16.msra.mxu0 0
        %8337 = vmatprep.subr.bf16.mxu0 0
        %8338 = vmatpush1.bf16.msra.mxu0 0
        %8339 = vmatprep.mubr.bf16.mxu0 0
        %8340 = vmatmul.mubr.bf16.gmra.mrb[0].mxu0 %v8299
        %v8341 = vpop.f32.mrb[0].mxu0
        %v8342 = vadd.f32 0.0, %v8341
        %v8343 = vpop.f32.mrb[0].mxu0
        %v8344 = vadd.f32 0.0, %v8343
        %v8345 = vpop.f32.mrb[0].mxu0
        %v8346 = vadd.f32 0.0, %v8345
        %v8347 = vpop.f32.mrb[0].mxu0
        %v8348 = vadd.f32 0.0, %v8347
        %8349 = vdwg.mxu0
        %v8350 = vadd.f32 %v8281, %v8342
        %v8351 = vadd.f32 %v8282, %v8344
        %v8352 = vadd.f32 %v8283, %v8346
        %v8353 = vadd.f32 %v8284, %v8348
        %s8354 = scalar_lea.vmem %s4, 176
        %v8355 = vld [vmem:[%s8354] sm:$0xf]
        %v8356 = vld [vmem:[%s8354 + $0x4] sm:$0xf]
        %v8359 = vunpack.c.l.b16 %v8355
        %v8360 = vunpack.c.l.b16 %v8356
        %v8361 = vpack.c.b16 %v8360, %v8359
        %8362 = vrot.lane.b32.xlu0 %v6836, 62
        %v8363 = vpop.permute.xlu0 %8362
        %8364 = vrot.lane.b32.xlu0 %v6837, 62
        %v8365 = vpop.permute.xlu0 %8364
        %v8366 = vsel %vm3056, %v8363, %v8365
        %v8368 = vsel %vm6853, %v8361, 0
        %v8371 = vsel %vm6857, %v8366, 0
        %v8374 = vsel %vm6857, %v8365, 0
        %8376 = vmatprep.subr.bf16.mxu0 %v8374
        %8377 = vmatpush1.bf16.msra.mxu0 %v8371
        %8378 = vmatprep.subr.bf16.mxu0 0
        %8379 = vmatpush1.bf16.msra.mxu0 0
        %8380 = vmatprep.subr.bf16.mxu0 0
        %8381 = vmatpush1.bf16.msra.mxu0 0
        %8382 = vmatprep.subr.bf16.mxu0 0
        %8383 = vmatpush1.bf16.msra.mxu0 0
        %8384 = vmatprep.subr.bf16.mxu0 0
        %8385 = vmatpush1.bf16.msra.mxu0 0
        %8386 = vmatprep.subr.bf16.mxu0 0
        %8387 = vmatpush1.bf16.msra.mxu0 0
        %8388 = vmatprep.subr.bf16.mxu0 0
        %8389 = vmatpush1.bf16.msra.mxu0 0
        %8390 = vmatprep.subr.bf16.mxu0 0
        %8391 = vmatpush1.bf16.msra.mxu0 0
        %8392 = vmatprep.subr.bf16.mxu0 0
        %8393 = vmatpush1.bf16.msra.mxu0 0
        %8394 = vmatprep.subr.bf16.mxu0 0
        %8395 = vmatpush1.bf16.msra.mxu0 0
        %8396 = vmatprep.subr.bf16.mxu0 0
        %8397 = vmatpush1.bf16.msra.mxu0 0
        %8398 = vmatprep.subr.bf16.mxu0 0
        %8399 = vmatpush1.bf16.msra.mxu0 0
        %8400 = vmatprep.subr.bf16.mxu0 0
        %8401 = vmatpush1.bf16.msra.mxu0 0
        %8402 = vmatprep.subr.bf16.mxu0 0
        %8403 = vmatpush1.bf16.msra.mxu0 0
        %8404 = vmatprep.subr.bf16.mxu0 0
        %8405 = vmatpush1.bf16.msra.mxu0 0
        %8406 = vmatprep.subr.bf16.mxu0 0
        %8407 = vmatpush1.bf16.msra.mxu0 0
        %8408 = vmatprep.mubr.bf16.mxu0 0
        %8409 = vmatmul.mubr.bf16.gmra.mrb[0].mxu0 %v8368
        %v8410 = vpop.f32.mrb[0].mxu0
        %v8411 = vadd.f32 0.0, %v8410
        %v8412 = vpop.f32.mrb[0].mxu0
        %v8413 = vadd.f32 0.0, %v8412
        %v8414 = vpop.f32.mrb[0].mxu0
        %v8415 = vadd.f32 0.0, %v8414
        %v8416 = vpop.f32.mrb[0].mxu0
        %v8417 = vadd.f32 0.0, %v8416
        %8418 = vdwg.mxu0
        %v8419 = vadd.f32 %v8350, %v8411
        %v8420 = vadd.f32 %v8351, %v8413
        %v8421 = vadd.f32 %v8352, %v8415
        %v8422 = vadd.f32 %v8353, %v8417
        %s8423 = scalar_lea.vmem %s4, 184
        %v8424 = vld [vmem:[%s8423] sm:$0xf]
        %v8425 = vld [vmem:[%s8423 + $0x4] sm:$0xf]
        %v8428 = vunpack.c.l.b16 %v8424
        %v8429 = vunpack.c.l.b16 %v8425
        %v8430 = vpack.c.b16 %v8429, %v8428
        %8431 = vrot.lane.b32.xlu0 %v6836, 61
        %v8432 = vpop.permute.xlu0 %8431
        %8433 = vrot.lane.b32.xlu0 %v6837, 61
        %v8434 = vpop.permute.xlu0 %8433
        %v8435 = vsel %vm3276, %v8432, %v8434
        %v8437 = vsel %vm6853, %v8430, 0
        %v8440 = vsel %vm6857, %v8435, 0
        %v8443 = vsel %vm6857, %v8434, 0
        %8445 = vmatprep.subr.bf16.mxu0 %v8443
        %8446 = vmatpush1.bf16.msra.mxu0 %v8440
        %8447 = vmatprep.subr.bf16.mxu0 0
        %8448 = vmatpush1.bf16.msra.mxu0 0
        %8449 = vmatprep.subr.bf16.mxu0 0
        %8450 = vmatpush1.bf16.msra.mxu0 0
        %8451 = vmatprep.subr.bf16.mxu0 0
        %8452 = vmatpush1.bf16.msra.mxu0 0
        %8453 = vmatprep.subr.bf16.mxu0 0
        %8454 = vmatpush1.bf16.msra.mxu0 0
        %8455 = vmatprep.subr.bf16.mxu0 0
        %8456 = vmatpush1.bf16.msra.mxu0 0
        %8457 = vmatprep.subr.bf16.mxu0 0
        %8458 = vmatpush1.bf16.msra.mxu0 0
        %8459 = vmatprep.subr.bf16.mxu0 0
        %8460 = vmatpush1.bf16.msra.mxu0 0
        %8461 = vmatprep.subr.bf16.mxu0 0
        %8462 = vmatpush1.bf16.msra.mxu0 0
        %8463 = vmatprep.subr.bf16.mxu0 0
        %8464 = vmatpush1.bf16.msra.mxu0 0
        %8465 = vmatprep.subr.bf16.mxu0 0
        %8466 = vmatpush1.bf16.msra.mxu0 0
        %8467 = vmatprep.subr.bf16.mxu0 0
        %8468 = vmatpush1.bf16.msra.mxu0 0
        %8469 = vmatprep.subr.bf16.mxu0 0
        %8470 = vmatpush1.bf16.msra.mxu0 0
        %8471 = vmatprep.subr.bf16.mxu0 0
        %8472 = vmatpush1.bf16.msra.mxu0 0
        %8473 = vmatprep.subr.bf16.mxu0 0
        %8474 = vmatpush1.bf16.msra.mxu0 0
        %8475 = vmatprep.subr.bf16.mxu0 0
        %8476 = vmatpush1.bf16.msra.mxu0 0
        %8477 = vmatprep.mubr.bf16.mxu0 0
        %8478 = vmatmul.mubr.bf16.gmra.mrb[0].mxu0 %v8437
        %v8479 = vpop.f32.mrb[0].mxu0
        %v8480 = vadd.f32 0.0, %v8479
        %v8481 = vpop.f32.mrb[0].mxu0
        %v8482 = vadd.f32 0.0, %v8481
        %v8483 = vpop.f32.mrb[0].mxu0
        %v8484 = vadd.f32 0.0, %v8483
        %v8485 = vpop.f32.mrb[0].mxu0
        %v8486 = vadd.f32 0.0, %v8485
        %8487 = vdwg.mxu0
        %v8488 = vadd.f32 %v8419, %v8480
        %v8489 = vadd.f32 %v8420, %v8482
        %v8490 = vadd.f32 %v8421, %v8484
        %v8491 = vadd.f32 %v8422, %v8486
        %s8492 = scalar_lea.vmem %s4, 192
        %v8493 = vld [vmem:[%s8492] sm:$0xf]
        %v8494 = vld [vmem:[%s8492 + $0x4] sm:$0xf]
        %v8497 = vunpack.c.l.b16 %v8493
        %v8498 = vunpack.c.l.b16 %v8494
        %v8499 = vpack.c.b16 %v8498, %v8497
        %8500 = vrot.lane.b32.xlu0 %v6836, 60
        %v8501 = vpop.permute.xlu0 %8500
        %8502 = vrot.lane.b32.xlu0 %v6837, 60
        %v8503 = vpop.permute.xlu0 %8502
        %v8504 = vsel %vm3496, %v8501, %v8503
        %v8506 = vsel %vm6853, %v8499, 0
        %v8509 = vsel %vm6857, %v8504, 0
        %v8512 = vsel %vm6857, %v8503, 0
        %8514 = vmatprep.subr.bf16.mxu0 %v8512
        %8515 = vmatpush1.bf16.msra.mxu0 %v8509
        %8516 = vmatprep.subr.bf16.mxu0 0
        %8517 = vmatpush1.bf16.msra.mxu0 0
        %8518 = vmatprep.subr.bf16.mxu0 0
        %8519 = vmatpush1.bf16.msra.mxu0 0
        %8520 = vmatprep.subr.bf16.mxu0 0
        %8521 = vmatpush1.bf16.msra.mxu0 0
        %8522 = vmatprep.subr.bf16.mxu0 0
        %8523 = vmatpush1.bf16.msra.mxu0 0
        %8524 = vmatprep.subr.bf16.mxu0 0
        %8525 = vmatpush1.bf16.msra.mxu0 0
        %8526 = vmatprep.subr.bf16.mxu0 0
        %8527 = vmatpush1.bf16.msra.mxu0 0
        %8528 = vmatprep.subr.bf16.mxu0 0
        %8529 = vmatpush1.bf16.msra.mxu0 0
        %8530 = vmatprep.subr.bf16.mxu0 0
        %8531 = vmatpush1.bf16.msra.mxu0 0
        %8532 = vmatprep.subr.bf16.mxu0 0
        %8533 = vmatpush1.bf16.msra.mxu0 0
        %8534 = vmatprep.subr.bf16.mxu0 0
        %8535 = vmatpush1.bf16.msra.mxu0 0
        %8536 = vmatprep.subr.bf16.mxu0 0
        %8537 = vmatpush1.bf16.msra.mxu0 0
        %8538 = vmatprep.subr.bf16.mxu0 0
        %8539 = vmatpush1.bf16.msra.mxu0 0
        %8540 = vmatprep.subr.bf16.mxu0 0
        %8541 = vmatpush1.bf16.msra.mxu0 0
        %8542 = vmatprep.subr.bf16.mxu0 0
        %8543 = vmatpush1.bf16.msra.mxu0 0
        %8544 = vmatprep.subr.bf16.mxu0 0
        %8545 = vmatpush1.bf16.msra.mxu0 0
        %8546 = vmatprep.mubr.bf16.mxu0 0
        %8547 = vmatmul.mubr.bf16.gmra.mrb[0].mxu0 %v8506
        %v8548 = vpop.f32.mrb[0].mxu0
        %v8549 = vadd.f32 0.0, %v8548
        %v8550 = vpop.f32.mrb[0].mxu0
        %v8551 = vadd.f32 0.0, %v8550
        %v8552 = vpop.f32.mrb[0].mxu0
        %v8553 = vadd.f32 0.0, %v8552
        %v8554 = vpop.f32.mrb[0].mxu0
        %v8555 = vadd.f32 0.0, %v8554
        %8556 = vdwg.mxu0
        %v8557 = vadd.f32 %v8488, %v8549
        %v8558 = vadd.f32 %v8489, %v8551
        %v8559 = vadd.f32 %v8490, %v8553
        %v8560 = vadd.f32 %v8491, %v8555
        %v8561 = vld [vmem:[%s5] sm:$0xff]
        %v8562 = vld [vmem:[%s5 + $0x8] sm:$0xff]
        %8564 = vset.pattern.permute.xlu0 0
        %8565 = vperm.xlu0 %8564, %v8561
        %v8566 = vpop.permute.xlu0 %8565
        %8569 = vset.pattern.permute.xlu0 0
        %8570 = vperm.xlu0 %8569, %v8562
        %v8571 = vpop.permute.xlu0 %8570
        %v8573 = vadd.f32 %v8557, %v8566
        %v8574 = vadd.f32 %v8558, %v8566
        %v8575 = vadd.f32 %v8559, %v8571
        %v8576 = vadd.f32 %v8560, %v8571
        %v8577 = vmax.f32 %v8573, 0.0
        %v8578 = vmax.f32 %v8574, 0.0
        %v8579 = vmax.f32 %v8575, 0.0
        %v8580 = vmax.f32 %v8576, 0.0
        %8585 = vrot.lane.b32.xlu0 %v8577, 127
        %v8586 = vpop.permute.xlu0 %8585
        %8587 = vrot.lane.b32.xlu0 %v8578, 127
        %v8588 = vpop.permute.xlu0 %8587
        %8589 = vrot.lane.b32.xlu0 %v8579, 127
        %v8590 = vpop.permute.xlu0 %8589
        %8591 = vrot.lane.b32.xlu0 %v8580, 127
        %v8592 = vpop.permute.xlu0 %8591
        %v8593 = vsel %vm4992, %v8586, %v8588
        %v8594 = vsel %vm4992, %v8590, %v8592
        %v8599 = vmax.f32 %v8577, %v8593
        %v8600 = vmax.f32 %v8578, %v8588
        %v8601 = vmax.f32 %v8579, %v8594
        %v8602 = vmax.f32 %v8580, %v8592
        %8607 = vrot.lane.b32.xlu0 %v8599, 112
        %v8608 = vpop.permute.xlu0 %8607
        %8609 = vrot.lane.b32.xlu0 %v8600, 112
        %v8610 = vpop.permute.xlu0 %8609
        %8611 = vrot.lane.b32.xlu0 %v8601, 112
        %v8612 = vpop.permute.xlu0 %8611
        %8613 = vrot.lane.b32.xlu0 %v8602, 112
        %v8614 = vpop.permute.xlu0 %8613
        %vm8615 = vcmask 916480
        %v8616 = vsel %vm8615, %v8608, %v8610
        %v8617 = vsel %vm8615, %v8612, %v8614
        %v8622 = vmax.f32 %v8599, %v8616
        %v8623 = vmax.f32 %v8600, %v8610
        %v8624 = vmax.f32 %v8601, %v8617
        %v8625 = vmax.f32 %v8602, %v8614
        %v8626 = vpack.c.bf16 %v8622, %v8622
        %v8627 = vpack.c.bf16 %v8623, %v8623
        %v8628 = vld [vmem:[%s6] sm:$0xf]
        %v8629 = vld [vmem:[%s6 + $0x4] sm:$0xf]
        %v8630 = vld [vmem:[%s6 + $0x8] sm:$0xf]
        %v8631 = vld [vmem:[%s6 + $0xc] sm:$0xf]
        %v8632 = vld [vmem:[%s6 + $0x10] sm:$0xf]
        %v8633 = vld [vmem:[%s6 + $0x14] sm:$0xf]
        %v8634 = vld [vmem:[%s6 + $0x18] sm:$0xf]
        %v8635 = vld [vmem:[%s6 + $0x1c] sm:$0xf]
        %v8636 = vld [vmem:[%s6 + $0x20] sm:$0xf]
        %v8637 = vld [vmem:[%s6 + $0x24] sm:$0xf]
        %v8638 = vld [vmem:[%s6 + $0x28] sm:$0xf]
        %v8639 = vld [vmem:[%s6 + $0x2c] sm:$0xf]
        %v8640 = vld [vmem:[%s6 + $0x30] sm:$0xf]
        %v8641 = vld [vmem:[%s6 + $0x34] sm:$0xf]
        %v8642 = vld [vmem:[%s6 + $0x38] sm:$0xf]
        %v8643 = vld [vmem:[%s6 + $0x3c] sm:$0xf]
        %v8644 = vld [vmem:[%s6 + $0x40] sm:$0xf]
        %v8645 = vld [vmem:[%s6 + $0x44] sm:$0x1]
        %s8646 = scalar_lea.vmem %s6, 72
        %v8647 = vld [vmem:[%s8646] sm:$0xf]
        %v8648 = vld [vmem:[%s8646 + $0x4] sm:$0xf]
        %v8649 = vld [vmem:[%s8646 + $0x8] sm:$0xf]
        %v8650 = vld [vmem:[%s8646 + $0xc] sm:$0xf]
        %v8651 = vld [vmem:[%s8646 + $0x10] sm:$0xf]
        %v8652 = vld [vmem:[%s8646 + $0x14] sm:$0xf]
        %v8653 = vld [vmem:[%s8646 + $0x18] sm:$0xf]
        %v8654 = vld [vmem:[%s8646 + $0x1c] sm:$0xf]
        %v8655 = vld [vmem:[%s8646 + $0x20] sm:$0xf]
        %v8656 = vld [vmem:[%s8646 + $0x24] sm:$0xf]
        %v8657 = vld [vmem:[%s8646 + $0x28] sm:$0xf]
        %v8658 = vld [vmem:[%s8646 + $0x2c] sm:$0xf]
        %v8659 = vld [vmem:[%s8646 + $0x30] sm:$0xf]
        %v8660 = vld [vmem:[%s8646 + $0x34] sm:$0xf]
        %v8661 = vld [vmem:[%s8646 + $0x38] sm:$0xf]
        %v8662 = vld [vmem:[%s8646 + $0x3c] sm:$0xf]
        %v8663 = vld [vmem:[%s8646 + $0x40] sm:$0xf]
        %v8664 = vld [vmem:[%s8646 + $0x44] sm:$0x1]
        %v8666 = vshrl.u32 %v8626, 16
        %v8669 = vshrl.u32 %v8627, 16
        %v8690 = vunpack.c.l.b16 %v8647
        %v8691 = vunpack.c.l.b16 %v8648
        %v8692 = vunpack.c.l.b16 %v8649
        %v8693 = vunpack.c.l.b16 %v8650
        %v8694 = vunpack.c.l.b16 %v8651
        %v8695 = vunpack.c.l.b16 %v8652
        %v8696 = vunpack.c.l.b16 %v8653
        %v8697 = vunpack.c.l.b16 %v8654
        %v8698 = vunpack.c.l.b16 %v8655
        %v8699 = vunpack.c.l.b16 %v8656
        %v8700 = vunpack.c.l.b16 %v8657
        %v8701 = vunpack.c.l.b16 %v8658
        %v8702 = vunpack.c.l.b16 %v8659
        %v8703 = vunpack.c.l.b16 %v8660
        %v8704 = vunpack.c.l.b16 %v8661
        %v8705 = vunpack.c.l.b16 %v8662
        %v8706 = vunpack.c.l.b16 %v8663
        %v8707 = vunpack.c.l.b16 %v8664
        %v8708 = vpack.c.b16 %v8691, %v8690
        %v8709 = vpack.c.b16 %v8693, %v8692
        %v8710 = vpack.c.b16 %v8695, %v8694
        %v8711 = vpack.c.b16 %v8697, %v8696
        %v8712 = vpack.c.b16 %v8699, %v8698
        %v8713 = vpack.c.b16 %v8701, %v8700
        %v8714 = vpack.c.b16 %v8703, %v8702
        %v8715 = vpack.c.b16 %v8705, %v8704
        %v8716 = vpack.c.b16 %v8707, %v8706
        %vm8725 = vcmask 72704
        %v8727 = vsel %vm8725, %v8669, 0
        %vm8729 = vcmask 1043456
        %v8730 = vsel %vm8729, 4294967295, 65535
        %v8731 = vsel %vm6660, %v8730, 0
        %v8733 = vand.u32 %v8716, %v8731
        %8735 = vmatprep.subr.bf16.mxu0 0
        %8736 = vmatpush1.bf16.msra.mxu0 %v8708
        %8737 = vmatprep.subr.bf16.mxu0 0
        %8738 = vmatpush1.bf16.msra.mxu0 %v8709
        %8739 = vmatprep.subr.bf16.mxu0 0
        %8740 = vmatpush1.bf16.msra.mxu0 %v8710
        %8741 = vmatprep.subr.bf16.mxu0 0
        %8742 = vmatpush1.bf16.msra.mxu0 %v8711
        %8743 = vmatprep.subr.bf16.mxu0 0
        %8744 = vmatpush1.bf16.msra.mxu0 %v8712
        %8745 = vmatprep.subr.bf16.mxu0 0
        %8746 = vmatpush1.bf16.msra.mxu0 %v8713
        %8747 = vmatprep.subr.bf16.mxu0 0
        %8748 = vmatpush1.bf16.msra.mxu0 %v8714
        %8749 = vmatprep.subr.bf16.mxu0 0
        %8750 = vmatpush1.bf16.msra.mxu0 %v8715
        %8751 = vmatprep.subr.bf16.mxu0 0
        %8752 = vmatpush1.bf16.msra.mxu0 %v8733
        %8753 = vmatprep.subr.bf16.mxu0 0
        %8754 = vmatpush1.bf16.msra.mxu0 0
        %8755 = vmatprep.subr.bf16.mxu0 0
        %8756 = vmatpush1.bf16.msra.mxu0 0
        %8757 = vmatprep.subr.bf16.mxu0 0
        %8758 = vmatpush1.bf16.msra.mxu0 0
        %8759 = vmatprep.subr.bf16.mxu0 0
        %8760 = vmatpush1.bf16.msra.mxu0 0
        %8761 = vmatprep.subr.bf16.mxu0 0
        %8762 = vmatpush1.bf16.msra.mxu0 0
        %8763 = vmatprep.subr.bf16.mxu0 0
        %8764 = vmatpush1.bf16.msra.mxu0 0
        %8765 = vmatprep.subr.bf16.mxu0 0
        %8766 = vmatpush1.bf16.msra.mxu0 0
        %8767 = vmatprep.mubr.bf16.mxu0 %v8727
        %8768 = vmatmul.mubr.bf16.gmra.mrb[0].mxu0 %v8666
        %v8769 = vpop.f32.mrb[0].mxu0
        %v8770 = vadd.f32 0.0, %v8769
        %v8771 = vpop.f32.mrb[0].mxu0
        %v8772 = vpop.f32.mrb[0].mxu0
        %v8773 = vpop.f32.mrb[0].mxu0
        %8774 = vdwg.mxu0
        %v8793 = vunpack.c.l.b16 %v8628
        %v8794 = vunpack.c.l.b16 %v8629
        %v8795 = vunpack.c.l.b16 %v8630
        %v8796 = vunpack.c.l.b16 %v8631
        %v8797 = vunpack.c.l.b16 %v8632
        %v8798 = vunpack.c.l.b16 %v8633
        %v8799 = vunpack.c.l.b16 %v8634
        %v8800 = vunpack.c.l.b16 %v8635
        %v8801 = vunpack.c.l.b16 %v8636
        %v8802 = vunpack.c.l.b16 %v8637
        %v8803 = vunpack.c.l.b16 %v8638
        %v8804 = vunpack.c.l.b16 %v8639
        %v8805 = vunpack.c.l.b16 %v8640
        %v8806 = vunpack.c.l.b16 %v8641
        %v8807 = vunpack.c.l.b16 %v8642
        %v8808 = vunpack.c.l.b16 %v8643
        %v8809 = vunpack.c.l.b16 %v8644
        %v8810 = vunpack.c.l.b16 %v8645
        %v8811 = vpack.c.b16 %v8794, %v8793
        %v8812 = vpack.c.b16 %v8796, %v8795
        %v8813 = vpack.c.b16 %v8798, %v8797
        %v8814 = vpack.c.b16 %v8800, %v8799
        %v8815 = vpack.c.b16 %v8802, %v8801
        %v8816 = vpack.c.b16 %v8804, %v8803
        %v8817 = vpack.c.b16 %v8806, %v8805
        %v8818 = vpack.c.b16 %v8808, %v8807
        %v8819 = vpack.c.b16 %v8810, %v8809
        %v8828 = vsel %vm8725, %v8627, 0
        %v8831 = vand.u32 %v8819, %v8731
        %8833 = vmatprep.subr.bf16.mxu0 0
        %8834 = vmatpush1.bf16.msra.mxu0 %v8811
        %8835 = vmatprep.subr.bf16.mxu0 0
        %8836 = vmatpush1.bf16.msra.mxu0 %v8812
        %8837 = vmatprep.subr.bf16.mxu0 0
        %8838 = vmatpush1.bf16.msra.mxu0 %v8813
        %8839 = vmatprep.subr.bf16.mxu0 0
        %8840 = vmatpush1.bf16.msra.mxu0 %v8814
        %8841 = vmatprep.subr.bf16.mxu0 0
        %8842 = vmatpush1.bf16.msra.mxu0 %v8815
        %8843 = vmatprep.subr.bf16.mxu0 0
        %8844 = vmatpush1.bf16.msra.mxu0 %v8816
        %8845 = vmatprep.subr.bf16.mxu0 0
        %8846 = vmatpush1.bf16.msra.mxu0 %v8817
        %8847 = vmatprep.subr.bf16.mxu0 0
        %8848 = vmatpush1.bf16.msra.mxu0 %v8818
        %8849 = vmatprep.subr.bf16.mxu0 0
        %8850 = vmatpush1.bf16.msra.mxu0 %v8831
        %8851 = vmatprep.subr.bf16.mxu0 0
        %8852 = vmatpush1.bf16.msra.mxu0 0
        %8853 = vmatprep.subr.bf16.mxu0 0
        %8854 = vmatpush1.bf16.msra.mxu0 0
        %8855 = vmatprep.subr.bf16.mxu0 0
        %8856 = vmatpush1.bf16.msra.mxu0 0
        %8857 = vmatprep.subr.bf16.mxu0 0
        %8858 = vmatpush1.bf16.msra.mxu0 0
        %8859 = vmatprep.subr.bf16.mxu0 0
        %8860 = vmatpush1.bf16.msra.mxu0 0
        %8861 = vmatprep.subr.bf16.mxu0 0
        %8862 = vmatpush1.bf16.msra.mxu0 0
        %8863 = vmatprep.subr.bf16.mxu0 0
        %8864 = vmatpush1.bf16.msra.mxu0 0
        %8865 = vmatprep.mubr.bf16.mxu0 %v8828
        %8866 = vmatmul.mubr.bf16.gmra.mrb[0].mxu0 %v8626
        %v8867 = vpop.f32.mrb[0].mxu0
        %v8868 = vadd.f32 %v8770, %v8867
        %v8869 = vpop.f32.mrb[0].mxu0
        %v8870 = vpop.f32.mrb[0].mxu0
        %v8871 = vpop.f32.mrb[0].mxu0
        %8872 = vdwg.mxu0
        %s8873 = scalar_lea.vmem %s6, 144
        %v8874 = vld [vmem:[%s8873] sm:$0xf]
        %v8875 = vld [vmem:[%s8873 + $0x4] sm:$0xf]
        %v8876 = vld [vmem:[%s8873 + $0x8] sm:$0xf]
        %v8877 = vld [vmem:[%s8873 + $0xc] sm:$0xf]
        %v8878 = vld [vmem:[%s8873 + $0x10] sm:$0xf]
        %v8879 = vld [vmem:[%s8873 + $0x14] sm:$0xf]
        %v8880 = vld [vmem:[%s8873 + $0x18] sm:$0xf]
        %v8881 = vld [vmem:[%s8873 + $0x1c] sm:$0xf]
        %v8882 = vld [vmem:[%s8873 + $0x20] sm:$0xf]
        %v8883 = vld [vmem:[%s8873 + $0x24] sm:$0xf]
        %v8884 = vld [vmem:[%s8873 + $0x28] sm:$0xf]
        %v8885 = vld [vmem:[%s8873 + $0x2c] sm:$0xf]
        %v8886 = vld [vmem:[%s8873 + $0x30] sm:$0xf]
        %v8887 = vld [vmem:[%s8873 + $0x34] sm:$0xf]
        %v8888 = vld [vmem:[%s8873 + $0x38] sm:$0xf]
        %v8889 = vld [vmem:[%s8873 + $0x3c] sm:$0xf]
        %v8890 = vld [vmem:[%s8873 + $0x40] sm:$0xf]
        %v8891 = vld [vmem:[%s8873 + $0x44] sm:$0x1]
        %v8894 = vrot.slane %v8626, 1
        %v8895 = vrot.slane %v8627, 1
        %v8915 = vunpack.c.l.b16 %v8874
        %v8916 = vunpack.c.l.b16 %v8875
        %v8917 = vunpack.c.l.b16 %v8876
        %v8918 = vunpack.c.l.b16 %v8877
        %v8919 = vunpack.c.l.b16 %v8878
        %v8920 = vunpack.c.l.b16 %v8879
        %v8921 = vunpack.c.l.b16 %v8880
        %v8922 = vunpack.c.l.b16 %v8881
        %v8923 = vunpack.c.l.b16 %v8882
        %v8924 = vunpack.c.l.b16 %v8883
        %v8925 = vunpack.c.l.b16 %v8884
        %v8926 = vunpack.c.l.b16 %v8885
        %v8927 = vunpack.c.l.b16 %v8886
        %v8928 = vunpack.c.l.b16 %v8887
        %v8929 = vunpack.c.l.b16 %v8888
        %v8930 = vunpack.c.l.b16 %v8889
        %v8931 = vunpack.c.l.b16 %v8890
        %v8932 = vunpack.c.l.b16 %v8891
        %v8933 = vpack.c.b16 %v8916, %v8915
        %v8934 = vpack.c.b16 %v8918, %v8917
        %v8935 = vpack.c.b16 %v8920, %v8919
        %v8936 = vpack.c.b16 %v8922, %v8921
        %v8937 = vpack.c.b16 %v8924, %v8923
        %v8938 = vpack.c.b16 %v8926, %v8925
        %v8939 = vpack.c.b16 %v8928, %v8927
        %v8940 = vpack.c.b16 %v8930, %v8929
        %v8941 = vpack.c.b16 %v8932, %v8931
        %v8951 = vsel %vm8725, %v8895, 0
        %v8954 = vand.u32 %v8941, %v8731
        %8956 = vmatprep.subr.bf16.mxu0 0
        %8957 = vmatpush1.bf16.msra.mxu0 %v8933
        %8958 = vmatprep.subr.bf16.mxu0 0
        %8959 = vmatpush1.bf16.msra.mxu0 %v8934
        %8960 = vmatprep.subr.bf16.mxu0 0
        %8961 = vmatpush1.bf16.msra.mxu0 %v8935
        %8962 = vmatprep.subr.bf16.mxu0 0
        %8963 = vmatpush1.bf16.msra.mxu0 %v8936
        %8964 = vmatprep.subr.bf16.mxu0 0
        %8965 = vmatpush1.bf16.msra.mxu0 %v8937
        %8966 = vmatprep.subr.bf16.mxu0 0
        %8967 = vmatpush1.bf16.msra.mxu0 %v8938
        %8968 = vmatprep.subr.bf16.mxu0 0
        %8969 = vmatpush1.bf16.msra.mxu0 %v8939
        %8970 = vmatprep.subr.bf16.mxu0 0
        %8971 = vmatpush1.bf16.msra.mxu0 %v8940
        %8972 = vmatprep.subr.bf16.mxu0 0
        %8973 = vmatpush1.bf16.msra.mxu0 %v8954
        %8974 = vmatprep.subr.bf16.mxu0 0
        %8975 = vmatpush1.bf16.msra.mxu0 0
        %8976 = vmatprep.subr.bf16.mxu0 0
        %8977 = vmatpush1.bf16.msra.mxu0 0
        %8978 = vmatprep.subr.bf16.mxu0 0
        %8979 = vmatpush1.bf16.msra.mxu0 0
        %8980 = vmatprep.subr.bf16.mxu0 0
        %8981 = vmatpush1.bf16.msra.mxu0 0
        %8982 = vmatprep.subr.bf16.mxu0 0
        %8983 = vmatpush1.bf16.msra.mxu0 0
        %8984 = vmatprep.subr.bf16.mxu0 0
        %8985 = vmatpush1.bf16.msra.mxu0 0
        %8986 = vmatprep.subr.bf16.mxu0 0
        %8987 = vmatpush1.bf16.msra.mxu0 0
        %8988 = vmatprep.mubr.bf16.mxu0 %v8951
        %8989 = vmatmul.mubr.bf16.gmra.mrb[0].mxu0 %v8894
        %v8990 = vpop.f32.mrb[0].mxu0
        %v8991 = vadd.f32 0.0, %v8990
        %v8992 = vpop.f32.mrb[0].mxu0
        %v8993 = vpop.f32.mrb[0].mxu0
        %v8994 = vpop.f32.mrb[0].mxu0
        %8995 = vdwg.mxu0
        %v8996 = vadd.f32 %v8868, %v8991
        %s8997 = scalar_lea.vmem %s6, 216
        %v8998 = vld [vmem:[%s8997] sm:$0xf]
        %v8999 = vld [vmem:[%s8997 + $0x4] sm:$0xf]
        %v9000 = vld [vmem:[%s8997 + $0x8] sm:$0xf]
        %v9001 = vld [vmem:[%s8997 + $0xc] sm:$0xf]
        %v9002 = vld [vmem:[%s8997 + $0x10] sm:$0xf]
        %v9003 = vld [vmem:[%s8997 + $0x14] sm:$0xf]
        %v9004 = vld [vmem:[%s8997 + $0x18] sm:$0xf]
        %v9005 = vld [vmem:[%s8997 + $0x1c] sm:$0xf]
        %v9006 = vld [vmem:[%s8997 + $0x20] sm:$0xf]
        %v9007 = vld [vmem:[%s8997 + $0x24] sm:$0xf]
        %v9008 = vld [vmem:[%s8997 + $0x28] sm:$0xf]
        %v9009 = vld [vmem:[%s8997 + $0x2c] sm:$0xf]
        %v9010 = vld [vmem:[%s8997 + $0x30] sm:$0xf]
        %v9011 = vld [vmem:[%s8997 + $0x34] sm:$0xf]
        %v9012 = vld [vmem:[%s8997 + $0x38] sm:$0xf]
        %v9013 = vld [vmem:[%s8997 + $0x3c] sm:$0xf]
        %v9014 = vld [vmem:[%s8997 + $0x40] sm:$0xf]
        %v9015 = vld [vmem:[%s8997 + $0x44] sm:$0x1]
        %v9016 = vrot.slane %v8666, 1
        %v9017 = vrot.slane %v8669, 1
        %v9037 = vunpack.c.l.b16 %v8998
        %v9038 = vunpack.c.l.b16 %v8999
        %v9039 = vunpack.c.l.b16 %v9000
        %v9040 = vunpack.c.l.b16 %v9001
        %v9041 = vunpack.c.l.b16 %v9002
        %v9042 = vunpack.c.l.b16 %v9003
        %v9043 = vunpack.c.l.b16 %v9004
        %v9044 = vunpack.c.l.b16 %v9005
        %v9045 = vunpack.c.l.b16 %v9006
        %v9046 = vunpack.c.l.b16 %v9007
        %v9047 = vunpack.c.l.b16 %v9008
        %v9048 = vunpack.c.l.b16 %v9009
        %v9049 = vunpack.c.l.b16 %v9010
        %v9050 = vunpack.c.l.b16 %v9011
        %v9051 = vunpack.c.l.b16 %v9012
        %v9052 = vunpack.c.l.b16 %v9013
        %v9053 = vunpack.c.l.b16 %v9014
        %v9054 = vunpack.c.l.b16 %v9015
        %v9055 = vpack.c.b16 %v9038, %v9037
        %v9056 = vpack.c.b16 %v9040, %v9039
        %v9057 = vpack.c.b16 %v9042, %v9041
        %v9058 = vpack.c.b16 %v9044, %v9043
        %v9059 = vpack.c.b16 %v9046, %v9045
        %v9060 = vpack.c.b16 %v9048, %v9047
        %v9061 = vpack.c.b16 %v9050, %v9049
        %v9062 = vpack.c.b16 %v9052, %v9051
        %v9063 = vpack.c.b16 %v9054, %v9053
        %v9073 = vsel %vm8725, %v9017, 0
        %v9076 = vand.u32 %v9063, %v8731
        %9078 = vmatprep.subr.bf16.mxu0 0
        %9079 = vmatpush1.bf16.msra.mxu0 %v9055
        %9080 = vmatprep.subr.bf16.mxu0 0
        %9081 = vmatpush1.bf16.msra.mxu0 %v9056
        %9082 = vmatprep.subr.bf16.mxu0 0
        %9083 = vmatpush1.bf16.msra.mxu0 %v9057
        %9084 = vmatprep.subr.bf16.mxu0 0
        %9085 = vmatpush1.bf16.msra.mxu0 %v9058
        %9086 = vmatprep.subr.bf16.mxu0 0
        %9087 = vmatpush1.bf16.msra.mxu0 %v9059
        %9088 = vmatprep.subr.bf16.mxu0 0
        %9089 = vmatpush1.bf16.msra.mxu0 %v9060
        %9090 = vmatprep.subr.bf16.mxu0 0
        %9091 = vmatpush1.bf16.msra.mxu0 %v9061
        %9092 = vmatprep.subr.bf16.mxu0 0
        %9093 = vmatpush1.bf16.msra.mxu0 %v9062
        %9094 = vmatprep.subr.bf16.mxu0 0
        %9095 = vmatpush1.bf16.msra.mxu0 %v9076
        %9096 = vmatprep.subr.bf16.mxu0 0
        %9097 = vmatpush1.bf16.msra.mxu0 0
        %9098 = vmatprep.subr.bf16.mxu0 0
        %9099 = vmatpush1.bf16.msra.mxu0 0
        %9100 = vmatprep.subr.bf16.mxu0 0
        %9101 = vmatpush1.bf16.msra.mxu0 0
        %9102 = vmatprep.subr.bf16.mxu0 0
        %9103 = vmatpush1.bf16.msra.mxu0 0
        %9104 = vmatprep.subr.bf16.mxu0 0
        %9105 = vmatpush1.bf16.msra.mxu0 0
        %9106 = vmatprep.subr.bf16.mxu0 0
        %9107 = vmatpush1.bf16.msra.mxu0 0
        %9108 = vmatprep.subr.bf16.mxu0 0
        %9109 = vmatpush1.bf16.msra.mxu0 0
        %9110 = vmatprep.mubr.bf16.mxu0 %v9073
        %9111 = vmatmul.mubr.bf16.gmra.mrb[0].mxu0 %v9016
        %v9112 = vpop.f32.mrb[0].mxu0
        %v9113 = vadd.f32 0.0, %v9112
        %v9114 = vpop.f32.mrb[0].mxu0
        %v9115 = vpop.f32.mrb[0].mxu0
        %v9116 = vpop.f32.mrb[0].mxu0
        %9117 = vdwg.mxu0
        %v9118 = vadd.f32 %v8996, %v9113
        %s9119 = scalar_lea.vmem %s6, 288
        %v9120 = vld [vmem:[%s9119] sm:$0xf]
        %v9121 = vld [vmem:[%s9119 + $0x4] sm:$0xf]
        %v9122 = vld [vmem:[%s9119 + $0x8] sm:$0xf]
        %v9123 = vld [vmem:[%s9119 + $0xc] sm:$0xf]
        %v9124 = vld [vmem:[%s9119 + $0x10] sm:$0xf]
        %v9125 = vld [vmem:[%s9119 + $0x14] sm:$0xf]
        %v9126 = vld [vmem:[%s9119 + $0x18] sm:$0xf]
        %v9127 = vld [vmem:[%s9119 + $0x1c] sm:$0xf]
        %v9128 = vld [vmem:[%s9119 + $0x20] sm:$0xf]
        %v9129 = vld [vmem:[%s9119 + $0x24] sm:$0xf]
        %v9130 = vld [vmem:[%s9119 + $0x28] sm:$0xf]
        %v9131 = vld [vmem:[%s9119 + $0x2c] sm:$0xf]
        %v9132 = vld [vmem:[%s9119 + $0x30] sm:$0xf]
        %v9133 = vld [vmem:[%s9119 + $0x34] sm:$0xf]
        %v9134 = vld [vmem:[%s9119 + $0x38] sm:$0xf]
        %v9135 = vld [vmem:[%s9119 + $0x3c] sm:$0xf]
        %v9136 = vld [vmem:[%s9119 + $0x40] sm:$0xf]
        %v9137 = vld [vmem:[%s9119 + $0x44] sm:$0x1]
        %v9138 = vrot.slane %v8626, 2
        %v9139 = vrot.slane %v8627, 2
        %v9159 = vunpack.c.l.b16 %v9120
        %v9160 = vunpack.c.l.b16 %v9121
        %v9161 = vunpack.c.l.b16 %v9122
        %v9162 = vunpack.c.l.b16 %v9123
        %v9163 = vunpack.c.l.b16 %v9124
        %v9164 = vunpack.c.l.b16 %v9125
        %v9165 = vunpack.c.l.b16 %v9126
        %v9166 = vunpack.c.l.b16 %v9127
        %v9167 = vunpack.c.l.b16 %v9128
        %v9168 = vunpack.c.l.b16 %v9129
        %v9169 = vunpack.c.l.b16 %v9130
        %v9170 = vunpack.c.l.b16 %v9131
        %v9171 = vunpack.c.l.b16 %v9132
        %v9172 = vunpack.c.l.b16 %v9133
        %v9173 = vunpack.c.l.b16 %v9134
        %v9174 = vunpack.c.l.b16 %v9135
        %v9175 = vunpack.c.l.b16 %v9136
        %v9176 = vunpack.c.l.b16 %v9137
        %v9177 = vpack.c.b16 %v9160, %v9159
        %v9178 = vpack.c.b16 %v9162, %v9161
        %v9179 = vpack.c.b16 %v9164, %v9163
        %v9180 = vpack.c.b16 %v9166, %v9165
        %v9181 = vpack.c.b16 %v9168, %v9167
        %v9182 = vpack.c.b16 %v9170, %v9169
        %v9183 = vpack.c.b16 %v9172, %v9171
        %v9184 = vpack.c.b16 %v9174, %v9173
        %v9185 = vpack.c.b16 %v9176, %v9175
        %v9195 = vsel %vm8725, %v9139, 0
        %v9198 = vand.u32 %v9185, %v8731
        %9200 = vmatprep.subr.bf16.mxu0 0
        %9201 = vmatpush1.bf16.msra.mxu0 %v9177
        %9202 = vmatprep.subr.bf16.mxu0 0
        %9203 = vmatpush1.bf16.msra.mxu0 %v9178
        %9204 = vmatprep.subr.bf16.mxu0 0
        %9205 = vmatpush1.bf16.msra.mxu0 %v9179
        %9206 = vmatprep.subr.bf16.mxu0 0
        %9207 = vmatpush1.bf16.msra.mxu0 %v9180
        %9208 = vmatprep.subr.bf16.mxu0 0
        %9209 = vmatpush1.bf16.msra.mxu0 %v9181
        %9210 = vmatprep.subr.bf16.mxu0 0
        %9211 = vmatpush1.bf16.msra.mxu0 %v9182
        %9212 = vmatprep.subr.bf16.mxu0 0
        %9213 = vmatpush1.bf16.msra.mxu0 %v9183
        %9214 = vmatprep.subr.bf16.mxu0 0
        %9215 = vmatpush1.bf16.msra.mxu0 %v9184
        %9216 = vmatprep.subr.bf16.mxu0 0
        %9217 = vmatpush1.bf16.msra.mxu0 %v9198
        %9218 = vmatprep.subr.bf16.mxu0 0
        %9219 = vmatpush1.bf16.msra.mxu0 0
        %9220 = vmatprep.subr.bf16.mxu0 0
        %9221 = vmatpush1.bf16.msra.mxu0 0
        %9222 = vmatprep.subr.bf16.mxu0 0
        %9223 = vmatpush1.bf16.msra.mxu0 0
        %9224 = vmatprep.subr.bf16.mxu0 0
        %9225 = vmatpush1.bf16.msra.mxu0 0
        %9226 = vmatprep.subr.bf16.mxu0 0
        %9227 = vmatpush1.bf16.msra.mxu0 0
        %9228 = vmatprep.subr.bf16.mxu0 0
        %9229 = vmatpush1.bf16.msra.mxu0 0
        %9230 = vmatprep.subr.bf16.mxu0 0
        %9231 = vmatpush1.bf16.msra.mxu0 0
        %9232 = vmatprep.mubr.bf16.mxu0 %v9195
        %9233 = vmatmul.mubr.bf16.gmra.mrb[0].mxu0 %v9138
        %v9234 = vpop.f32.mrb[0].mxu0
        %v9235 = vadd.f32 0.0, %v9234
        %v9236 = vpop.f32.mrb[0].mxu0
        %v9237 = vpop.f32.mrb[0].mxu0
        %v9238 = vpop.f32.mrb[0].mxu0
        %9239 = vdwg.mxu0
        %v9240 = vadd.f32 %v9118, %v9235
        %s9241 = scalar_lea.vmem %s6, 360
        %v9242 = vld [vmem:[%s9241] sm:$0xf]
        %v9243 = vld [vmem:[%s9241 + $0x4] sm:$0xf]
        %v9244 = vld [vmem:[%s9241 + $0x8] sm:$0xf]
        %v9245 = vld [vmem:[%s9241 + $0xc] sm:$0xf]
        %v9246 = vld [vmem:[%s9241 + $0x10] sm:$0xf]
        %v9247 = vld [vmem:[%s9241 + $0x14] sm:$0xf]
        %v9248 = vld [vmem:[%s9241 + $0x18] sm:$0xf]
        %v9249 = vld [vmem:[%s9241 + $0x1c] sm:$0xf]
        %v9250 = vld [vmem:[%s9241 + $0x20] sm:$0xf]
        %v9251 = vld [vmem:[%s9241 + $0x24] sm:$0xf]
        %v9252 = vld [vmem:[%s9241 + $0x28] sm:$0xf]
        %v9253 = vld [vmem:[%s9241 + $0x2c] sm:$0xf]
        %v9254 = vld [vmem:[%s9241 + $0x30] sm:$0xf]
        %v9255 = vld [vmem:[%s9241 + $0x34] sm:$0xf]
        %v9256 = vld [vmem:[%s9241 + $0x38] sm:$0xf]
        %v9257 = vld [vmem:[%s9241 + $0x3c] sm:$0xf]
        %v9258 = vld [vmem:[%s9241 + $0x40] sm:$0xf]
        %v9259 = vld [vmem:[%s9241 + $0x44] sm:$0x1]
        %v9260 = vrot.slane %v8666, 2
        %v9261 = vrot.slane %v8669, 2
        %v9281 = vunpack.c.l.b16 %v9242
        %v9282 = vunpack.c.l.b16 %v9243
        %v9283 = vunpack.c.l.b16 %v9244
        %v9284 = vunpack.c.l.b16 %v9245
        %v9285 = vunpack.c.l.b16 %v9246
        %v9286 = vunpack.c.l.b16 %v9247
        %v9287 = vunpack.c.l.b16 %v9248
        %v9288 = vunpack.c.l.b16 %v9249
        %v9289 = vunpack.c.l.b16 %v9250
        %v9290 = vunpack.c.l.b16 %v9251
        %v9291 = vunpack.c.l.b16 %v9252
        %v9292 = vunpack.c.l.b16 %v9253
        %v9293 = vunpack.c.l.b16 %v9254
        %v9294 = vunpack.c.l.b16 %v9255
        %v9295 = vunpack.c.l.b16 %v9256
        %v9296 = vunpack.c.l.b16 %v9257
        %v9297 = vunpack.c.l.b16 %v9258
        %v9298 = vunpack.c.l.b16 %v9259
        %v9299 = vpack.c.b16 %v9282, %v9281
        %v9300 = vpack.c.b16 %v9284, %v9283
        %v9301 = vpack.c.b16 %v9286, %v9285
        %v9302 = vpack.c.b16 %v9288, %v9287
        %v9303 = vpack.c.b16 %v9290, %v9289
        %v9304 = vpack.c.b16 %v9292, %v9291
        %v9305 = vpack.c.b16 %v9294, %v9293
        %v9306 = vpack.c.b16 %v9296, %v9295
        %v9307 = vpack.c.b16 %v9298, %v9297
        %v9317 = vsel %vm8725, %v9261, 0
        %v9320 = vand.u32 %v9307, %v8731
        %9322 = vmatprep.subr.bf16.mxu0 0
        %9323 = vmatpush1.bf16.msra.mxu0 %v9299
        %9324 = vmatprep.subr.bf16.mxu0 0
        %9325 = vmatpush1.bf16.msra.mxu0 %v9300
        %9326 = vmatprep.subr.bf16.mxu0 0
        %9327 = vmatpush1.bf16.msra.mxu0 %v9301
        %9328 = vmatprep.subr.bf16.mxu0 0
        %9329 = vmatpush1.bf16.msra.mxu0 %v9302
        %9330 = vmatprep.subr.bf16.mxu0 0
        %9331 = vmatpush1.bf16.msra.mxu0 %v9303
        %9332 = vmatprep.subr.bf16.mxu0 0
        %9333 = vmatpush1.bf16.msra.mxu0 %v9304
        %9334 = vmatprep.subr.bf16.mxu0 0
        %9335 = vmatpush1.bf16.msra.mxu0 %v9305
        %9336 = vmatprep.subr.bf16.mxu0 0
        %9337 = vmatpush1.bf16.msra.mxu0 %v9306
        %9338 = vmatprep.subr.bf16.mxu0 0
        %9339 = vmatpush1.bf16.msra.mxu0 %v9320
        %9340 = vmatprep.subr.bf16.mxu0 0
        %9341 = vmatpush1.bf16.msra.mxu0 0
        %9342 = vmatprep.subr.bf16.mxu0 0
        %9343 = vmatpush1.bf16.msra.mxu0 0
        %9344 = vmatprep.subr.bf16.mxu0 0
        %9345 = vmatpush1.bf16.msra.mxu0 0
        %9346 = vmatprep.subr.bf16.mxu0 0
        %9347 = vmatpush1.bf16.msra.mxu0 0
        %9348 = vmatprep.subr.bf16.mxu0 0
        %9349 = vmatpush1.bf16.msra.mxu0 0
        %9350 = vmatprep.subr.bf16.mxu0 0
        %9351 = vmatpush1.bf16.msra.mxu0 0
        %9352 = vmatprep.subr.bf16.mxu0 0
        %9353 = vmatpush1.bf16.msra.mxu0 0
        %9354 = vmatprep.mubr.bf16.mxu0 %v9317
        %9355 = vmatmul.mubr.bf16.gmra.mrb[0].mxu0 %v9260
        %v9356 = vpop.f32.mrb[0].mxu0
        %v9357 = vadd.f32 0.0, %v9356
        %v9358 = vpop.f32.mrb[0].mxu0
        %v9359 = vpop.f32.mrb[0].mxu0
        %v9360 = vpop.f32.mrb[0].mxu0
        %9361 = vdwg.mxu0
        %v9362 = vadd.f32 %v9240, %v9357
        %s9363 = scalar_lea.vmem %s6, 432
        %v9364 = vld [vmem:[%s9363] sm:$0xf]
        %v9365 = vld [vmem:[%s9363 + $0x4] sm:$0xf]
        %v9366 = vld [vmem:[%s9363 + $0x8] sm:$0xf]
        %v9367 = vld [vmem:[%s9363 + $0xc] sm:$0xf]
        %v9368 = vld [vmem:[%s9363 + $0x10] sm:$0xf]
        %v9369 = vld [vmem:[%s9363 + $0x14] sm:$0xf]
        %v9370 = vld [vmem:[%s9363 + $0x18] sm:$0xf]
        %v9371 = vld [vmem:[%s9363 + $0x1c] sm:$0xf]
        %v9372 = vld [vmem:[%s9363 + $0x20] sm:$0xf]
        %v9373 = vld [vmem:[%s9363 + $0x24] sm:$0xf]
        %v9374 = vld [vmem:[%s9363 + $0x28] sm:$0xf]
        %v9375 = vld [vmem:[%s9363 + $0x2c] sm:$0xf]
        %v9376 = vld [vmem:[%s9363 + $0x30] sm:$0xf]
        %v9377 = vld [vmem:[%s9363 + $0x34] sm:$0xf]
        %v9378 = vld [vmem:[%s9363 + $0x38] sm:$0xf]
        %v9379 = vld [vmem:[%s9363 + $0x3c] sm:$0xf]
        %v9380 = vld [vmem:[%s9363 + $0x40] sm:$0xf]
        %v9381 = vld [vmem:[%s9363 + $0x44] sm:$0x1]
        %v9382 = vrot.slane %v8626, 3
        %v9383 = vrot.slane %v8627, 3
        %v9403 = vunpack.c.l.b16 %v9364
        %v9404 = vunpack.c.l.b16 %v9365
        %v9405 = vunpack.c.l.b16 %v9366
        %v9406 = vunpack.c.l.b16 %v9367
        %v9407 = vunpack.c.l.b16 %v9368
        %v9408 = vunpack.c.l.b16 %v9369
        %v9409 = vunpack.c.l.b16 %v9370
        %v9410 = vunpack.c.l.b16 %v9371
        %v9411 = vunpack.c.l.b16 %v9372
        %v9412 = vunpack.c.l.b16 %v9373
        %v9413 = vunpack.c.l.b16 %v9374
        %v9414 = vunpack.c.l.b16 %v9375
        %v9415 = vunpack.c.l.b16 %v9376
        %v9416 = vunpack.c.l.b16 %v9377
        %v9417 = vunpack.c.l.b16 %v9378
        %v9418 = vunpack.c.l.b16 %v9379
        %v9419 = vunpack.c.l.b16 %v9380
        %v9420 = vunpack.c.l.b16 %v9381
        %v9421 = vpack.c.b16 %v9404, %v9403
        %v9422 = vpack.c.b16 %v9406, %v9405
        %v9423 = vpack.c.b16 %v9408, %v9407
        %v9424 = vpack.c.b16 %v9410, %v9409
        %v9425 = vpack.c.b16 %v9412, %v9411
        %v9426 = vpack.c.b16 %v9414, %v9413
        %v9427 = vpack.c.b16 %v9416, %v9415
        %v9428 = vpack.c.b16 %v9418, %v9417
        %v9429 = vpack.c.b16 %v9420, %v9419
        %v9439 = vsel %vm8725, %v9383, 0
        %v9442 = vand.u32 %v9429, %v8731
        %9444 = vmatprep.subr.bf16.mxu0 0
        %9445 = vmatpush1.bf16.msra.mxu0 %v9421
        %9446 = vmatprep.subr.bf16.mxu0 0
        %9447 = vmatpush1.bf16.msra.mxu0 %v9422
        %9448 = vmatprep.subr.bf16.mxu0 0
        %9449 = vmatpush1.bf16.msra.mxu0 %v9423
        %9450 = vmatprep.subr.bf16.mxu0 0
        %9451 = vmatpush1.bf16.msra.mxu0 %v9424
        %9452 = vmatprep.subr.bf16.mxu0 0
        %9453 = vmatpush1.bf16.msra.mxu0 %v9425
        %9454 = vmatprep.subr.bf16.mxu0 0
        %9455 = vmatpush1.bf16.msra.mxu0 %v9426
        %9456 = vmatprep.subr.bf16.mxu0 0
        %9457 = vmatpush1.bf16.msra.mxu0 %v9427
        %9458 = vmatprep.subr.bf16.mxu0 0
        %9459 = vmatpush1.bf16.msra.mxu0 %v9428
        %9460 = vmatprep.subr.bf16.mxu0 0
        %9461 = vmatpush1.bf16.msra.mxu0 %v9442
        %9462 = vmatprep.subr.bf16.mxu0 0
        %9463 = vmatpush1.bf16.msra.mxu0 0
        %9464 = vmatprep.subr.bf16.mxu0 0
        %9465 = vmatpush1.bf16.msra.mxu0 0
        %9466 = vmatprep.subr.bf16.mxu0 0
        %9467 = vmatpush1.bf16.msra.mxu0 0
        %9468 = vmatprep.subr.bf16.mxu0 0
        %9469 = vmatpush1.bf16.msra.mxu0 0
        %9470 = vmatprep.subr.bf16.mxu0 0
        %9471 = vmatpush1.bf16.msra.mxu0 0
        %9472 = vmatprep.subr.bf16.mxu0 0
        %9473 = vmatpush1.bf16.msra.mxu0 0
        %9474 = vmatprep.subr.bf16.mxu0 0
        %9475 = vmatpush1.bf16.msra.mxu0 0
        %9476 = vmatprep.mubr.bf16.mxu0 %v9439
        %9477 = vmatmul.mubr.bf16.gmra.mrb[0].mxu0 %v9382
        %v9478 = vpop.f32.mrb[0].mxu0
        %v9479 = vadd.f32 0.0, %v9478
        %v9480 = vpop.f32.mrb[0].mxu0
        %v9481 = vpop.f32.mrb[0].mxu0
        %v9482 = vpop.f32.mrb[0].mxu0
        %9483 = vdwg.mxu0
        %v9484 = vadd.f32 %v9362, %v9479
        %s9485 = scalar_lea.vmem %s6, 504
        %v9486 = vld [vmem:[%s9485] sm:$0xf]
        %v9487 = vld [vmem:[%s9485 + $0x4] sm:$0xf]
        %v9488 = vld [vmem:[%s9485 + $0x8] sm:$0xf]
        %v9489 = vld [vmem:[%s9485 + $0xc] sm:$0xf]
        %v9490 = vld [vmem:[%s9485 + $0x10] sm:$0xf]
        %v9491 = vld [vmem:[%s9485 + $0x14] sm:$0xf]
        %v9492 = vld [vmem:[%s9485 + $0x18] sm:$0xf]
        %v9493 = vld [vmem:[%s9485 + $0x1c] sm:$0xf]
        %v9494 = vld [vmem:[%s9485 + $0x20] sm:$0xf]
        %v9495 = vld [vmem:[%s9485 + $0x24] sm:$0xf]
        %v9496 = vld [vmem:[%s9485 + $0x28] sm:$0xf]
        %v9497 = vld [vmem:[%s9485 + $0x2c] sm:$0xf]
        %v9498 = vld [vmem:[%s9485 + $0x30] sm:$0xf]
        %v9499 = vld [vmem:[%s9485 + $0x34] sm:$0xf]
        %v9500 = vld [vmem:[%s9485 + $0x38] sm:$0xf]
        %v9501 = vld [vmem:[%s9485 + $0x3c] sm:$0xf]
        %v9502 = vld [vmem:[%s9485 + $0x40] sm:$0xf]
        %v9503 = vld [vmem:[%s9485 + $0x44] sm:$0x1]
        %v9504 = vrot.slane %v8666, 3
        %v9505 = vrot.slane %v8669, 3
        %v9525 = vunpack.c.l.b16 %v9486
        %v9526 = vunpack.c.l.b16 %v9487
        %v9527 = vunpack.c.l.b16 %v9488
        %v9528 = vunpack.c.l.b16 %v9489
        %v9529 = vunpack.c.l.b16 %v9490
        %v9530 = vunpack.c.l.b16 %v9491
        %v9531 = vunpack.c.l.b16 %v9492
        %v9532 = vunpack.c.l.b16 %v9493
        %v9533 = vunpack.c.l.b16 %v9494
        %v9534 = vunpack.c.l.b16 %v9495
        %v9535 = vunpack.c.l.b16 %v9496
        %v9536 = vunpack.c.l.b16 %v9497
        %v9537 = vunpack.c.l.b16 %v9498
        %v9538 = vunpack.c.l.b16 %v9499
        %v9539 = vunpack.c.l.b16 %v9500
        %v9540 = vunpack.c.l.b16 %v9501
        %v9541 = vunpack.c.l.b16 %v9502
        %v9542 = vunpack.c.l.b16 %v9503
        %v9543 = vpack.c.b16 %v9526, %v9525
        %v9544 = vpack.c.b16 %v9528, %v9527
        %v9545 = vpack.c.b16 %v9530, %v9529
        %v9546 = vpack.c.b16 %v9532, %v9531
        %v9547 = vpack.c.b16 %v9534, %v9533
        %v9548 = vpack.c.b16 %v9536, %v9535
        %v9549 = vpack.c.b16 %v9538, %v9537
        %v9550 = vpack.c.b16 %v9540, %v9539
        %v9551 = vpack.c.b16 %v9542, %v9541
        %v9561 = vsel %vm8725, %v9505, 0
        %v9564 = vand.u32 %v9551, %v8731
        %9566 = vmatprep.subr.bf16.mxu0 0
        %9567 = vmatpush1.bf16.msra.mxu0 %v9543
        %9568 = vmatprep.subr.bf16.mxu0 0
        %9569 = vmatpush1.bf16.msra.mxu0 %v9544
        %9570 = vmatprep.subr.bf16.mxu0 0
        %9571 = vmatpush1.bf16.msra.mxu0 %v9545
        %9572 = vmatprep.subr.bf16.mxu0 0
        %9573 = vmatpush1.bf16.msra.mxu0 %v9546
        %9574 = vmatprep.subr.bf16.mxu0 0
        %9575 = vmatpush1.bf16.msra.mxu0 %v9547
        %9576 = vmatprep.subr.bf16.mxu0 0
        %9577 = vmatpush1.bf16.msra.mxu0 %v9548
        %9578 = vmatprep.subr.bf16.mxu0 0
        %9579 = vmatpush1.bf16.msra.mxu0 %v9549
        %9580 = vmatprep.subr.bf16.mxu0 0
        %9581 = vmatpush1.bf16.msra.mxu0 %v9550
        %9582 = vmatprep.subr.bf16.mxu0 0
        %9583 = vmatpush1.bf16.msra.mxu0 %v9564
        %9584 = vmatprep.subr.bf16.mxu0 0
        %9585 = vmatpush1.bf16.msra.mxu0 0
        %9586 = vmatprep.subr.bf16.mxu0 0
        %9587 = vmatpush1.bf16.msra.mxu0 0
        %9588 = vmatprep.subr.bf16.mxu0 0
        %9589 = vmatpush1.bf16.msra.mxu0 0
        %9590 = vmatprep.subr.bf16.mxu0 0
        %9591 = vmatpush1.bf16.msra.mxu0 0
        %9592 = vmatprep.subr.bf16.mxu0 0
        %9593 = vmatpush1.bf16.msra.mxu0 0
        %9594 = vmatprep.subr.bf16.mxu0 0
        %9595 = vmatpush1.bf16.msra.mxu0 0
        %9596 = vmatprep.subr.bf16.mxu0 0
        %9597 = vmatpush1.bf16.msra.mxu0 0
        %9598 = vmatprep.mubr.bf16.mxu0 %v9561
        %9599 = vmatmul.mubr.bf16.gmra.mrb[0].mxu0 %v9504
        %v9600 = vpop.f32.mrb[0].mxu0
        %v9601 = vadd.f32 0.0, %v9600
        %v9602 = vpop.f32.mrb[0].mxu0
        %v9603 = vpop.f32.mrb[0].mxu0
        %v9604 = vpop.f32.mrb[0].mxu0
        %9605 = vdwg.mxu0
        %v9606 = vadd.f32 %v9484, %v9601
        %v9607 = vpack.c.bf16 %v8624, %v8624
        %v9608 = vpack.c.bf16 %v8625, %v8625
        %s9609 = scalar_lea.vmem %s6, 576
        %v9610 = vld [vmem:[%s9609] sm:$0xf]
        %v9611 = vld [vmem:[%s9609 + $0x4] sm:$0xf]
        %v9612 = vld [vmem:[%s9609 + $0x8] sm:$0xf]
        %v9613 = vld [vmem:[%s9609 + $0xc] sm:$0xf]
        %v9614 = vld [vmem:[%s9609 + $0x10] sm:$0xf]
        %v9615 = vld [vmem:[%s9609 + $0x14] sm:$0xf]
        %v9616 = vld [vmem:[%s9609 + $0x18] sm:$0xf]
        %v9617 = vld [vmem:[%s9609 + $0x1c] sm:$0xf]
        %v9618 = vld [vmem:[%s9609 + $0x20] sm:$0xf]
        %v9619 = vld [vmem:[%s9609 + $0x24] sm:$0xf]
        %v9620 = vld [vmem:[%s9609 + $0x28] sm:$0xf]
        %v9621 = vld [vmem:[%s9609 + $0x2c] sm:$0xf]
        %v9622 = vld [vmem:[%s9609 + $0x30] sm:$0xf]
        %v9623 = vld [vmem:[%s9609 + $0x34] sm:$0xf]
        %v9624 = vld [vmem:[%s9609 + $0x38] sm:$0xf]
        %v9625 = vld [vmem:[%s9609 + $0x3c] sm:$0xf]
        %v9626 = vld [vmem:[%s9609 + $0x40] sm:$0xf]
        %v9627 = vld [vmem:[%s9609 + $0x44] sm:$0x1]
        %v9646 = vunpack.c.l.b16 %v9610
        %v9647 = vunpack.c.l.b16 %v9611
        %v9648 = vunpack.c.l.b16 %v9612
        %v9649 = vunpack.c.l.b16 %v9613
        %v9650 = vunpack.c.l.b16 %v9614
        %v9651 = vunpack.c.l.b16 %v9615
        %v9652 = vunpack.c.l.b16 %v9616
        %v9653 = vunpack.c.l.b16 %v9617
        %v9654 = vunpack.c.l.b16 %v9618
        %v9655 = vunpack.c.l.b16 %v9619
        %v9656 = vunpack.c.l.b16 %v9620
        %v9657 = vunpack.c.l.b16 %v9621
        %v9658 = vunpack.c.l.b16 %v9622
        %v9659 = vunpack.c.l.b16 %v9623
        %v9660 = vunpack.c.l.b16 %v9624
        %v9661 = vunpack.c.l.b16 %v9625
        %v9662 = vunpack.c.l.b16 %v9626
        %v9663 = vunpack.c.l.b16 %v9627
        %v9664 = vpack.c.b16 %v9647, %v9646
        %v9665 = vpack.c.b16 %v9649, %v9648
        %v9666 = vpack.c.b16 %v9651, %v9650
        %v9667 = vpack.c.b16 %v9653, %v9652
        %v9668 = vpack.c.b16 %v9655, %v9654
        %v9669 = vpack.c.b16 %v9657, %v9656
        %v9670 = vpack.c.b16 %v9659, %v9658
        %v9671 = vpack.c.b16 %v9661, %v9660
        %v9672 = vpack.c.b16 %v9663, %v9662
        %v9682 = vsel %vm8725, %v9608, 0
        %v9685 = vand.u32 %v9672, %v8731
        %9687 = vmatprep.subr.bf16.mxu0 0
        %9688 = vmatpush1.bf16.msra.mxu0 %v9664
        %9689 = vmatprep.subr.bf16.mxu0 0
        %9690 = vmatpush1.bf16.msra.mxu0 %v9665
        %9691 = vmatprep.subr.bf16.mxu0 0
        %9692 = vmatpush1.bf16.msra.mxu0 %v9666
        %9693 = vmatprep.subr.bf16.mxu0 0
        %9694 = vmatpush1.bf16.msra.mxu0 %v9667
        %9695 = vmatprep.subr.bf16.mxu0 0
        %9696 = vmatpush1.bf16.msra.mxu0 %v9668
        %9697 = vmatprep.subr.bf16.mxu0 0
        %9698 = vmatpush1.bf16.msra.mxu0 %v9669
        %9699 = vmatprep.subr.bf16.mxu0 0
        %9700 = vmatpush1.bf16.msra.mxu0 %v9670
        %9701 = vmatprep.subr.bf16.mxu0 0
        %9702 = vmatpush1.bf16.msra.mxu0 %v9671
        %9703 = vmatprep.subr.bf16.mxu0 0
        %9704 = vmatpush1.bf16.msra.mxu0 %v9685
        %9705 = vmatprep.subr.bf16.mxu0 0
        %9706 = vmatpush1.bf16.msra.mxu0 0
        %9707 = vmatprep.subr.bf16.mxu0 0
        %9708 = vmatpush1.bf16.msra.mxu0 0
        %9709 = vmatprep.subr.bf16.mxu0 0
        %9710 = vmatpush1.bf16.msra.mxu0 0
        %9711 = vmatprep.subr.bf16.mxu0 0
        %9712 = vmatpush1.bf16.msra.mxu0 0
        %9713 = vmatprep.subr.bf16.mxu0 0
        %9714 = vmatpush1.bf16.msra.mxu0 0
        %9715 = vmatprep.subr.bf16.mxu0 0
        %9716 = vmatpush1.bf16.msra.mxu0 0
        %9717 = vmatprep.subr.bf16.mxu0 0
        %9718 = vmatpush1.bf16.msra.mxu0 0
        %9719 = vmatprep.mubr.bf16.mxu0 %v9682
        %9720 = vmatmul.mubr.bf16.gmra.mrb[0].mxu0 %v9607
        %v9721 = vpop.f32.mrb[0].mxu0
        %v9722 = vadd.f32 0.0, %v9721
        %v9723 = vpop.f32.mrb[0].mxu0
        %v9724 = vpop.f32.mrb[0].mxu0
        %v9725 = vpop.f32.mrb[0].mxu0
        %9726 = vdwg.mxu0
        %v9727 = vadd.f32 %v9606, %v9722
        %s9728 = scalar_lea.vmem %s6, 648
        %v9729 = vld [vmem:[%s9728] sm:$0xf]
        %v9730 = vld [vmem:[%s9728 + $0x4] sm:$0xf]
        %v9731 = vld [vmem:[%s9728 + $0x8] sm:$0xf]
        %v9732 = vld [vmem:[%s9728 + $0xc] sm:$0xf]
        %v9733 = vld [vmem:[%s9728 + $0x10] sm:$0xf]
        %v9734 = vld [vmem:[%s9728 + $0x14] sm:$0xf]
        %v9735 = vld [vmem:[%s9728 + $0x18] sm:$0xf]
        %v9736 = vld [vmem:[%s9728 + $0x1c] sm:$0xf]
        %v9737 = vld [vmem:[%s9728 + $0x20] sm:$0xf]
        %v9738 = vld [vmem:[%s9728 + $0x24] sm:$0xf]
        %v9739 = vld [vmem:[%s9728 + $0x28] sm:$0xf]
        %v9740 = vld [vmem:[%s9728 + $0x2c] sm:$0xf]
        %v9741 = vld [vmem:[%s9728 + $0x30] sm:$0xf]
        %v9742 = vld [vmem:[%s9728 + $0x34] sm:$0xf]
        %v9743 = vld [vmem:[%s9728 + $0x38] sm:$0xf]
        %v9744 = vld [vmem:[%s9728 + $0x3c] sm:$0xf]
        %v9745 = vld [vmem:[%s9728 + $0x40] sm:$0xf]
        %v9746 = vld [vmem:[%s9728 + $0x44] sm:$0x1]
        %v9748 = vshrl.u32 %v9607, 16
        %v9750 = vshrl.u32 %v9608, 16
        %v9771 = vunpack.c.l.b16 %v9729
        %v9772 = vunpack.c.l.b16 %v9730
        %v9773 = vunpack.c.l.b16 %v9731
        %v9774 = vunpack.c.l.b16 %v9732
        %v9775 = vunpack.c.l.b16 %v9733
        %v9776 = vunpack.c.l.b16 %v9734
        %v9777 = vunpack.c.l.b16 %v9735
        %v9778 = vunpack.c.l.b16 %v9736
        %v9779 = vunpack.c.l.b16 %v9737
        %v9780 = vunpack.c.l.b16 %v9738
        %v9781 = vunpack.c.l.b16 %v9739
        %v9782 = vunpack.c.l.b16 %v9740
        %v9783 = vunpack.c.l.b16 %v9741
        %v9784 = vunpack.c.l.b16 %v9742
        %v9785 = vunpack.c.l.b16 %v9743
        %v9786 = vunpack.c.l.b16 %v9744
        %v9787 = vunpack.c.l.b16 %v9745
        %v9788 = vunpack.c.l.b16 %v9746
        %v9789 = vpack.c.b16 %v9772, %v9771
        %v9790 = vpack.c.b16 %v9774, %v9773
        %v9791 = vpack.c.b16 %v9776, %v9775
        %v9792 = vpack.c.b16 %v9778, %v9777
        %v9793 = vpack.c.b16 %v9780, %v9779
        %v9794 = vpack.c.b16 %v9782, %v9781
        %v9795 = vpack.c.b16 %v9784, %v9783
        %v9796 = vpack.c.b16 %v9786, %v9785
        %v9797 = vpack.c.b16 %v9788, %v9787
        %v9807 = vsel %vm8725, %v9750, 0
        %v9810 = vand.u32 %v9797, %v8731
        %9812 = vmatprep.subr.bf16.mxu0 0
        %9813 = vmatpush1.bf16.msra.mxu0 %v9789
        %9814 = vmatprep.subr.bf16.mxu0 0
        %9815 = vmatpush1.bf16.msra.mxu0 %v9790
        %9816 = vmatprep.subr.bf16.mxu0 0
        %9817 = vmatpush1.bf16.msra.mxu0 %v9791
        %9818 = vmatprep.subr.bf16.mxu0 0
        %9819 = vmatpush1.bf16.msra.mxu0 %v9792
        %9820 = vmatprep.subr.bf16.mxu0 0
        %9821 = vmatpush1.bf16.msra.mxu0 %v9793
        %9822 = vmatprep.subr.bf16.mxu0 0
        %9823 = vmatpush1.bf16.msra.mxu0 %v9794
        %9824 = vmatprep.subr.bf16.mxu0 0
        %9825 = vmatpush1.bf16.msra.mxu0 %v9795
        %9826 = vmatprep.subr.bf16.mxu0 0
        %9827 = vmatpush1.bf16.msra.mxu0 %v9796
        %9828 = vmatprep.subr.bf16.mxu0 0
        %9829 = vmatpush1.bf16.msra.mxu0 %v9810
        %9830 = vmatprep.subr.bf16.mxu0 0
        %9831 = vmatpush1.bf16.msra.mxu0 0
        %9832 = vmatprep.subr.bf16.mxu0 0
        %9833 = vmatpush1.bf16.msra.mxu0 0
        %9834 = vmatprep.subr.bf16.mxu0 0
        %9835 = vmatpush1.bf16.msra.mxu0 0
        %9836 = vmatprep.subr.bf16.mxu0 0
        %9837 = vmatpush1.bf16.msra.mxu0 0
        %9838 = vmatprep.subr.bf16.mxu0 0
        %9839 = vmatpush1.bf16.msra.mxu0 0
        %9840 = vmatprep.subr.bf16.mxu0 0
        %9841 = vmatpush1.bf16.msra.mxu0 0
        %9842 = vmatprep.subr.bf16.mxu0 0
        %9843 = vmatpush1.bf16.msra.mxu0 0
        %9844 = vmatprep.mubr.bf16.mxu0 %v9807
        %9845 = vmatmul.mubr.bf16.gmra.mrb[0].mxu0 %v9748
        %v9846 = vpop.f32.mrb[0].mxu0
        %v9847 = vadd.f32 0.0, %v9846
        %v9848 = vpop.f32.mrb[0].mxu0
        %v9849 = vpop.f32.mrb[0].mxu0
        %v9850 = vpop.f32.mrb[0].mxu0
        %9851 = vdwg.mxu0
        %v9852 = vadd.f32 %v9727, %v9847
        %s9853 = scalar_lea.vmem %s6, 720
        %v9854 = vld [vmem:[%s9853] sm:$0xf]
        %v9855 = vld [vmem:[%s9853 + $0x4] sm:$0xf]
        %v9856 = vld [vmem:[%s9853 + $0x8] sm:$0xf]
        %v9857 = vld [vmem:[%s9853 + $0xc] sm:$0xf]
        %v9858 = vld [vmem:[%s9853 + $0x10] sm:$0xf]
        %v9859 = vld [vmem:[%s9853 + $0x14] sm:$0xf]
        %v9860 = vld [vmem:[%s9853 + $0x18] sm:$0xf]
        %v9861 = vld [vmem:[%s9853 + $0x1c] sm:$0xf]
        %v9862 = vld [vmem:[%s9853 + $0x20] sm:$0xf]
        %v9863 = vld [vmem:[%s9853 + $0x24] sm:$0xf]
        %v9864 = vld [vmem:[%s9853 + $0x28] sm:$0xf]
        %v9865 = vld [vmem:[%s9853 + $0x2c] sm:$0xf]
        %v9866 = vld [vmem:[%s9853 + $0x30] sm:$0xf]
        %v9867 = vld [vmem:[%s9853 + $0x34] sm:$0xf]
        %v9868 = vld [vmem:[%s9853 + $0x38] sm:$0xf]
        %v9869 = vld [vmem:[%s9853 + $0x3c] sm:$0xf]
        %v9870 = vld [vmem:[%s9853 + $0x40] sm:$0xf]
        %v9871 = vld [vmem:[%s9853 + $0x44] sm:$0x1]
        %v9874 = vrot.slane %v9607, 1
        %v9875 = vrot.slane %v9608, 1
        %v9895 = vunpack.c.l.b16 %v9854
        %v9896 = vunpack.c.l.b16 %v9855
        %v9897 = vunpack.c.l.b16 %v9856
        %v9898 = vunpack.c.l.b16 %v9857
        %v9899 = vunpack.c.l.b16 %v9858
        %v9900 = vunpack.c.l.b16 %v9859
        %v9901 = vunpack.c.l.b16 %v9860
        %v9902 = vunpack.c.l.b16 %v9861
        %v9903 = vunpack.c.l.b16 %v9862
        %v9904 = vunpack.c.l.b16 %v9863
        %v9905 = vunpack.c.l.b16 %v9864
        %v9906 = vunpack.c.l.b16 %v9865
        %v9907 = vunpack.c.l.b16 %v9866
        %v9908 = vunpack.c.l.b16 %v9867
        %v9909 = vunpack.c.l.b16 %v9868
        %v9910 = vunpack.c.l.b16 %v9869
        %v9911 = vunpack.c.l.b16 %v9870
        %v9912 = vunpack.c.l.b16 %v9871
        %v9913 = vpack.c.b16 %v9896, %v9895
        %v9914 = vpack.c.b16 %v9898, %v9897
        %v9915 = vpack.c.b16 %v9900, %v9899
        %v9916 = vpack.c.b16 %v9902, %v9901
        %v9917 = vpack.c.b16 %v9904, %v9903
        %v9918 = vpack.c.b16 %v9906, %v9905
        %v9919 = vpack.c.b16 %v9908, %v9907
        %v9920 = vpack.c.b16 %v9910, %v9909
        %v9921 = vpack.c.b16 %v9912, %v9911
        %v9931 = vsel %vm8725, %v9875, 0
        %v9934 = vand.u32 %v9921, %v8731
        %9936 = vmatprep.subr.bf16.mxu0 0
        %9937 = vmatpush1.bf16.msra.mxu0 %v9913
        %9938 = vmatprep.subr.bf16.mxu0 0
        %9939 = vmatpush1.bf16.msra.mxu0 %v9914
        %9940 = vmatprep.subr.bf16.mxu0 0
        %9941 = vmatpush1.bf16.msra.mxu0 %v9915
        %9942 = vmatprep.subr.bf16.mxu0 0
        %9943 = vmatpush1.bf16.msra.mxu0 %v9916
        %9944 = vmatprep.subr.bf16.mxu0 0
        %9945 = vmatpush1.bf16.msra.mxu0 %v9917
        %9946 = vmatprep.subr.bf16.mxu0 0
        %9947 = vmatpush1.bf16.msra.mxu0 %v9918
        %9948 = vmatprep.subr.bf16.mxu0 0
        %9949 = vmatpush1.bf16.msra.mxu0 %v9919
        %9950 = vmatprep.subr.bf16.mxu0 0
        %9951 = vmatpush1.bf16.msra.mxu0 %v9920
        %9952 = vmatprep.subr.bf16.mxu0 0
        %9953 = vmatpush1.bf16.msra.mxu0 %v9934
        %9954 = vmatprep.subr.bf16.mxu0 0
        %9955 = vmatpush1.bf16.msra.mxu0 0
        %9956 = vmatprep.subr.bf16.mxu0 0
        %9957 = vmatpush1.bf16.msra.mxu0 0
        %9958 = vmatprep.subr.bf16.mxu0 0
        %9959 = vmatpush1.bf16.msra.mxu0 0
        %9960 = vmatprep.subr.bf16.mxu0 0
        %9961 = vmatpush1.bf16.msra.mxu0 0
        %9962 = vmatprep.subr.bf16.mxu0 0
        %9963 = vmatpush1.bf16.msra.mxu0 0
        %9964 = vmatprep.subr.bf16.mxu0 0
        %9965 = vmatpush1.bf16.msra.mxu0 0
        %9966 = vmatprep.subr.bf16.mxu0 0
        %9967 = vmatpush1.bf16.msra.mxu0 0
        %9968 = vmatprep.mubr.bf16.mxu0 %v9931
        %9969 = vmatmul.mubr.bf16.gmra.mrb[0].mxu0 %v9874
        %v9970 = vpop.f32.mrb[0].mxu0
        %v9971 = vadd.f32 0.0, %v9970
        %v9972 = vpop.f32.mrb[0].mxu0
        %v9973 = vpop.f32.mrb[0].mxu0
        %v9974 = vpop.f32.mrb[0].mxu0
        %9975 = vdwg.mxu0
        %v9976 = vadd.f32 %v9852, %v9971
        %s9977 = scalar_lea.vmem %s6, 792
        %v9978 = vld [vmem:[%s9977] sm:$0xf]
        %v9979 = vld [vmem:[%s9977 + $0x4] sm:$0xf]
        %v9980 = vld [vmem:[%s9977 + $0x8] sm:$0xf]
        %v9981 = vld [vmem:[%s9977 + $0xc] sm:$0xf]
        %v9982 = vld [vmem:[%s9977 + $0x10] sm:$0xf]
        %v9983 = vld [vmem:[%s9977 + $0x14] sm:$0xf]
        %v9984 = vld [vmem:[%s9977 + $0x18] sm:$0xf]
        %v9985 = vld [vmem:[%s9977 + $0x1c] sm:$0xf]
        %v9986 = vld [vmem:[%s9977 + $0x20] sm:$0xf]
        %v9987 = vld [vmem:[%s9977 + $0x24] sm:$0xf]
        %v9988 = vld [vmem:[%s9977 + $0x28] sm:$0xf]
        %v9989 = vld [vmem:[%s9977 + $0x2c] sm:$0xf]
        %v9990 = vld [vmem:[%s9977 + $0x30] sm:$0xf]
        %v9991 = vld [vmem:[%s9977 + $0x34] sm:$0xf]
        %v9992 = vld [vmem:[%s9977 + $0x38] sm:$0xf]
        %v9993 = vld [vmem:[%s9977 + $0x3c] sm:$0xf]
        %v9994 = vld [vmem:[%s9977 + $0x40] sm:$0xf]
        %v9995 = vld [vmem:[%s9977 + $0x44] sm:$0x1]
        %v9996 = vrot.slane %v9748, 1
        %v9997 = vrot.slane %v9750, 1
        %v10017 = vunpack.c.l.b16 %v9978
        %v10018 = vunpack.c.l.b16 %v9979
        %v10019 = vunpack.c.l.b16 %v9980
        %v10020 = vunpack.c.l.b16 %v9981
        %v10021 = vunpack.c.l.b16 %v9982
        %v10022 = vunpack.c.l.b16 %v9983
        %v10023 = vunpack.c.l.b16 %v9984
        %v10024 = vunpack.c.l.b16 %v9985
        %v10025 = vunpack.c.l.b16 %v9986
        %v10026 = vunpack.c.l.b16 %v9987
        %v10027 = vunpack.c.l.b16 %v9988
        %v10028 = vunpack.c.l.b16 %v9989
        %v10029 = vunpack.c.l.b16 %v9990
        %v10030 = vunpack.c.l.b16 %v9991
        %v10031 = vunpack.c.l.b16 %v9992
        %v10032 = vunpack.c.l.b16 %v9993
        %v10033 = vunpack.c.l.b16 %v9994
        %v10034 = vunpack.c.l.b16 %v9995
        %v10035 = vpack.c.b16 %v10018, %v10017
        %v10036 = vpack.c.b16 %v10020, %v10019
        %v10037 = vpack.c.b16 %v10022, %v10021
        %v10038 = vpack.c.b16 %v10024, %v10023
        %v10039 = vpack.c.b16 %v10026, %v10025
        %v10040 = vpack.c.b16 %v10028, %v10027
        %v10041 = vpack.c.b16 %v10030, %v10029
        %v10042 = vpack.c.b16 %v10032, %v10031
        %v10043 = vpack.c.b16 %v10034, %v10033
        %v10053 = vsel %vm8725, %v9997, 0
        %v10056 = vand.u32 %v10043, %v8731
        %10058 = vmatprep.subr.bf16.mxu0 0
        %10059 = vmatpush1.bf16.msra.mxu0 %v10035
        %10060 = vmatprep.subr.bf16.mxu0 0
        %10061 = vmatpush1.bf16.msra.mxu0 %v10036
        %10062 = vmatprep.subr.bf16.mxu0 0
        %10063 = vmatpush1.bf16.msra.mxu0 %v10037
        %10064 = vmatprep.subr.bf16.mxu0 0
        %10065 = vmatpush1.bf16.msra.mxu0 %v10038
        %10066 = vmatprep.subr.bf16.mxu0 0
        %10067 = vmatpush1.bf16.msra.mxu0 %v10039
        %10068 = vmatprep.subr.bf16.mxu0 0
        %10069 = vmatpush1.bf16.msra.mxu0 %v10040
        %10070 = vmatprep.subr.bf16.mxu0 0
        %10071 = vmatpush1.bf16.msra.mxu0 %v10041
        %10072 = vmatprep.subr.bf16.mxu0 0
        %10073 = vmatpush1.bf16.msra.mxu0 %v10042
        %10074 = vmatprep.subr.bf16.mxu0 0
        %10075 = vmatpush1.bf16.msra.mxu0 %v10056
        %10076 = vmatprep.subr.bf16.mxu0 0
        %10077 = vmatpush1.bf16.msra.mxu0 0
        %10078 = vmatprep.subr.bf16.mxu0 0
        %10079 = vmatpush1.bf16.msra.mxu0 0
        %10080 = vmatprep.subr.bf16.mxu0 0
        %10081 = vmatpush1.bf16.msra.mxu0 0
        %10082 = vmatprep.subr.bf16.mxu0 0
        %10083 = vmatpush1.bf16.msra.mxu0 0
        %10084 = vmatprep.subr.bf16.mxu0 0
        %10085 = vmatpush1.bf16.msra.mxu0 0
        %10086 = vmatprep.subr.bf16.mxu0 0
        %10087 = vmatpush1.bf16.msra.mxu0 0
        %10088 = vmatprep.subr.bf16.mxu0 0
        %10089 = vmatpush1.bf16.msra.mxu0 0
        %10090 = vmatprep.mubr.bf16.mxu0 %v10053
        %10091 = vmatmul.mubr.bf16.gmra.mrb[0].mxu0 %v9996
        %v10092 = vpop.f32.mrb[0].mxu0
        %v10093 = vadd.f32 0.0, %v10092
        %v10094 = vpop.f32.mrb[0].mxu0
        %v10095 = vpop.f32.mrb[0].mxu0
        %v10096 = vpop.f32.mrb[0].mxu0
        %10097 = vdwg.mxu0
        %v10098 = vadd.f32 %v9976, %v10093
        %s10099 = scalar_lea.vmem %s6, 864
        %v10100 = vld [vmem:[%s10099] sm:$0xf]
        %v10101 = vld [vmem:[%s10099 + $0x4] sm:$0xf]
        %v10102 = vld [vmem:[%s10099 + $0x8] sm:$0xf]
        %v10103 = vld [vmem:[%s10099 + $0xc] sm:$0xf]
        %v10104 = vld [vmem:[%s10099 + $0x10] sm:$0xf]
        %v10105 = vld [vmem:[%s10099 + $0x14] sm:$0xf]
        %v10106 = vld [vmem:[%s10099 + $0x18] sm:$0xf]
        %v10107 = vld [vmem:[%s10099 + $0x1c] sm:$0xf]
        %v10108 = vld [vmem:[%s10099 + $0x20] sm:$0xf]
        %v10109 = vld [vmem:[%s10099 + $0x24] sm:$0xf]
        %v10110 = vld [vmem:[%s10099 + $0x28] sm:$0xf]
        %v10111 = vld [vmem:[%s10099 + $0x2c] sm:$0xf]
        %v10112 = vld [vmem:[%s10099 + $0x30] sm:$0xf]
        %v10113 = vld [vmem:[%s10099 + $0x34] sm:$0xf]
        %v10114 = vld [vmem:[%s10099 + $0x38] sm:$0xf]
        %v10115 = vld [vmem:[%s10099 + $0x3c] sm:$0xf]
        %v10116 = vld [vmem:[%s10099 + $0x40] sm:$0xf]
        %v10117 = vld [vmem:[%s10099 + $0x44] sm:$0x1]
        %v10118 = vrot.slane %v9607, 2
        %v10119 = vrot.slane %v9608, 2
        %v10139 = vunpack.c.l.b16 %v10100
        %v10140 = vunpack.c.l.b16 %v10101
        %v10141 = vunpack.c.l.b16 %v10102
        %v10142 = vunpack.c.l.b16 %v10103
        %v10143 = vunpack.c.l.b16 %v10104
        %v10144 = vunpack.c.l.b16 %v10105
        %v10145 = vunpack.c.l.b16 %v10106
        %v10146 = vunpack.c.l.b16 %v10107
        %v10147 = vunpack.c.l.b16 %v10108
        %v10148 = vunpack.c.l.b16 %v10109
        %v10149 = vunpack.c.l.b16 %v10110
        %v10150 = vunpack.c.l.b16 %v10111
        %v10151 = vunpack.c.l.b16 %v10112
        %v10152 = vunpack.c.l.b16 %v10113
        %v10153 = vunpack.c.l.b16 %v10114
        %v10154 = vunpack.c.l.b16 %v10115
        %v10155 = vunpack.c.l.b16 %v10116
        %v10156 = vunpack.c.l.b16 %v10117
        %v10157 = vpack.c.b16 %v10140, %v10139
        %v10158 = vpack.c.b16 %v10142, %v10141
        %v10159 = vpack.c.b16 %v10144, %v10143
        %v10160 = vpack.c.b16 %v10146, %v10145
        %v10161 = vpack.c.b16 %v10148, %v10147
        %v10162 = vpack.c.b16 %v10150, %v10149
        %v10163 = vpack.c.b16 %v10152, %v10151
        %v10164 = vpack.c.b16 %v10154, %v10153
        %v10165 = vpack.c.b16 %v10156, %v10155
        %v10175 = vsel %vm8725, %v10119, 0
        %v10178 = vand.u32 %v10165, %v8731
        %10180 = vmatprep.subr.bf16.mxu0 0
        %10181 = vmatpush1.bf16.msra.mxu0 %v10157
        %10182 = vmatprep.subr.bf16.mxu0 0
        %10183 = vmatpush1.bf16.msra.mxu0 %v10158
        %10184 = vmatprep.subr.bf16.mxu0 0
        %10185 = vmatpush1.bf16.msra.mxu0 %v10159
        %10186 = vmatprep.subr.bf16.mxu0 0
        %10187 = vmatpush1.bf16.msra.mxu0 %v10160
        %10188 = vmatprep.subr.bf16.mxu0 0
        %10189 = vmatpush1.bf16.msra.mxu0 %v10161
        %10190 = vmatprep.subr.bf16.mxu0 0
        %10191 = vmatpush1.bf16.msra.mxu0 %v10162
        %10192 = vmatprep.subr.bf16.mxu0 0
        %10193 = vmatpush1.bf16.msra.mxu0 %v10163
        %10194 = vmatprep.subr.bf16.mxu0 0
        %10195 = vmatpush1.bf16.msra.mxu0 %v10164
        %10196 = vmatprep.subr.bf16.mxu0 0
        %10197 = vmatpush1.bf16.msra.mxu0 %v10178
        %10198 = vmatprep.subr.bf16.mxu0 0
        %10199 = vmatpush1.bf16.msra.mxu0 0
        %10200 = vmatprep.subr.bf16.mxu0 0
        %10201 = vmatpush1.bf16.msra.mxu0 0
        %10202 = vmatprep.subr.bf16.mxu0 0
        %10203 = vmatpush1.bf16.msra.mxu0 0
        %10204 = vmatprep.subr.bf16.mxu0 0
        %10205 = vmatpush1.bf16.msra.mxu0 0
        %10206 = vmatprep.subr.bf16.mxu0 0
        %10207 = vmatpush1.bf16.msra.mxu0 0
        %10208 = vmatprep.subr.bf16.mxu0 0
        %10209 = vmatpush1.bf16.msra.mxu0 0
        %10210 = vmatprep.subr.bf16.mxu0 0
        %10211 = vmatpush1.bf16.msra.mxu0 0
        %10212 = vmatprep.mubr.bf16.mxu0 %v10175
        %10213 = vmatmul.mubr.bf16.gmra.mrb[0].mxu0 %v10118
        %v10214 = vpop.f32.mrb[0].mxu0
        %v10215 = vadd.f32 0.0, %v10214
        %v10216 = vpop.f32.mrb[0].mxu0
        %v10217 = vpop.f32.mrb[0].mxu0
        %v10218 = vpop.f32.mrb[0].mxu0
        %10219 = vdwg.mxu0
        %v10220 = vadd.f32 %v10098, %v10215
        %s10221 = scalar_lea.vmem %s6, 936
        %v10222 = vld [vmem:[%s10221] sm:$0xf]
        %v10223 = vld [vmem:[%s10221 + $0x4] sm:$0xf]
        %v10224 = vld [vmem:[%s10221 + $0x8] sm:$0xf]
        %v10225 = vld [vmem:[%s10221 + $0xc] sm:$0xf]
        %v10226 = vld [vmem:[%s10221 + $0x10] sm:$0xf]
        %v10227 = vld [vmem:[%s10221 + $0x14] sm:$0xf]
        %v10228 = vld [vmem:[%s10221 + $0x18] sm:$0xf]
        %v10229 = vld [vmem:[%s10221 + $0x1c] sm:$0xf]
        %v10230 = vld [vmem:[%s10221 + $0x20] sm:$0xf]
        %v10231 = vld [vmem:[%s10221 + $0x24] sm:$0xf]
        %v10232 = vld [vmem:[%s10221 + $0x28] sm:$0xf]
        %v10233 = vld [vmem:[%s10221 + $0x2c] sm:$0xf]
        %v10234 = vld [vmem:[%s10221 + $0x30] sm:$0xf]
        %v10235 = vld [vmem:[%s10221 + $0x34] sm:$0xf]
        %v10236 = vld [vmem:[%s10221 + $0x38] sm:$0xf]
        %v10237 = vld [vmem:[%s10221 + $0x3c] sm:$0xf]
        %v10238 = vld [vmem:[%s10221 + $0x40] sm:$0xf]
        %v10239 = vld [vmem:[%s10221 + $0x44] sm:$0x1]
        %v10240 = vrot.slane %v9748, 2
        %v10241 = vrot.slane %v9750, 2
        %v10261 = vunpack.c.l.b16 %v10222
        %v10262 = vunpack.c.l.b16 %v10223
        %v10263 = vunpack.c.l.b16 %v10224
        %v10264 = vunpack.c.l.b16 %v10225
        %v10265 = vunpack.c.l.b16 %v10226
        %v10266 = vunpack.c.l.b16 %v10227
        %v10267 = vunpack.c.l.b16 %v10228
        %v10268 = vunpack.c.l.b16 %v10229
        %v10269 = vunpack.c.l.b16 %v10230
        %v10270 = vunpack.c.l.b16 %v10231
        %v10271 = vunpack.c.l.b16 %v10232
        %v10272 = vunpack.c.l.b16 %v10233
        %v10273 = vunpack.c.l.b16 %v10234
        %v10274 = vunpack.c.l.b16 %v10235
        %v10275 = vunpack.c.l.b16 %v10236
        %v10276 = vunpack.c.l.b16 %v10237
        %v10277 = vunpack.c.l.b16 %v10238
        %v10278 = vunpack.c.l.b16 %v10239
        %v10279 = vpack.c.b16 %v10262, %v10261
        %v10280 = vpack.c.b16 %v10264, %v10263
        %v10281 = vpack.c.b16 %v10266, %v10265
        %v10282 = vpack.c.b16 %v10268, %v10267
        %v10283 = vpack.c.b16 %v10270, %v10269
        %v10284 = vpack.c.b16 %v10272, %v10271
        %v10285 = vpack.c.b16 %v10274, %v10273
        %v10286 = vpack.c.b16 %v10276, %v10275
        %v10287 = vpack.c.b16 %v10278, %v10277
        %v10297 = vsel %vm8725, %v10241, 0
        %v10300 = vand.u32 %v10287, %v8731
        %10302 = vmatprep.subr.bf16.mxu0 0
        %10303 = vmatpush1.bf16.msra.mxu0 %v10279
        %10304 = vmatprep.subr.bf16.mxu0 0
        %10305 = vmatpush1.bf16.msra.mxu0 %v10280
        %10306 = vmatprep.subr.bf16.mxu0 0
        %10307 = vmatpush1.bf16.msra.mxu0 %v10281
        %10308 = vmatprep.subr.bf16.mxu0 0
        %10309 = vmatpush1.bf16.msra.mxu0 %v10282
        %10310 = vmatprep.subr.bf16.mxu0 0
        %10311 = vmatpush1.bf16.msra.mxu0 %v10283
        %10312 = vmatprep.subr.bf16.mxu0 0
        %10313 = vmatpush1.bf16.msra.mxu0 %v10284
        %10314 = vmatprep.subr.bf16.mxu0 0
        %10315 = vmatpush1.bf16.msra.mxu0 %v10285
        %10316 = vmatprep.subr.bf16.mxu0 0
        %10317 = vmatpush1.bf16.msra.mxu0 %v10286
        %10318 = vmatprep.subr.bf16.mxu0 0
        %10319 = vmatpush1.bf16.msra.mxu0 %v10300
        %10320 = vmatprep.subr.bf16.mxu0 0
        %10321 = vmatpush1.bf16.msra.mxu0 0
        %10322 = vmatprep.subr.bf16.mxu0 0
        %10323 = vmatpush1.bf16.msra.mxu0 0
        %10324 = vmatprep.subr.bf16.mxu0 0
        %10325 = vmatpush1.bf16.msra.mxu0 0
        %10326 = vmatprep.subr.bf16.mxu0 0
        %10327 = vmatpush1.bf16.msra.mxu0 0
        %10328 = vmatprep.subr.bf16.mxu0 0
        %10329 = vmatpush1.bf16.msra.mxu0 0
        %10330 = vmatprep.subr.bf16.mxu0 0
        %10331 = vmatpush1.bf16.msra.mxu0 0
        %10332 = vmatprep.subr.bf16.mxu0 0
        %10333 = vmatpush1.bf16.msra.mxu0 0
        %10334 = vmatprep.mubr.bf16.mxu0 %v10297
        %10335 = vmatmul.mubr.bf16.gmra.mrb[0].mxu0 %v10240
        %v10336 = vpop.f32.mrb[0].mxu0
        %v10337 = vadd.f32 0.0, %v10336
        %v10338 = vpop.f32.mrb[0].mxu0
        %v10339 = vpop.f32.mrb[0].mxu0
        %v10340 = vpop.f32.mrb[0].mxu0
        %10341 = vdwg.mxu0
        %v10342 = vadd.f32 %v10220, %v10337
        %s10343 = scalar_lea.vmem %s6, 1008
        %v10344 = vld [vmem:[%s10343] sm:$0xf]
        %v10345 = vld [vmem:[%s10343 + $0x4] sm:$0xf]
        %v10346 = vld [vmem:[%s10343 + $0x8] sm:$0xf]
        %v10347 = vld [vmem:[%s10343 + $0xc] sm:$0xf]
        %v10348 = vld [vmem:[%s10343 + $0x10] sm:$0xf]
        %v10349 = vld [vmem:[%s10343 + $0x14] sm:$0xf]
        %v10350 = vld [vmem:[%s10343 + $0x18] sm:$0xf]
        %v10351 = vld [vmem:[%s10343 + $0x1c] sm:$0xf]
        %v10352 = vld [vmem:[%s10343 + $0x20] sm:$0xf]
        %v10353 = vld [vmem:[%s10343 + $0x24] sm:$0xf]
        %v10354 = vld [vmem:[%s10343 + $0x28] sm:$0xf]
        %v10355 = vld [vmem:[%s10343 + $0x2c] sm:$0xf]
        %v10356 = vld [vmem:[%s10343 + $0x30] sm:$0xf]
        %v10357 = vld [vmem:[%s10343 + $0x34] sm:$0xf]
        %v10358 = vld [vmem:[%s10343 + $0x38] sm:$0xf]
        %v10359 = vld [vmem:[%s10343 + $0x3c] sm:$0xf]
        %v10360 = vld [vmem:[%s10343 + $0x40] sm:$0xf]
        %v10361 = vld [vmem:[%s10343 + $0x44] sm:$0x1]
        %v10362 = vrot.slane %v9607, 3
        %v10363 = vrot.slane %v9608, 3
        %v10383 = vunpack.c.l.b16 %v10344
        %v10384 = vunpack.c.l.b16 %v10345
        %v10385 = vunpack.c.l.b16 %v10346
        %v10386 = vunpack.c.l.b16 %v10347
        %v10387 = vunpack.c.l.b16 %v10348
        %v10388 = vunpack.c.l.b16 %v10349
        %v10389 = vunpack.c.l.b16 %v10350
        %v10390 = vunpack.c.l.b16 %v10351
        %v10391 = vunpack.c.l.b16 %v10352
        %v10392 = vunpack.c.l.b16 %v10353
        %v10393 = vunpack.c.l.b16 %v10354
        %v10394 = vunpack.c.l.b16 %v10355
        %v10395 = vunpack.c.l.b16 %v10356
        %v10396 = vunpack.c.l.b16 %v10357
        %v10397 = vunpack.c.l.b16 %v10358
        %v10398 = vunpack.c.l.b16 %v10359
        %v10399 = vunpack.c.l.b16 %v10360
        %v10400 = vunpack.c.l.b16 %v10361
        %v10401 = vpack.c.b16 %v10384, %v10383
        %v10402 = vpack.c.b16 %v10386, %v10385
        %v10403 = vpack.c.b16 %v10388, %v10387
        %v10404 = vpack.c.b16 %v10390, %v10389
        %v10405 = vpack.c.b16 %v10392, %v10391
        %v10406 = vpack.c.b16 %v10394, %v10393
        %v10407 = vpack.c.b16 %v10396, %v10395
        %v10408 = vpack.c.b16 %v10398, %v10397
        %v10409 = vpack.c.b16 %v10400, %v10399
        %v10419 = vsel %vm8725, %v10363, 0
        %v10422 = vand.u32 %v10409, %v8731
        %10424 = vmatprep.subr.bf16.mxu0 0
        %10425 = vmatpush1.bf16.msra.mxu0 %v10401
        %10426 = vmatprep.subr.bf16.mxu0 0
        %10427 = vmatpush1.bf16.msra.mxu0 %v10402
        %10428 = vmatprep.subr.bf16.mxu0 0
        %10429 = vmatpush1.bf16.msra.mxu0 %v10403
        %10430 = vmatprep.subr.bf16.mxu0 0
        %10431 = vmatpush1.bf16.msra.mxu0 %v10404
        %10432 = vmatprep.subr.bf16.mxu0 0
        %10433 = vmatpush1.bf16.msra.mxu0 %v10405
        %10434 = vmatprep.subr.bf16.mxu0 0
        %10435 = vmatpush1.bf16.msra.mxu0 %v10406
        %10436 = vmatprep.subr.bf16.mxu0 0
        %10437 = vmatpush1.bf16.msra.mxu0 %v10407
        %10438 = vmatprep.subr.bf16.mxu0 0
        %10439 = vmatpush1.bf16.msra.mxu0 %v10408
        %10440 = vmatprep.subr.bf16.mxu0 0
        %10441 = vmatpush1.bf16.msra.mxu0 %v10422
        %10442 = vmatprep.subr.bf16.mxu0 0
        %10443 = vmatpush1.bf16.msra.mxu0 0
        %10444 = vmatprep.subr.bf16.mxu0 0
        %10445 = vmatpush1.bf16.msra.mxu0 0
        %10446 = vmatprep.subr.bf16.mxu0 0
        %10447 = vmatpush1.bf16.msra.mxu0 0
        %10448 = vmatprep.subr.bf16.mxu0 0
        %10449 = vmatpush1.bf16.msra.mxu0 0
        %10450 = vmatprep.subr.bf16.mxu0 0
        %10451 = vmatpush1.bf16.msra.mxu0 0
        %10452 = vmatprep.subr.bf16.mxu0 0
        %10453 = vmatpush1.bf16.msra.mxu0 0
        %10454 = vmatprep.subr.bf16.mxu0 0
        %10455 = vmatpush1.bf16.msra.mxu0 0
        %10456 = vmatprep.mubr.bf16.mxu0 %v10419
        %10457 = vmatmul.mubr.bf16.gmra.mrb[0].mxu0 %v10362
        %v10458 = vpop.f32.mrb[0].mxu0
        %v10459 = vadd.f32 0.0, %v10458
        %v10460 = vpop.f32.mrb[0].mxu0
        %v10461 = vpop.f32.mrb[0].mxu0
        %v10462 = vpop.f32.mrb[0].mxu0
        %10463 = vdwg.mxu0
        %v10464 = vadd.f32 %v10342, %v10459
        %s10465 = scalar_lea.vmem %s6, 1080
        %v10466 = vld [vmem:[%s10465] sm:$0xf]
        %v10467 = vld [vmem:[%s10465 + $0x4] sm:$0xf]
        %v10468 = vld [vmem:[%s10465 + $0x8] sm:$0xf]
        %v10469 = vld [vmem:[%s10465 + $0xc] sm:$0xf]
        %v10470 = vld [vmem:[%s10465 + $0x10] sm:$0xf]
        %v10471 = vld [vmem:[%s10465 + $0x14] sm:$0xf]
        %v10472 = vld [vmem:[%s10465 + $0x18] sm:$0xf]
        %v10473 = vld [vmem:[%s10465 + $0x1c] sm:$0xf]
        %v10474 = vld [vmem:[%s10465 + $0x20] sm:$0xf]
        %v10475 = vld [vmem:[%s10465 + $0x24] sm:$0xf]
        %v10476 = vld [vmem:[%s10465 + $0x28] sm:$0xf]
        %v10477 = vld [vmem:[%s10465 + $0x2c] sm:$0xf]
        %v10478 = vld [vmem:[%s10465 + $0x30] sm:$0xf]
        %v10479 = vld [vmem:[%s10465 + $0x34] sm:$0xf]
        %v10480 = vld [vmem:[%s10465 + $0x38] sm:$0xf]
        %v10481 = vld [vmem:[%s10465 + $0x3c] sm:$0xf]
        %v10482 = vld [vmem:[%s10465 + $0x40] sm:$0xf]
        %v10483 = vld [vmem:[%s10465 + $0x44] sm:$0x1]
        %v10484 = vrot.slane %v9748, 3
        %v10485 = vrot.slane %v9750, 3
        %v10505 = vunpack.c.l.b16 %v10466
        %v10506 = vunpack.c.l.b16 %v10467
        %v10507 = vunpack.c.l.b16 %v10468
        %v10508 = vunpack.c.l.b16 %v10469
        %v10509 = vunpack.c.l.b16 %v10470
        %v10510 = vunpack.c.l.b16 %v10471
        %v10511 = vunpack.c.l.b16 %v10472
        %v10512 = vunpack.c.l.b16 %v10473
        %v10513 = vunpack.c.l.b16 %v10474
        %v10514 = vunpack.c.l.b16 %v10475
        %v10515 = vunpack.c.l.b16 %v10476
        %v10516 = vunpack.c.l.b16 %v10477
        %v10517 = vunpack.c.l.b16 %v10478
        %v10518 = vunpack.c.l.b16 %v10479
        %v10519 = vunpack.c.l.b16 %v10480
        %v10520 = vunpack.c.l.b16 %v10481
        %v10521 = vunpack.c.l.b16 %v10482
        %v10522 = vunpack.c.l.b16 %v10483
        %v10523 = vpack.c.b16 %v10506, %v10505
        %v10524 = vpack.c.b16 %v10508, %v10507
        %v10525 = vpack.c.b16 %v10510, %v10509
        %v10526 = vpack.c.b16 %v10512, %v10511
        %v10527 = vpack.c.b16 %v10514, %v10513
        %v10528 = vpack.c.b16 %v10516, %v10515
        %v10529 = vpack.c.b16 %v10518, %v10517
        %v10530 = vpack.c.b16 %v10520, %v10519
        %v10531 = vpack.c.b16 %v10522, %v10521
        %v10541 = vsel %vm8725, %v10485, 0
        %v10544 = vand.u32 %v10531, %v8731
        %10546 = vmatprep.subr.bf16.mxu0 0
        %10547 = vmatpush1.bf16.msra.mxu0 %v10523
        %10548 = vmatprep.subr.bf16.mxu0 0
        %10549 = vmatpush1.bf16.msra.mxu0 %v10524
        %10550 = vmatprep.subr.bf16.mxu0 0
        %10551 = vmatpush1.bf16.msra.mxu0 %v10525
        %10552 = vmatprep.subr.bf16.mxu0 0
        %10553 = vmatpush1.bf16.msra.mxu0 %v10526
        %10554 = vmatprep.subr.bf16.mxu0 0
        %10555 = vmatpush1.bf16.msra.mxu0 %v10527
        %10556 = vmatprep.subr.bf16.mxu0 0
        %10557 = vmatpush1.bf16.msra.mxu0 %v10528
        %10558 = vmatprep.subr.bf16.mxu0 0
        %10559 = vmatpush1.bf16.msra.mxu0 %v10529
        %10560 = vmatprep.subr.bf16.mxu0 0
        %10561 = vmatpush1.bf16.msra.mxu0 %v10530
        %10562 = vmatprep.subr.bf16.mxu0 0
        %10563 = vmatpush1.bf16.msra.mxu0 %v10544
        %10564 = vmatprep.subr.bf16.mxu0 0
        %10565 = vmatpush1.bf16.msra.mxu0 0
        %10566 = vmatprep.subr.bf16.mxu0 0
        %10567 = vmatpush1.bf16.msra.mxu0 0
        %10568 = vmatprep.subr.bf16.mxu0 0
        %10569 = vmatpush1.bf16.msra.mxu0 0
        %10570 = vmatprep.subr.bf16.mxu0 0
        %10571 = vmatpush1.bf16.msra.mxu0 0
        %10572 = vmatprep.subr.bf16.mxu0 0
        %10573 = vmatpush1.bf16.msra.mxu0 0
        %10574 = vmatprep.subr.bf16.mxu0 0
        %10575 = vmatpush1.bf16.msra.mxu0 0
        %10576 = vmatprep.subr.bf16.mxu0 0
        %10577 = vmatpush1.bf16.msra.mxu0 0
        %10578 = vmatprep.mubr.bf16.mxu0 %v10541
        %10579 = vmatmul.mubr.bf16.gmra.mrb[0].mxu0 %v10484
        %v10580 = vpop.f32.mrb[0].mxu0
        %v10581 = vadd.f32 0.0, %v10580
        %v10582 = vpop.f32.mrb[0].mxu0
        %v10583 = vpop.f32.mrb[0].mxu0
        %v10584 = vpop.f32.mrb[0].mxu0
        %10585 = vdwg.mxu0
        %v10586 = vadd.f32 %v10464, %v10581
        %v10587 = vld [vmem:[%s7] sm:$0x1]
        %v10588 = vadd.f32 %v10586, %v10587
        %v10589 = vmax.f32 %v10588, 0.0
        %v10590 = vpack.c.bf16 %v10589, %v10589
        %v10591 = vld [vmem:[%s8] sm:$0xf]
        %v10592 = vld [vmem:[%s8 + $0x4] sm:$0xf]
        %v10593 = vld [vmem:[%s8 + $0x8] sm:$0xf]
        %v10594 = vld [vmem:[%s8 + $0xc] sm:$0xf]
        %v10595 = vld [vmem:[%s8 + $0x10] sm:$0xf]
        %v10596 = vld [vmem:[%s8 + $0x14] sm:$0xf]
        %v10597 = vld [vmem:[%s8 + $0x18] sm:$0xf]
        %v10598 = vld [vmem:[%s8 + $0x1c] sm:$0xf]
        %v10599 = vld [vmem:[%s8 + $0x20] sm:$0xf]
        %v10600 = vld [vmem:[%s8 + $0x24] sm:$0xf]
        %v10601 = vld [vmem:[%s8 + $0x28] sm:$0xf]
        %v10602 = vld [vmem:[%s8 + $0x2c] sm:$0xf]
        %v10603 = vld [vmem:[%s8 + $0x30] sm:$0xf]
        %v10604 = vld [vmem:[%s8 + $0x34] sm:$0xf]
        %v10605 = vld [vmem:[%s8 + $0x38] sm:$0xf]
        %v10606 = vld [vmem:[%s9] sm:$0x1]
        %v10622 = vunpack.c.l.b16 %v10591
        %v10623 = vunpack.c.l.b16 %v10592
        %v10624 = vunpack.c.l.b16 %v10593
        %v10625 = vunpack.c.l.b16 %v10594
        %v10626 = vunpack.c.l.b16 %v10595
        %v10627 = vunpack.c.l.b16 %v10596
        %v10628 = vunpack.c.l.b16 %v10597
        %v10629 = vunpack.c.l.b16 %v10598
        %v10630 = vunpack.c.l.b16 %v10599
        %v10631 = vunpack.c.l.b16 %v10600
        %v10632 = vunpack.c.l.b16 %v10601
        %v10633 = vunpack.c.l.b16 %v10602
        %v10634 = vunpack.c.l.b16 %v10603
        %v10635 = vunpack.c.l.b16 %v10604
        %v10636 = vunpack.c.l.b16 %v10605
        %v10637 = vpack.c.b16 %v10623, %v10622
        %v10638 = vpack.c.b16 %v10625, %v10624
        %v10639 = vpack.c.b16 %v10627, %v10626
        %v10640 = vpack.c.b16 %v10629, %v10628
        %v10641 = vpack.c.b16 %v10631, %v10630
        %v10642 = vpack.c.b16 %v10633, %v10632
        %v10643 = vpack.c.b16 %v10635, %v10634
        %v10644 = vpack.c.b16 %v10636, %v10636
        %vm10652 = vcmask 982016
        %v10654 = vsel %vm10652, %v10590, 0
        %v10657 = vsel %vm8729, %v10644, 0
        %10659 = vmatprep.subr.bf16.mxu0 0
        %10660 = vmatpush1.bf16.msra.mxu0 %v10637
        %10661 = vmatprep.subr.bf16.mxu0 0
        %10662 = vmatpush1.bf16.msra.mxu0 %v10638
        %10663 = vmatprep.subr.bf16.mxu0 0
        %10664 = vmatpush1.bf16.msra.mxu0 %v10639
        %10665 = vmatprep.subr.bf16.mxu0 0
        %10666 = vmatpush1.bf16.msra.mxu0 %v10640
        %10667 = vmatprep.subr.bf16.mxu0 0
        %10668 = vmatpush1.bf16.msra.mxu0 %v10641
        %10669 = vmatprep.subr.bf16.mxu0 0
        %10670 = vmatpush1.bf16.msra.mxu0 %v10642
        %10671 = vmatprep.subr.bf16.mxu0 0
        %10672 = vmatpush1.bf16.msra.mxu0 %v10643
        %10673 = vmatprep.subr.bf16.mxu0 0
        %10674 = vmatpush1.bf16.msra.mxu0 %v10657
        %10675 = vmatprep.subr.bf16.mxu0 0
        %10676 = vmatpush1.bf16.msra.mxu0 0
        %10677 = vmatprep.subr.bf16.mxu0 0
        %10678 = vmatpush1.bf16.msra.mxu0 0
        %10679 = vmatprep.subr.bf16.mxu0 0
        %10680 = vmatpush1.bf16.msra.mxu0 0
        %10681 = vmatprep.subr.bf16.mxu0 0
        %10682 = vmatpush1.bf16.msra.mxu0 0
        %10683 = vmatprep.subr.bf16.mxu0 0
        %10684 = vmatpush1.bf16.msra.mxu0 0
        %10685 = vmatprep.subr.bf16.mxu0 0
        %10686 = vmatpush1.bf16.msra.mxu0 0
        %10687 = vmatprep.subr.bf16.mxu0 0
        %10688 = vmatpush1.bf16.msra.mxu0 0
        %10689 = vmatprep.subr.bf16.mxu0 0
        %10690 = vmatpush1.bf16.msra.mxu0 0
        %10691 = vmatprep.mubr.bf16.mxu0 0
        %10692 = vmatmul.mubr.bf16.gmra.mrb[0].mxu0 %v10654
        %v10693 = vpop.f32.mrb[0].mxu0
        %v10694 = vadd.f32 %v10606, %v10693
        %v10695 = vpop.f32.mrb[0].mxu0
        %v10696 = vpop.f32.mrb[0].mxu0
        %v10697 = vpop.f32.mrb[0].mxu0
        %10698 = vdwg.mxu0
        %v10699 = vmax.f32 %v10694, 0.0
        %v10700 = vpack.c.bf16 %v10699, %v10699
        %v10701 = vld [vmem:[%s10] sm:$0xf]
        %v10702 = vld [vmem:[%s10 + $0x4] sm:$0xf]
        %v10703 = vld [vmem:[%s10 + $0x8] sm:$0xf]
        %v10704 = vld [vmem:[%s10 + $0xc] sm:$0xf]
        %v10705 = vld [vmem:[%s10 + $0x10] sm:$0xf]
        %v10706 = vld [vmem:[%s10 + $0x14] sm:$0xf]
        %v10707 = vld [vmem:[%s10 + $0x18] sm:$0xf]
        %v10708 = vld [vmem:[%s10 + $0x1c] sm:$0xf]
        %v10709 = vld [vmem:[%s10 + $0x20] sm:$0xf]
        %v10710 = vld [vmem:[%s10 + $0x24] sm:$0xf]
        %v10711 = vld [vmem:[%s10 + $0x28] sm:$0x3]
        %v10712 = vld [vmem:[%s11] sm:$0x1]
        %v10724 = vunpack.c.l.b16 %v10701
        %v10725 = vunpack.c.l.b16 %v10702
        %v10726 = vunpack.c.l.b16 %v10703
        %v10727 = vunpack.c.l.b16 %v10704
        %v10728 = vunpack.c.l.b16 %v10705
        %v10729 = vunpack.c.l.b16 %v10706
        %v10730 = vunpack.c.l.b16 %v10707
        %v10731 = vunpack.c.l.b16 %v10708
        %v10732 = vunpack.c.l.b16 %v10709
        %v10733 = vunpack.c.l.b16 %v10710
        %v10734 = vunpack.c.l.b16 %v10711
        %v10735 = vpack.c.b16 %v10725, %v10724
        %v10736 = vpack.c.b16 %v10727, %v10726
        %v10737 = vpack.c.b16 %v10729, %v10728
        %v10738 = vpack.c.b16 %v10731, %v10730
        %v10739 = vpack.c.b16 %v10733, %v10732
        %v10740 = vpack.c.b16 %v10734, %v10734
        %vm10746 = vcmask 687104
        %v10748 = vsel %vm10746, %v10700, 0
        %v10751 = vsel %vm469, %v10740, 0
        %10753 = vmatprep.subr.bf16.mxu0 0
        %10754 = vmatpush1.bf16.msra.mxu0 %v10735
        %10755 = vmatprep.subr.bf16.mxu0 0
        %10756 = vmatpush1.bf16.msra.mxu0 %v10736
        %10757 = vmatprep.subr.bf16.mxu0 0
        %10758 = vmatpush1.bf16.msra.mxu0 %v10737
        %10759 = vmatprep.subr.bf16.mxu0 0
        %10760 = vmatpush1.bf16.msra.mxu0 %v10738
        %10761 = vmatprep.subr.bf16.mxu0 0
        %10762 = vmatpush1.bf16.msra.mxu0 %v10739
        %10763 = vmatprep.subr.bf16.mxu0 0
        %10764 = vmatpush1.bf16.msra.mxu0 %v10751
        %10765 = vmatprep.subr.bf16.mxu0 0
        %10766 = vmatpush1.bf16.msra.mxu0 0
        %10767 = vmatprep.subr.bf16.mxu0 0
        %10768 = vmatpush1.bf16.msra.mxu0 0
        %10769 = vmatprep.subr.bf16.mxu0 0
        %10770 = vmatpush1.bf16.msra.mxu0 0
        %10771 = vmatprep.subr.bf16.mxu0 0
        %10772 = vmatpush1.bf16.msra.mxu0 0
        %10773 = vmatprep.subr.bf16.mxu0 0
        %10774 = vmatpush1.bf16.msra.mxu0 0
        %10775 = vmatprep.subr.bf16.mxu0 0
        %10776 = vmatpush1.bf16.msra.mxu0 0
        %10777 = vmatprep.subr.bf16.mxu0 0
        %10778 = vmatpush1.bf16.msra.mxu0 0
        %10779 = vmatprep.subr.bf16.mxu0 0
        %10780 = vmatpush1.bf16.msra.mxu0 0
        %10781 = vmatprep.subr.bf16.mxu0 0
        %10782 = vmatpush1.bf16.msra.mxu0 0
        %10783 = vmatprep.subr.bf16.mxu0 0
        %10784 = vmatpush1.bf16.msra.mxu0 0
        %10785 = vmatprep.mubr.bf16.mxu0 0
        %10786 = vmatmul.mubr.bf16.gmra.mrb[0].mxu0 %v10748
        %v10787 = vpop.f32.mrb[0].mxu0
        %v10788 = vadd.f32 %v10712, %v10787
        %v10789 = vpop.f32.mrb[0].mxu0
        %v10790 = vpop.f32.mrb[0].mxu0
        %v10791 = vpop.f32.mrb[0].mxu0
        %10792 = vdwg.mxu0
        %10793 = vst [vmem:[%s405] sm:$0x1] %v10788
        %s10794 = sand.u32 %s291, 1
        %s10795 = scalar_lea.sflag [#allocation3], %s10794
        %s10796 = sand.u32 %s291, 1
        %s10797 = scalar_lea.vmem [#allocation2], %s10796
        // Predicated region
        $region69: #{toy_forward.1} parent=67 // pred_check
          %p10798 = pneg %p301
        $region70: #{toy_forward.1} parent=67 // pred_check_branch
          %10800 = sbr.rel (%p10798) target = $region72
        $region71: #{toy_forward.1} parent=67 // pred_region
          %s10802 = ssub.s32 16, 16
          %10803 = vsyncadd %s10795, %s10802
          %s10804 = smul.addr %s26, 16
          %s10805 = scalar_lea.hbm %s12, %s10804
          %s10807 = sshll.u32 %s10797, 4
          %s10808 = int_to_ptr.vmem [resolvable:$true] %s10807
          %10810 = dma.vmem_to_hbm [thread:$0]  %s10808, 16, %s10805, %s10795
        $region72: #{toy_forward.1} parent=67 // pred_fallthru
          _
      $region68: #{toy_forward.1} parent=5 // pred_fallthru
        _
      %p10811 = scmp.le.s32.totalorder 2, %s21
      // Predicated region
      $region73: #{toy_forward.1} parent=5 // pred_check
        %p10812 = pneg %p10811
      $region74: #{toy_forward.1} parent=5 // pred_check_branch
        %10814 = sbr.rel (%p10812) target = $region76
      $region75: #{toy_forward.1} parent=5 // pred_region
        %s10815 = ssub.s32 %s21, 2
        // Predicated region
        $region77: #{toy_forward.1} parent=75 // pred_check
          %p10816 = pneg %p307
        $region78: #{toy_forward.1} parent=75 // pred_check_branch
          %10818 = sbr.rel (%p10816) target = $region80
        $region79: #{toy_forward.1} parent=75 // pred_region
          %s10819 = sand.u32 %s292, 1
          %s10820 = scalar_lea.sflag [#allocation3], %s10819
          %s10821 = sand.u32 %s292, 1
          %s10822 = scalar_lea.vmem [#allocation2], %s10821
          %10823 = dma.done %s10820, 16
        $region80: #{toy_forward.1} parent=75 // pred_fallthru
          _
      $region76: #{toy_forward.1} parent=5 // pred_fallthru
        _
    $region6: #{toy_forward.1} parent=1 // loop_footer
      %s25 = sadd.s32 1, %s21
    $region7: #{toy_forward.1} parent=1 // loop_footer_branch
      %20 = sbr.rel target = $region3
    $region8: #{toy_forward.1} parent=1 // loop_exit
      _
    %10824 = vsyncpa [#allocation3], 1
    %s10825 = scalar_lea.sflag [#allocation3], 1
    %10826 = vsyncpa %s10825, 1

</llo_original>
